<compile_context>
chip_gen: v6e
topology: v6e:2x2x1
jax: 0.10.0
libtpu: 0.0.40
codegen_flags: <defaults>
</compile_context>

<pallas_src>
import functools

import jax
import jax.numpy as jnp
from jax import lax
from jax.experimental import pallas as pl
from jax.experimental.pallas import tpu as pltpu


def _conv3x3_im2col(x_pad_f32, w_slab_ref, H, W):
    """3x3 'same' conv as a single K=9*Cin MXU contraction, transposed layout.

    x_pad_f32 : (Cin, H+2, W+2) float32, zero-padded input.
    w_slab_ref: (Cout, 9*Cin) bf16 VMEM ref, column order (dy*3+dx)*Cin + c.
    returns   : (Cout, H*W) float32 pre-activation.
    """
    cin = x_pad_f32.shape[0]
    patches = []
    for dy in range(3):
        for dx in range(3):
            patches.append(
                x_pad_f32[:, dy:dy + H, dx:dx + W].reshape(cin, H * W))
    # (9*Cin, H*W) im2col stack; cast to bf16 only for the MXU operands.
    stacked = jnp.concatenate(patches, axis=0).astype(jnp.bfloat16)
    return jnp.dot(w_slab_ref[...], stacked,
                   preferred_element_type=jnp.float32)


def _disc_kernel(xp_ref, w1_ref, w2_ref, w3_ref, logits_ref, loss_ref, acc_ref,
                 *, H, W, n_images, target):
    b = pl.program_id(0)
    C2 = w1_ref.shape[0]
    HW = H * W

    # ---- conv1 (C -> C/2) + ReLU, (Cout, H*W) layout ----
    x = xp_ref[0].astype(jnp.float32)                          # (C, H+2, W+2)
    h1 = jnp.maximum(_conv3x3_im2col(x, w1_ref, H, W), 0.0)    # (C2, HW) f32

    # ---- re-apply the zero padding ring for the second 'same' conv ----
    h1g = h1.reshape(C2, H, W)
    zc = jnp.zeros((C2, H, 1), jnp.float32)
    zr = jnp.zeros((C2, 1, W + 2), jnp.float32)
    h1p = jnp.concatenate(
        [zr, jnp.concatenate([zc, h1g, zc], axis=2), zr], axis=1)  # (C2,H+2,W+2)

    # ---- conv2 (C/2 -> C/4) + ReLU ----
    h2 = jnp.maximum(_conv3x3_im2col(h1p, w2_ref, H, W), 0.0)  # (C4, HW) f32

    # ---- 1x1 conv (C/4 -> 1): weighted channel sum on the VPU/XLU ----
    logits = jnp.sum(h2 * w3_ref[...], axis=0, keepdims=True)  # (1, HW) f32
    logits_ref[...] = logits.reshape(1, 1, HW).astype(logits_ref.dtype)

    # ---- BCE with logits (stable form), summed per image, accumulated ----
    # loss_elem = max(z,0) - z*t + log(1 + exp(-|z|)); the log argument is in
    # (1, 2] so plain log is well conditioned here.
    t = jnp.float32(target)
    per = (jnp.maximum(logits, 0.0) - logits * t
           + jnp.log(1.0 + jnp.exp(-jnp.abs(logits))))
    part = jnp.sum(per, axis=1, keepdims=True)                 # (1, 1)

    @pl.when(b == 0)
    def _():
        acc_ref[...] = jnp.zeros_like(acc_ref)

    acc_ref[...] += part

    @pl.when(b == n_images - 1)
    def _():
        loss_ref[...] = acc_ref[...] * (1.0 / (n_images * HW))


def image_domain_discriminator(x_nchw, w1, w2, w3, *, domain_target=False,
                               alpha=1.0):
    """Forward pass matching ImageDomainDiscriminator.forward (PyTorch).

    x_nchw: (B, C, H, W); w1: (3,3,C,C/2) HWIO; w2: (3,3,C/2,C/4) HWIO;
    w3: (C/4, 1) (the 1x1 conv weight).
    """
    del alpha  # GradReverse: forward is identity; alpha only scales gradients.
    B, C, H, W = x_nchw.shape
    C2, C4 = w1.shape[-1], w2.shape[-1]
    HW = H * W

    # bf16 activations/weights in HBM (halves HBM traffic); f32 accum in-kernel.
    xp = jnp.pad(x_nchw.astype(jnp.bfloat16),
                 ((0, 0), (0, 0), (1, 1), (1, 1)))              # (B, C, H+2, W+2)
    # (Cout, 9*Cin) weight slabs matching the kernel's im2col stacking order.
    w1s = jnp.transpose(w1, (3, 0, 1, 2)).reshape(C2, 9 * C).astype(jnp.bfloat16)
    w2s = jnp.transpose(w2, (3, 0, 1, 2)).reshape(C4, 9 * C2).astype(jnp.bfloat16)
    w3c = w3.reshape(C4, 1).astype(jnp.float32)

    kernel = functools.partial(_disc_kernel, H=H, W=W, n_images=B,
                               target=1.0 if domain_target else 0.0)

    logits_flat, loss = pl.pallas_call(
        kernel,
        grid=(B,),
        in_specs=[
            pl.BlockSpec((1, C, H + 2, W + 2), lambda b: (b, 0, 0, 0)),
            pl.BlockSpec((C2, 9 * C), lambda b: (0, 0)),
            pl.BlockSpec((C4, 9 * C2), lambda b: (0, 0)),
            pl.BlockSpec((C4, 1), lambda b: (0, 0)),
        ],
        out_specs=(
            pl.BlockSpec((1, 1, HW), lambda b: (b, 0, 0)),   # lane-dense logits
            pl.BlockSpec((1, 1), lambda b: (0, 0)),          # resident loss acc
        ),
        out_shape=(
            jax.ShapeDtypeStruct((B, 1, HW), jnp.float32),
            jax.ShapeDtypeStruct((1, 1), jnp.float32),
        ),
        scratch_shapes=[pltpu.VMEM((1, 1), jnp.float32)],
        compiler_params=pltpu.CompilerParams(
            dimension_semantics=("arbitrary",)),
    )(xp, w1s, w2s, w3c)

    logits = logits_flat.reshape(B, 1, H, W)                  # already NCHW
    return {"loss_image_d": loss[0, 0], "logits": logits}


def _reference(x_nchw, w1, w2, w3, domain_target):
    """Pure-JAX (XLA conv) reference for correctness checking."""
    dn = ("NCHW", "HWIO", "NCHW")
    x = x_nchw.astype(jnp.float32)
    h1 = jax.nn.relu(lax.conv_general_dilated(x, w1, (1, 1), "SAME",
                                              dimension_numbers=dn))
    h2 = jax.nn.relu(lax.conv_general_dilated(h1, w2, (1, 1), "SAME",
                                              dimension_numbers=dn))
    w3_hwio = w3.reshape(1, 1, w3.shape[0], w3.shape[1])
    logits = lax.conv_general_dilated(h2, w3_hwio, (1, 1), "SAME",
                                      dimension_numbers=dn)
    t = jnp.float32(1.0 if domain_target else 0.0)
    per = (jnp.maximum(logits, 0.0) - logits * t
           + jnp.log1p(jnp.exp(-jnp.abs(logits))))
    return jnp.mean(per), logits


if __name__ == "__main__":
    key = jax.random.PRNGKey(0)
    kx, k1, k2, k3 = jax.random.split(key, 4)

    # Small shapes consistent with the module (in_channels divisible by 4).
    B, C, H, W = 2, 16, 16, 16
    C2, C4 = C // 2, C // 4

    x = jax.random.normal(kx, (B, C, H, W), jnp.float32)
    # HWIO conv weights (PyTorch would store OIHW: (C2,C,3,3), (C4,C2,3,3),
    # (1,C4,1,1)); deterministic synthetic values.
    w1 = 0.1 * jax.random.normal(k1, (3, 3, C, C2), jnp.float32)
    w2 = 0.1 * jax.random.normal(k2, (3, 3, C2, C4), jnp.float32)
    w3 = 0.1 * jax.random.normal(k3, (C4, 1), jnp.float32)

    out = image_domain_discriminator(x, w1, w2, w3, domain_target=False)
    jax.block_until_ready(out)

    ref_loss, ref_logits = _reference(x, w1, w2, w3, False)
    assert out["logits"].shape == (B, 1, H, W)
    # bf16 MXU operands -> slightly loosened tolerances vs the f32 reference.
    assert jnp.allclose(out["logits"], ref_logits, atol=2e-2, rtol=2e-2), \
        float(jnp.max(jnp.abs(out["logits"] - ref_logits)))
    assert jnp.allclose(out["loss_image_d"], ref_loss, atol=5e-3), \
        (float(out["loss_image_d"]), float(ref_loss))

    # domain_target=True branch (different static BCE target).
    out_t = image_domain_discriminator(x, w1, w2, w3, domain_target=True)
    jax.block_until_ready(out_t)
    ref_loss_t, _ = _reference(x, w1, w2, w3, True)
    assert jnp.allclose(out_t["loss_image_d"], ref_loss_t, atol=5e-3), \
        (float(out_t["loss_image_d"]), float(ref_loss_t))

    print("KERNEL_OK")
</pallas_src>

<mosaic_0001>
module attributes {stable_mosaic.version = 11 : i64} {
  func.func @_disc_kernel(%arg0: i32, %arg1: memref<1x16x18x18xbf16, #tpu.memory_space<vmem>>, %arg2: memref<8x144xbf16, #tpu.memory_space<vmem>>, %arg3: memref<4x72xbf16, #tpu.memory_space<vmem>>, %arg4: memref<4x1xf32, #tpu.memory_space<vmem>>, %arg5: memref<1x1x256xf32, #tpu.memory_space<vmem>>, %arg6: memref<1x1xf32, #tpu.memory_space<vmem>>, %arg7: memref<1x1xf32, #tpu.memory_space<vmem>>) attributes {dimension_semantics = [#tpu.dimension_semantics<arbitrary>], iteration_bounds = array<i64: 2>, scalar_prefetch = 0 : i64, scratch_operands = 1 : i64, tpu.core_type = #tpu.core_type<tc>, window_params = [{transform_indices = @transform_0, window_bounds = array<i64: 1, 16, 18, 18>}, {pipeline_mode = #tpu.pipeline_mode<synchronous>, transform_indices = @transform_1, window_bounds = array<i64: 8, 144>}, {pipeline_mode = #tpu.pipeline_mode<synchronous>, transform_indices = @transform_2, window_bounds = array<i64: 4, 72>}, {pipeline_mode = #tpu.pipeline_mode<synchronous>, transform_indices = @transform_3, window_bounds = array<i64: 4, 1>}, {transform_indices = @transform_4, window_bounds = array<i64: 1, 1, 256>}, {pipeline_mode = #tpu.pipeline_mode<synchronous>, transform_indices = @transform_5, window_bounds = array<i64: 1, 1>}]} {
    %c0 = arith.constant 0 : index
    %c0_0 = arith.constant 0 : index
    %c0_1 = arith.constant 0 : index
    %c0_2 = arith.constant 0 : index
    %0 = vector.load %arg1[%c0, %c0_0, %c0_1, %c0_2] : memref<1x16x18x18xbf16, #tpu.memory_space<vmem>>, vector<1x16x18x18xbf16>
    %1 = vector.shape_cast %0 : vector<1x16x18x18xbf16> to vector<16x18x18xbf16>
    %2 = arith.extf %1 : vector<16x18x18xbf16> to vector<16x18x18xf32>
    %3 = vector.extract_strided_slice %2 {offsets = [0, 0, 0], sizes = [16, 16, 16], strides = [1, 1, 1]} : vector<16x18x18xf32> to vector<16x16x16xf32>
    %4 = vector.shape_cast %3 : vector<16x16x16xf32> to vector<16x256xf32>
    %5 = vector.extract_strided_slice %2 {offsets = [0, 0, 1], sizes = [16, 16, 16], strides = [1, 1, 1]} : vector<16x18x18xf32> to vector<16x16x16xf32>
    %6 = vector.shape_cast %5 : vector<16x16x16xf32> to vector<16x256xf32>
    %7 = vector.extract_strided_slice %2 {offsets = [0, 0, 2], sizes = [16, 16, 16], strides = [1, 1, 1]} : vector<16x18x18xf32> to vector<16x16x16xf32>
    %8 = vector.shape_cast %7 : vector<16x16x16xf32> to vector<16x256xf32>
    %9 = vector.extract_strided_slice %2 {offsets = [0, 1, 0], sizes = [16, 16, 16], strides = [1, 1, 1]} : vector<16x18x18xf32> to vector<16x16x16xf32>
    %10 = vector.shape_cast %9 : vector<16x16x16xf32> to vector<16x256xf32>
    %11 = vector.extract_strided_slice %2 {offsets = [0, 1, 1], sizes = [16, 16, 16], strides = [1, 1, 1]} : vector<16x18x18xf32> to vector<16x16x16xf32>
    %12 = vector.shape_cast %11 : vector<16x16x16xf32> to vector<16x256xf32>
    %13 = vector.extract_strided_slice %2 {offsets = [0, 1, 2], sizes = [16, 16, 16], strides = [1, 1, 1]} : vector<16x18x18xf32> to vector<16x16x16xf32>
    %14 = vector.shape_cast %13 : vector<16x16x16xf32> to vector<16x256xf32>
    %15 = vector.extract_strided_slice %2 {offsets = [0, 2, 0], sizes = [16, 16, 16], strides = [1, 1, 1]} : vector<16x18x18xf32> to vector<16x16x16xf32>
    %16 = vector.shape_cast %15 : vector<16x16x16xf32> to vector<16x256xf32>
    %17 = vector.extract_strided_slice %2 {offsets = [0, 2, 1], sizes = [16, 16, 16], strides = [1, 1, 1]} : vector<16x18x18xf32> to vector<16x16x16xf32>
    %18 = vector.shape_cast %17 : vector<16x16x16xf32> to vector<16x256xf32>
    %19 = vector.extract_strided_slice %2 {offsets = [0, 2, 2], sizes = [16, 16, 16], strides = [1, 1, 1]} : vector<16x18x18xf32> to vector<16x16x16xf32>
    %20 = vector.shape_cast %19 : vector<16x16x16xf32> to vector<16x256xf32>
    %21 = tpu.concatenate %4, %6, %8, %10, %12, %14, %16, %18, %20 in 0 : vector<16x256xf32>, vector<16x256xf32>, vector<16x256xf32>, vector<16x256xf32>, vector<16x256xf32>, vector<16x256xf32>, vector<16x256xf32>, vector<16x256xf32>, vector<16x256xf32> -> vector<144x256xf32>
    %22 = arith.truncf %21 : vector<144x256xf32> to vector<144x256xbf16>
    %c0_3 = arith.constant 0 : index
    %c0_4 = arith.constant 0 : index
    %23 = vector.load %arg2[%c0_3, %c0_4] : memref<8x144xbf16, #tpu.memory_space<vmem>>, vector<8x144xbf16>
    %cst = arith.constant dense<0.000000e+00> : vector<8x256xf32>
    %24 = tpu.matmul %23, %22, %cst {dimension_numbers = #tpu.dot_dimension_numbers<[1], [0], [0], [1], [0, 0, 1, 1], [], []>} : vector<8x144xbf16>, vector<144x256xbf16>, vector<8x256xf32> -> vector<8x256xf32>
    %cst_5 = arith.constant 0.000000e+00 : f32
    %25 = vector.broadcast %cst_5 : f32 to vector<8x256xf32>
    %26 = arith.maximumf %24, %25 : vector<8x256xf32>
    %27 = vector.shape_cast %26 : vector<8x256xf32> to vector<8x16x16xf32>
    %cst_6 = arith.constant 0.000000e+00 : f32
    %28 = vector.broadcast %cst_6 : f32 to vector<8x16x1xf32>
    %cst_7 = arith.constant 0.000000e+00 : f32
    %29 = vector.broadcast %cst_7 : f32 to vector<8x1x18xf32>
    %30 = tpu.concatenate %28, %27, %28 in 2 : vector<8x16x1xf32>, vector<8x16x16xf32>, vector<8x16x1xf32> -> vector<8x16x18xf32>
    %31 = tpu.concatenate %29, %30, %29 in 1 : vector<8x1x18xf32>, vector<8x16x18xf32>, vector<8x1x18xf32> -> vector<8x18x18xf32>
    %32 = vector.extract_strided_slice %31 {offsets = [0, 0, 0], sizes = [8, 16, 16], strides = [1, 1, 1]} : vector<8x18x18xf32> to vector<8x16x16xf32>
    %33 = vector.shape_cast %32 : vector<8x16x16xf32> to vector<8x256xf32>
    %34 = vector.extract_strided_slice %31 {offsets = [0, 0, 1], sizes = [8, 16, 16], strides = [1, 1, 1]} : vector<8x18x18xf32> to vector<8x16x16xf32>
    %35 = vector.shape_cast %34 : vector<8x16x16xf32> to vector<8x256xf32>
    %36 = vector.extract_strided_slice %31 {offsets = [0, 0, 2], sizes = [8, 16, 16], strides = [1, 1, 1]} : vector<8x18x18xf32> to vector<8x16x16xf32>
    %37 = vector.shape_cast %36 : vector<8x16x16xf32> to vector<8x256xf32>
    %38 = vector.extract_strided_slice %31 {offsets = [0, 1, 0], sizes = [8, 16, 16], strides = [1, 1, 1]} : vector<8x18x18xf32> to vector<8x16x16xf32>
    %39 = vector.shape_cast %38 : vector<8x16x16xf32> to vector<8x256xf32>
    %40 = vector.extract_strided_slice %31 {offsets = [0, 1, 1], sizes = [8, 16, 16], strides = [1, 1, 1]} : vector<8x18x18xf32> to vector<8x16x16xf32>
    %41 = vector.shape_cast %40 : vector<8x16x16xf32> to vector<8x256xf32>
    %42 = vector.extract_strided_slice %31 {offsets = [0, 1, 2], sizes = [8, 16, 16], strides = [1, 1, 1]} : vector<8x18x18xf32> to vector<8x16x16xf32>
    %43 = vector.shape_cast %42 : vector<8x16x16xf32> to vector<8x256xf32>
    %44 = vector.extract_strided_slice %31 {offsets = [0, 2, 0], sizes = [8, 16, 16], strides = [1, 1, 1]} : vector<8x18x18xf32> to vector<8x16x16xf32>
    %45 = vector.shape_cast %44 : vector<8x16x16xf32> to vector<8x256xf32>
    %46 = vector.extract_strided_slice %31 {offsets = [0, 2, 1], sizes = [8, 16, 16], strides = [1, 1, 1]} : vector<8x18x18xf32> to vector<8x16x16xf32>
    %47 = vector.shape_cast %46 : vector<8x16x16xf32> to vector<8x256xf32>
    %48 = vector.extract_strided_slice %31 {offsets = [0, 2, 2], sizes = [8, 16, 16], strides = [1, 1, 1]} : vector<8x18x18xf32> to vector<8x16x16xf32>
    %49 = vector.shape_cast %48 : vector<8x16x16xf32> to vector<8x256xf32>
    %50 = tpu.concatenate %33, %35, %37, %39, %41, %43, %45, %47, %49 in 0 : vector<8x256xf32>, vector<8x256xf32>, vector<8x256xf32>, vector<8x256xf32>, vector<8x256xf32>, vector<8x256xf32>, vector<8x256xf32>, vector<8x256xf32>, vector<8x256xf32> -> vector<72x256xf32>
    %51 = arith.truncf %50 : vector<72x256xf32> to vector<72x256xbf16>
    %c0_8 = arith.constant 0 : index
    %c0_9 = arith.constant 0 : index
    %52 = vector.load %arg3[%c0_8, %c0_9] : memref<4x72xbf16, #tpu.memory_space<vmem>>, vector<4x72xbf16>
    %cst_10 = arith.constant dense<0.000000e+00> : vector<4x256xf32>
    %53 = tpu.matmul %52, %51, %cst_10 {dimension_numbers = #tpu.dot_dimension_numbers<[1], [0], [0], [1], [0, 0, 1, 1], [], []>} : vector<4x72xbf16>, vector<72x256xbf16>, vector<4x256xf32> -> vector<4x256xf32>
    %cst_11 = arith.constant 0.000000e+00 : f32
    %54 = vector.broadcast %cst_11 : f32 to vector<4x256xf32>
    %55 = arith.maximumf %53, %54 : vector<4x256xf32>
    %c0_12 = arith.constant 0 : index
    %c0_13 = arith.constant 0 : index
    %56 = vector.load %arg4[%c0_12, %c0_13] : memref<4x1xf32, #tpu.memory_space<vmem>>, vector<4x1xf32>
    %57 = vector.broadcast %56 : vector<4x1xf32> to vector<4x256xf32>
    %58 = arith.mulf %55, %57 : vector<4x256xf32>
    %cst_14 = arith.constant dense<0.000000e+00> : vector<256xf32>
    %59 = vector.multi_reduction <add>, %58, %cst_14 [0] : vector<4x256xf32> to vector<256xf32>
    %60 = vector.shape_cast %59 : vector<256xf32> to vector<1x256xf32>
    %61 = vector.shape_cast %60 : vector<1x256xf32> to vector<1x1x256xf32>
    %c0_15 = arith.constant 0 : index
    %c0_16 = arith.constant 0 : index
    %c0_17 = arith.constant 0 : index
    %62 = vector.load %arg5[%c0_15, %c0_16, %c0_17] : memref<1x1x256xf32, #tpu.memory_space<vmem>>, vector<1x1x256xf32>
    tpu.vector_store %arg5[%c0_15, %c0_16, %c0_17], %61 {strides = array<i32>} : memref<1x1x256xf32, #tpu.memory_space<vmem>>, vector<1x1x256xf32>,
    %cst_18 = arith.constant 0.000000e+00 : f32
    %63 = vector.broadcast %cst_18 : f32 to vector<1x256xf32>
    %64 = arith.maximumf %60, %63 : vector<1x256xf32>
    %cst_19 = arith.constant 0.000000e+00 : f32
    %65 = vector.broadcast %cst_19 : f32 to vector<1x256xf32>
    %66 = arith.mulf %60, %65 : vector<1x256xf32>
    %67 = arith.subf %64, %66 : vector<1x256xf32>
    %68 = math.absf %60 : vector<1x256xf32>
    %cst_20 = arith.constant 0.000000e+00 : f32
    %69 = vector.broadcast %cst_20 : f32 to vector<1x256xf32>
    %70 = arith.subf %69, %68 : vector<1x256xf32>
    %71 = math.exp %70 : vector<1x256xf32>
    %cst_21 = arith.constant 1.000000e+00 : f32
    %72 = vector.broadcast %cst_21 : f32 to vector<1x256xf32>
    %73 = arith.addf %72, %71 : vector<1x256xf32>
    %74 = math.log %73 : vector<1x256xf32>
    %75 = arith.addf %67, %74 : vector<1x256xf32>
    %cst_22 = arith.constant dense<0.000000e+00> : vector<1xf32>
    %76 = vector.multi_reduction <add>, %75, %cst_22 [1] : vector<1x256xf32> to vector<1xf32>
    %77 = vector.shape_cast %76 : vector<1xf32> to vector<1x1xf32>
    %c0_i32 = arith.constant 0 : i32
    %78 = arith.cmpi eq, %arg0, %c0_i32 : i32
    %79 = arith.extui %78 : i1 to i32
    %c0_i32_23 = arith.constant 0 : i32
    %80 = arith.cmpi ne, %79, %c0_i32_23 : i32
    scf.if %80 {
      %cst_29 = arith.constant 0.000000e+00 : f32
      %87 = vector.broadcast %cst_29 : f32 to vector<1x1xf32>
      %c0_30 = arith.constant 0 : index
      %c0_31 = arith.constant 0 : index
      %88 = vector.load %arg7[%c0_30, %c0_31] : memref<1x1xf32, #tpu.memory_space<vmem>>, vector<1x1xf32>
      tpu.vector_store %arg7[%c0_30, %c0_31], %87 {strides = array<i32>} : memref<1x1xf32, #tpu.memory_space<vmem>>, vector<1x1xf32>,
    } else {
    }
    %c0_24 = arith.constant 0 : index
    %c0_25 = arith.constant 0 : index
    %81 = vector.load %arg7[%c0_24, %c0_25] : memref<1x1xf32, #tpu.memory_space<vmem>>, vector<1x1xf32>
    %82 = arith.addf %81, %77 : vector<1x1xf32>
    %c0_26 = arith.constant 0 : index
    %c0_27 = arith.constant 0 : index
    %83 = vector.load %arg7[%c0_26, %c0_27] : memref<1x1xf32, #tpu.memory_space<vmem>>, vector<1x1xf32>
    tpu.vector_store %arg7[%c0_26, %c0_27], %82 {strides = array<i32>} : memref<1x1xf32, #tpu.memory_space<vmem>>, vector<1x1xf32>,
    %c1_i32 = arith.constant 1 : i32
    %84 = arith.cmpi eq, %arg0, %c1_i32 : i32
    %85 = arith.extui %84 : i1 to i32
    %c0_i32_28 = arith.constant 0 : i32
    %86 = arith.cmpi ne, %85, %c0_i32_28 : i32
    scf.if %86 {
      %c0_29 = arith.constant 0 : index
      %c0_30 = arith.constant 0 : index
      %87 = vector.load %arg7[%c0_29, %c0_30] : memref<1x1xf32, #tpu.memory_space<vmem>>, vector<1x1xf32>
      %cst_31 = arith.constant 0.001953125 : f32
      %88 = vector.broadcast %cst_31 : f32 to vector<1x1xf32>
      %89 = arith.mulf %87, %88 : vector<1x1xf32>
      %c0_32 = arith.constant 0 : index
      %c0_33 = arith.constant 0 : index
      %90 = vector.load %arg6[%c0_32, %c0_33] : memref<1x1xf32, #tpu.memory_space<vmem>>, vector<1x1xf32>
      tpu.vector_store %arg6[%c0_32, %c0_33], %89 {strides = array<i32>} : memref<1x1xf32, #tpu.memory_space<vmem>>, vector<1x1xf32>,
    } else {
    }
    return
  }
  func.func @transform_0(%arg0: i32) -> (i32, i32, i32, i32) {
    %c0_i32 = arith.constant 0 : i32
    %c0_i32_0 = arith.constant 0 : i32
    %c0_i32_1 = arith.constant 0 : i32
    %c0_i32_2 = arith.constant 0 : i32
    return %arg0, %c0_i32, %c0_i32_0, %c0_i32_1 : i32, i32, i32, i32
  }
  func.func @transform_1(%arg0: i32) -> (i32, i32) {
    %c0_i32 = arith.constant 0 : i32
    %c0_i32_0 = arith.constant 0 : i32
    %c0_i32_1 = arith.constant 0 : i32
    return %c0_i32, %c0_i32_0 : i32, i32
  }
  func.func @transform_2(%arg0: i32) -> (i32, i32) {
    %c0_i32 = arith.constant 0 : i32
    %c0_i32_0 = arith.constant 0 : i32
    %c0_i32_1 = arith.constant 0 : i32
    return %c0_i32, %c0_i32_0 : i32, i32
  }
  func.func @transform_3(%arg0: i32) -> (i32, i32) {
    %c0_i32 = arith.constant 0 : i32
    %c0_i32_0 = arith.constant 0 : i32
    %c0_i32_1 = arith.constant 0 : i32
    return %c0_i32, %c0_i32_0 : i32, i32
  }
  func.func @transform_4(%arg0: i32) -> (i32, i32, i32) {
    %c0_i32 = arith.constant 0 : i32
    %c0_i32_0 = arith.constant 0 : i32
    %c0_i32_1 = arith.constant 0 : i32
    return %arg0, %c0_i32, %c0_i32_0 : i32, i32, i32
  }
  func.func @transform_5(%arg0: i32) -> (i32, i32) {
    %c0_i32 = arith.constant 0 : i32
    %c0_i32_0 = arith.constant 0 : i32
    %c0_i32_1 = arith.constant 0 : i32
    return %c0_i32, %c0_i32_0 : i32, i32
  }
}

</mosaic_0001>

<llo_original>
// kernel: tpu_custom_call.1
$region0: #{tpu_custom_call.1}
  #allocation0 [shape = 'u32[]', space=smem, size = 0x4, offset = 0x4, fixed_abs, tag = 'smem constant byte address 0x4 - core index']
  #allocation1 [shape = 'u32[144,128]{1,0:T(1,128)}', space=vmem, size = 0x12000, scoped, tag = 'internal scratch']
  #allocation2 [shape = 'f32[1,1]{1,0:T(1,128)}', space=vmem, size = 0x200, scoped, tag = 'scratch operand']
  %s0 = inlined_call_operand.vmem [shape: bf16[2,16,18,18], index: 0, kind: input, shape index: {}]
  %s1 = inlined_call_operand.vmem [shape: bf16[8,144], index: 1, kind: input, shape index: {}]
  %s2 = inlined_call_operand.vmem [shape: bf16[4,72], index: 2, kind: input, shape index: {}]
  %s3 = inlined_call_operand.vmem [shape: f32[4,1], index: 3, kind: input, shape index: {}]
  %s4 = inlined_call_operand.hbm [shape: f32[2,1,256], index: 4, kind: output, shape index: {0}]
  %s5 = inlined_call_operand.hbm [shape: f32[1,1], index: 5, kind: output, shape index: {1}]
  %6 = xla_tuple %s4, %s5
  %s7 = sld [smem:[#allocation0]]
  $region65: #{tpu_custom_call.1} parent=0
    _
  %s9 = ssub.s32 1, %s7
  %s10 = scalar_select 0, %s9, %s7
  $region1: #{tpu_custom_call.1} parent=0
    #allocation3 [shape = 'u8[2048]{0}', space=vmem, size = 0x800, scoped, tag = 'output window, operand 0']
    #allocation4 [shape = 's32[2]{0}', space=sflag, size = 0x8, scoped, tag = 'scoped memory for tpu_custom_call.1']
    #allocation5 [shape = 'u8[512]{0}', space=vmem, size = 0x400, scoped, tag = 'output window, operand 1, single buffered']
    #allocation6 [shape = 's32[1]{0}', space=sflag, size = 0x4, scoped, tag = 'scoped memory for tpu_custom_call.1']
    %11 = vsyncpa [#allocation4], 0
    %s12 = scalar_lea.sflag [#allocation4], 1
    %13 = vsyncpa %s12, 0
    %14 = vsyncpa [#allocation6], 0
    loop: start=0, step=1, limit=4
    $region2: #{tpu_custom_call.1} parent=1 // loop_pre_header
      _
    $region3: #{tpu_custom_call.1} parent=1 // loop_header
      %s16 = sphi 0, %s20
      %p17 = scmp.ge.s32.totalorder %s16, 4
      %s26 = sphi 0, %s28
      %s29 = sphi 0, %s26
      %s30 = sphi 0, %s29
      %s46 = sphi 0, %s30
      %s50 = sphi 0, %s50
      %s52 = sphi 0, %s50
      %s53 = sphi 0, %s52
      %s67 = sphi 0, %s53
      %s71 = sphi 0, %s71
      %s73 = sphi 0, %s71
      %s74 = sphi 0, %s73
      %s88 = sphi 0, %s74
      %s92 = sphi 0, %s92
      %s94 = sphi 0, %s92
      %s95 = sphi 0, %s94
      %s109 = sphi 0, %s95
      %s115 = sphi 0, %s117
      %s118 = sphi 0, %s115
      %s119 = sphi 0, %s118
      %s135 = sphi 0, %s119
      %s139 = sphi 0, %s139
      %s141 = sphi 0, %s139
      %s142 = sphi 0, %s141
      %s156 = sphi 0, %s142
    $region4: #{tpu_custom_call.1} parent=1 // loop_header_branch
      %19 = sbr.rel (%p17) target = $region8
    $region5: #{tpu_custom_call.1} parent=1 // loop_body
      %s21 = ssub.s32 %s16, 1
      %s22 = ssub.s32 %s16, 2
      %s23 = sadd.s32 %s16, 1
      %s24 = ssub.s32 %s16, %s23
      %p25 = scmp.eq.s32.totalorder %s24, 0
      %s27 = sadd.s32 %s26, 1
      %s28 = scalar_select %p25, %s26, %s27
      %p31 = pneg %p25
      %p32 = scmp.eq.s32.totalorder %s16, 1
      %p33 = por %p31, %p32
      %p34 = scmp.ne.s32.totalorder %s26, %s29
      %p35 = scmp.eq.s32.totalorder %s16, 0
      %p36 = por %p34, %p35
      %p37 = scmp.ne.s32.totalorder %s26, %s29
      %p38 = scmp.eq.s32.totalorder %s21, 1
      %p39 = por %p37, %p38
      %p40 = scmp.ne.s32.totalorder %s29, %s30
      %p41 = scmp.eq.s32.totalorder %s21, 0
      %p42 = por %p40, %p41
      %p43 = scmp.ne.s32.totalorder %s29, %s30
      %p44 = scmp.eq.s32.totalorder %s22, 1
      %p45 = por %p43, %p44
      %p47 = scmp.ne.s32.totalorder %s30, %s46
      %p48 = scmp.eq.s32.totalorder %s22, 0
      %p49 = por %p47, %p48
      %s51 = sadd.s32 %s50, 1
      %p54 = scmp.eq.s32.totalorder %s16, 1
      %p55 = scmp.ne.s32.totalorder %s50, %s52
      %p56 = scmp.eq.s32.totalorder %s16, 0
      %p57 = por %p55, %p56
      %p58 = scmp.ne.s32.totalorder %s50, %s52
      %p59 = scmp.eq.s32.totalorder %s21, 1
      %p60 = por %p58, %p59
      %p61 = scmp.ne.s32.totalorder %s52, %s53
      %p62 = scmp.eq.s32.totalorder %s21, 0
      %p63 = por %p61, %p62
      %p64 = scmp.ne.s32.totalorder %s52, %s53
      %p65 = scmp.eq.s32.totalorder %s22, 1
      %p66 = por %p64, %p65
      %p68 = scmp.ne.s32.totalorder %s53, %s67
      %p69 = scmp.eq.s32.totalorder %s22, 0
      %p70 = por %p68, %p69
      %s72 = sadd.s32 %s71, 1
      %p75 = scmp.eq.s32.totalorder %s16, 1
      %p76 = scmp.ne.s32.totalorder %s71, %s73
      %p77 = scmp.eq.s32.totalorder %s16, 0
      %p78 = por %p76, %p77
      %p79 = scmp.ne.s32.totalorder %s71, %s73
      %p80 = scmp.eq.s32.totalorder %s21, 1
      %p81 = por %p79, %p80
      %p82 = scmp.ne.s32.totalorder %s73, %s74
      %p83 = scmp.eq.s32.totalorder %s21, 0
      %p84 = por %p82, %p83
      %p85 = scmp.ne.s32.totalorder %s73, %s74
      %p86 = scmp.eq.s32.totalorder %s22, 1
      %p87 = por %p85, %p86
      %p89 = scmp.ne.s32.totalorder %s74, %s88
      %p90 = scmp.eq.s32.totalorder %s22, 0
      %p91 = por %p89, %p90
      %s93 = sadd.s32 %s92, 1
      %p96 = scmp.eq.s32.totalorder %s16, 1
      %p97 = scmp.ne.s32.totalorder %s92, %s94
      %p98 = scmp.eq.s32.totalorder %s16, 0
      %p99 = por %p97, %p98
      %p100 = scmp.ne.s32.totalorder %s92, %s94
      %p101 = scmp.eq.s32.totalorder %s21, 1
      %p102 = por %p100, %p101
      %p103 = scmp.ne.s32.totalorder %s94, %s95
      %p104 = scmp.eq.s32.totalorder %s21, 0
      %p105 = por %p103, %p104
      %p106 = scmp.ne.s32.totalorder %s94, %s95
      %p107 = scmp.eq.s32.totalorder %s22, 1
      %p108 = por %p106, %p107
      %p110 = scmp.ne.s32.totalorder %s95, %s109
      %p111 = scmp.eq.s32.totalorder %s22, 0
      %p112 = por %p110, %p111
      %s113 = ssub.s32 %s16, %s23
      %p114 = scmp.eq.s32.totalorder %s113, 0
      %s116 = sadd.s32 %s115, 1
      %s117 = scalar_select %p114, %s115, %s116
      %p120 = pneg %p114
      %p121 = scmp.eq.s32.totalorder %s16, 1
      %p122 = por %p120, %p121
      %p123 = scmp.ne.s32.totalorder %s115, %s118
      %p124 = scmp.eq.s32.totalorder %s16, 0
      %p125 = por %p123, %p124
      %p126 = scmp.ne.s32.totalorder %s115, %s118
      %p127 = scmp.eq.s32.totalorder %s21, 1
      %p128 = por %p126, %p127
      %p129 = scmp.ne.s32.totalorder %s118, %s119
      %p130 = scmp.eq.s32.totalorder %s21, 0
      %p131 = por %p129, %p130
      %p132 = scmp.ne.s32.totalorder %s118, %s119
      %p133 = scmp.eq.s32.totalorder %s22, 1
      %p134 = por %p132, %p133
      %p136 = scmp.ne.s32.totalorder %s119, %s135
      %p137 = scmp.eq.s32.totalorder %s22, 0
      %p138 = por %p136, %p137
      %s140 = sadd.s32 %s139, 1
      %p143 = scmp.eq.s32.totalorder %s16, 1
      %p144 = scmp.ne.s32.totalorder %s139, %s141
      %p145 = scmp.eq.s32.totalorder %s16, 0
      %p146 = por %p144, %p145
      %p147 = scmp.ne.s32.totalorder %s139, %s141
      %p148 = scmp.eq.s32.totalorder %s21, 1
      %p149 = por %p147, %p148
      %p150 = scmp.ne.s32.totalorder %s141, %s142
      %p151 = scmp.eq.s32.totalorder %s21, 0
      %p152 = por %p150, %p151
      %p153 = scmp.ne.s32.totalorder %s141, %s142
      %p154 = scmp.eq.s32.totalorder %s22, 1
      %p155 = por %p153, %p154
      %p157 = scmp.ne.s32.totalorder %s142, %s156
      %p158 = scmp.eq.s32.totalorder %s22, 0
      %p159 = por %p157, %p158
      %p160 = scmp.le.s32.totalorder 1, %s16
      %p161 = scmp.lt.s32.totalorder %s16, 3
      %p162 = pnand %p160, %p161
      %p163 = pneg %p162
      // Predicated region
      $region9: #{tpu_custom_call.1} parent=5 // pred_check
        _
      $region10: #{tpu_custom_call.1} parent=5 // pred_check_branch
        %165 = sbr.rel (%p162) target = $region12
      $region11: #{tpu_custom_call.1} parent=5 // pred_region
        %s166 = ssub.s32 %s16, 1
        // Predicated region
        $region13: #{tpu_custom_call.1} parent=11 // pred_check
          %p167 = pneg %p63
        $region14: #{tpu_custom_call.1} parent=11 // pred_check_branch
          %169 = sbr.rel (%p167) target = $region16
        $region15: #{tpu_custom_call.1} parent=11 // pred_region
          _
        $region16: #{tpu_custom_call.1} parent=11 // pred_fallthru
          _
        // Predicated region
        $region17: #{tpu_custom_call.1} parent=11 // pred_check
          %p170 = pneg %p84
        $region18: #{tpu_custom_call.1} parent=11 // pred_check_branch
          %172 = sbr.rel (%p170) target = $region20
        $region19: #{tpu_custom_call.1} parent=11 // pred_region
          _
        $region20: #{tpu_custom_call.1} parent=11 // pred_fallthru
          _
        // Predicated region
        $region21: #{tpu_custom_call.1} parent=11 // pred_check
          %p173 = pneg %p105
        $region22: #{tpu_custom_call.1} parent=11 // pred_check_branch
          %175 = sbr.rel (%p173) target = $region24
        $region23: #{tpu_custom_call.1} parent=11 // pred_region
          _
        $region24: #{tpu_custom_call.1} parent=11 // pred_fallthru
          _
      $region12: #{tpu_custom_call.1} parent=5 // pred_fallthru
        _
      %p176 = scmp.lt.s32.totalorder %s16, 2
      // Predicated region
      $region25: #{tpu_custom_call.1} parent=5 // pred_check
        %p177 = pneg %p176
      $region26: #{tpu_custom_call.1} parent=5 // pred_check_branch
        %179 = sbr.rel (%p177) target = $region28
      $region27: #{tpu_custom_call.1} parent=5 // pred_region
        // Predicated region
        $region29: #{tpu_custom_call.1} parent=27 // pred_check
          %p180 = pneg %p36
        $region30: #{tpu_custom_call.1} parent=27 // pred_check_branch
          %182 = sbr.rel (%p180) target = $region32
        $region31: #{tpu_custom_call.1} parent=27 // pred_region
          %p183 = scmp.lt.s32.totalorder %s16, 1
          %s184 = scalar_select %p183, %s16, 1
          %s185 = smul.addr %s184, 48
          %s186 = smul.addr %s185, 4
          %s187 = scalar_lea.vmem %s0, %s186
        $region32: #{tpu_custom_call.1} parent=27 // pred_fallthru
          _
      $region28: #{tpu_custom_call.1} parent=5 // pred_fallthru
        _
      %p188 = scmp.le.s32.totalorder 1, %s16
      %p189 = scmp.lt.s32.totalorder %s16, 3
      %p190 = pnand %p188, %p189
      %p191 = pneg %p190
      // Predicated region
      $region33: #{tpu_custom_call.1} parent=5 // pred_check
        _
      $region34: #{tpu_custom_call.1} parent=5 // pred_check_branch
        %193 = sbr.rel (%p190) target = $region36
      $region35: #{tpu_custom_call.1} parent=5 // pred_region
        %s194 = ssub.s32 %s16, 1
        %p195 = scmp.lt.s32.totalorder %s21, 1
        %s196 = scalar_select %p195, %s21, 1
        %s197 = smul.addr %s196, 48
        %s198 = smul.addr %s197, 4
        %s199 = scalar_lea.vmem %s0, %s198
        %p200 = pneg %p42
        %p201 = pneg %p39
        %p202 = pneg %p63
        %p203 = pneg %p60
        %p204 = pneg %p84
        %p205 = pneg %p81
        %p206 = pneg %p105
        %p207 = pneg %p102
        %p208 = pneg %p131
        %p209 = pneg %p128
        %s210 = sand.u32 %s118, 1
        %s211 = scalar_lea.sflag [#allocation4], %s210
        %s212 = sand.u32 %s118, 1
        %s213 = smul.addr %s212, 2
        %s214 = scalar_lea.vmem [#allocation3], %s213
        %p215 = pneg %p152
        %p216 = pneg %p149
        %p217 = scmp.lt.s32.totalorder %s21, 1
        %s218 = scalar_select %p217, %s21, 1
        %s219 = smul.addr %s218, 48
        %s220 = smul.addr %s219, 4
        %s221 = scalar_lea.vmem %s0, %s220
        %v223 = vld [vmem:[%s221] sm:$0xf]
        %v224 = vld [vmem:[%s221 + $0x4] sm:$0xf]
        %v225 = vld [vmem:[%s221 + $0x8] sm:$0x1]
        %v226 = vld [vmem:[%s221 + $0xc] sm:$0xf]
        %v227 = vld [vmem:[%s221 + $0x10] sm:$0xf]
        %v228 = vld [vmem:[%s221 + $0x14] sm:$0x1]
        %v229 = vld [vmem:[%s221 + $0x18] sm:$0xf]
        %v230 = vld [vmem:[%s221 + $0x1c] sm:$0xf]
        %v231 = vld [vmem:[%s221 + $0x20] sm:$0x1]
        %v232 = vld [vmem:[%s221 + $0x24] sm:$0xf]
        %v233 = vld [vmem:[%s221 + $0x28] sm:$0xf]
        %v234 = vld [vmem:[%s221 + $0x2c] sm:$0x1]
        %v235 = vld [vmem:[%s221 + $0x30] sm:$0xf]
        %v236 = vld [vmem:[%s221 + $0x34] sm:$0xf]
        %v237 = vld [vmem:[%s221 + $0x38] sm:$0x1]
        %v238 = vld [vmem:[%s221 + $0x3c] sm:$0xf]
        %v239 = vld [vmem:[%s221 + $0x40] sm:$0xf]
        %v240 = vld [vmem:[%s221 + $0x44] sm:$0x1]
        %v241 = vld [vmem:[%s221 + $0x48] sm:$0xf]
        %v242 = vld [vmem:[%s221 + $0x4c] sm:$0xf]
        %v243 = vld [vmem:[%s221 + $0x50] sm:$0x1]
        %v244 = vld [vmem:[%s221 + $0x54] sm:$0xf]
        %v245 = vld [vmem:[%s221 + $0x58] sm:$0xf]
        %v246 = vld [vmem:[%s221 + $0x5c] sm:$0x1]
        %v247 = vld [vmem:[%s221 + $0x60] sm:$0xf]
        %v248 = vld [vmem:[%s221 + $0x64] sm:$0xf]
        %v249 = vld [vmem:[%s221 + $0x68] sm:$0x1]
        %v250 = vld [vmem:[%s221 + $0x6c] sm:$0xf]
        %v251 = vld [vmem:[%s221 + $0x70] sm:$0xf]
        %v252 = vld [vmem:[%s221 + $0x74] sm:$0x1]
        %v253 = vld [vmem:[%s221 + $0x78] sm:$0xf]
        %v254 = vld [vmem:[%s221 + $0x7c] sm:$0xf]
        %v255 = vld [vmem:[%s221 + $0x80] sm:$0x1]
        %v256 = vld [vmem:[%s221 + $0x84] sm:$0xf]
        %v257 = vld [vmem:[%s221 + $0x88] sm:$0xf]
        %v258 = vld [vmem:[%s221 + $0x8c] sm:$0x1]
        %v259 = vld [vmem:[%s221 + $0x90] sm:$0xf]
        %v260 = vld [vmem:[%s221 + $0x94] sm:$0xf]
        %v261 = vld [vmem:[%s221 + $0x98] sm:$0x1]
        %v262 = vld [vmem:[%s221 + $0x9c] sm:$0xf]
        %v263 = vld [vmem:[%s221 + $0xa0] sm:$0xf]
        %v264 = vld [vmem:[%s221 + $0xa4] sm:$0x1]
        %v265 = vld [vmem:[%s221 + $0xa8] sm:$0xf]
        %v266 = vld [vmem:[%s221 + $0xac] sm:$0xf]
        %v267 = vld [vmem:[%s221 + $0xb0] sm:$0x1]
        %v268 = vld [vmem:[%s221 + $0xb4] sm:$0xf]
        %v269 = vld [vmem:[%s221 + $0xb8] sm:$0xf]
        %v270 = vld [vmem:[%s221 + $0xbc] sm:$0x1]
        %v271 = vunpack.c.l.bf16 %v223
        %v272 = vunpack.c.l.bf16 %v224
        %v273 = vunpack.c.l.bf16 %v225
        %v274 = vunpack.c.l.bf16 %v226
        %v275 = vunpack.c.l.bf16 %v227
        %v276 = vunpack.c.l.bf16 %v228
        %v277 = vunpack.c.l.bf16 %v229
        %v278 = vunpack.c.l.bf16 %v230
        %v279 = vunpack.c.l.bf16 %v231
        %v280 = vunpack.c.l.bf16 %v232
        %v281 = vunpack.c.l.bf16 %v233
        %v282 = vunpack.c.l.bf16 %v234
        %v283 = vunpack.c.l.bf16 %v235
        %v284 = vunpack.c.l.bf16 %v236
        %v285 = vunpack.c.l.bf16 %v237
        %v286 = vunpack.c.l.bf16 %v238
        %v287 = vunpack.c.l.bf16 %v239
        %v288 = vunpack.c.l.bf16 %v240
        %v289 = vunpack.c.l.bf16 %v241
        %v290 = vunpack.c.l.bf16 %v242
        %v291 = vunpack.c.l.bf16 %v243
        %v292 = vunpack.c.l.bf16 %v244
        %v293 = vunpack.c.l.bf16 %v245
        %v294 = vunpack.c.l.bf16 %v246
        %v295 = vunpack.c.l.bf16 %v247
        %v296 = vunpack.c.l.bf16 %v248
        %v297 = vunpack.c.l.bf16 %v249
        %v298 = vunpack.c.l.bf16 %v250
        %v299 = vunpack.c.l.bf16 %v251
        %v300 = vunpack.c.l.bf16 %v252
        %v301 = vunpack.c.l.bf16 %v253
        %v302 = vunpack.c.l.bf16 %v254
        %v303 = vunpack.c.l.bf16 %v255
        %v304 = vunpack.c.l.bf16 %v256
        %v305 = vunpack.c.l.bf16 %v257
        %v306 = vunpack.c.l.bf16 %v258
        %v307 = vunpack.c.l.bf16 %v259
        %v308 = vunpack.c.l.bf16 %v260
        %v309 = vunpack.c.l.bf16 %v261
        %v310 = vunpack.c.l.bf16 %v262
        %v311 = vunpack.c.l.bf16 %v263
        %v312 = vunpack.c.l.bf16 %v264
        %v313 = vunpack.c.l.bf16 %v265
        %v314 = vunpack.c.l.bf16 %v266
        %v315 = vunpack.c.l.bf16 %v267
        %v316 = vunpack.c.l.bf16 %v268
        %v317 = vunpack.c.l.bf16 %v269
        %v318 = vunpack.c.l.bf16 %v270
        %v319 = vcombine.low %v271, %v277
        %v320 = vcombine.high %v271, %v277
        %v322 = vunpack.c.l.s4 1983009808
        %v323 = vunpack.c.0.s8 %v322
        %v324 = vlaneseq
        %v325 = vshrl.u32 %v324, 7
        %v326 = vsub.s32 %v323, %v325
        %v327 = vrot.slane %v319, %v326
        %v329 = vunpack.c.l.s4 1983009808
        %v330 = vunpack.c.0.s8 %v329
        %v331 = vlaneseq
        %v332 = vshrl.u32 %v331, 7
        %v333 = vsub.s32 %v330, %v332
        %v334 = vrot.slane %v320, %v333
        %v335 = vcombine.low %v274, %v280
        %v336 = vcombine.high %v274, %v280
        %v338 = vunpack.c.l.s4 1983009808
        %v339 = vunpack.c.0.s8 %v338
        %v340 = vlaneseq
        %v341 = vshrl.u32 %v340, 7
        %v342 = vsub.s32 %v339, %v341
        %v343 = vrot.slane %v335, %v342
        %v345 = vunpack.c.l.s4 1983009808
        %v346 = vunpack.c.0.s8 %v345
        %v347 = vlaneseq
        %v348 = vshrl.u32 %v347, 7
        %v349 = vsub.s32 %v346, %v348
        %v350 = vrot.slane %v336, %v349
        %v351 = vcombine.low %v283, %v289
        %v352 = vcombine.high %v283, %v289
        %v354 = vunpack.c.l.s4 1983009808
        %v355 = vunpack.c.0.s8 %v354
        %v356 = vlaneseq
        %v357 = vshrl.u32 %v356, 7
        %v358 = vsub.s32 %v355, %v357
        %v359 = vrot.slane %v351, %v358
        %v361 = vunpack.c.l.s4 1983009808
        %v362 = vunpack.c.0.s8 %v361
        %v363 = vlaneseq
        %v364 = vshrl.u32 %v363, 7
        %v365 = vsub.s32 %v362, %v364
        %v366 = vrot.slane %v352, %v365
        %v367 = vcombine.low %v286, %v292
        %v368 = vcombine.high %v286, %v292
        %v370 = vunpack.c.l.s4 1983009808
        %v371 = vunpack.c.0.s8 %v370
        %v372 = vlaneseq
        %v373 = vshrl.u32 %v372, 7
        %v374 = vsub.s32 %v371, %v373
        %v375 = vrot.slane %v367, %v374
        %v377 = vunpack.c.l.s4 1983009808
        %v378 = vunpack.c.0.s8 %v377
        %v379 = vlaneseq
        %v380 = vshrl.u32 %v379, 7
        %v381 = vsub.s32 %v378, %v380
        %v382 = vrot.slane %v368, %v381
        %v383 = vcombine.low %v327, %v343
        %v384 = vcombine.high %v327, %v343
        %v386 = vunpack.c.l.s4 1934713408
        %v387 = vunpack.c.0.s8 %v386
        %v388 = vlaneseq
        %v389 = vshrl.u32 %v388, 7
        %v390 = vsub.s32 %v387, %v389
        %v391 = vrot.slane %v383, %v390
        %v393 = vunpack.c.l.s4 1934713408
        %v394 = vunpack.c.0.s8 %v393
        %v395 = vlaneseq
        %v396 = vshrl.u32 %v395, 7
        %v397 = vsub.s32 %v394, %v396
        %v398 = vrot.slane %v384, %v397
        %v399 = vcombine.low %v334, %v350
        %v400 = vcombine.high %v334, %v350
        %v402 = vunpack.c.l.s4 1934713408
        %v403 = vunpack.c.0.s8 %v402
        %v404 = vlaneseq
        %v405 = vshrl.u32 %v404, 7
        %v406 = vsub.s32 %v403, %v405
        %v407 = vrot.slane %v399, %v406
        %v409 = vunpack.c.l.s4 1934713408
        %v410 = vunpack.c.0.s8 %v409
        %v411 = vlaneseq
        %v412 = vshrl.u32 %v411, 7
        %v413 = vsub.s32 %v410, %v412
        %v414 = vrot.slane %v400, %v413
        %v415 = vcombine.low %v359, %v375
        %v416 = vcombine.high %v359, %v375
        %v418 = vunpack.c.l.s4 1934713408
        %v419 = vunpack.c.0.s8 %v418
        %v420 = vlaneseq
        %v421 = vshrl.u32 %v420, 7
        %v422 = vsub.s32 %v419, %v421
        %v423 = vrot.slane %v415, %v422
        %v425 = vunpack.c.l.s4 1934713408
        %v426 = vunpack.c.0.s8 %v425
        %v427 = vlaneseq
        %v428 = vshrl.u32 %v427, 7
        %v429 = vsub.s32 %v426, %v428
        %v430 = vrot.slane %v416, %v429
        %v431 = vcombine.low %v366, %v382
        %v432 = vcombine.high %v366, %v382
        %v434 = vunpack.c.l.s4 1934713408
        %v435 = vunpack.c.0.s8 %v434
        %v436 = vlaneseq
        %v437 = vshrl.u32 %v436, 7
        %v438 = vsub.s32 %v435, %v437
        %v439 = vrot.slane %v431, %v438
        %v441 = vunpack.c.l.s4 1934713408
        %v442 = vunpack.c.0.s8 %v441
        %v443 = vlaneseq
        %v444 = vshrl.u32 %v443, 7
        %v445 = vsub.s32 %v442, %v444
        %v446 = vrot.slane %v432, %v445
        %v447 = vcombine.low %v391, %v423
        %v448 = vcombine.high %v391, %v423
        %v449 = vcombine.low %v398, %v430
        %v450 = vcombine.high %v398, %v430
        %v451 = vcombine.low %v407, %v439
        %v452 = vcombine.high %v407, %v439
        %v453 = vcombine.low %v414, %v446
        %v454 = vcombine.high %v414, %v446
        %v455 = vcombine.low %v295, %v301
        %v456 = vcombine.high %v295, %v301
        %v458 = vunpack.c.l.s4 1983009808
        %v459 = vunpack.c.0.s8 %v458
        %v460 = vlaneseq
        %v461 = vshrl.u32 %v460, 7
        %v462 = vsub.s32 %v459, %v461
        %v463 = vrot.slane %v455, %v462
        %v465 = vunpack.c.l.s4 1983009808
        %v466 = vunpack.c.0.s8 %v465
        %v467 = vlaneseq
        %v468 = vshrl.u32 %v467, 7
        %v469 = vsub.s32 %v466, %v468
        %v470 = vrot.slane %v456, %v469
        %v471 = vcombine.low %v298, %v304
        %v472 = vcombine.high %v298, %v304
        %v474 = vunpack.c.l.s4 1983009808
        %v475 = vunpack.c.0.s8 %v474
        %v476 = vlaneseq
        %v477 = vshrl.u32 %v476, 7
        %v478 = vsub.s32 %v475, %v477
        %v479 = vrot.slane %v471, %v478
        %v481 = vunpack.c.l.s4 1983009808
        %v482 = vunpack.c.0.s8 %v481
        %v483 = vlaneseq
        %v484 = vshrl.u32 %v483, 7
        %v485 = vsub.s32 %v482, %v484
        %v486 = vrot.slane %v472, %v485
        %v487 = vcombine.low %v307, %v313
        %v488 = vcombine.high %v307, %v313
        %v490 = vunpack.c.l.s4 1983009808
        %v491 = vunpack.c.0.s8 %v490
        %v492 = vlaneseq
        %v493 = vshrl.u32 %v492, 7
        %v494 = vsub.s32 %v491, %v493
        %v495 = vrot.slane %v487, %v494
        %v497 = vunpack.c.l.s4 1983009808
        %v498 = vunpack.c.0.s8 %v497
        %v499 = vlaneseq
        %v500 = vshrl.u32 %v499, 7
        %v501 = vsub.s32 %v498, %v500
        %v502 = vrot.slane %v488, %v501
        %v503 = vcombine.low %v310, %v316
        %v504 = vcombine.high %v310, %v316
        %v506 = vunpack.c.l.s4 1983009808
        %v507 = vunpack.c.0.s8 %v506
        %v508 = vlaneseq
        %v509 = vshrl.u32 %v508, 7
        %v510 = vsub.s32 %v507, %v509
        %v511 = vrot.slane %v503, %v510
        %v513 = vunpack.c.l.s4 1983009808
        %v514 = vunpack.c.0.s8 %v513
        %v515 = vlaneseq
        %v516 = vshrl.u32 %v515, 7
        %v517 = vsub.s32 %v514, %v516
        %v518 = vrot.slane %v504, %v517
        %v519 = vcombine.low %v463, %v479
        %v520 = vcombine.high %v463, %v479
        %v522 = vunpack.c.l.s4 1934713408
        %v523 = vunpack.c.0.s8 %v522
        %v524 = vlaneseq
        %v525 = vshrl.u32 %v524, 7
        %v526 = vsub.s32 %v523, %v525
        %v527 = vrot.slane %v519, %v526
        %v529 = vunpack.c.l.s4 1934713408
        %v530 = vunpack.c.0.s8 %v529
        %v531 = vlaneseq
        %v532 = vshrl.u32 %v531, 7
        %v533 = vsub.s32 %v530, %v532
        %v534 = vrot.slane %v520, %v533
        %v535 = vcombine.low %v470, %v486
        %v536 = vcombine.high %v470, %v486
        %v538 = vunpack.c.l.s4 1934713408
        %v539 = vunpack.c.0.s8 %v538
        %v540 = vlaneseq
        %v541 = vshrl.u32 %v540, 7
        %v542 = vsub.s32 %v539, %v541
        %v543 = vrot.slane %v535, %v542
        %v545 = vunpack.c.l.s4 1934713408
        %v546 = vunpack.c.0.s8 %v545
        %v547 = vlaneseq
        %v548 = vshrl.u32 %v547, 7
        %v549 = vsub.s32 %v546, %v548
        %v550 = vrot.slane %v536, %v549
        %v551 = vcombine.low %v495, %v511
        %v552 = vcombine.high %v495, %v511
        %v554 = vunpack.c.l.s4 1934713408
        %v555 = vunpack.c.0.s8 %v554
        %v556 = vlaneseq
        %v557 = vshrl.u32 %v556, 7
        %v558 = vsub.s32 %v555, %v557
        %v559 = vrot.slane %v551, %v558
        %v561 = vunpack.c.l.s4 1934713408
        %v562 = vunpack.c.0.s8 %v561
        %v563 = vlaneseq
        %v564 = vshrl.u32 %v563, 7
        %v565 = vsub.s32 %v562, %v564
        %v566 = vrot.slane %v552, %v565
        %v567 = vcombine.low %v502, %v518
        %v568 = vcombine.high %v502, %v518
        %v570 = vunpack.c.l.s4 1934713408
        %v571 = vunpack.c.0.s8 %v570
        %v572 = vlaneseq
        %v573 = vshrl.u32 %v572, 7
        %v574 = vsub.s32 %v571, %v573
        %v575 = vrot.slane %v567, %v574
        %v577 = vunpack.c.l.s4 1934713408
        %v578 = vunpack.c.0.s8 %v577
        %v579 = vlaneseq
        %v580 = vshrl.u32 %v579, 7
        %v581 = vsub.s32 %v578, %v580
        %v582 = vrot.slane %v568, %v581
        %v583 = vcombine.low %v527, %v559
        %v584 = vcombine.high %v527, %v559
        %v585 = vcombine.low %v534, %v566
        %v586 = vcombine.high %v534, %v566
        %v587 = vcombine.low %v543, %v575
        %v588 = vcombine.high %v543, %v575
        %v589 = vcombine.low %v550, %v582
        %v590 = vcombine.high %v550, %v582
        %v591 = vcombine.low %v272, %v278
        %v592 = vcombine.high %v272, %v278
        %v594 = vunpack.c.l.s4 1983009808
        %v595 = vunpack.c.0.s8 %v594
        %v596 = vlaneseq
        %v597 = vshrl.u32 %v596, 7
        %v598 = vsub.s32 %v595, %v597
        %v599 = vrot.slane %v591, %v598
        %v601 = vunpack.c.l.s4 1983009808
        %v602 = vunpack.c.0.s8 %v601
        %v603 = vlaneseq
        %v604 = vshrl.u32 %v603, 7
        %v605 = vsub.s32 %v602, %v604
        %v606 = vrot.slane %v592, %v605
        %v607 = vcombine.low %v275, %v281
        %v608 = vcombine.high %v275, %v281
        %v610 = vunpack.c.l.s4 1983009808
        %v611 = vunpack.c.0.s8 %v610
        %v612 = vlaneseq
        %v613 = vshrl.u32 %v612, 7
        %v614 = vsub.s32 %v611, %v613
        %v615 = vrot.slane %v607, %v614
        %v617 = vunpack.c.l.s4 1983009808
        %v618 = vunpack.c.0.s8 %v617
        %v619 = vlaneseq
        %v620 = vshrl.u32 %v619, 7
        %v621 = vsub.s32 %v618, %v620
        %v622 = vrot.slane %v608, %v621
        %v623 = vcombine.low %v284, %v290
        %v624 = vcombine.high %v284, %v290
        %v626 = vunpack.c.l.s4 1983009808
        %v627 = vunpack.c.0.s8 %v626
        %v628 = vlaneseq
        %v629 = vshrl.u32 %v628, 7
        %v630 = vsub.s32 %v627, %v629
        %v631 = vrot.slane %v623, %v630
        %v633 = vunpack.c.l.s4 1983009808
        %v634 = vunpack.c.0.s8 %v633
        %v635 = vlaneseq
        %v636 = vshrl.u32 %v635, 7
        %v637 = vsub.s32 %v634, %v636
        %v638 = vrot.slane %v624, %v637
        %v639 = vcombine.low %v287, %v293
        %v640 = vcombine.high %v287, %v293
        %v642 = vunpack.c.l.s4 1983009808
        %v643 = vunpack.c.0.s8 %v642
        %v644 = vlaneseq
        %v645 = vshrl.u32 %v644, 7
        %v646 = vsub.s32 %v643, %v645
        %v647 = vrot.slane %v639, %v646
        %v649 = vunpack.c.l.s4 1983009808
        %v650 = vunpack.c.0.s8 %v649
        %v651 = vlaneseq
        %v652 = vshrl.u32 %v651, 7
        %v653 = vsub.s32 %v650, %v652
        %v654 = vrot.slane %v640, %v653
        %v655 = vcombine.low %v599, %v615
        %v656 = vcombine.high %v599, %v615
        %v658 = vunpack.c.l.s4 1934713408
        %v659 = vunpack.c.0.s8 %v658
        %v660 = vlaneseq
        %v661 = vshrl.u32 %v660, 7
        %v662 = vsub.s32 %v659, %v661
        %v663 = vrot.slane %v655, %v662
        %v665 = vunpack.c.l.s4 1934713408
        %v666 = vunpack.c.0.s8 %v665
        %v667 = vlaneseq
        %v668 = vshrl.u32 %v667, 7
        %v669 = vsub.s32 %v666, %v668
        %v670 = vrot.slane %v656, %v669
        %v671 = vcombine.low %v606, %v622
        %v672 = vcombine.high %v606, %v622
        %v674 = vunpack.c.l.s4 1934713408
        %v675 = vunpack.c.0.s8 %v674
        %v676 = vlaneseq
        %v677 = vshrl.u32 %v676, 7
        %v678 = vsub.s32 %v675, %v677
        %v679 = vrot.slane %v671, %v678
        %v681 = vunpack.c.l.s4 1934713408
        %v682 = vunpack.c.0.s8 %v681
        %v683 = vlaneseq
        %v684 = vshrl.u32 %v683, 7
        %v685 = vsub.s32 %v682, %v684
        %v686 = vrot.slane %v672, %v685
        %v687 = vcombine.low %v631, %v647
        %v688 = vcombine.high %v631, %v647
        %v690 = vunpack.c.l.s4 1934713408
        %v691 = vunpack.c.0.s8 %v690
        %v692 = vlaneseq
        %v693 = vshrl.u32 %v692, 7
        %v694 = vsub.s32 %v691, %v693
        %v695 = vrot.slane %v687, %v694
        %v697 = vunpack.c.l.s4 1934713408
        %v698 = vunpack.c.0.s8 %v697
        %v699 = vlaneseq
        %v700 = vshrl.u32 %v699, 7
        %v701 = vsub.s32 %v698, %v700
        %v702 = vrot.slane %v688, %v701
        %v703 = vcombine.low %v638, %v654
        %v704 = vcombine.high %v638, %v654
        %v706 = vunpack.c.l.s4 1934713408
        %v707 = vunpack.c.0.s8 %v706
        %v708 = vlaneseq
        %v709 = vshrl.u32 %v708, 7
        %v710 = vsub.s32 %v707, %v709
        %v711 = vrot.slane %v703, %v710
        %v713 = vunpack.c.l.s4 1934713408
        %v714 = vunpack.c.0.s8 %v713
        %v715 = vlaneseq
        %v716 = vshrl.u32 %v715, 7
        %v717 = vsub.s32 %v714, %v716
        %v718 = vrot.slane %v704, %v717
        %v719 = vcombine.low %v663, %v695
        %v720 = vcombine.high %v663, %v695
        %v721 = vcombine.low %v670, %v702
        %v722 = vcombine.high %v670, %v702
        %v723 = vcombine.low %v679, %v711
        %v724 = vcombine.high %v679, %v711
        %v725 = vcombine.low %v686, %v718
        %v726 = vcombine.high %v686, %v718
        %v727 = vcombine.low %v296, %v302
        %v728 = vcombine.high %v296, %v302
        %v730 = vunpack.c.l.s4 1983009808
        %v731 = vunpack.c.0.s8 %v730
        %v732 = vlaneseq
        %v733 = vshrl.u32 %v732, 7
        %v734 = vsub.s32 %v731, %v733
        %v735 = vrot.slane %v727, %v734
        %v737 = vunpack.c.l.s4 1983009808
        %v738 = vunpack.c.0.s8 %v737
        %v739 = vlaneseq
        %v740 = vshrl.u32 %v739, 7
        %v741 = vsub.s32 %v738, %v740
        %v742 = vrot.slane %v728, %v741
        %v743 = vcombine.low %v299, %v305
        %v744 = vcombine.high %v299, %v305
        %v746 = vunpack.c.l.s4 1983009808
        %v747 = vunpack.c.0.s8 %v746
        %v748 = vlaneseq
        %v749 = vshrl.u32 %v748, 7
        %v750 = vsub.s32 %v747, %v749
        %v751 = vrot.slane %v743, %v750
        %v753 = vunpack.c.l.s4 1983009808
        %v754 = vunpack.c.0.s8 %v753
        %v755 = vlaneseq
        %v756 = vshrl.u32 %v755, 7
        %v757 = vsub.s32 %v754, %v756
        %v758 = vrot.slane %v744, %v757
        %v759 = vcombine.low %v308, %v314
        %v760 = vcombine.high %v308, %v314
        %v762 = vunpack.c.l.s4 1983009808
        %v763 = vunpack.c.0.s8 %v762
        %v764 = vlaneseq
        %v765 = vshrl.u32 %v764, 7
        %v766 = vsub.s32 %v763, %v765
        %v767 = vrot.slane %v759, %v766
        %v769 = vunpack.c.l.s4 1983009808
        %v770 = vunpack.c.0.s8 %v769
        %v771 = vlaneseq
        %v772 = vshrl.u32 %v771, 7
        %v773 = vsub.s32 %v770, %v772
        %v774 = vrot.slane %v760, %v773
        %v775 = vcombine.low %v311, %v317
        %v776 = vcombine.high %v311, %v317
        %v778 = vunpack.c.l.s4 1983009808
        %v779 = vunpack.c.0.s8 %v778
        %v780 = vlaneseq
        %v781 = vshrl.u32 %v780, 7
        %v782 = vsub.s32 %v779, %v781
        %v783 = vrot.slane %v775, %v782
        %v785 = vunpack.c.l.s4 1983009808
        %v786 = vunpack.c.0.s8 %v785
        %v787 = vlaneseq
        %v788 = vshrl.u32 %v787, 7
        %v789 = vsub.s32 %v786, %v788
        %v790 = vrot.slane %v776, %v789
        %v791 = vcombine.low %v735, %v751
        %v792 = vcombine.high %v735, %v751
        %v794 = vunpack.c.l.s4 1934713408
        %v795 = vunpack.c.0.s8 %v794
        %v796 = vlaneseq
        %v797 = vshrl.u32 %v796, 7
        %v798 = vsub.s32 %v795, %v797
        %v799 = vrot.slane %v791, %v798
        %v801 = vunpack.c.l.s4 1934713408
        %v802 = vunpack.c.0.s8 %v801
        %v803 = vlaneseq
        %v804 = vshrl.u32 %v803, 7
        %v805 = vsub.s32 %v802, %v804
        %v806 = vrot.slane %v792, %v805
        %v807 = vcombine.low %v742, %v758
        %v808 = vcombine.high %v742, %v758
        %v810 = vunpack.c.l.s4 1934713408
        %v811 = vunpack.c.0.s8 %v810
        %v812 = vlaneseq
        %v813 = vshrl.u32 %v812, 7
        %v814 = vsub.s32 %v811, %v813
        %v815 = vrot.slane %v807, %v814
        %v817 = vunpack.c.l.s4 1934713408
        %v818 = vunpack.c.0.s8 %v817
        %v819 = vlaneseq
        %v820 = vshrl.u32 %v819, 7
        %v821 = vsub.s32 %v818, %v820
        %v822 = vrot.slane %v808, %v821
        %v823 = vcombine.low %v767, %v783
        %v824 = vcombine.high %v767, %v783
        %v826 = vunpack.c.l.s4 1934713408
        %v827 = vunpack.c.0.s8 %v826
        %v828 = vlaneseq
        %v829 = vshrl.u32 %v828, 7
        %v830 = vsub.s32 %v827, %v829
        %v831 = vrot.slane %v823, %v830
        %v833 = vunpack.c.l.s4 1934713408
        %v834 = vunpack.c.0.s8 %v833
        %v835 = vlaneseq
        %v836 = vshrl.u32 %v835, 7
        %v837 = vsub.s32 %v834, %v836
        %v838 = vrot.slane %v824, %v837
        %v839 = vcombine.low %v774, %v790
        %v840 = vcombine.high %v774, %v790
        %v842 = vunpack.c.l.s4 1934713408
        %v843 = vunpack.c.0.s8 %v842
        %v844 = vlaneseq
        %v845 = vshrl.u32 %v844, 7
        %v846 = vsub.s32 %v843, %v845
        %v847 = vrot.slane %v839, %v846
        %v849 = vunpack.c.l.s4 1934713408
        %v850 = vunpack.c.0.s8 %v849
        %v851 = vlaneseq
        %v852 = vshrl.u32 %v851, 7
        %v853 = vsub.s32 %v850, %v852
        %v854 = vrot.slane %v840, %v853
        %v855 = vcombine.low %v799, %v831
        %v856 = vcombine.high %v799, %v831
        %v857 = vcombine.low %v806, %v838
        %v858 = vcombine.high %v806, %v838
        %v859 = vcombine.low %v815, %v847
        %v860 = vcombine.high %v815, %v847
        %v861 = vcombine.low %v822, %v854
        %v862 = vcombine.high %v822, %v854
        %865 = vrot.lane.b32.xlu0 %v448, 16
        %v866 = vpop.permute.xlu0 %865
        %867 = vrot.lane.b32.xlu0 %v584, 16
        %v868 = vpop.permute.xlu0 %867
        %873 = vrot.lane.b32.xlu0 %v449, 32
        %v874 = vpop.permute.xlu0 %873
        %875 = vrot.lane.b32.xlu0 %v585, 32
        %v876 = vpop.permute.xlu0 %875
        %881 = vrot.lane.b32.xlu0 %v450, 48
        %v882 = vpop.permute.xlu0 %881
        %883 = vrot.lane.b32.xlu0 %v586, 48
        %v884 = vpop.permute.xlu0 %883
        %889 = vrot.lane.b32.xlu0 %v451, 64
        %v890 = vpop.permute.xlu0 %889
        %891 = vrot.lane.b32.xlu0 %v587, 64
        %v892 = vpop.permute.xlu0 %891
        %897 = vrot.lane.b32.xlu0 %v452, 80
        %v898 = vpop.permute.xlu0 %897
        %899 = vrot.lane.b32.xlu0 %v588, 80
        %v900 = vpop.permute.xlu0 %899
        %905 = vrot.lane.b32.xlu0 %v453, 96
        %v906 = vpop.permute.xlu0 %905
        %907 = vrot.lane.b32.xlu0 %v589, 96
        %v908 = vpop.permute.xlu0 %907
        %913 = vrot.lane.b32.xlu0 %v454, 112
        %v914 = vpop.permute.xlu0 %913
        %915 = vrot.lane.b32.xlu0 %v590, 112
        %v916 = vpop.permute.xlu0 %915
        %921 = vrot.lane.b32.xlu0 %v720, 16
        %v922 = vpop.permute.xlu0 %921
        %923 = vrot.lane.b32.xlu0 %v856, 16
        %v924 = vpop.permute.xlu0 %923
        %929 = vrot.lane.b32.xlu0 %v721, 32
        %v930 = vpop.permute.xlu0 %929
        %931 = vrot.lane.b32.xlu0 %v857, 32
        %v932 = vpop.permute.xlu0 %931
        %937 = vrot.lane.b32.xlu0 %v722, 48
        %v938 = vpop.permute.xlu0 %937
        %939 = vrot.lane.b32.xlu0 %v858, 48
        %v940 = vpop.permute.xlu0 %939
        %945 = vrot.lane.b32.xlu0 %v723, 64
        %v946 = vpop.permute.xlu0 %945
        %947 = vrot.lane.b32.xlu0 %v859, 64
        %v948 = vpop.permute.xlu0 %947
        %953 = vrot.lane.b32.xlu0 %v724, 80
        %v954 = vpop.permute.xlu0 %953
        %955 = vrot.lane.b32.xlu0 %v860, 80
        %v956 = vpop.permute.xlu0 %955
        %961 = vrot.lane.b32.xlu0 %v725, 96
        %v962 = vpop.permute.xlu0 %961
        %963 = vrot.lane.b32.xlu0 %v861, 96
        %v964 = vpop.permute.xlu0 %963
        %969 = vrot.lane.b32.xlu0 %v726, 112
        %v970 = vpop.permute.xlu0 %969
        %971 = vrot.lane.b32.xlu0 %v862, 112
        %v972 = vpop.permute.xlu0 %971
        %vm975 = vcmask 130048
        %v976 = vsel %vm975, %v447, %v866
        %v977 = vsel %vm975, %v583, %v868
        %vm978 = vcmask 261120
        %v979 = vsel %vm978, %v976, %v874
        %v980 = vsel %vm978, %v977, %v876
        %vm981 = vcmask 392192
        %v982 = vsel %vm981, %v979, %v882
        %v983 = vsel %vm981, %v980, %v884
        %vm984 = vcmask 523264
        %v985 = vsel %vm984, %v982, %v890
        %v986 = vsel %vm984, %v983, %v892
        %vm987 = vcmask 654336
        %v988 = vsel %vm987, %v985, %v898
        %v989 = vsel %vm987, %v986, %v900
        %vm990 = vcmask 785408
        %v991 = vsel %vm990, %v988, %v906
        %v992 = vsel %vm990, %v989, %v908
        %vm993 = vcmask 916480
        %v994 = vsel %vm993, %v991, %v914
        %v995 = vsel %vm993, %v992, %v916
        %v996 = vsel %vm975, %v719, %v922
        %v997 = vsel %vm975, %v855, %v924
        %v998 = vsel %vm978, %v996, %v930
        %v999 = vsel %vm978, %v997, %v932
        %v1000 = vsel %vm981, %v998, %v938
        %v1001 = vsel %vm981, %v999, %v940
        %v1002 = vsel %vm984, %v1000, %v946
        %v1003 = vsel %vm984, %v1001, %v948
        %v1004 = vsel %vm987, %v1002, %v954
        %v1005 = vsel %vm987, %v1003, %v956
        %v1006 = vsel %vm990, %v1004, %v962
        %v1007 = vsel %vm990, %v1005, %v964
        %v1008 = vsel %vm993, %v1006, %v970
        %v1009 = vsel %vm993, %v1007, %v972
        %1042 = vrot.lane.b32.xlu0 %v271, 127
        %v1043 = vpop.permute.xlu0 %1042
        %1044 = vrot.lane.b32.xlu0 %v272, 127
        %v1045 = vpop.permute.xlu0 %1044
        %1046 = vrot.lane.b32.xlu0 %v274, 127
        %v1047 = vpop.permute.xlu0 %1046
        %1048 = vrot.lane.b32.xlu0 %v275, 127
        %v1049 = vpop.permute.xlu0 %1048
        %1050 = vrot.lane.b32.xlu0 %v277, 127
        %v1051 = vpop.permute.xlu0 %1050
        %1052 = vrot.lane.b32.xlu0 %v278, 127
        %v1053 = vpop.permute.xlu0 %1052
        %1054 = vrot.lane.b32.xlu0 %v280, 127
        %v1055 = vpop.permute.xlu0 %1054
        %1056 = vrot.lane.b32.xlu0 %v281, 127
        %v1057 = vpop.permute.xlu0 %1056
        %1058 = vrot.lane.b32.xlu0 %v283, 127
        %v1059 = vpop.permute.xlu0 %1058
        %1060 = vrot.lane.b32.xlu0 %v284, 127
        %v1061 = vpop.permute.xlu0 %1060
        %1062 = vrot.lane.b32.xlu0 %v286, 127
        %v1063 = vpop.permute.xlu0 %1062
        %1064 = vrot.lane.b32.xlu0 %v287, 127
        %v1065 = vpop.permute.xlu0 %1064
        %1066 = vrot.lane.b32.xlu0 %v289, 127
        %v1067 = vpop.permute.xlu0 %1066
        %1068 = vrot.lane.b32.xlu0 %v290, 127
        %v1069 = vpop.permute.xlu0 %1068
        %1070 = vrot.lane.b32.xlu0 %v292, 127
        %v1071 = vpop.permute.xlu0 %1070
        %1072 = vrot.lane.b32.xlu0 %v293, 127
        %v1073 = vpop.permute.xlu0 %1072
        %1074 = vrot.lane.b32.xlu0 %v295, 127
        %v1075 = vpop.permute.xlu0 %1074
        %1076 = vrot.lane.b32.xlu0 %v296, 127
        %v1077 = vpop.permute.xlu0 %1076
        %1078 = vrot.lane.b32.xlu0 %v298, 127
        %v1079 = vpop.permute.xlu0 %1078
        %1080 = vrot.lane.b32.xlu0 %v299, 127
        %v1081 = vpop.permute.xlu0 %1080
        %1082 = vrot.lane.b32.xlu0 %v301, 127
        %v1083 = vpop.permute.xlu0 %1082
        %1084 = vrot.lane.b32.xlu0 %v302, 127
        %v1085 = vpop.permute.xlu0 %1084
        %1086 = vrot.lane.b32.xlu0 %v304, 127
        %v1087 = vpop.permute.xlu0 %1086
        %1088 = vrot.lane.b32.xlu0 %v305, 127
        %v1089 = vpop.permute.xlu0 %1088
        %1090 = vrot.lane.b32.xlu0 %v307, 127
        %v1091 = vpop.permute.xlu0 %1090
        %1092 = vrot.lane.b32.xlu0 %v308, 127
        %v1093 = vpop.permute.xlu0 %1092
        %1094 = vrot.lane.b32.xlu0 %v310, 127
        %v1095 = vpop.permute.xlu0 %1094
        %1096 = vrot.lane.b32.xlu0 %v311, 127
        %v1097 = vpop.permute.xlu0 %1096
        %1098 = vrot.lane.b32.xlu0 %v313, 127
        %v1099 = vpop.permute.xlu0 %1098
        %1100 = vrot.lane.b32.xlu0 %v314, 127
        %v1101 = vpop.permute.xlu0 %1100
        %1102 = vrot.lane.b32.xlu0 %v316, 127
        %v1103 = vpop.permute.xlu0 %1102
        %1104 = vrot.lane.b32.xlu0 %v317, 127
        %v1105 = vpop.permute.xlu0 %1104
        %v1138 = vcombine.low %v1043, %v1051
        %v1139 = vcombine.high %v1043, %v1051
        %v1141 = vunpack.c.l.s4 1983009808
        %v1142 = vunpack.c.0.s8 %v1141
        %v1143 = vlaneseq
        %v1144 = vshrl.u32 %v1143, 7
        %v1145 = vsub.s32 %v1142, %v1144
        %v1146 = vrot.slane %v1138, %v1145
        %v1148 = vunpack.c.l.s4 1983009808
        %v1149 = vunpack.c.0.s8 %v1148
        %v1150 = vlaneseq
        %v1151 = vshrl.u32 %v1150, 7
        %v1152 = vsub.s32 %v1149, %v1151
        %v1153 = vrot.slane %v1139, %v1152
        %v1154 = vcombine.low %v1047, %v1055
        %v1155 = vcombine.high %v1047, %v1055
        %v1157 = vunpack.c.l.s4 1983009808
        %v1158 = vunpack.c.0.s8 %v1157
        %v1159 = vlaneseq
        %v1160 = vshrl.u32 %v1159, 7
        %v1161 = vsub.s32 %v1158, %v1160
        %v1162 = vrot.slane %v1154, %v1161
        %v1164 = vunpack.c.l.s4 1983009808
        %v1165 = vunpack.c.0.s8 %v1164
        %v1166 = vlaneseq
        %v1167 = vshrl.u32 %v1166, 7
        %v1168 = vsub.s32 %v1165, %v1167
        %v1169 = vrot.slane %v1155, %v1168
        %v1170 = vcombine.low %v1059, %v1067
        %v1171 = vcombine.high %v1059, %v1067
        %v1173 = vunpack.c.l.s4 1983009808
        %v1174 = vunpack.c.0.s8 %v1173
        %v1175 = vlaneseq
        %v1176 = vshrl.u32 %v1175, 7
        %v1177 = vsub.s32 %v1174, %v1176
        %v1178 = vrot.slane %v1170, %v1177
        %v1180 = vunpack.c.l.s4 1983009808
        %v1181 = vunpack.c.0.s8 %v1180
        %v1182 = vlaneseq
        %v1183 = vshrl.u32 %v1182, 7
        %v1184 = vsub.s32 %v1181, %v1183
        %v1185 = vrot.slane %v1171, %v1184
        %v1186 = vcombine.low %v1063, %v1071
        %v1187 = vcombine.high %v1063, %v1071
        %v1189 = vunpack.c.l.s4 1983009808
        %v1190 = vunpack.c.0.s8 %v1189
        %v1191 = vlaneseq
        %v1192 = vshrl.u32 %v1191, 7
        %v1193 = vsub.s32 %v1190, %v1192
        %v1194 = vrot.slane %v1186, %v1193
        %v1196 = vunpack.c.l.s4 1983009808
        %v1197 = vunpack.c.0.s8 %v1196
        %v1198 = vlaneseq
        %v1199 = vshrl.u32 %v1198, 7
        %v1200 = vsub.s32 %v1197, %v1199
        %v1201 = vrot.slane %v1187, %v1200
        %v1202 = vcombine.low %v1146, %v1162
        %v1203 = vcombine.high %v1146, %v1162
        %v1205 = vunpack.c.l.s4 1934713408
        %v1206 = vunpack.c.0.s8 %v1205
        %v1207 = vlaneseq
        %v1208 = vshrl.u32 %v1207, 7
        %v1209 = vsub.s32 %v1206, %v1208
        %v1210 = vrot.slane %v1202, %v1209
        %v1212 = vunpack.c.l.s4 1934713408
        %v1213 = vunpack.c.0.s8 %v1212
        %v1214 = vlaneseq
        %v1215 = vshrl.u32 %v1214, 7
        %v1216 = vsub.s32 %v1213, %v1215
        %v1217 = vrot.slane %v1203, %v1216
        %v1218 = vcombine.low %v1153, %v1169
        %v1219 = vcombine.high %v1153, %v1169
        %v1221 = vunpack.c.l.s4 1934713408
        %v1222 = vunpack.c.0.s8 %v1221
        %v1223 = vlaneseq
        %v1224 = vshrl.u32 %v1223, 7
        %v1225 = vsub.s32 %v1222, %v1224
        %v1226 = vrot.slane %v1218, %v1225
        %v1228 = vunpack.c.l.s4 1934713408
        %v1229 = vunpack.c.0.s8 %v1228
        %v1230 = vlaneseq
        %v1231 = vshrl.u32 %v1230, 7
        %v1232 = vsub.s32 %v1229, %v1231
        %v1233 = vrot.slane %v1219, %v1232
        %v1234 = vcombine.low %v1178, %v1194
        %v1235 = vcombine.high %v1178, %v1194
        %v1237 = vunpack.c.l.s4 1934713408
        %v1238 = vunpack.c.0.s8 %v1237
        %v1239 = vlaneseq
        %v1240 = vshrl.u32 %v1239, 7
        %v1241 = vsub.s32 %v1238, %v1240
        %v1242 = vrot.slane %v1234, %v1241
        %v1244 = vunpack.c.l.s4 1934713408
        %v1245 = vunpack.c.0.s8 %v1244
        %v1246 = vlaneseq
        %v1247 = vshrl.u32 %v1246, 7
        %v1248 = vsub.s32 %v1245, %v1247
        %v1249 = vrot.slane %v1235, %v1248
        %v1250 = vcombine.low %v1185, %v1201
        %v1251 = vcombine.high %v1185, %v1201
        %v1253 = vunpack.c.l.s4 1934713408
        %v1254 = vunpack.c.0.s8 %v1253
        %v1255 = vlaneseq
        %v1256 = vshrl.u32 %v1255, 7
        %v1257 = vsub.s32 %v1254, %v1256
        %v1258 = vrot.slane %v1250, %v1257
        %v1260 = vunpack.c.l.s4 1934713408
        %v1261 = vunpack.c.0.s8 %v1260
        %v1262 = vlaneseq
        %v1263 = vshrl.u32 %v1262, 7
        %v1264 = vsub.s32 %v1261, %v1263
        %v1265 = vrot.slane %v1251, %v1264
        %v1266 = vcombine.low %v1210, %v1242
        %v1267 = vcombine.high %v1210, %v1242
        %v1268 = vcombine.low %v1217, %v1249
        %v1269 = vcombine.high %v1217, %v1249
        %v1270 = vcombine.low %v1226, %v1258
        %v1271 = vcombine.high %v1226, %v1258
        %v1272 = vcombine.low %v1233, %v1265
        %v1273 = vcombine.high %v1233, %v1265
        %v1274 = vcombine.low %v1075, %v1083
        %v1275 = vcombine.high %v1075, %v1083
        %v1277 = vunpack.c.l.s4 1983009808
        %v1278 = vunpack.c.0.s8 %v1277
        %v1279 = vlaneseq
        %v1280 = vshrl.u32 %v1279, 7
        %v1281 = vsub.s32 %v1278, %v1280
        %v1282 = vrot.slane %v1274, %v1281
        %v1284 = vunpack.c.l.s4 1983009808
        %v1285 = vunpack.c.0.s8 %v1284
        %v1286 = vlaneseq
        %v1287 = vshrl.u32 %v1286, 7
        %v1288 = vsub.s32 %v1285, %v1287
        %v1289 = vrot.slane %v1275, %v1288
        %v1290 = vcombine.low %v1079, %v1087
        %v1291 = vcombine.high %v1079, %v1087
        %v1293 = vunpack.c.l.s4 1983009808
        %v1294 = vunpack.c.0.s8 %v1293
        %v1295 = vlaneseq
        %v1296 = vshrl.u32 %v1295, 7
        %v1297 = vsub.s32 %v1294, %v1296
        %v1298 = vrot.slane %v1290, %v1297
        %v1300 = vunpack.c.l.s4 1983009808
        %v1301 = vunpack.c.0.s8 %v1300
        %v1302 = vlaneseq
        %v1303 = vshrl.u32 %v1302, 7
        %v1304 = vsub.s32 %v1301, %v1303
        %v1305 = vrot.slane %v1291, %v1304
        %v1306 = vcombine.low %v1091, %v1099
        %v1307 = vcombine.high %v1091, %v1099
        %v1309 = vunpack.c.l.s4 1983009808
        %v1310 = vunpack.c.0.s8 %v1309
        %v1311 = vlaneseq
        %v1312 = vshrl.u32 %v1311, 7
        %v1313 = vsub.s32 %v1310, %v1312
        %v1314 = vrot.slane %v1306, %v1313
        %v1316 = vunpack.c.l.s4 1983009808
        %v1317 = vunpack.c.0.s8 %v1316
        %v1318 = vlaneseq
        %v1319 = vshrl.u32 %v1318, 7
        %v1320 = vsub.s32 %v1317, %v1319
        %v1321 = vrot.slane %v1307, %v1320
        %v1322 = vcombine.low %v1095, %v1103
        %v1323 = vcombine.high %v1095, %v1103
        %v1325 = vunpack.c.l.s4 1983009808
        %v1326 = vunpack.c.0.s8 %v1325
        %v1327 = vlaneseq
        %v1328 = vshrl.u32 %v1327, 7
        %v1329 = vsub.s32 %v1326, %v1328
        %v1330 = vrot.slane %v1322, %v1329
        %v1332 = vunpack.c.l.s4 1983009808
        %v1333 = vunpack.c.0.s8 %v1332
        %v1334 = vlaneseq
        %v1335 = vshrl.u32 %v1334, 7
        %v1336 = vsub.s32 %v1333, %v1335
        %v1337 = vrot.slane %v1323, %v1336
        %v1338 = vcombine.low %v1282, %v1298
        %v1339 = vcombine.high %v1282, %v1298
        %v1341 = vunpack.c.l.s4 1934713408
        %v1342 = vunpack.c.0.s8 %v1341
        %v1343 = vlaneseq
        %v1344 = vshrl.u32 %v1343, 7
        %v1345 = vsub.s32 %v1342, %v1344
        %v1346 = vrot.slane %v1338, %v1345
        %v1348 = vunpack.c.l.s4 1934713408
        %v1349 = vunpack.c.0.s8 %v1348
        %v1350 = vlaneseq
        %v1351 = vshrl.u32 %v1350, 7
        %v1352 = vsub.s32 %v1349, %v1351
        %v1353 = vrot.slane %v1339, %v1352
        %v1354 = vcombine.low %v1289, %v1305
        %v1355 = vcombine.high %v1289, %v1305
        %v1357 = vunpack.c.l.s4 1934713408
        %v1358 = vunpack.c.0.s8 %v1357
        %v1359 = vlaneseq
        %v1360 = vshrl.u32 %v1359, 7
        %v1361 = vsub.s32 %v1358, %v1360
        %v1362 = vrot.slane %v1354, %v1361
        %v1364 = vunpack.c.l.s4 1934713408
        %v1365 = vunpack.c.0.s8 %v1364
        %v1366 = vlaneseq
        %v1367 = vshrl.u32 %v1366, 7
        %v1368 = vsub.s32 %v1365, %v1367
        %v1369 = vrot.slane %v1355, %v1368
        %v1370 = vcombine.low %v1314, %v1330
        %v1371 = vcombine.high %v1314, %v1330
        %v1373 = vunpack.c.l.s4 1934713408
        %v1374 = vunpack.c.0.s8 %v1373
        %v1375 = vlaneseq
        %v1376 = vshrl.u32 %v1375, 7
        %v1377 = vsub.s32 %v1374, %v1376
        %v1378 = vrot.slane %v1370, %v1377
        %v1380 = vunpack.c.l.s4 1934713408
        %v1381 = vunpack.c.0.s8 %v1380
        %v1382 = vlaneseq
        %v1383 = vshrl.u32 %v1382, 7
        %v1384 = vsub.s32 %v1381, %v1383
        %v1385 = vrot.slane %v1371, %v1384
        %v1386 = vcombine.low %v1321, %v1337
        %v1387 = vcombine.high %v1321, %v1337
        %v1389 = vunpack.c.l.s4 1934713408
        %v1390 = vunpack.c.0.s8 %v1389
        %v1391 = vlaneseq
        %v1392 = vshrl.u32 %v1391, 7
        %v1393 = vsub.s32 %v1390, %v1392
        %v1394 = vrot.slane %v1386, %v1393
        %v1396 = vunpack.c.l.s4 1934713408
        %v1397 = vunpack.c.0.s8 %v1396
        %v1398 = vlaneseq
        %v1399 = vshrl.u32 %v1398, 7
        %v1400 = vsub.s32 %v1397, %v1399
        %v1401 = vrot.slane %v1387, %v1400
        %v1402 = vcombine.low %v1346, %v1378
        %v1403 = vcombine.high %v1346, %v1378
        %v1404 = vcombine.low %v1353, %v1385
        %v1405 = vcombine.high %v1353, %v1385
        %v1406 = vcombine.low %v1362, %v1394
        %v1407 = vcombine.high %v1362, %v1394
        %v1408 = vcombine.low %v1369, %v1401
        %v1409 = vcombine.high %v1369, %v1401
        %v1410 = vcombine.low %v1045, %v1053
        %v1411 = vcombine.high %v1045, %v1053
        %v1413 = vunpack.c.l.s4 1983009808
        %v1414 = vunpack.c.0.s8 %v1413
        %v1415 = vlaneseq
        %v1416 = vshrl.u32 %v1415, 7
        %v1417 = vsub.s32 %v1414, %v1416
        %v1418 = vrot.slane %v1410, %v1417
        %v1420 = vunpack.c.l.s4 1983009808
        %v1421 = vunpack.c.0.s8 %v1420
        %v1422 = vlaneseq
        %v1423 = vshrl.u32 %v1422, 7
        %v1424 = vsub.s32 %v1421, %v1423
        %v1425 = vrot.slane %v1411, %v1424
        %v1426 = vcombine.low %v1049, %v1057
        %v1427 = vcombine.high %v1049, %v1057
        %v1429 = vunpack.c.l.s4 1983009808
        %v1430 = vunpack.c.0.s8 %v1429
        %v1431 = vlaneseq
        %v1432 = vshrl.u32 %v1431, 7
        %v1433 = vsub.s32 %v1430, %v1432
        %v1434 = vrot.slane %v1426, %v1433
        %v1436 = vunpack.c.l.s4 1983009808
        %v1437 = vunpack.c.0.s8 %v1436
        %v1438 = vlaneseq
        %v1439 = vshrl.u32 %v1438, 7
        %v1440 = vsub.s32 %v1437, %v1439
        %v1441 = vrot.slane %v1427, %v1440
        %v1442 = vcombine.low %v1061, %v1069
        %v1443 = vcombine.high %v1061, %v1069
        %v1445 = vunpack.c.l.s4 1983009808
        %v1446 = vunpack.c.0.s8 %v1445
        %v1447 = vlaneseq
        %v1448 = vshrl.u32 %v1447, 7
        %v1449 = vsub.s32 %v1446, %v1448
        %v1450 = vrot.slane %v1442, %v1449
        %v1452 = vunpack.c.l.s4 1983009808
        %v1453 = vunpack.c.0.s8 %v1452
        %v1454 = vlaneseq
        %v1455 = vshrl.u32 %v1454, 7
        %v1456 = vsub.s32 %v1453, %v1455
        %v1457 = vrot.slane %v1443, %v1456
        %v1458 = vcombine.low %v1065, %v1073
        %v1459 = vcombine.high %v1065, %v1073
        %v1461 = vunpack.c.l.s4 1983009808
        %v1462 = vunpack.c.0.s8 %v1461
        %v1463 = vlaneseq
        %v1464 = vshrl.u32 %v1463, 7
        %v1465 = vsub.s32 %v1462, %v1464
        %v1466 = vrot.slane %v1458, %v1465
        %v1468 = vunpack.c.l.s4 1983009808
        %v1469 = vunpack.c.0.s8 %v1468
        %v1470 = vlaneseq
        %v1471 = vshrl.u32 %v1470, 7
        %v1472 = vsub.s32 %v1469, %v1471
        %v1473 = vrot.slane %v1459, %v1472
        %v1474 = vcombine.low %v1418, %v1434
        %v1475 = vcombine.high %v1418, %v1434
        %v1477 = vunpack.c.l.s4 1934713408
        %v1478 = vunpack.c.0.s8 %v1477
        %v1479 = vlaneseq
        %v1480 = vshrl.u32 %v1479, 7
        %v1481 = vsub.s32 %v1478, %v1480
        %v1482 = vrot.slane %v1474, %v1481
        %v1484 = vunpack.c.l.s4 1934713408
        %v1485 = vunpack.c.0.s8 %v1484
        %v1486 = vlaneseq
        %v1487 = vshrl.u32 %v1486, 7
        %v1488 = vsub.s32 %v1485, %v1487
        %v1489 = vrot.slane %v1475, %v1488
        %v1490 = vcombine.low %v1425, %v1441
        %v1491 = vcombine.high %v1425, %v1441
        %v1493 = vunpack.c.l.s4 1934713408
        %v1494 = vunpack.c.0.s8 %v1493
        %v1495 = vlaneseq
        %v1496 = vshrl.u32 %v1495, 7
        %v1497 = vsub.s32 %v1494, %v1496
        %v1498 = vrot.slane %v1490, %v1497
        %v1500 = vunpack.c.l.s4 1934713408
        %v1501 = vunpack.c.0.s8 %v1500
        %v1502 = vlaneseq
        %v1503 = vshrl.u32 %v1502, 7
        %v1504 = vsub.s32 %v1501, %v1503
        %v1505 = vrot.slane %v1491, %v1504
        %v1506 = vcombine.low %v1450, %v1466
        %v1507 = vcombine.high %v1450, %v1466
        %v1509 = vunpack.c.l.s4 1934713408
        %v1510 = vunpack.c.0.s8 %v1509
        %v1511 = vlaneseq
        %v1512 = vshrl.u32 %v1511, 7
        %v1513 = vsub.s32 %v1510, %v1512
        %v1514 = vrot.slane %v1506, %v1513
        %v1516 = vunpack.c.l.s4 1934713408
        %v1517 = vunpack.c.0.s8 %v1516
        %v1518 = vlaneseq
        %v1519 = vshrl.u32 %v1518, 7
        %v1520 = vsub.s32 %v1517, %v1519
        %v1521 = vrot.slane %v1507, %v1520
        %v1522 = vcombine.low %v1457, %v1473
        %v1523 = vcombine.high %v1457, %v1473
        %v1525 = vunpack.c.l.s4 1934713408
        %v1526 = vunpack.c.0.s8 %v1525
        %v1527 = vlaneseq
        %v1528 = vshrl.u32 %v1527, 7
        %v1529 = vsub.s32 %v1526, %v1528
        %v1530 = vrot.slane %v1522, %v1529
        %v1532 = vunpack.c.l.s4 1934713408
        %v1533 = vunpack.c.0.s8 %v1532
        %v1534 = vlaneseq
        %v1535 = vshrl.u32 %v1534, 7
        %v1536 = vsub.s32 %v1533, %v1535
        %v1537 = vrot.slane %v1523, %v1536
        %v1538 = vcombine.low %v1482, %v1514
        %v1539 = vcombine.high %v1482, %v1514
        %v1540 = vcombine.low %v1489, %v1521
        %v1541 = vcombine.high %v1489, %v1521
        %v1542 = vcombine.low %v1498, %v1530
        %v1543 = vcombine.high %v1498, %v1530
        %v1544 = vcombine.low %v1505, %v1537
        %v1545 = vcombine.high %v1505, %v1537
        %v1546 = vcombine.low %v1077, %v1085
        %v1547 = vcombine.high %v1077, %v1085
        %v1549 = vunpack.c.l.s4 1983009808
        %v1550 = vunpack.c.0.s8 %v1549
        %v1551 = vlaneseq
        %v1552 = vshrl.u32 %v1551, 7
        %v1553 = vsub.s32 %v1550, %v1552
        %v1554 = vrot.slane %v1546, %v1553
        %v1556 = vunpack.c.l.s4 1983009808
        %v1557 = vunpack.c.0.s8 %v1556
        %v1558 = vlaneseq
        %v1559 = vshrl.u32 %v1558, 7
        %v1560 = vsub.s32 %v1557, %v1559
        %v1561 = vrot.slane %v1547, %v1560
        %v1562 = vcombine.low %v1081, %v1089
        %v1563 = vcombine.high %v1081, %v1089
        %v1565 = vunpack.c.l.s4 1983009808
        %v1566 = vunpack.c.0.s8 %v1565
        %v1567 = vlaneseq
        %v1568 = vshrl.u32 %v1567, 7
        %v1569 = vsub.s32 %v1566, %v1568
        %v1570 = vrot.slane %v1562, %v1569
        %v1572 = vunpack.c.l.s4 1983009808
        %v1573 = vunpack.c.0.s8 %v1572
        %v1574 = vlaneseq
        %v1575 = vshrl.u32 %v1574, 7
        %v1576 = vsub.s32 %v1573, %v1575
        %v1577 = vrot.slane %v1563, %v1576
        %v1578 = vcombine.low %v1093, %v1101
        %v1579 = vcombine.high %v1093, %v1101
        %v1581 = vunpack.c.l.s4 1983009808
        %v1582 = vunpack.c.0.s8 %v1581
        %v1583 = vlaneseq
        %v1584 = vshrl.u32 %v1583, 7
        %v1585 = vsub.s32 %v1582, %v1584
        %v1586 = vrot.slane %v1578, %v1585
        %v1588 = vunpack.c.l.s4 1983009808
        %v1589 = vunpack.c.0.s8 %v1588
        %v1590 = vlaneseq
        %v1591 = vshrl.u32 %v1590, 7
        %v1592 = vsub.s32 %v1589, %v1591
        %v1593 = vrot.slane %v1579, %v1592
        %v1594 = vcombine.low %v1097, %v1105
        %v1595 = vcombine.high %v1097, %v1105
        %v1597 = vunpack.c.l.s4 1983009808
        %v1598 = vunpack.c.0.s8 %v1597
        %v1599 = vlaneseq
        %v1600 = vshrl.u32 %v1599, 7
        %v1601 = vsub.s32 %v1598, %v1600
        %v1602 = vrot.slane %v1594, %v1601
        %v1604 = vunpack.c.l.s4 1983009808
        %v1605 = vunpack.c.0.s8 %v1604
        %v1606 = vlaneseq
        %v1607 = vshrl.u32 %v1606, 7
        %v1608 = vsub.s32 %v1605, %v1607
        %v1609 = vrot.slane %v1595, %v1608
        %v1610 = vcombine.low %v1554, %v1570
        %v1611 = vcombine.high %v1554, %v1570
        %v1613 = vunpack.c.l.s4 1934713408
        %v1614 = vunpack.c.0.s8 %v1613
        %v1615 = vlaneseq
        %v1616 = vshrl.u32 %v1615, 7
        %v1617 = vsub.s32 %v1614, %v1616
        %v1618 = vrot.slane %v1610, %v1617
        %v1620 = vunpack.c.l.s4 1934713408
        %v1621 = vunpack.c.0.s8 %v1620
        %v1622 = vlaneseq
        %v1623 = vshrl.u32 %v1622, 7
        %v1624 = vsub.s32 %v1621, %v1623
        %v1625 = vrot.slane %v1611, %v1624
        %v1626 = vcombine.low %v1561, %v1577
        %v1627 = vcombine.high %v1561, %v1577
        %v1629 = vunpack.c.l.s4 1934713408
        %v1630 = vunpack.c.0.s8 %v1629
        %v1631 = vlaneseq
        %v1632 = vshrl.u32 %v1631, 7
        %v1633 = vsub.s32 %v1630, %v1632
        %v1634 = vrot.slane %v1626, %v1633
        %v1636 = vunpack.c.l.s4 1934713408
        %v1637 = vunpack.c.0.s8 %v1636
        %v1638 = vlaneseq
        %v1639 = vshrl.u32 %v1638, 7
        %v1640 = vsub.s32 %v1637, %v1639
        %v1641 = vrot.slane %v1627, %v1640
        %v1642 = vcombine.low %v1586, %v1602
        %v1643 = vcombine.high %v1586, %v1602
        %v1645 = vunpack.c.l.s4 1934713408
        %v1646 = vunpack.c.0.s8 %v1645
        %v1647 = vlaneseq
        %v1648 = vshrl.u32 %v1647, 7
        %v1649 = vsub.s32 %v1646, %v1648
        %v1650 = vrot.slane %v1642, %v1649
        %v1652 = vunpack.c.l.s4 1934713408
        %v1653 = vunpack.c.0.s8 %v1652
        %v1654 = vlaneseq
        %v1655 = vshrl.u32 %v1654, 7
        %v1656 = vsub.s32 %v1653, %v1655
        %v1657 = vrot.slane %v1643, %v1656
        %v1658 = vcombine.low %v1593, %v1609
        %v1659 = vcombine.high %v1593, %v1609
        %v1661 = vunpack.c.l.s4 1934713408
        %v1662 = vunpack.c.0.s8 %v1661
        %v1663 = vlaneseq
        %v1664 = vshrl.u32 %v1663, 7
        %v1665 = vsub.s32 %v1662, %v1664
        %v1666 = vrot.slane %v1658, %v1665
        %v1668 = vunpack.c.l.s4 1934713408
        %v1669 = vunpack.c.0.s8 %v1668
        %v1670 = vlaneseq
        %v1671 = vshrl.u32 %v1670, 7
        %v1672 = vsub.s32 %v1669, %v1671
        %v1673 = vrot.slane %v1659, %v1672
        %v1674 = vcombine.low %v1618, %v1650
        %v1675 = vcombine.high %v1618, %v1650
        %v1676 = vcombine.low %v1625, %v1657
        %v1677 = vcombine.high %v1625, %v1657
        %v1678 = vcombine.low %v1634, %v1666
        %v1679 = vcombine.high %v1634, %v1666
        %v1680 = vcombine.low %v1641, %v1673
        %v1681 = vcombine.high %v1641, %v1673
        %1684 = vrot.lane.b32.xlu0 %v1267, 16
        %v1685 = vpop.permute.xlu0 %1684
        %1686 = vrot.lane.b32.xlu0 %v1403, 16
        %v1687 = vpop.permute.xlu0 %1686
        %1692 = vrot.lane.b32.xlu0 %v1268, 32
        %v1693 = vpop.permute.xlu0 %1692
        %1694 = vrot.lane.b32.xlu0 %v1404, 32
        %v1695 = vpop.permute.xlu0 %1694
        %1700 = vrot.lane.b32.xlu0 %v1269, 48
        %v1701 = vpop.permute.xlu0 %1700
        %1702 = vrot.lane.b32.xlu0 %v1405, 48
        %v1703 = vpop.permute.xlu0 %1702
        %1708 = vrot.lane.b32.xlu0 %v1270, 64
        %v1709 = vpop.permute.xlu0 %1708
        %1710 = vrot.lane.b32.xlu0 %v1406, 64
        %v1711 = vpop.permute.xlu0 %1710
        %1716 = vrot.lane.b32.xlu0 %v1271, 80
        %v1717 = vpop.permute.xlu0 %1716
        %1718 = vrot.lane.b32.xlu0 %v1407, 80
        %v1719 = vpop.permute.xlu0 %1718
        %1724 = vrot.lane.b32.xlu0 %v1272, 96
        %v1725 = vpop.permute.xlu0 %1724
        %1726 = vrot.lane.b32.xlu0 %v1408, 96
        %v1727 = vpop.permute.xlu0 %1726
        %1732 = vrot.lane.b32.xlu0 %v1273, 112
        %v1733 = vpop.permute.xlu0 %1732
        %1734 = vrot.lane.b32.xlu0 %v1409, 112
        %v1735 = vpop.permute.xlu0 %1734
        %1740 = vrot.lane.b32.xlu0 %v1539, 16
        %v1741 = vpop.permute.xlu0 %1740
        %1742 = vrot.lane.b32.xlu0 %v1675, 16
        %v1743 = vpop.permute.xlu0 %1742
        %1748 = vrot.lane.b32.xlu0 %v1540, 32
        %v1749 = vpop.permute.xlu0 %1748
        %1750 = vrot.lane.b32.xlu0 %v1676, 32
        %v1751 = vpop.permute.xlu0 %1750
        %1756 = vrot.lane.b32.xlu0 %v1541, 48
        %v1757 = vpop.permute.xlu0 %1756
        %1758 = vrot.lane.b32.xlu0 %v1677, 48
        %v1759 = vpop.permute.xlu0 %1758
        %1764 = vrot.lane.b32.xlu0 %v1542, 64
        %v1765 = vpop.permute.xlu0 %1764
        %1766 = vrot.lane.b32.xlu0 %v1678, 64
        %v1767 = vpop.permute.xlu0 %1766
        %1772 = vrot.lane.b32.xlu0 %v1543, 80
        %v1773 = vpop.permute.xlu0 %1772
        %1774 = vrot.lane.b32.xlu0 %v1679, 80
        %v1775 = vpop.permute.xlu0 %1774
        %1780 = vrot.lane.b32.xlu0 %v1544, 96
        %v1781 = vpop.permute.xlu0 %1780
        %1782 = vrot.lane.b32.xlu0 %v1680, 96
        %v1783 = vpop.permute.xlu0 %1782
        %1788 = vrot.lane.b32.xlu0 %v1545, 112
        %v1789 = vpop.permute.xlu0 %1788
        %1790 = vrot.lane.b32.xlu0 %v1681, 112
        %v1791 = vpop.permute.xlu0 %1790
        %v1794 = vsel %vm975, %v1266, %v1685
        %v1795 = vsel %vm975, %v1402, %v1687
        %v1796 = vsel %vm978, %v1794, %v1693
        %v1797 = vsel %vm978, %v1795, %v1695
        %v1798 = vsel %vm981, %v1796, %v1701
        %v1799 = vsel %vm981, %v1797, %v1703
        %v1800 = vsel %vm984, %v1798, %v1709
        %v1801 = vsel %vm984, %v1799, %v1711
        %v1802 = vsel %vm987, %v1800, %v1717
        %v1803 = vsel %vm987, %v1801, %v1719
        %v1804 = vsel %vm990, %v1802, %v1725
        %v1805 = vsel %vm990, %v1803, %v1727
        %v1806 = vsel %vm993, %v1804, %v1733
        %v1807 = vsel %vm993, %v1805, %v1735
        %v1808 = vsel %vm975, %v1538, %v1741
        %v1809 = vsel %vm975, %v1674, %v1743
        %v1810 = vsel %vm978, %v1808, %v1749
        %v1811 = vsel %vm978, %v1809, %v1751
        %v1812 = vsel %vm981, %v1810, %v1757
        %v1813 = vsel %vm981, %v1811, %v1759
        %v1814 = vsel %vm984, %v1812, %v1765
        %v1815 = vsel %vm984, %v1813, %v1767
        %v1816 = vsel %vm987, %v1814, %v1773
        %v1817 = vsel %vm987, %v1815, %v1775
        %v1818 = vsel %vm990, %v1816, %v1781
        %v1819 = vsel %vm990, %v1817, %v1783
        %v1820 = vsel %vm993, %v1818, %v1789
        %v1821 = vsel %vm993, %v1819, %v1791
        %1822 = vrot.lane.b32.xlu0 %v271, 126
        %v1823 = vpop.permute.xlu0 %1822
        %1824 = vrot.lane.b32.xlu0 %v272, 126
        %v1825 = vpop.permute.xlu0 %1824
        %1826 = vrot.lane.b32.xlu0 %v274, 126
        %v1827 = vpop.permute.xlu0 %1826
        %1828 = vrot.lane.b32.xlu0 %v275, 126
        %v1829 = vpop.permute.xlu0 %1828
        %1830 = vrot.lane.b32.xlu0 %v277, 126
        %v1831 = vpop.permute.xlu0 %1830
        %1832 = vrot.lane.b32.xlu0 %v278, 126
        %v1833 = vpop.permute.xlu0 %1832
        %1834 = vrot.lane.b32.xlu0 %v280, 126
        %v1835 = vpop.permute.xlu0 %1834
        %1836 = vrot.lane.b32.xlu0 %v281, 126
        %v1837 = vpop.permute.xlu0 %1836
        %1838 = vrot.lane.b32.xlu0 %v283, 126
        %v1839 = vpop.permute.xlu0 %1838
        %1840 = vrot.lane.b32.xlu0 %v284, 126
        %v1841 = vpop.permute.xlu0 %1840
        %1842 = vrot.lane.b32.xlu0 %v286, 126
        %v1843 = vpop.permute.xlu0 %1842
        %1844 = vrot.lane.b32.xlu0 %v287, 126
        %v1845 = vpop.permute.xlu0 %1844
        %1846 = vrot.lane.b32.xlu0 %v289, 126
        %v1847 = vpop.permute.xlu0 %1846
        %1848 = vrot.lane.b32.xlu0 %v290, 126
        %v1849 = vpop.permute.xlu0 %1848
        %1850 = vrot.lane.b32.xlu0 %v292, 126
        %v1851 = vpop.permute.xlu0 %1850
        %1852 = vrot.lane.b32.xlu0 %v293, 126
        %v1853 = vpop.permute.xlu0 %1852
        %1854 = vrot.lane.b32.xlu0 %v295, 126
        %v1855 = vpop.permute.xlu0 %1854
        %1856 = vrot.lane.b32.xlu0 %v296, 126
        %v1857 = vpop.permute.xlu0 %1856
        %1858 = vrot.lane.b32.xlu0 %v298, 126
        %v1859 = vpop.permute.xlu0 %1858
        %1860 = vrot.lane.b32.xlu0 %v299, 126
        %v1861 = vpop.permute.xlu0 %1860
        %1862 = vrot.lane.b32.xlu0 %v301, 126
        %v1863 = vpop.permute.xlu0 %1862
        %1864 = vrot.lane.b32.xlu0 %v302, 126
        %v1865 = vpop.permute.xlu0 %1864
        %1866 = vrot.lane.b32.xlu0 %v304, 126
        %v1867 = vpop.permute.xlu0 %1866
        %1868 = vrot.lane.b32.xlu0 %v305, 126
        %v1869 = vpop.permute.xlu0 %1868
        %1870 = vrot.lane.b32.xlu0 %v307, 126
        %v1871 = vpop.permute.xlu0 %1870
        %1872 = vrot.lane.b32.xlu0 %v308, 126
        %v1873 = vpop.permute.xlu0 %1872
        %1874 = vrot.lane.b32.xlu0 %v310, 126
        %v1875 = vpop.permute.xlu0 %1874
        %1876 = vrot.lane.b32.xlu0 %v311, 126
        %v1877 = vpop.permute.xlu0 %1876
        %1878 = vrot.lane.b32.xlu0 %v313, 126
        %v1879 = vpop.permute.xlu0 %1878
        %1880 = vrot.lane.b32.xlu0 %v314, 126
        %v1881 = vpop.permute.xlu0 %1880
        %1882 = vrot.lane.b32.xlu0 %v316, 126
        %v1883 = vpop.permute.xlu0 %1882
        %1884 = vrot.lane.b32.xlu0 %v317, 126
        %v1885 = vpop.permute.xlu0 %1884
        %v1918 = vcombine.low %v1823, %v1831
        %v1919 = vcombine.high %v1823, %v1831
        %v1921 = vunpack.c.l.s4 1983009808
        %v1922 = vunpack.c.0.s8 %v1921
        %v1923 = vlaneseq
        %v1924 = vshrl.u32 %v1923, 7
        %v1925 = vsub.s32 %v1922, %v1924
        %v1926 = vrot.slane %v1918, %v1925
        %v1928 = vunpack.c.l.s4 1983009808
        %v1929 = vunpack.c.0.s8 %v1928
        %v1930 = vlaneseq
        %v1931 = vshrl.u32 %v1930, 7
        %v1932 = vsub.s32 %v1929, %v1931
        %v1933 = vrot.slane %v1919, %v1932
        %v1934 = vcombine.low %v1827, %v1835
        %v1935 = vcombine.high %v1827, %v1835
        %v1937 = vunpack.c.l.s4 1983009808
        %v1938 = vunpack.c.0.s8 %v1937
        %v1939 = vlaneseq
        %v1940 = vshrl.u32 %v1939, 7
        %v1941 = vsub.s32 %v1938, %v1940
        %v1942 = vrot.slane %v1934, %v1941
        %v1944 = vunpack.c.l.s4 1983009808
        %v1945 = vunpack.c.0.s8 %v1944
        %v1946 = vlaneseq
        %v1947 = vshrl.u32 %v1946, 7
        %v1948 = vsub.s32 %v1945, %v1947
        %v1949 = vrot.slane %v1935, %v1948
        %v1950 = vcombine.low %v1839, %v1847
        %v1951 = vcombine.high %v1839, %v1847
        %v1953 = vunpack.c.l.s4 1983009808
        %v1954 = vunpack.c.0.s8 %v1953
        %v1955 = vlaneseq
        %v1956 = vshrl.u32 %v1955, 7
        %v1957 = vsub.s32 %v1954, %v1956
        %v1958 = vrot.slane %v1950, %v1957
        %v1960 = vunpack.c.l.s4 1983009808
        %v1961 = vunpack.c.0.s8 %v1960
        %v1962 = vlaneseq
        %v1963 = vshrl.u32 %v1962, 7
        %v1964 = vsub.s32 %v1961, %v1963
        %v1965 = vrot.slane %v1951, %v1964
        %v1966 = vcombine.low %v1843, %v1851
        %v1967 = vcombine.high %v1843, %v1851
        %v1969 = vunpack.c.l.s4 1983009808
        %v1970 = vunpack.c.0.s8 %v1969
        %v1971 = vlaneseq
        %v1972 = vshrl.u32 %v1971, 7
        %v1973 = vsub.s32 %v1970, %v1972
        %v1974 = vrot.slane %v1966, %v1973
        %v1976 = vunpack.c.l.s4 1983009808
        %v1977 = vunpack.c.0.s8 %v1976
        %v1978 = vlaneseq
        %v1979 = vshrl.u32 %v1978, 7
        %v1980 = vsub.s32 %v1977, %v1979
        %v1981 = vrot.slane %v1967, %v1980
        %v1982 = vcombine.low %v1926, %v1942
        %v1983 = vcombine.high %v1926, %v1942
        %v1985 = vunpack.c.l.s4 1934713408
        %v1986 = vunpack.c.0.s8 %v1985
        %v1987 = vlaneseq
        %v1988 = vshrl.u32 %v1987, 7
        %v1989 = vsub.s32 %v1986, %v1988
        %v1990 = vrot.slane %v1982, %v1989
        %v1992 = vunpack.c.l.s4 1934713408
        %v1993 = vunpack.c.0.s8 %v1992
        %v1994 = vlaneseq
        %v1995 = vshrl.u32 %v1994, 7
        %v1996 = vsub.s32 %v1993, %v1995
        %v1997 = vrot.slane %v1983, %v1996
        %v1998 = vcombine.low %v1933, %v1949
        %v1999 = vcombine.high %v1933, %v1949
        %v2001 = vunpack.c.l.s4 1934713408
        %v2002 = vunpack.c.0.s8 %v2001
        %v2003 = vlaneseq
        %v2004 = vshrl.u32 %v2003, 7
        %v2005 = vsub.s32 %v2002, %v2004
        %v2006 = vrot.slane %v1998, %v2005
        %v2008 = vunpack.c.l.s4 1934713408
        %v2009 = vunpack.c.0.s8 %v2008
        %v2010 = vlaneseq
        %v2011 = vshrl.u32 %v2010, 7
        %v2012 = vsub.s32 %v2009, %v2011
        %v2013 = vrot.slane %v1999, %v2012
        %v2014 = vcombine.low %v1958, %v1974
        %v2015 = vcombine.high %v1958, %v1974
        %v2017 = vunpack.c.l.s4 1934713408
        %v2018 = vunpack.c.0.s8 %v2017
        %v2019 = vlaneseq
        %v2020 = vshrl.u32 %v2019, 7
        %v2021 = vsub.s32 %v2018, %v2020
        %v2022 = vrot.slane %v2014, %v2021
        %v2024 = vunpack.c.l.s4 1934713408
        %v2025 = vunpack.c.0.s8 %v2024
        %v2026 = vlaneseq
        %v2027 = vshrl.u32 %v2026, 7
        %v2028 = vsub.s32 %v2025, %v2027
        %v2029 = vrot.slane %v2015, %v2028
        %v2030 = vcombine.low %v1965, %v1981
        %v2031 = vcombine.high %v1965, %v1981
        %v2033 = vunpack.c.l.s4 1934713408
        %v2034 = vunpack.c.0.s8 %v2033
        %v2035 = vlaneseq
        %v2036 = vshrl.u32 %v2035, 7
        %v2037 = vsub.s32 %v2034, %v2036
        %v2038 = vrot.slane %v2030, %v2037
        %v2040 = vunpack.c.l.s4 1934713408
        %v2041 = vunpack.c.0.s8 %v2040
        %v2042 = vlaneseq
        %v2043 = vshrl.u32 %v2042, 7
        %v2044 = vsub.s32 %v2041, %v2043
        %v2045 = vrot.slane %v2031, %v2044
        %v2046 = vcombine.low %v1990, %v2022
        %v2047 = vcombine.high %v1990, %v2022
        %v2048 = vcombine.low %v1997, %v2029
        %v2049 = vcombine.high %v1997, %v2029
        %v2050 = vcombine.low %v2006, %v2038
        %v2051 = vcombine.high %v2006, %v2038
        %v2052 = vcombine.low %v2013, %v2045
        %v2053 = vcombine.high %v2013, %v2045
        %v2054 = vcombine.low %v1855, %v1863
        %v2055 = vcombine.high %v1855, %v1863
        %v2057 = vunpack.c.l.s4 1983009808
        %v2058 = vunpack.c.0.s8 %v2057
        %v2059 = vlaneseq
        %v2060 = vshrl.u32 %v2059, 7
        %v2061 = vsub.s32 %v2058, %v2060
        %v2062 = vrot.slane %v2054, %v2061
        %v2064 = vunpack.c.l.s4 1983009808
        %v2065 = vunpack.c.0.s8 %v2064
        %v2066 = vlaneseq
        %v2067 = vshrl.u32 %v2066, 7
        %v2068 = vsub.s32 %v2065, %v2067
        %v2069 = vrot.slane %v2055, %v2068
        %v2070 = vcombine.low %v1859, %v1867
        %v2071 = vcombine.high %v1859, %v1867
        %v2073 = vunpack.c.l.s4 1983009808
        %v2074 = vunpack.c.0.s8 %v2073
        %v2075 = vlaneseq
        %v2076 = vshrl.u32 %v2075, 7
        %v2077 = vsub.s32 %v2074, %v2076
        %v2078 = vrot.slane %v2070, %v2077
        %v2080 = vunpack.c.l.s4 1983009808
        %v2081 = vunpack.c.0.s8 %v2080
        %v2082 = vlaneseq
        %v2083 = vshrl.u32 %v2082, 7
        %v2084 = vsub.s32 %v2081, %v2083
        %v2085 = vrot.slane %v2071, %v2084
        %v2086 = vcombine.low %v1871, %v1879
        %v2087 = vcombine.high %v1871, %v1879
        %v2089 = vunpack.c.l.s4 1983009808
        %v2090 = vunpack.c.0.s8 %v2089
        %v2091 = vlaneseq
        %v2092 = vshrl.u32 %v2091, 7
        %v2093 = vsub.s32 %v2090, %v2092
        %v2094 = vrot.slane %v2086, %v2093
        %v2096 = vunpack.c.l.s4 1983009808
        %v2097 = vunpack.c.0.s8 %v2096
        %v2098 = vlaneseq
        %v2099 = vshrl.u32 %v2098, 7
        %v2100 = vsub.s32 %v2097, %v2099
        %v2101 = vrot.slane %v2087, %v2100
        %v2102 = vcombine.low %v1875, %v1883
        %v2103 = vcombine.high %v1875, %v1883
        %v2105 = vunpack.c.l.s4 1983009808
        %v2106 = vunpack.c.0.s8 %v2105
        %v2107 = vlaneseq
        %v2108 = vshrl.u32 %v2107, 7
        %v2109 = vsub.s32 %v2106, %v2108
        %v2110 = vrot.slane %v2102, %v2109
        %v2112 = vunpack.c.l.s4 1983009808
        %v2113 = vunpack.c.0.s8 %v2112
        %v2114 = vlaneseq
        %v2115 = vshrl.u32 %v2114, 7
        %v2116 = vsub.s32 %v2113, %v2115
        %v2117 = vrot.slane %v2103, %v2116
        %v2118 = vcombine.low %v2062, %v2078
        %v2119 = vcombine.high %v2062, %v2078
        %v2121 = vunpack.c.l.s4 1934713408
        %v2122 = vunpack.c.0.s8 %v2121
        %v2123 = vlaneseq
        %v2124 = vshrl.u32 %v2123, 7
        %v2125 = vsub.s32 %v2122, %v2124
        %v2126 = vrot.slane %v2118, %v2125
        %v2128 = vunpack.c.l.s4 1934713408
        %v2129 = vunpack.c.0.s8 %v2128
        %v2130 = vlaneseq
        %v2131 = vshrl.u32 %v2130, 7
        %v2132 = vsub.s32 %v2129, %v2131
        %v2133 = vrot.slane %v2119, %v2132
        %v2134 = vcombine.low %v2069, %v2085
        %v2135 = vcombine.high %v2069, %v2085
        %v2137 = vunpack.c.l.s4 1934713408
        %v2138 = vunpack.c.0.s8 %v2137
        %v2139 = vlaneseq
        %v2140 = vshrl.u32 %v2139, 7
        %v2141 = vsub.s32 %v2138, %v2140
        %v2142 = vrot.slane %v2134, %v2141
        %v2144 = vunpack.c.l.s4 1934713408
        %v2145 = vunpack.c.0.s8 %v2144
        %v2146 = vlaneseq
        %v2147 = vshrl.u32 %v2146, 7
        %v2148 = vsub.s32 %v2145, %v2147
        %v2149 = vrot.slane %v2135, %v2148
        %v2150 = vcombine.low %v2094, %v2110
        %v2151 = vcombine.high %v2094, %v2110
        %v2153 = vunpack.c.l.s4 1934713408
        %v2154 = vunpack.c.0.s8 %v2153
        %v2155 = vlaneseq
        %v2156 = vshrl.u32 %v2155, 7
        %v2157 = vsub.s32 %v2154, %v2156
        %v2158 = vrot.slane %v2150, %v2157
        %v2160 = vunpack.c.l.s4 1934713408
        %v2161 = vunpack.c.0.s8 %v2160
        %v2162 = vlaneseq
        %v2163 = vshrl.u32 %v2162, 7
        %v2164 = vsub.s32 %v2161, %v2163
        %v2165 = vrot.slane %v2151, %v2164
        %v2166 = vcombine.low %v2101, %v2117
        %v2167 = vcombine.high %v2101, %v2117
        %v2169 = vunpack.c.l.s4 1934713408
        %v2170 = vunpack.c.0.s8 %v2169
        %v2171 = vlaneseq
        %v2172 = vshrl.u32 %v2171, 7
        %v2173 = vsub.s32 %v2170, %v2172
        %v2174 = vrot.slane %v2166, %v2173
        %v2176 = vunpack.c.l.s4 1934713408
        %v2177 = vunpack.c.0.s8 %v2176
        %v2178 = vlaneseq
        %v2179 = vshrl.u32 %v2178, 7
        %v2180 = vsub.s32 %v2177, %v2179
        %v2181 = vrot.slane %v2167, %v2180
        %v2182 = vcombine.low %v2126, %v2158
        %v2183 = vcombine.high %v2126, %v2158
        %v2184 = vcombine.low %v2133, %v2165
        %v2185 = vcombine.high %v2133, %v2165
        %v2186 = vcombine.low %v2142, %v2174
        %v2187 = vcombine.high %v2142, %v2174
        %v2188 = vcombine.low %v2149, %v2181
        %v2189 = vcombine.high %v2149, %v2181
        %v2190 = vcombine.low %v1825, %v1833
        %v2191 = vcombine.high %v1825, %v1833
        %v2193 = vunpack.c.l.s4 1983009808
        %v2194 = vunpack.c.0.s8 %v2193
        %v2195 = vlaneseq
        %v2196 = vshrl.u32 %v2195, 7
        %v2197 = vsub.s32 %v2194, %v2196
        %v2198 = vrot.slane %v2190, %v2197
        %v2200 = vunpack.c.l.s4 1983009808
        %v2201 = vunpack.c.0.s8 %v2200
        %v2202 = vlaneseq
        %v2203 = vshrl.u32 %v2202, 7
        %v2204 = vsub.s32 %v2201, %v2203
        %v2205 = vrot.slane %v2191, %v2204
        %v2206 = vcombine.low %v1829, %v1837
        %v2207 = vcombine.high %v1829, %v1837
        %v2209 = vunpack.c.l.s4 1983009808
        %v2210 = vunpack.c.0.s8 %v2209
        %v2211 = vlaneseq
        %v2212 = vshrl.u32 %v2211, 7
        %v2213 = vsub.s32 %v2210, %v2212
        %v2214 = vrot.slane %v2206, %v2213
        %v2216 = vunpack.c.l.s4 1983009808
        %v2217 = vunpack.c.0.s8 %v2216
        %v2218 = vlaneseq
        %v2219 = vshrl.u32 %v2218, 7
        %v2220 = vsub.s32 %v2217, %v2219
        %v2221 = vrot.slane %v2207, %v2220
        %v2222 = vcombine.low %v1841, %v1849
        %v2223 = vcombine.high %v1841, %v1849
        %v2225 = vunpack.c.l.s4 1983009808
        %v2226 = vunpack.c.0.s8 %v2225
        %v2227 = vlaneseq
        %v2228 = vshrl.u32 %v2227, 7
        %v2229 = vsub.s32 %v2226, %v2228
        %v2230 = vrot.slane %v2222, %v2229
        %v2232 = vunpack.c.l.s4 1983009808
        %v2233 = vunpack.c.0.s8 %v2232
        %v2234 = vlaneseq
        %v2235 = vshrl.u32 %v2234, 7
        %v2236 = vsub.s32 %v2233, %v2235
        %v2237 = vrot.slane %v2223, %v2236
        %v2238 = vcombine.low %v1845, %v1853
        %v2239 = vcombine.high %v1845, %v1853
        %v2241 = vunpack.c.l.s4 1983009808
        %v2242 = vunpack.c.0.s8 %v2241
        %v2243 = vlaneseq
        %v2244 = vshrl.u32 %v2243, 7
        %v2245 = vsub.s32 %v2242, %v2244
        %v2246 = vrot.slane %v2238, %v2245
        %v2248 = vunpack.c.l.s4 1983009808
        %v2249 = vunpack.c.0.s8 %v2248
        %v2250 = vlaneseq
        %v2251 = vshrl.u32 %v2250, 7
        %v2252 = vsub.s32 %v2249, %v2251
        %v2253 = vrot.slane %v2239, %v2252
        %v2254 = vcombine.low %v2198, %v2214
        %v2255 = vcombine.high %v2198, %v2214
        %v2257 = vunpack.c.l.s4 1934713408
        %v2258 = vunpack.c.0.s8 %v2257
        %v2259 = vlaneseq
        %v2260 = vshrl.u32 %v2259, 7
        %v2261 = vsub.s32 %v2258, %v2260
        %v2262 = vrot.slane %v2254, %v2261
        %v2264 = vunpack.c.l.s4 1934713408
        %v2265 = vunpack.c.0.s8 %v2264
        %v2266 = vlaneseq
        %v2267 = vshrl.u32 %v2266, 7
        %v2268 = vsub.s32 %v2265, %v2267
        %v2269 = vrot.slane %v2255, %v2268
        %v2270 = vcombine.low %v2205, %v2221
        %v2271 = vcombine.high %v2205, %v2221
        %v2273 = vunpack.c.l.s4 1934713408
        %v2274 = vunpack.c.0.s8 %v2273
        %v2275 = vlaneseq
        %v2276 = vshrl.u32 %v2275, 7
        %v2277 = vsub.s32 %v2274, %v2276
        %v2278 = vrot.slane %v2270, %v2277
        %v2280 = vunpack.c.l.s4 1934713408
        %v2281 = vunpack.c.0.s8 %v2280
        %v2282 = vlaneseq
        %v2283 = vshrl.u32 %v2282, 7
        %v2284 = vsub.s32 %v2281, %v2283
        %v2285 = vrot.slane %v2271, %v2284
        %v2286 = vcombine.low %v2230, %v2246
        %v2287 = vcombine.high %v2230, %v2246
        %v2289 = vunpack.c.l.s4 1934713408
        %v2290 = vunpack.c.0.s8 %v2289
        %v2291 = vlaneseq
        %v2292 = vshrl.u32 %v2291, 7
        %v2293 = vsub.s32 %v2290, %v2292
        %v2294 = vrot.slane %v2286, %v2293
        %v2296 = vunpack.c.l.s4 1934713408
        %v2297 = vunpack.c.0.s8 %v2296
        %v2298 = vlaneseq
        %v2299 = vshrl.u32 %v2298, 7
        %v2300 = vsub.s32 %v2297, %v2299
        %v2301 = vrot.slane %v2287, %v2300
        %v2302 = vcombine.low %v2237, %v2253
        %v2303 = vcombine.high %v2237, %v2253
        %v2305 = vunpack.c.l.s4 1934713408
        %v2306 = vunpack.c.0.s8 %v2305
        %v2307 = vlaneseq
        %v2308 = vshrl.u32 %v2307, 7
        %v2309 = vsub.s32 %v2306, %v2308
        %v2310 = vrot.slane %v2302, %v2309
        %v2312 = vunpack.c.l.s4 1934713408
        %v2313 = vunpack.c.0.s8 %v2312
        %v2314 = vlaneseq
        %v2315 = vshrl.u32 %v2314, 7
        %v2316 = vsub.s32 %v2313, %v2315
        %v2317 = vrot.slane %v2303, %v2316
        %v2318 = vcombine.low %v2262, %v2294
        %v2319 = vcombine.high %v2262, %v2294
        %v2320 = vcombine.low %v2269, %v2301
        %v2321 = vcombine.high %v2269, %v2301
        %v2322 = vcombine.low %v2278, %v2310
        %v2323 = vcombine.high %v2278, %v2310
        %v2324 = vcombine.low %v2285, %v2317
        %v2325 = vcombine.high %v2285, %v2317
        %v2326 = vcombine.low %v1857, %v1865
        %v2327 = vcombine.high %v1857, %v1865
        %v2329 = vunpack.c.l.s4 1983009808
        %v2330 = vunpack.c.0.s8 %v2329
        %v2331 = vlaneseq
        %v2332 = vshrl.u32 %v2331, 7
        %v2333 = vsub.s32 %v2330, %v2332
        %v2334 = vrot.slane %v2326, %v2333
        %v2336 = vunpack.c.l.s4 1983009808
        %v2337 = vunpack.c.0.s8 %v2336
        %v2338 = vlaneseq
        %v2339 = vshrl.u32 %v2338, 7
        %v2340 = vsub.s32 %v2337, %v2339
        %v2341 = vrot.slane %v2327, %v2340
        %v2342 = vcombine.low %v1861, %v1869
        %v2343 = vcombine.high %v1861, %v1869
        %v2345 = vunpack.c.l.s4 1983009808
        %v2346 = vunpack.c.0.s8 %v2345
        %v2347 = vlaneseq
        %v2348 = vshrl.u32 %v2347, 7
        %v2349 = vsub.s32 %v2346, %v2348
        %v2350 = vrot.slane %v2342, %v2349
        %v2352 = vunpack.c.l.s4 1983009808
        %v2353 = vunpack.c.0.s8 %v2352
        %v2354 = vlaneseq
        %v2355 = vshrl.u32 %v2354, 7
        %v2356 = vsub.s32 %v2353, %v2355
        %v2357 = vrot.slane %v2343, %v2356
        %v2358 = vcombine.low %v1873, %v1881
        %v2359 = vcombine.high %v1873, %v1881
        %v2361 = vunpack.c.l.s4 1983009808
        %v2362 = vunpack.c.0.s8 %v2361
        %v2363 = vlaneseq
        %v2364 = vshrl.u32 %v2363, 7
        %v2365 = vsub.s32 %v2362, %v2364
        %v2366 = vrot.slane %v2358, %v2365
        %v2368 = vunpack.c.l.s4 1983009808
        %v2369 = vunpack.c.0.s8 %v2368
        %v2370 = vlaneseq
        %v2371 = vshrl.u32 %v2370, 7
        %v2372 = vsub.s32 %v2369, %v2371
        %v2373 = vrot.slane %v2359, %v2372
        %v2374 = vcombine.low %v1877, %v1885
        %v2375 = vcombine.high %v1877, %v1885
        %v2377 = vunpack.c.l.s4 1983009808
        %v2378 = vunpack.c.0.s8 %v2377
        %v2379 = vlaneseq
        %v2380 = vshrl.u32 %v2379, 7
        %v2381 = vsub.s32 %v2378, %v2380
        %v2382 = vrot.slane %v2374, %v2381
        %v2384 = vunpack.c.l.s4 1983009808
        %v2385 = vunpack.c.0.s8 %v2384
        %v2386 = vlaneseq
        %v2387 = vshrl.u32 %v2386, 7
        %v2388 = vsub.s32 %v2385, %v2387
        %v2389 = vrot.slane %v2375, %v2388
        %v2390 = vcombine.low %v2334, %v2350
        %v2391 = vcombine.high %v2334, %v2350
        %v2393 = vunpack.c.l.s4 1934713408
        %v2394 = vunpack.c.0.s8 %v2393
        %v2395 = vlaneseq
        %v2396 = vshrl.u32 %v2395, 7
        %v2397 = vsub.s32 %v2394, %v2396
        %v2398 = vrot.slane %v2390, %v2397
        %v2400 = vunpack.c.l.s4 1934713408
        %v2401 = vunpack.c.0.s8 %v2400
        %v2402 = vlaneseq
        %v2403 = vshrl.u32 %v2402, 7
        %v2404 = vsub.s32 %v2401, %v2403
        %v2405 = vrot.slane %v2391, %v2404
        %v2406 = vcombine.low %v2341, %v2357
        %v2407 = vcombine.high %v2341, %v2357
        %v2409 = vunpack.c.l.s4 1934713408
        %v2410 = vunpack.c.0.s8 %v2409
        %v2411 = vlaneseq
        %v2412 = vshrl.u32 %v2411, 7
        %v2413 = vsub.s32 %v2410, %v2412
        %v2414 = vrot.slane %v2406, %v2413
        %v2416 = vunpack.c.l.s4 1934713408
        %v2417 = vunpack.c.0.s8 %v2416
        %v2418 = vlaneseq
        %v2419 = vshrl.u32 %v2418, 7
        %v2420 = vsub.s32 %v2417, %v2419
        %v2421 = vrot.slane %v2407, %v2420
        %v2422 = vcombine.low %v2366, %v2382
        %v2423 = vcombine.high %v2366, %v2382
        %v2425 = vunpack.c.l.s4 1934713408
        %v2426 = vunpack.c.0.s8 %v2425
        %v2427 = vlaneseq
        %v2428 = vshrl.u32 %v2427, 7
        %v2429 = vsub.s32 %v2426, %v2428
        %v2430 = vrot.slane %v2422, %v2429
        %v2432 = vunpack.c.l.s4 1934713408
        %v2433 = vunpack.c.0.s8 %v2432
        %v2434 = vlaneseq
        %v2435 = vshrl.u32 %v2434, 7
        %v2436 = vsub.s32 %v2433, %v2435
        %v2437 = vrot.slane %v2423, %v2436
        %v2438 = vcombine.low %v2373, %v2389
        %v2439 = vcombine.high %v2373, %v2389
        %v2441 = vunpack.c.l.s4 1934713408
        %v2442 = vunpack.c.0.s8 %v2441
        %v2443 = vlaneseq
        %v2444 = vshrl.u32 %v2443, 7
        %v2445 = vsub.s32 %v2442, %v2444
        %v2446 = vrot.slane %v2438, %v2445
        %v2448 = vunpack.c.l.s4 1934713408
        %v2449 = vunpack.c.0.s8 %v2448
        %v2450 = vlaneseq
        %v2451 = vshrl.u32 %v2450, 7
        %v2452 = vsub.s32 %v2449, %v2451
        %v2453 = vrot.slane %v2439, %v2452
        %v2454 = vcombine.low %v2398, %v2430
        %v2455 = vcombine.high %v2398, %v2430
        %v2456 = vcombine.low %v2405, %v2437
        %v2457 = vcombine.high %v2405, %v2437
        %v2458 = vcombine.low %v2414, %v2446
        %v2459 = vcombine.high %v2414, %v2446
        %v2460 = vcombine.low %v2421, %v2453
        %v2461 = vcombine.high %v2421, %v2453
        %2464 = vrot.lane.b32.xlu0 %v2047, 16
        %v2465 = vpop.permute.xlu0 %2464
        %2466 = vrot.lane.b32.xlu0 %v2183, 16
        %v2467 = vpop.permute.xlu0 %2466
        %2472 = vrot.lane.b32.xlu0 %v2048, 32
        %v2473 = vpop.permute.xlu0 %2472
        %2474 = vrot.lane.b32.xlu0 %v2184, 32
        %v2475 = vpop.permute.xlu0 %2474
        %2480 = vrot.lane.b32.xlu0 %v2049, 48
        %v2481 = vpop.permute.xlu0 %2480
        %2482 = vrot.lane.b32.xlu0 %v2185, 48
        %v2483 = vpop.permute.xlu0 %2482
        %2488 = vrot.lane.b32.xlu0 %v2050, 64
        %v2489 = vpop.permute.xlu0 %2488
        %2490 = vrot.lane.b32.xlu0 %v2186, 64
        %v2491 = vpop.permute.xlu0 %2490
        %2496 = vrot.lane.b32.xlu0 %v2051, 80
        %v2497 = vpop.permute.xlu0 %2496
        %2498 = vrot.lane.b32.xlu0 %v2187, 80
        %v2499 = vpop.permute.xlu0 %2498
        %2504 = vrot.lane.b32.xlu0 %v2052, 96
        %v2505 = vpop.permute.xlu0 %2504
        %2506 = vrot.lane.b32.xlu0 %v2188, 96
        %v2507 = vpop.permute.xlu0 %2506
        %2512 = vrot.lane.b32.xlu0 %v2053, 112
        %v2513 = vpop.permute.xlu0 %2512
        %2514 = vrot.lane.b32.xlu0 %v2189, 112
        %v2515 = vpop.permute.xlu0 %2514
        %2520 = vrot.lane.b32.xlu0 %v2319, 16
        %v2521 = vpop.permute.xlu0 %2520
        %2522 = vrot.lane.b32.xlu0 %v2455, 16
        %v2523 = vpop.permute.xlu0 %2522
        %2528 = vrot.lane.b32.xlu0 %v2320, 32
        %v2529 = vpop.permute.xlu0 %2528
        %2530 = vrot.lane.b32.xlu0 %v2456, 32
        %v2531 = vpop.permute.xlu0 %2530
        %2536 = vrot.lane.b32.xlu0 %v2321, 48
        %v2537 = vpop.permute.xlu0 %2536
        %2538 = vrot.lane.b32.xlu0 %v2457, 48
        %v2539 = vpop.permute.xlu0 %2538
        %2544 = vrot.lane.b32.xlu0 %v2322, 64
        %v2545 = vpop.permute.xlu0 %2544
        %2546 = vrot.lane.b32.xlu0 %v2458, 64
        %v2547 = vpop.permute.xlu0 %2546
        %2552 = vrot.lane.b32.xlu0 %v2323, 80
        %v2553 = vpop.permute.xlu0 %2552
        %2554 = vrot.lane.b32.xlu0 %v2459, 80
        %v2555 = vpop.permute.xlu0 %2554
        %2560 = vrot.lane.b32.xlu0 %v2324, 96
        %v2561 = vpop.permute.xlu0 %2560
        %2562 = vrot.lane.b32.xlu0 %v2460, 96
        %v2563 = vpop.permute.xlu0 %2562
        %2568 = vrot.lane.b32.xlu0 %v2325, 112
        %v2569 = vpop.permute.xlu0 %2568
        %2570 = vrot.lane.b32.xlu0 %v2461, 112
        %v2571 = vpop.permute.xlu0 %2570
        %v2574 = vsel %vm975, %v2046, %v2465
        %v2575 = vsel %vm975, %v2182, %v2467
        %v2576 = vsel %vm978, %v2574, %v2473
        %v2577 = vsel %vm978, %v2575, %v2475
        %v2578 = vsel %vm981, %v2576, %v2481
        %v2579 = vsel %vm981, %v2577, %v2483
        %v2580 = vsel %vm984, %v2578, %v2489
        %v2581 = vsel %vm984, %v2579, %v2491
        %v2582 = vsel %vm987, %v2580, %v2497
        %v2583 = vsel %vm987, %v2581, %v2499
        %v2584 = vsel %vm990, %v2582, %v2505
        %v2585 = vsel %vm990, %v2583, %v2507
        %v2586 = vsel %vm993, %v2584, %v2513
        %v2587 = vsel %vm993, %v2585, %v2515
        %v2588 = vsel %vm975, %v2318, %v2521
        %v2589 = vsel %vm975, %v2454, %v2523
        %v2590 = vsel %vm978, %v2588, %v2529
        %v2591 = vsel %vm978, %v2589, %v2531
        %v2592 = vsel %vm981, %v2590, %v2537
        %v2593 = vsel %vm981, %v2591, %v2539
        %v2594 = vsel %vm984, %v2592, %v2545
        %v2595 = vsel %vm984, %v2593, %v2547
        %v2596 = vsel %vm987, %v2594, %v2553
        %v2597 = vsel %vm987, %v2595, %v2555
        %v2598 = vsel %vm990, %v2596, %v2561
        %v2599 = vsel %vm990, %v2597, %v2563
        %v2600 = vsel %vm993, %v2598, %v2569
        %v2601 = vsel %vm993, %v2599, %v2571
        %vm2618 = vcmask 1046528
        %v2619 = vrot.slane %v271, 1
        %v2620 = vrot.slane %v272, 1
        %v2621 = vsel %vm2618, %v2619, %v2620
        %v2622 = vrot.slane %v273, 1
        %v2623 = vsel %vm2618, %v2620, %v2622
        %v2624 = vrot.slane %v274, 1
        %v2625 = vrot.slane %v275, 1
        %v2626 = vsel %vm2618, %v2624, %v2625
        %v2627 = vrot.slane %v276, 1
        %v2628 = vsel %vm2618, %v2625, %v2627
        %v2629 = vrot.slane %v277, 1
        %v2630 = vrot.slane %v278, 1
        %v2631 = vsel %vm2618, %v2629, %v2630
        %v2632 = vrot.slane %v279, 1
        %v2633 = vsel %vm2618, %v2630, %v2632
        %v2634 = vrot.slane %v280, 1
        %v2635 = vrot.slane %v281, 1
        %v2636 = vsel %vm2618, %v2634, %v2635
        %v2637 = vrot.slane %v282, 1
        %v2638 = vsel %vm2618, %v2635, %v2637
        %v2639 = vrot.slane %v283, 1
        %v2640 = vrot.slane %v284, 1
        %v2641 = vsel %vm2618, %v2639, %v2640
        %v2642 = vrot.slane %v285, 1
        %v2643 = vsel %vm2618, %v2640, %v2642
        %v2644 = vrot.slane %v286, 1
        %v2645 = vrot.slane %v287, 1
        %v2646 = vsel %vm2618, %v2644, %v2645
        %v2647 = vrot.slane %v288, 1
        %v2648 = vsel %vm2618, %v2645, %v2647
        %v2649 = vrot.slane %v289, 1
        %v2650 = vrot.slane %v290, 1
        %v2651 = vsel %vm2618, %v2649, %v2650
        %v2652 = vrot.slane %v291, 1
        %v2653 = vsel %vm2618, %v2650, %v2652
        %v2654 = vrot.slane %v292, 1
        %v2655 = vrot.slane %v293, 1
        %v2656 = vsel %vm2618, %v2654, %v2655
        %v2657 = vrot.slane %v294, 1
        %v2658 = vsel %vm2618, %v2655, %v2657
        %v2659 = vrot.slane %v295, 1
        %v2660 = vrot.slane %v296, 1
        %v2661 = vsel %vm2618, %v2659, %v2660
        %v2662 = vrot.slane %v297, 1
        %v2663 = vsel %vm2618, %v2660, %v2662
        %v2664 = vrot.slane %v298, 1
        %v2665 = vrot.slane %v299, 1
        %v2666 = vsel %vm2618, %v2664, %v2665
        %v2667 = vrot.slane %v300, 1
        %v2668 = vsel %vm2618, %v2665, %v2667
        %v2669 = vrot.slane %v301, 1
        %v2670 = vrot.slane %v302, 1
        %v2671 = vsel %vm2618, %v2669, %v2670
        %v2672 = vrot.slane %v303, 1
        %v2673 = vsel %vm2618, %v2670, %v2672
        %v2674 = vrot.slane %v304, 1
        %v2675 = vrot.slane %v305, 1
        %v2676 = vsel %vm2618, %v2674, %v2675
        %v2677 = vrot.slane %v306, 1
        %v2678 = vsel %vm2618, %v2675, %v2677
        %v2679 = vrot.slane %v307, 1
        %v2680 = vrot.slane %v308, 1
        %v2681 = vsel %vm2618, %v2679, %v2680
        %v2682 = vrot.slane %v309, 1
        %v2683 = vsel %vm2618, %v2680, %v2682
        %v2684 = vrot.slane %v310, 1
        %v2685 = vrot.slane %v311, 1
        %v2686 = vsel %vm2618, %v2684, %v2685
        %v2687 = vrot.slane %v312, 1
        %v2688 = vsel %vm2618, %v2685, %v2687
        %v2689 = vrot.slane %v313, 1
        %v2690 = vrot.slane %v314, 1
        %v2691 = vsel %vm2618, %v2689, %v2690
        %v2692 = vrot.slane %v315, 1
        %v2693 = vsel %vm2618, %v2690, %v2692
        %v2694 = vrot.slane %v316, 1
        %v2695 = vrot.slane %v317, 1
        %v2696 = vsel %vm2618, %v2694, %v2695
        %v2697 = vrot.slane %v318, 1
        %v2698 = vsel %vm2618, %v2695, %v2697
        %v2731 = vcombine.low %v2621, %v2631
        %v2732 = vcombine.high %v2621, %v2631
        %v2734 = vunpack.c.l.s4 1983009808
        %v2735 = vunpack.c.0.s8 %v2734
        %v2736 = vlaneseq
        %v2737 = vshrl.u32 %v2736, 7
        %v2738 = vsub.s32 %v2735, %v2737
        %v2739 = vrot.slane %v2731, %v2738
        %v2741 = vunpack.c.l.s4 1983009808
        %v2742 = vunpack.c.0.s8 %v2741
        %v2743 = vlaneseq
        %v2744 = vshrl.u32 %v2743, 7
        %v2745 = vsub.s32 %v2742, %v2744
        %v2746 = vrot.slane %v2732, %v2745
        %v2747 = vcombine.low %v2626, %v2636
        %v2748 = vcombine.high %v2626, %v2636
        %v2750 = vunpack.c.l.s4 1983009808
        %v2751 = vunpack.c.0.s8 %v2750
        %v2752 = vlaneseq
        %v2753 = vshrl.u32 %v2752, 7
        %v2754 = vsub.s32 %v2751, %v2753
        %v2755 = vrot.slane %v2747, %v2754
        %v2757 = vunpack.c.l.s4 1983009808
        %v2758 = vunpack.c.0.s8 %v2757
        %v2759 = vlaneseq
        %v2760 = vshrl.u32 %v2759, 7
        %v2761 = vsub.s32 %v2758, %v2760
        %v2762 = vrot.slane %v2748, %v2761
        %v2763 = vcombine.low %v2641, %v2651
        %v2764 = vcombine.high %v2641, %v2651
        %v2766 = vunpack.c.l.s4 1983009808
        %v2767 = vunpack.c.0.s8 %v2766
        %v2768 = vlaneseq
        %v2769 = vshrl.u32 %v2768, 7
        %v2770 = vsub.s32 %v2767, %v2769
        %v2771 = vrot.slane %v2763, %v2770
        %v2773 = vunpack.c.l.s4 1983009808
        %v2774 = vunpack.c.0.s8 %v2773
        %v2775 = vlaneseq
        %v2776 = vshrl.u32 %v2775, 7
        %v2777 = vsub.s32 %v2774, %v2776
        %v2778 = vrot.slane %v2764, %v2777
        %v2779 = vcombine.low %v2646, %v2656
        %v2780 = vcombine.high %v2646, %v2656
        %v2782 = vunpack.c.l.s4 1983009808
        %v2783 = vunpack.c.0.s8 %v2782
        %v2784 = vlaneseq
        %v2785 = vshrl.u32 %v2784, 7
        %v2786 = vsub.s32 %v2783, %v2785
        %v2787 = vrot.slane %v2779, %v2786
        %v2789 = vunpack.c.l.s4 1983009808
        %v2790 = vunpack.c.0.s8 %v2789
        %v2791 = vlaneseq
        %v2792 = vshrl.u32 %v2791, 7
        %v2793 = vsub.s32 %v2790, %v2792
        %v2794 = vrot.slane %v2780, %v2793
        %v2795 = vcombine.low %v2739, %v2755
        %v2796 = vcombine.high %v2739, %v2755
        %v2798 = vunpack.c.l.s4 1934713408
        %v2799 = vunpack.c.0.s8 %v2798
        %v2800 = vlaneseq
        %v2801 = vshrl.u32 %v2800, 7
        %v2802 = vsub.s32 %v2799, %v2801
        %v2803 = vrot.slane %v2795, %v2802
        %v2805 = vunpack.c.l.s4 1934713408
        %v2806 = vunpack.c.0.s8 %v2805
        %v2807 = vlaneseq
        %v2808 = vshrl.u32 %v2807, 7
        %v2809 = vsub.s32 %v2806, %v2808
        %v2810 = vrot.slane %v2796, %v2809
        %v2811 = vcombine.low %v2746, %v2762
        %v2812 = vcombine.high %v2746, %v2762
        %v2814 = vunpack.c.l.s4 1934713408
        %v2815 = vunpack.c.0.s8 %v2814
        %v2816 = vlaneseq
        %v2817 = vshrl.u32 %v2816, 7
        %v2818 = vsub.s32 %v2815, %v2817
        %v2819 = vrot.slane %v2811, %v2818
        %v2821 = vunpack.c.l.s4 1934713408
        %v2822 = vunpack.c.0.s8 %v2821
        %v2823 = vlaneseq
        %v2824 = vshrl.u32 %v2823, 7
        %v2825 = vsub.s32 %v2822, %v2824
        %v2826 = vrot.slane %v2812, %v2825
        %v2827 = vcombine.low %v2771, %v2787
        %v2828 = vcombine.high %v2771, %v2787
        %v2830 = vunpack.c.l.s4 1934713408
        %v2831 = vunpack.c.0.s8 %v2830
        %v2832 = vlaneseq
        %v2833 = vshrl.u32 %v2832, 7
        %v2834 = vsub.s32 %v2831, %v2833
        %v2835 = vrot.slane %v2827, %v2834
        %v2837 = vunpack.c.l.s4 1934713408
        %v2838 = vunpack.c.0.s8 %v2837
        %v2839 = vlaneseq
        %v2840 = vshrl.u32 %v2839, 7
        %v2841 = vsub.s32 %v2838, %v2840
        %v2842 = vrot.slane %v2828, %v2841
        %v2843 = vcombine.low %v2778, %v2794
        %v2844 = vcombine.high %v2778, %v2794
        %v2846 = vunpack.c.l.s4 1934713408
        %v2847 = vunpack.c.0.s8 %v2846
        %v2848 = vlaneseq
        %v2849 = vshrl.u32 %v2848, 7
        %v2850 = vsub.s32 %v2847, %v2849
        %v2851 = vrot.slane %v2843, %v2850
        %v2853 = vunpack.c.l.s4 1934713408
        %v2854 = vunpack.c.0.s8 %v2853
        %v2855 = vlaneseq
        %v2856 = vshrl.u32 %v2855, 7
        %v2857 = vsub.s32 %v2854, %v2856
        %v2858 = vrot.slane %v2844, %v2857
        %v2859 = vcombine.low %v2803, %v2835
        %v2860 = vcombine.high %v2803, %v2835
        %v2861 = vcombine.low %v2810, %v2842
        %v2862 = vcombine.high %v2810, %v2842
        %v2863 = vcombine.low %v2819, %v2851
        %v2864 = vcombine.high %v2819, %v2851
        %v2865 = vcombine.low %v2826, %v2858
        %v2866 = vcombine.high %v2826, %v2858
        %v2867 = vcombine.low %v2661, %v2671
        %v2868 = vcombine.high %v2661, %v2671
        %v2870 = vunpack.c.l.s4 1983009808
        %v2871 = vunpack.c.0.s8 %v2870
        %v2872 = vlaneseq
        %v2873 = vshrl.u32 %v2872, 7
        %v2874 = vsub.s32 %v2871, %v2873
        %v2875 = vrot.slane %v2867, %v2874
        %v2877 = vunpack.c.l.s4 1983009808
        %v2878 = vunpack.c.0.s8 %v2877
        %v2879 = vlaneseq
        %v2880 = vshrl.u32 %v2879, 7
        %v2881 = vsub.s32 %v2878, %v2880
        %v2882 = vrot.slane %v2868, %v2881
        %v2883 = vcombine.low %v2666, %v2676
        %v2884 = vcombine.high %v2666, %v2676
        %v2886 = vunpack.c.l.s4 1983009808
        %v2887 = vunpack.c.0.s8 %v2886
        %v2888 = vlaneseq
        %v2889 = vshrl.u32 %v2888, 7
        %v2890 = vsub.s32 %v2887, %v2889
        %v2891 = vrot.slane %v2883, %v2890
        %v2893 = vunpack.c.l.s4 1983009808
        %v2894 = vunpack.c.0.s8 %v2893
        %v2895 = vlaneseq
        %v2896 = vshrl.u32 %v2895, 7
        %v2897 = vsub.s32 %v2894, %v2896
        %v2898 = vrot.slane %v2884, %v2897
        %v2899 = vcombine.low %v2681, %v2691
        %v2900 = vcombine.high %v2681, %v2691
        %v2902 = vunpack.c.l.s4 1983009808
        %v2903 = vunpack.c.0.s8 %v2902
        %v2904 = vlaneseq
        %v2905 = vshrl.u32 %v2904, 7
        %v2906 = vsub.s32 %v2903, %v2905
        %v2907 = vrot.slane %v2899, %v2906
        %v2909 = vunpack.c.l.s4 1983009808
        %v2910 = vunpack.c.0.s8 %v2909
        %v2911 = vlaneseq
        %v2912 = vshrl.u32 %v2911, 7
        %v2913 = vsub.s32 %v2910, %v2912
        %v2914 = vrot.slane %v2900, %v2913
        %v2915 = vcombine.low %v2686, %v2696
        %v2916 = vcombine.high %v2686, %v2696
        %v2918 = vunpack.c.l.s4 1983009808
        %v2919 = vunpack.c.0.s8 %v2918
        %v2920 = vlaneseq
        %v2921 = vshrl.u32 %v2920, 7
        %v2922 = vsub.s32 %v2919, %v2921
        %v2923 = vrot.slane %v2915, %v2922
        %v2925 = vunpack.c.l.s4 1983009808
        %v2926 = vunpack.c.0.s8 %v2925
        %v2927 = vlaneseq
        %v2928 = vshrl.u32 %v2927, 7
        %v2929 = vsub.s32 %v2926, %v2928
        %v2930 = vrot.slane %v2916, %v2929
        %v2931 = vcombine.low %v2875, %v2891
        %v2932 = vcombine.high %v2875, %v2891
        %v2934 = vunpack.c.l.s4 1934713408
        %v2935 = vunpack.c.0.s8 %v2934
        %v2936 = vlaneseq
        %v2937 = vshrl.u32 %v2936, 7
        %v2938 = vsub.s32 %v2935, %v2937
        %v2939 = vrot.slane %v2931, %v2938
        %v2941 = vunpack.c.l.s4 1934713408
        %v2942 = vunpack.c.0.s8 %v2941
        %v2943 = vlaneseq
        %v2944 = vshrl.u32 %v2943, 7
        %v2945 = vsub.s32 %v2942, %v2944
        %v2946 = vrot.slane %v2932, %v2945
        %v2947 = vcombine.low %v2882, %v2898
        %v2948 = vcombine.high %v2882, %v2898
        %v2950 = vunpack.c.l.s4 1934713408
        %v2951 = vunpack.c.0.s8 %v2950
        %v2952 = vlaneseq
        %v2953 = vshrl.u32 %v2952, 7
        %v2954 = vsub.s32 %v2951, %v2953
        %v2955 = vrot.slane %v2947, %v2954
        %v2957 = vunpack.c.l.s4 1934713408
        %v2958 = vunpack.c.0.s8 %v2957
        %v2959 = vlaneseq
        %v2960 = vshrl.u32 %v2959, 7
        %v2961 = vsub.s32 %v2958, %v2960
        %v2962 = vrot.slane %v2948, %v2961
        %v2963 = vcombine.low %v2907, %v2923
        %v2964 = vcombine.high %v2907, %v2923
        %v2966 = vunpack.c.l.s4 1934713408
        %v2967 = vunpack.c.0.s8 %v2966
        %v2968 = vlaneseq
        %v2969 = vshrl.u32 %v2968, 7
        %v2970 = vsub.s32 %v2967, %v2969
        %v2971 = vrot.slane %v2963, %v2970
        %v2973 = vunpack.c.l.s4 1934713408
        %v2974 = vunpack.c.0.s8 %v2973
        %v2975 = vlaneseq
        %v2976 = vshrl.u32 %v2975, 7
        %v2977 = vsub.s32 %v2974, %v2976
        %v2978 = vrot.slane %v2964, %v2977
        %v2979 = vcombine.low %v2914, %v2930
        %v2980 = vcombine.high %v2914, %v2930
        %v2982 = vunpack.c.l.s4 1934713408
        %v2983 = vunpack.c.0.s8 %v2982
        %v2984 = vlaneseq
        %v2985 = vshrl.u32 %v2984, 7
        %v2986 = vsub.s32 %v2983, %v2985
        %v2987 = vrot.slane %v2979, %v2986
        %v2989 = vunpack.c.l.s4 1934713408
        %v2990 = vunpack.c.0.s8 %v2989
        %v2991 = vlaneseq
        %v2992 = vshrl.u32 %v2991, 7
        %v2993 = vsub.s32 %v2990, %v2992
        %v2994 = vrot.slane %v2980, %v2993
        %v2995 = vcombine.low %v2939, %v2971
        %v2996 = vcombine.high %v2939, %v2971
        %v2997 = vcombine.low %v2946, %v2978
        %v2998 = vcombine.high %v2946, %v2978
        %v2999 = vcombine.low %v2955, %v2987
        %v3000 = vcombine.high %v2955, %v2987
        %v3001 = vcombine.low %v2962, %v2994
        %v3002 = vcombine.high %v2962, %v2994
        %v3003 = vcombine.low %v2623, %v2633
        %v3004 = vcombine.high %v2623, %v2633
        %v3006 = vunpack.c.l.s4 1983009808
        %v3007 = vunpack.c.0.s8 %v3006
        %v3008 = vlaneseq
        %v3009 = vshrl.u32 %v3008, 7
        %v3010 = vsub.s32 %v3007, %v3009
        %v3011 = vrot.slane %v3003, %v3010
        %v3013 = vunpack.c.l.s4 1983009808
        %v3014 = vunpack.c.0.s8 %v3013
        %v3015 = vlaneseq
        %v3016 = vshrl.u32 %v3015, 7
        %v3017 = vsub.s32 %v3014, %v3016
        %v3018 = vrot.slane %v3004, %v3017
        %v3019 = vcombine.low %v2628, %v2638
        %v3020 = vcombine.high %v2628, %v2638
        %v3022 = vunpack.c.l.s4 1983009808
        %v3023 = vunpack.c.0.s8 %v3022
        %v3024 = vlaneseq
        %v3025 = vshrl.u32 %v3024, 7
        %v3026 = vsub.s32 %v3023, %v3025
        %v3027 = vrot.slane %v3019, %v3026
        %v3029 = vunpack.c.l.s4 1983009808
        %v3030 = vunpack.c.0.s8 %v3029
        %v3031 = vlaneseq
        %v3032 = vshrl.u32 %v3031, 7
        %v3033 = vsub.s32 %v3030, %v3032
        %v3034 = vrot.slane %v3020, %v3033
        %v3035 = vcombine.low %v2643, %v2653
        %v3036 = vcombine.high %v2643, %v2653
        %v3038 = vunpack.c.l.s4 1983009808
        %v3039 = vunpack.c.0.s8 %v3038
        %v3040 = vlaneseq
        %v3041 = vshrl.u32 %v3040, 7
        %v3042 = vsub.s32 %v3039, %v3041
        %v3043 = vrot.slane %v3035, %v3042
        %v3045 = vunpack.c.l.s4 1983009808
        %v3046 = vunpack.c.0.s8 %v3045
        %v3047 = vlaneseq
        %v3048 = vshrl.u32 %v3047, 7
        %v3049 = vsub.s32 %v3046, %v3048
        %v3050 = vrot.slane %v3036, %v3049
        %v3051 = vcombine.low %v2648, %v2658
        %v3052 = vcombine.high %v2648, %v2658
        %v3054 = vunpack.c.l.s4 1983009808
        %v3055 = vunpack.c.0.s8 %v3054
        %v3056 = vlaneseq
        %v3057 = vshrl.u32 %v3056, 7
        %v3058 = vsub.s32 %v3055, %v3057
        %v3059 = vrot.slane %v3051, %v3058
        %v3061 = vunpack.c.l.s4 1983009808
        %v3062 = vunpack.c.0.s8 %v3061
        %v3063 = vlaneseq
        %v3064 = vshrl.u32 %v3063, 7
        %v3065 = vsub.s32 %v3062, %v3064
        %v3066 = vrot.slane %v3052, %v3065
        %v3067 = vcombine.low %v3011, %v3027
        %v3068 = vcombine.high %v3011, %v3027
        %v3070 = vunpack.c.l.s4 1934713408
        %v3071 = vunpack.c.0.s8 %v3070
        %v3072 = vlaneseq
        %v3073 = vshrl.u32 %v3072, 7
        %v3074 = vsub.s32 %v3071, %v3073
        %v3075 = vrot.slane %v3067, %v3074
        %v3077 = vunpack.c.l.s4 1934713408
        %v3078 = vunpack.c.0.s8 %v3077
        %v3079 = vlaneseq
        %v3080 = vshrl.u32 %v3079, 7
        %v3081 = vsub.s32 %v3078, %v3080
        %v3082 = vrot.slane %v3068, %v3081
        %v3083 = vcombine.low %v3018, %v3034
        %v3084 = vcombine.high %v3018, %v3034
        %v3086 = vunpack.c.l.s4 1934713408
        %v3087 = vunpack.c.0.s8 %v3086
        %v3088 = vlaneseq
        %v3089 = vshrl.u32 %v3088, 7
        %v3090 = vsub.s32 %v3087, %v3089
        %v3091 = vrot.slane %v3083, %v3090
        %v3093 = vunpack.c.l.s4 1934713408
        %v3094 = vunpack.c.0.s8 %v3093
        %v3095 = vlaneseq
        %v3096 = vshrl.u32 %v3095, 7
        %v3097 = vsub.s32 %v3094, %v3096
        %v3098 = vrot.slane %v3084, %v3097
        %v3099 = vcombine.low %v3043, %v3059
        %v3100 = vcombine.high %v3043, %v3059
        %v3102 = vunpack.c.l.s4 1934713408
        %v3103 = vunpack.c.0.s8 %v3102
        %v3104 = vlaneseq
        %v3105 = vshrl.u32 %v3104, 7
        %v3106 = vsub.s32 %v3103, %v3105
        %v3107 = vrot.slane %v3099, %v3106
        %v3109 = vunpack.c.l.s4 1934713408
        %v3110 = vunpack.c.0.s8 %v3109
        %v3111 = vlaneseq
        %v3112 = vshrl.u32 %v3111, 7
        %v3113 = vsub.s32 %v3110, %v3112
        %v3114 = vrot.slane %v3100, %v3113
        %v3115 = vcombine.low %v3050, %v3066
        %v3116 = vcombine.high %v3050, %v3066
        %v3118 = vunpack.c.l.s4 1934713408
        %v3119 = vunpack.c.0.s8 %v3118
        %v3120 = vlaneseq
        %v3121 = vshrl.u32 %v3120, 7
        %v3122 = vsub.s32 %v3119, %v3121
        %v3123 = vrot.slane %v3115, %v3122
        %v3125 = vunpack.c.l.s4 1934713408
        %v3126 = vunpack.c.0.s8 %v3125
        %v3127 = vlaneseq
        %v3128 = vshrl.u32 %v3127, 7
        %v3129 = vsub.s32 %v3126, %v3128
        %v3130 = vrot.slane %v3116, %v3129
        %v3131 = vcombine.low %v3075, %v3107
        %v3132 = vcombine.high %v3075, %v3107
        %v3133 = vcombine.low %v3082, %v3114
        %v3134 = vcombine.high %v3082, %v3114
        %v3135 = vcombine.low %v3091, %v3123
        %v3136 = vcombine.high %v3091, %v3123
        %v3137 = vcombine.low %v3098, %v3130
        %v3138 = vcombine.high %v3098, %v3130
        %v3139 = vcombine.low %v2663, %v2673
        %v3140 = vcombine.high %v2663, %v2673
        %v3142 = vunpack.c.l.s4 1983009808
        %v3143 = vunpack.c.0.s8 %v3142
        %v3144 = vlaneseq
        %v3145 = vshrl.u32 %v3144, 7
        %v3146 = vsub.s32 %v3143, %v3145
        %v3147 = vrot.slane %v3139, %v3146
        %v3149 = vunpack.c.l.s4 1983009808
        %v3150 = vunpack.c.0.s8 %v3149
        %v3151 = vlaneseq
        %v3152 = vshrl.u32 %v3151, 7
        %v3153 = vsub.s32 %v3150, %v3152
        %v3154 = vrot.slane %v3140, %v3153
        %v3155 = vcombine.low %v2668, %v2678
        %v3156 = vcombine.high %v2668, %v2678
        %v3158 = vunpack.c.l.s4 1983009808
        %v3159 = vunpack.c.0.s8 %v3158
        %v3160 = vlaneseq
        %v3161 = vshrl.u32 %v3160, 7
        %v3162 = vsub.s32 %v3159, %v3161
        %v3163 = vrot.slane %v3155, %v3162
        %v3165 = vunpack.c.l.s4 1983009808
        %v3166 = vunpack.c.0.s8 %v3165
        %v3167 = vlaneseq
        %v3168 = vshrl.u32 %v3167, 7
        %v3169 = vsub.s32 %v3166, %v3168
        %v3170 = vrot.slane %v3156, %v3169
        %v3171 = vcombine.low %v2683, %v2693
        %v3172 = vcombine.high %v2683, %v2693
        %v3174 = vunpack.c.l.s4 1983009808
        %v3175 = vunpack.c.0.s8 %v3174
        %v3176 = vlaneseq
        %v3177 = vshrl.u32 %v3176, 7
        %v3178 = vsub.s32 %v3175, %v3177
        %v3179 = vrot.slane %v3171, %v3178
        %v3181 = vunpack.c.l.s4 1983009808
        %v3182 = vunpack.c.0.s8 %v3181
        %v3183 = vlaneseq
        %v3184 = vshrl.u32 %v3183, 7
        %v3185 = vsub.s32 %v3182, %v3184
        %v3186 = vrot.slane %v3172, %v3185
        %v3187 = vcombine.low %v2688, %v2698
        %v3188 = vcombine.high %v2688, %v2698
        %v3190 = vunpack.c.l.s4 1983009808
        %v3191 = vunpack.c.0.s8 %v3190
        %v3192 = vlaneseq
        %v3193 = vshrl.u32 %v3192, 7
        %v3194 = vsub.s32 %v3191, %v3193
        %v3195 = vrot.slane %v3187, %v3194
        %v3197 = vunpack.c.l.s4 1983009808
        %v3198 = vunpack.c.0.s8 %v3197
        %v3199 = vlaneseq
        %v3200 = vshrl.u32 %v3199, 7
        %v3201 = vsub.s32 %v3198, %v3200
        %v3202 = vrot.slane %v3188, %v3201
        %v3203 = vcombine.low %v3147, %v3163
        %v3204 = vcombine.high %v3147, %v3163
        %v3206 = vunpack.c.l.s4 1934713408
        %v3207 = vunpack.c.0.s8 %v3206
        %v3208 = vlaneseq
        %v3209 = vshrl.u32 %v3208, 7
        %v3210 = vsub.s32 %v3207, %v3209
        %v3211 = vrot.slane %v3203, %v3210
        %v3213 = vunpack.c.l.s4 1934713408
        %v3214 = vunpack.c.0.s8 %v3213
        %v3215 = vlaneseq
        %v3216 = vshrl.u32 %v3215, 7
        %v3217 = vsub.s32 %v3214, %v3216
        %v3218 = vrot.slane %v3204, %v3217
        %v3219 = vcombine.low %v3154, %v3170
        %v3220 = vcombine.high %v3154, %v3170
        %v3222 = vunpack.c.l.s4 1934713408
        %v3223 = vunpack.c.0.s8 %v3222
        %v3224 = vlaneseq
        %v3225 = vshrl.u32 %v3224, 7
        %v3226 = vsub.s32 %v3223, %v3225
        %v3227 = vrot.slane %v3219, %v3226
        %v3229 = vunpack.c.l.s4 1934713408
        %v3230 = vunpack.c.0.s8 %v3229
        %v3231 = vlaneseq
        %v3232 = vshrl.u32 %v3231, 7
        %v3233 = vsub.s32 %v3230, %v3232
        %v3234 = vrot.slane %v3220, %v3233
        %v3235 = vcombine.low %v3179, %v3195
        %v3236 = vcombine.high %v3179, %v3195
        %v3238 = vunpack.c.l.s4 1934713408
        %v3239 = vunpack.c.0.s8 %v3238
        %v3240 = vlaneseq
        %v3241 = vshrl.u32 %v3240, 7
        %v3242 = vsub.s32 %v3239, %v3241
        %v3243 = vrot.slane %v3235, %v3242
        %v3245 = vunpack.c.l.s4 1934713408
        %v3246 = vunpack.c.0.s8 %v3245
        %v3247 = vlaneseq
        %v3248 = vshrl.u32 %v3247, 7
        %v3249 = vsub.s32 %v3246, %v3248
        %v3250 = vrot.slane %v3236, %v3249
        %v3251 = vcombine.low %v3186, %v3202
        %v3252 = vcombine.high %v3186, %v3202
        %v3254 = vunpack.c.l.s4 1934713408
        %v3255 = vunpack.c.0.s8 %v3254
        %v3256 = vlaneseq
        %v3257 = vshrl.u32 %v3256, 7
        %v3258 = vsub.s32 %v3255, %v3257
        %v3259 = vrot.slane %v3251, %v3258
        %v3261 = vunpack.c.l.s4 1934713408
        %v3262 = vunpack.c.0.s8 %v3261
        %v3263 = vlaneseq
        %v3264 = vshrl.u32 %v3263, 7
        %v3265 = vsub.s32 %v3262, %v3264
        %v3266 = vrot.slane %v3252, %v3265
        %v3267 = vcombine.low %v3211, %v3243
        %v3268 = vcombine.high %v3211, %v3243
        %v3269 = vcombine.low %v3218, %v3250
        %v3270 = vcombine.high %v3218, %v3250
        %v3271 = vcombine.low %v3227, %v3259
        %v3272 = vcombine.high %v3227, %v3259
        %v3273 = vcombine.low %v3234, %v3266
        %v3274 = vcombine.high %v3234, %v3266
        %3277 = vrot.lane.b32.xlu0 %v2860, 16
        %v3278 = vpop.permute.xlu0 %3277
        %3279 = vrot.lane.b32.xlu0 %v2996, 16
        %v3280 = vpop.permute.xlu0 %3279
        %3285 = vrot.lane.b32.xlu0 %v2861, 32
        %v3286 = vpop.permute.xlu0 %3285
        %3287 = vrot.lane.b32.xlu0 %v2997, 32
        %v3288 = vpop.permute.xlu0 %3287
        %3293 = vrot.lane.b32.xlu0 %v2862, 48
        %v3294 = vpop.permute.xlu0 %3293
        %3295 = vrot.lane.b32.xlu0 %v2998, 48
        %v3296 = vpop.permute.xlu0 %3295
        %3301 = vrot.lane.b32.xlu0 %v2863, 64
        %v3302 = vpop.permute.xlu0 %3301
        %3303 = vrot.lane.b32.xlu0 %v2999, 64
        %v3304 = vpop.permute.xlu0 %3303
        %3309 = vrot.lane.b32.xlu0 %v2864, 80
        %v3310 = vpop.permute.xlu0 %3309
        %3311 = vrot.lane.b32.xlu0 %v3000, 80
        %v3312 = vpop.permute.xlu0 %3311
        %3317 = vrot.lane.b32.xlu0 %v2865, 96
        %v3318 = vpop.permute.xlu0 %3317
        %3319 = vrot.lane.b32.xlu0 %v3001, 96
        %v3320 = vpop.permute.xlu0 %3319
        %3325 = vrot.lane.b32.xlu0 %v2866, 112
        %v3326 = vpop.permute.xlu0 %3325
        %3327 = vrot.lane.b32.xlu0 %v3002, 112
        %v3328 = vpop.permute.xlu0 %3327
        %3333 = vrot.lane.b32.xlu0 %v3132, 16
        %v3334 = vpop.permute.xlu0 %3333
        %3335 = vrot.lane.b32.xlu0 %v3268, 16
        %v3336 = vpop.permute.xlu0 %3335
        %3341 = vrot.lane.b32.xlu0 %v3133, 32
        %v3342 = vpop.permute.xlu0 %3341
        %3343 = vrot.lane.b32.xlu0 %v3269, 32
        %v3344 = vpop.permute.xlu0 %3343
        %3349 = vrot.lane.b32.xlu0 %v3134, 48
        %v3350 = vpop.permute.xlu0 %3349
        %3351 = vrot.lane.b32.xlu0 %v3270, 48
        %v3352 = vpop.permute.xlu0 %3351
        %3357 = vrot.lane.b32.xlu0 %v3135, 64
        %v3358 = vpop.permute.xlu0 %3357
        %3359 = vrot.lane.b32.xlu0 %v3271, 64
        %v3360 = vpop.permute.xlu0 %3359
        %3365 = vrot.lane.b32.xlu0 %v3136, 80
        %v3366 = vpop.permute.xlu0 %3365
        %3367 = vrot.lane.b32.xlu0 %v3272, 80
        %v3368 = vpop.permute.xlu0 %3367
        %3373 = vrot.lane.b32.xlu0 %v3137, 96
        %v3374 = vpop.permute.xlu0 %3373
        %3375 = vrot.lane.b32.xlu0 %v3273, 96
        %v3376 = vpop.permute.xlu0 %3375
        %3381 = vrot.lane.b32.xlu0 %v3138, 112
        %v3382 = vpop.permute.xlu0 %3381
        %3383 = vrot.lane.b32.xlu0 %v3274, 112
        %v3384 = vpop.permute.xlu0 %3383
        %v3387 = vsel %vm975, %v2859, %v3278
        %v3388 = vsel %vm975, %v2995, %v3280
        %v3389 = vsel %vm978, %v3387, %v3286
        %v3390 = vsel %vm978, %v3388, %v3288
        %v3391 = vsel %vm981, %v3389, %v3294
        %v3392 = vsel %vm981, %v3390, %v3296
        %v3393 = vsel %vm984, %v3391, %v3302
        %v3394 = vsel %vm984, %v3392, %v3304
        %v3395 = vsel %vm987, %v3393, %v3310
        %v3396 = vsel %vm987, %v3394, %v3312
        %v3397 = vsel %vm990, %v3395, %v3318
        %v3398 = vsel %vm990, %v3396, %v3320
        %v3399 = vsel %vm993, %v3397, %v3326
        %v3400 = vsel %vm993, %v3398, %v3328
        %v3401 = vsel %vm975, %v3131, %v3334
        %v3402 = vsel %vm975, %v3267, %v3336
        %v3403 = vsel %vm978, %v3401, %v3342
        %v3404 = vsel %vm978, %v3402, %v3344
        %v3405 = vsel %vm981, %v3403, %v3350
        %v3406 = vsel %vm981, %v3404, %v3352
        %v3407 = vsel %vm984, %v3405, %v3358
        %v3408 = vsel %vm984, %v3406, %v3360
        %v3409 = vsel %vm987, %v3407, %v3366
        %v3410 = vsel %vm987, %v3408, %v3368
        %v3411 = vsel %vm990, %v3409, %v3374
        %v3412 = vsel %vm990, %v3410, %v3376
        %v3413 = vsel %vm993, %v3411, %v3382
        %v3414 = vsel %vm993, %v3412, %v3384
        %3415 = vrot.lane.b32.xlu0 %v2621, 127
        %v3416 = vpop.permute.xlu0 %3415
        %3417 = vrot.lane.b32.xlu0 %v2623, 127
        %v3418 = vpop.permute.xlu0 %3417
        %3419 = vrot.lane.b32.xlu0 %v2626, 127
        %v3420 = vpop.permute.xlu0 %3419
        %3421 = vrot.lane.b32.xlu0 %v2628, 127
        %v3422 = vpop.permute.xlu0 %3421
        %3423 = vrot.lane.b32.xlu0 %v2631, 127
        %v3424 = vpop.permute.xlu0 %3423
        %3425 = vrot.lane.b32.xlu0 %v2633, 127
        %v3426 = vpop.permute.xlu0 %3425
        %3427 = vrot.lane.b32.xlu0 %v2636, 127
        %v3428 = vpop.permute.xlu0 %3427
        %3429 = vrot.lane.b32.xlu0 %v2638, 127
        %v3430 = vpop.permute.xlu0 %3429
        %3431 = vrot.lane.b32.xlu0 %v2641, 127
        %v3432 = vpop.permute.xlu0 %3431
        %3433 = vrot.lane.b32.xlu0 %v2643, 127
        %v3434 = vpop.permute.xlu0 %3433
        %3435 = vrot.lane.b32.xlu0 %v2646, 127
        %v3436 = vpop.permute.xlu0 %3435
        %3437 = vrot.lane.b32.xlu0 %v2648, 127
        %v3438 = vpop.permute.xlu0 %3437
        %3439 = vrot.lane.b32.xlu0 %v2651, 127
        %v3440 = vpop.permute.xlu0 %3439
        %3441 = vrot.lane.b32.xlu0 %v2653, 127
        %v3442 = vpop.permute.xlu0 %3441
        %3443 = vrot.lane.b32.xlu0 %v2656, 127
        %v3444 = vpop.permute.xlu0 %3443
        %3445 = vrot.lane.b32.xlu0 %v2658, 127
        %v3446 = vpop.permute.xlu0 %3445
        %3447 = vrot.lane.b32.xlu0 %v2661, 127
        %v3448 = vpop.permute.xlu0 %3447
        %3449 = vrot.lane.b32.xlu0 %v2663, 127
        %v3450 = vpop.permute.xlu0 %3449
        %3451 = vrot.lane.b32.xlu0 %v2666, 127
        %v3452 = vpop.permute.xlu0 %3451
        %3453 = vrot.lane.b32.xlu0 %v2668, 127
        %v3454 = vpop.permute.xlu0 %3453
        %3455 = vrot.lane.b32.xlu0 %v2671, 127
        %v3456 = vpop.permute.xlu0 %3455
        %3457 = vrot.lane.b32.xlu0 %v2673, 127
        %v3458 = vpop.permute.xlu0 %3457
        %3459 = vrot.lane.b32.xlu0 %v2676, 127
        %v3460 = vpop.permute.xlu0 %3459
        %3461 = vrot.lane.b32.xlu0 %v2678, 127
        %v3462 = vpop.permute.xlu0 %3461
        %3463 = vrot.lane.b32.xlu0 %v2681, 127
        %v3464 = vpop.permute.xlu0 %3463
        %3465 = vrot.lane.b32.xlu0 %v2683, 127
        %v3466 = vpop.permute.xlu0 %3465
        %3467 = vrot.lane.b32.xlu0 %v2686, 127
        %v3468 = vpop.permute.xlu0 %3467
        %3469 = vrot.lane.b32.xlu0 %v2688, 127
        %v3470 = vpop.permute.xlu0 %3469
        %3471 = vrot.lane.b32.xlu0 %v2691, 127
        %v3472 = vpop.permute.xlu0 %3471
        %3473 = vrot.lane.b32.xlu0 %v2693, 127
        %v3474 = vpop.permute.xlu0 %3473
        %3475 = vrot.lane.b32.xlu0 %v2696, 127
        %v3476 = vpop.permute.xlu0 %3475
        %3477 = vrot.lane.b32.xlu0 %v2698, 127
        %v3478 = vpop.permute.xlu0 %3477
        %v3511 = vcombine.low %v3416, %v3424
        %v3512 = vcombine.high %v3416, %v3424
        %v3514 = vunpack.c.l.s4 1983009808
        %v3515 = vunpack.c.0.s8 %v3514
        %v3516 = vlaneseq
        %v3517 = vshrl.u32 %v3516, 7
        %v3518 = vsub.s32 %v3515, %v3517
        %v3519 = vrot.slane %v3511, %v3518
        %v3521 = vunpack.c.l.s4 1983009808
        %v3522 = vunpack.c.0.s8 %v3521
        %v3523 = vlaneseq
        %v3524 = vshrl.u32 %v3523, 7
        %v3525 = vsub.s32 %v3522, %v3524
        %v3526 = vrot.slane %v3512, %v3525
        %v3527 = vcombine.low %v3420, %v3428
        %v3528 = vcombine.high %v3420, %v3428
        %v3530 = vunpack.c.l.s4 1983009808
        %v3531 = vunpack.c.0.s8 %v3530
        %v3532 = vlaneseq
        %v3533 = vshrl.u32 %v3532, 7
        %v3534 = vsub.s32 %v3531, %v3533
        %v3535 = vrot.slane %v3527, %v3534
        %v3537 = vunpack.c.l.s4 1983009808
        %v3538 = vunpack.c.0.s8 %v3537
        %v3539 = vlaneseq
        %v3540 = vshrl.u32 %v3539, 7
        %v3541 = vsub.s32 %v3538, %v3540
        %v3542 = vrot.slane %v3528, %v3541
        %v3543 = vcombine.low %v3432, %v3440
        %v3544 = vcombine.high %v3432, %v3440
        %v3546 = vunpack.c.l.s4 1983009808
        %v3547 = vunpack.c.0.s8 %v3546
        %v3548 = vlaneseq
        %v3549 = vshrl.u32 %v3548, 7
        %v3550 = vsub.s32 %v3547, %v3549
        %v3551 = vrot.slane %v3543, %v3550
        %v3553 = vunpack.c.l.s4 1983009808
        %v3554 = vunpack.c.0.s8 %v3553
        %v3555 = vlaneseq
        %v3556 = vshrl.u32 %v3555, 7
        %v3557 = vsub.s32 %v3554, %v3556
        %v3558 = vrot.slane %v3544, %v3557
        %v3559 = vcombine.low %v3436, %v3444
        %v3560 = vcombine.high %v3436, %v3444
        %v3562 = vunpack.c.l.s4 1983009808
        %v3563 = vunpack.c.0.s8 %v3562
        %v3564 = vlaneseq
        %v3565 = vshrl.u32 %v3564, 7
        %v3566 = vsub.s32 %v3563, %v3565
        %v3567 = vrot.slane %v3559, %v3566
        %v3569 = vunpack.c.l.s4 1983009808
        %v3570 = vunpack.c.0.s8 %v3569
        %v3571 = vlaneseq
        %v3572 = vshrl.u32 %v3571, 7
        %v3573 = vsub.s32 %v3570, %v3572
        %v3574 = vrot.slane %v3560, %v3573
        %v3575 = vcombine.low %v3519, %v3535
        %v3576 = vcombine.high %v3519, %v3535
        %v3578 = vunpack.c.l.s4 1934713408
        %v3579 = vunpack.c.0.s8 %v3578
        %v3580 = vlaneseq
        %v3581 = vshrl.u32 %v3580, 7
        %v3582 = vsub.s32 %v3579, %v3581
        %v3583 = vrot.slane %v3575, %v3582
        %v3585 = vunpack.c.l.s4 1934713408
        %v3586 = vunpack.c.0.s8 %v3585
        %v3587 = vlaneseq
        %v3588 = vshrl.u32 %v3587, 7
        %v3589 = vsub.s32 %v3586, %v3588
        %v3590 = vrot.slane %v3576, %v3589
        %v3591 = vcombine.low %v3526, %v3542
        %v3592 = vcombine.high %v3526, %v3542
        %v3594 = vunpack.c.l.s4 1934713408
        %v3595 = vunpack.c.0.s8 %v3594
        %v3596 = vlaneseq
        %v3597 = vshrl.u32 %v3596, 7
        %v3598 = vsub.s32 %v3595, %v3597
        %v3599 = vrot.slane %v3591, %v3598
        %v3601 = vunpack.c.l.s4 1934713408
        %v3602 = vunpack.c.0.s8 %v3601
        %v3603 = vlaneseq
        %v3604 = vshrl.u32 %v3603, 7
        %v3605 = vsub.s32 %v3602, %v3604
        %v3606 = vrot.slane %v3592, %v3605
        %v3607 = vcombine.low %v3551, %v3567
        %v3608 = vcombine.high %v3551, %v3567
        %v3610 = vunpack.c.l.s4 1934713408
        %v3611 = vunpack.c.0.s8 %v3610
        %v3612 = vlaneseq
        %v3613 = vshrl.u32 %v3612, 7
        %v3614 = vsub.s32 %v3611, %v3613
        %v3615 = vrot.slane %v3607, %v3614
        %v3617 = vunpack.c.l.s4 1934713408
        %v3618 = vunpack.c.0.s8 %v3617
        %v3619 = vlaneseq
        %v3620 = vshrl.u32 %v3619, 7
        %v3621 = vsub.s32 %v3618, %v3620
        %v3622 = vrot.slane %v3608, %v3621
        %v3623 = vcombine.low %v3558, %v3574
        %v3624 = vcombine.high %v3558, %v3574
        %v3626 = vunpack.c.l.s4 1934713408
        %v3627 = vunpack.c.0.s8 %v3626
        %v3628 = vlaneseq
        %v3629 = vshrl.u32 %v3628, 7
        %v3630 = vsub.s32 %v3627, %v3629
        %v3631 = vrot.slane %v3623, %v3630
        %v3633 = vunpack.c.l.s4 1934713408
        %v3634 = vunpack.c.0.s8 %v3633
        %v3635 = vlaneseq
        %v3636 = vshrl.u32 %v3635, 7
        %v3637 = vsub.s32 %v3634, %v3636
        %v3638 = vrot.slane %v3624, %v3637
        %v3639 = vcombine.low %v3583, %v3615
        %v3640 = vcombine.high %v3583, %v3615
        %v3641 = vcombine.low %v3590, %v3622
        %v3642 = vcombine.high %v3590, %v3622
        %v3643 = vcombine.low %v3599, %v3631
        %v3644 = vcombine.high %v3599, %v3631
        %v3645 = vcombine.low %v3606, %v3638
        %v3646 = vcombine.high %v3606, %v3638
        %v3647 = vcombine.low %v3448, %v3456
        %v3648 = vcombine.high %v3448, %v3456
        %v3650 = vunpack.c.l.s4 1983009808
        %v3651 = vunpack.c.0.s8 %v3650
        %v3652 = vlaneseq
        %v3653 = vshrl.u32 %v3652, 7
        %v3654 = vsub.s32 %v3651, %v3653
        %v3655 = vrot.slane %v3647, %v3654
        %v3657 = vunpack.c.l.s4 1983009808
        %v3658 = vunpack.c.0.s8 %v3657
        %v3659 = vlaneseq
        %v3660 = vshrl.u32 %v3659, 7
        %v3661 = vsub.s32 %v3658, %v3660
        %v3662 = vrot.slane %v3648, %v3661
        %v3663 = vcombine.low %v3452, %v3460
        %v3664 = vcombine.high %v3452, %v3460
        %v3666 = vunpack.c.l.s4 1983009808
        %v3667 = vunpack.c.0.s8 %v3666
        %v3668 = vlaneseq
        %v3669 = vshrl.u32 %v3668, 7
        %v3670 = vsub.s32 %v3667, %v3669
        %v3671 = vrot.slane %v3663, %v3670
        %v3673 = vunpack.c.l.s4 1983009808
        %v3674 = vunpack.c.0.s8 %v3673
        %v3675 = vlaneseq
        %v3676 = vshrl.u32 %v3675, 7
        %v3677 = vsub.s32 %v3674, %v3676
        %v3678 = vrot.slane %v3664, %v3677
        %v3679 = vcombine.low %v3464, %v3472
        %v3680 = vcombine.high %v3464, %v3472
        %v3682 = vunpack.c.l.s4 1983009808
        %v3683 = vunpack.c.0.s8 %v3682
        %v3684 = vlaneseq
        %v3685 = vshrl.u32 %v3684, 7
        %v3686 = vsub.s32 %v3683, %v3685
        %v3687 = vrot.slane %v3679, %v3686
        %v3689 = vunpack.c.l.s4 1983009808
        %v3690 = vunpack.c.0.s8 %v3689
        %v3691 = vlaneseq
        %v3692 = vshrl.u32 %v3691, 7
        %v3693 = vsub.s32 %v3690, %v3692
        %v3694 = vrot.slane %v3680, %v3693
        %v3695 = vcombine.low %v3468, %v3476
        %v3696 = vcombine.high %v3468, %v3476
        %v3698 = vunpack.c.l.s4 1983009808
        %v3699 = vunpack.c.0.s8 %v3698
        %v3700 = vlaneseq
        %v3701 = vshrl.u32 %v3700, 7
        %v3702 = vsub.s32 %v3699, %v3701
        %v3703 = vrot.slane %v3695, %v3702
        %v3705 = vunpack.c.l.s4 1983009808
        %v3706 = vunpack.c.0.s8 %v3705
        %v3707 = vlaneseq
        %v3708 = vshrl.u32 %v3707, 7
        %v3709 = vsub.s32 %v3706, %v3708
        %v3710 = vrot.slane %v3696, %v3709
        %v3711 = vcombine.low %v3655, %v3671
        %v3712 = vcombine.high %v3655, %v3671
        %v3714 = vunpack.c.l.s4 1934713408
        %v3715 = vunpack.c.0.s8 %v3714
        %v3716 = vlaneseq
        %v3717 = vshrl.u32 %v3716, 7
        %v3718 = vsub.s32 %v3715, %v3717
        %v3719 = vrot.slane %v3711, %v3718
        %v3721 = vunpack.c.l.s4 1934713408
        %v3722 = vunpack.c.0.s8 %v3721
        %v3723 = vlaneseq
        %v3724 = vshrl.u32 %v3723, 7
        %v3725 = vsub.s32 %v3722, %v3724
        %v3726 = vrot.slane %v3712, %v3725
        %v3727 = vcombine.low %v3662, %v3678
        %v3728 = vcombine.high %v3662, %v3678
        %v3730 = vunpack.c.l.s4 1934713408
        %v3731 = vunpack.c.0.s8 %v3730
        %v3732 = vlaneseq
        %v3733 = vshrl.u32 %v3732, 7
        %v3734 = vsub.s32 %v3731, %v3733
        %v3735 = vrot.slane %v3727, %v3734
        %v3737 = vunpack.c.l.s4 1934713408
        %v3738 = vunpack.c.0.s8 %v3737
        %v3739 = vlaneseq
        %v3740 = vshrl.u32 %v3739, 7
        %v3741 = vsub.s32 %v3738, %v3740
        %v3742 = vrot.slane %v3728, %v3741
        %v3743 = vcombine.low %v3687, %v3703
        %v3744 = vcombine.high %v3687, %v3703
        %v3746 = vunpack.c.l.s4 1934713408
        %v3747 = vunpack.c.0.s8 %v3746
        %v3748 = vlaneseq
        %v3749 = vshrl.u32 %v3748, 7
        %v3750 = vsub.s32 %v3747, %v3749
        %v3751 = vrot.slane %v3743, %v3750
        %v3753 = vunpack.c.l.s4 1934713408
        %v3754 = vunpack.c.0.s8 %v3753
        %v3755 = vlaneseq
        %v3756 = vshrl.u32 %v3755, 7
        %v3757 = vsub.s32 %v3754, %v3756
        %v3758 = vrot.slane %v3744, %v3757
        %v3759 = vcombine.low %v3694, %v3710
        %v3760 = vcombine.high %v3694, %v3710
        %v3762 = vunpack.c.l.s4 1934713408
        %v3763 = vunpack.c.0.s8 %v3762
        %v3764 = vlaneseq
        %v3765 = vshrl.u32 %v3764, 7
        %v3766 = vsub.s32 %v3763, %v3765
        %v3767 = vrot.slane %v3759, %v3766
        %v3769 = vunpack.c.l.s4 1934713408
        %v3770 = vunpack.c.0.s8 %v3769
        %v3771 = vlaneseq
        %v3772 = vshrl.u32 %v3771, 7
        %v3773 = vsub.s32 %v3770, %v3772
        %v3774 = vrot.slane %v3760, %v3773
        %v3775 = vcombine.low %v3719, %v3751
        %v3776 = vcombine.high %v3719, %v3751
        %v3777 = vcombine.low %v3726, %v3758
        %v3778 = vcombine.high %v3726, %v3758
        %v3779 = vcombine.low %v3735, %v3767
        %v3780 = vcombine.high %v3735, %v3767
        %v3781 = vcombine.low %v3742, %v3774
        %v3782 = vcombine.high %v3742, %v3774
        %v3783 = vcombine.low %v3418, %v3426
        %v3784 = vcombine.high %v3418, %v3426
        %v3786 = vunpack.c.l.s4 1983009808
        %v3787 = vunpack.c.0.s8 %v3786
        %v3788 = vlaneseq
        %v3789 = vshrl.u32 %v3788, 7
        %v3790 = vsub.s32 %v3787, %v3789
        %v3791 = vrot.slane %v3783, %v3790
        %v3793 = vunpack.c.l.s4 1983009808
        %v3794 = vunpack.c.0.s8 %v3793
        %v3795 = vlaneseq
        %v3796 = vshrl.u32 %v3795, 7
        %v3797 = vsub.s32 %v3794, %v3796
        %v3798 = vrot.slane %v3784, %v3797
        %v3799 = vcombine.low %v3422, %v3430
        %v3800 = vcombine.high %v3422, %v3430
        %v3802 = vunpack.c.l.s4 1983009808
        %v3803 = vunpack.c.0.s8 %v3802
        %v3804 = vlaneseq
        %v3805 = vshrl.u32 %v3804, 7
        %v3806 = vsub.s32 %v3803, %v3805
        %v3807 = vrot.slane %v3799, %v3806
        %v3809 = vunpack.c.l.s4 1983009808
        %v3810 = vunpack.c.0.s8 %v3809
        %v3811 = vlaneseq
        %v3812 = vshrl.u32 %v3811, 7
        %v3813 = vsub.s32 %v3810, %v3812
        %v3814 = vrot.slane %v3800, %v3813
        %v3815 = vcombine.low %v3434, %v3442
        %v3816 = vcombine.high %v3434, %v3442
        %v3818 = vunpack.c.l.s4 1983009808
        %v3819 = vunpack.c.0.s8 %v3818
        %v3820 = vlaneseq
        %v3821 = vshrl.u32 %v3820, 7
        %v3822 = vsub.s32 %v3819, %v3821
        %v3823 = vrot.slane %v3815, %v3822
        %v3825 = vunpack.c.l.s4 1983009808
        %v3826 = vunpack.c.0.s8 %v3825
        %v3827 = vlaneseq
        %v3828 = vshrl.u32 %v3827, 7
        %v3829 = vsub.s32 %v3826, %v3828
        %v3830 = vrot.slane %v3816, %v3829
        %v3831 = vcombine.low %v3438, %v3446
        %v3832 = vcombine.high %v3438, %v3446
        %v3834 = vunpack.c.l.s4 1983009808
        %v3835 = vunpack.c.0.s8 %v3834
        %v3836 = vlaneseq
        %v3837 = vshrl.u32 %v3836, 7
        %v3838 = vsub.s32 %v3835, %v3837
        %v3839 = vrot.slane %v3831, %v3838
        %v3841 = vunpack.c.l.s4 1983009808
        %v3842 = vunpack.c.0.s8 %v3841
        %v3843 = vlaneseq
        %v3844 = vshrl.u32 %v3843, 7
        %v3845 = vsub.s32 %v3842, %v3844
        %v3846 = vrot.slane %v3832, %v3845
        %v3847 = vcombine.low %v3791, %v3807
        %v3848 = vcombine.high %v3791, %v3807
        %v3850 = vunpack.c.l.s4 1934713408
        %v3851 = vunpack.c.0.s8 %v3850
        %v3852 = vlaneseq
        %v3853 = vshrl.u32 %v3852, 7
        %v3854 = vsub.s32 %v3851, %v3853
        %v3855 = vrot.slane %v3847, %v3854
        %v3857 = vunpack.c.l.s4 1934713408
        %v3858 = vunpack.c.0.s8 %v3857
        %v3859 = vlaneseq
        %v3860 = vshrl.u32 %v3859, 7
        %v3861 = vsub.s32 %v3858, %v3860
        %v3862 = vrot.slane %v3848, %v3861
        %v3863 = vcombine.low %v3798, %v3814
        %v3864 = vcombine.high %v3798, %v3814
        %v3866 = vunpack.c.l.s4 1934713408
        %v3867 = vunpack.c.0.s8 %v3866
        %v3868 = vlaneseq
        %v3869 = vshrl.u32 %v3868, 7
        %v3870 = vsub.s32 %v3867, %v3869
        %v3871 = vrot.slane %v3863, %v3870
        %v3873 = vunpack.c.l.s4 1934713408
        %v3874 = vunpack.c.0.s8 %v3873
        %v3875 = vlaneseq
        %v3876 = vshrl.u32 %v3875, 7
        %v3877 = vsub.s32 %v3874, %v3876
        %v3878 = vrot.slane %v3864, %v3877
        %v3879 = vcombine.low %v3823, %v3839
        %v3880 = vcombine.high %v3823, %v3839
        %v3882 = vunpack.c.l.s4 1934713408
        %v3883 = vunpack.c.0.s8 %v3882
        %v3884 = vlaneseq
        %v3885 = vshrl.u32 %v3884, 7
        %v3886 = vsub.s32 %v3883, %v3885
        %v3887 = vrot.slane %v3879, %v3886
        %v3889 = vunpack.c.l.s4 1934713408
        %v3890 = vunpack.c.0.s8 %v3889
        %v3891 = vlaneseq
        %v3892 = vshrl.u32 %v3891, 7
        %v3893 = vsub.s32 %v3890, %v3892
        %v3894 = vrot.slane %v3880, %v3893
        %v3895 = vcombine.low %v3830, %v3846
        %v3896 = vcombine.high %v3830, %v3846
        %v3898 = vunpack.c.l.s4 1934713408
        %v3899 = vunpack.c.0.s8 %v3898
        %v3900 = vlaneseq
        %v3901 = vshrl.u32 %v3900, 7
        %v3902 = vsub.s32 %v3899, %v3901
        %v3903 = vrot.slane %v3895, %v3902
        %v3905 = vunpack.c.l.s4 1934713408
        %v3906 = vunpack.c.0.s8 %v3905
        %v3907 = vlaneseq
        %v3908 = vshrl.u32 %v3907, 7
        %v3909 = vsub.s32 %v3906, %v3908
        %v3910 = vrot.slane %v3896, %v3909
        %v3911 = vcombine.low %v3855, %v3887
        %v3912 = vcombine.high %v3855, %v3887
        %v3913 = vcombine.low %v3862, %v3894
        %v3914 = vcombine.high %v3862, %v3894
        %v3915 = vcombine.low %v3871, %v3903
        %v3916 = vcombine.high %v3871, %v3903
        %v3917 = vcombine.low %v3878, %v3910
        %v3918 = vcombine.high %v3878, %v3910
        %v3919 = vcombine.low %v3450, %v3458
        %v3920 = vcombine.high %v3450, %v3458
        %v3922 = vunpack.c.l.s4 1983009808
        %v3923 = vunpack.c.0.s8 %v3922
        %v3924 = vlaneseq
        %v3925 = vshrl.u32 %v3924, 7
        %v3926 = vsub.s32 %v3923, %v3925
        %v3927 = vrot.slane %v3919, %v3926
        %v3929 = vunpack.c.l.s4 1983009808
        %v3930 = vunpack.c.0.s8 %v3929
        %v3931 = vlaneseq
        %v3932 = vshrl.u32 %v3931, 7
        %v3933 = vsub.s32 %v3930, %v3932
        %v3934 = vrot.slane %v3920, %v3933
        %v3935 = vcombine.low %v3454, %v3462
        %v3936 = vcombine.high %v3454, %v3462
        %v3938 = vunpack.c.l.s4 1983009808
        %v3939 = vunpack.c.0.s8 %v3938
        %v3940 = vlaneseq
        %v3941 = vshrl.u32 %v3940, 7
        %v3942 = vsub.s32 %v3939, %v3941
        %v3943 = vrot.slane %v3935, %v3942
        %v3945 = vunpack.c.l.s4 1983009808
        %v3946 = vunpack.c.0.s8 %v3945
        %v3947 = vlaneseq
        %v3948 = vshrl.u32 %v3947, 7
        %v3949 = vsub.s32 %v3946, %v3948
        %v3950 = vrot.slane %v3936, %v3949
        %v3951 = vcombine.low %v3466, %v3474
        %v3952 = vcombine.high %v3466, %v3474
        %v3954 = vunpack.c.l.s4 1983009808
        %v3955 = vunpack.c.0.s8 %v3954
        %v3956 = vlaneseq
        %v3957 = vshrl.u32 %v3956, 7
        %v3958 = vsub.s32 %v3955, %v3957
        %v3959 = vrot.slane %v3951, %v3958
        %v3961 = vunpack.c.l.s4 1983009808
        %v3962 = vunpack.c.0.s8 %v3961
        %v3963 = vlaneseq
        %v3964 = vshrl.u32 %v3963, 7
        %v3965 = vsub.s32 %v3962, %v3964
        %v3966 = vrot.slane %v3952, %v3965
        %v3967 = vcombine.low %v3470, %v3478
        %v3968 = vcombine.high %v3470, %v3478
        %v3970 = vunpack.c.l.s4 1983009808
        %v3971 = vunpack.c.0.s8 %v3970
        %v3972 = vlaneseq
        %v3973 = vshrl.u32 %v3972, 7
        %v3974 = vsub.s32 %v3971, %v3973
        %v3975 = vrot.slane %v3967, %v3974
        %v3977 = vunpack.c.l.s4 1983009808
        %v3978 = vunpack.c.0.s8 %v3977
        %v3979 = vlaneseq
        %v3980 = vshrl.u32 %v3979, 7
        %v3981 = vsub.s32 %v3978, %v3980
        %v3982 = vrot.slane %v3968, %v3981
        %v3983 = vcombine.low %v3927, %v3943
        %v3984 = vcombine.high %v3927, %v3943
        %v3986 = vunpack.c.l.s4 1934713408
        %v3987 = vunpack.c.0.s8 %v3986
        %v3988 = vlaneseq
        %v3989 = vshrl.u32 %v3988, 7
        %v3990 = vsub.s32 %v3987, %v3989
        %v3991 = vrot.slane %v3983, %v3990
        %v3993 = vunpack.c.l.s4 1934713408
        %v3994 = vunpack.c.0.s8 %v3993
        %v3995 = vlaneseq
        %v3996 = vshrl.u32 %v3995, 7
        %v3997 = vsub.s32 %v3994, %v3996
        %v3998 = vrot.slane %v3984, %v3997
        %v3999 = vcombine.low %v3934, %v3950
        %v4000 = vcombine.high %v3934, %v3950
        %v4002 = vunpack.c.l.s4 1934713408
        %v4003 = vunpack.c.0.s8 %v4002
        %v4004 = vlaneseq
        %v4005 = vshrl.u32 %v4004, 7
        %v4006 = vsub.s32 %v4003, %v4005
        %v4007 = vrot.slane %v3999, %v4006
        %v4009 = vunpack.c.l.s4 1934713408
        %v4010 = vunpack.c.0.s8 %v4009
        %v4011 = vlaneseq
        %v4012 = vshrl.u32 %v4011, 7
        %v4013 = vsub.s32 %v4010, %v4012
        %v4014 = vrot.slane %v4000, %v4013
        %v4015 = vcombine.low %v3959, %v3975
        %v4016 = vcombine.high %v3959, %v3975
        %v4018 = vunpack.c.l.s4 1934713408
        %v4019 = vunpack.c.0.s8 %v4018
        %v4020 = vlaneseq
        %v4021 = vshrl.u32 %v4020, 7
        %v4022 = vsub.s32 %v4019, %v4021
        %v4023 = vrot.slane %v4015, %v4022
        %v4025 = vunpack.c.l.s4 1934713408
        %v4026 = vunpack.c.0.s8 %v4025
        %v4027 = vlaneseq
        %v4028 = vshrl.u32 %v4027, 7
        %v4029 = vsub.s32 %v4026, %v4028
        %v4030 = vrot.slane %v4016, %v4029
        %v4031 = vcombine.low %v3966, %v3982
        %v4032 = vcombine.high %v3966, %v3982
        %v4034 = vunpack.c.l.s4 1934713408
        %v4035 = vunpack.c.0.s8 %v4034
        %v4036 = vlaneseq
        %v4037 = vshrl.u32 %v4036, 7
        %v4038 = vsub.s32 %v4035, %v4037
        %v4039 = vrot.slane %v4031, %v4038
        %v4041 = vunpack.c.l.s4 1934713408
        %v4042 = vunpack.c.0.s8 %v4041
        %v4043 = vlaneseq
        %v4044 = vshrl.u32 %v4043, 7
        %v4045 = vsub.s32 %v4042, %v4044
        %v4046 = vrot.slane %v4032, %v4045
        %v4047 = vcombine.low %v3991, %v4023
        %v4048 = vcombine.high %v3991, %v4023
        %v4049 = vcombine.low %v3998, %v4030
        %v4050 = vcombine.high %v3998, %v4030
        %v4051 = vcombine.low %v4007, %v4039
        %v4052 = vcombine.high %v4007, %v4039
        %v4053 = vcombine.low %v4014, %v4046
        %v4054 = vcombine.high %v4014, %v4046
        %4057 = vrot.lane.b32.xlu0 %v3640, 16
        %v4058 = vpop.permute.xlu0 %4057
        %4059 = vrot.lane.b32.xlu0 %v3776, 16
        %v4060 = vpop.permute.xlu0 %4059
        %4065 = vrot.lane.b32.xlu0 %v3641, 32
        %v4066 = vpop.permute.xlu0 %4065
        %4067 = vrot.lane.b32.xlu0 %v3777, 32
        %v4068 = vpop.permute.xlu0 %4067
        %4073 = vrot.lane.b32.xlu0 %v3642, 48
        %v4074 = vpop.permute.xlu0 %4073
        %4075 = vrot.lane.b32.xlu0 %v3778, 48
        %v4076 = vpop.permute.xlu0 %4075
        %4081 = vrot.lane.b32.xlu0 %v3643, 64
        %v4082 = vpop.permute.xlu0 %4081
        %4083 = vrot.lane.b32.xlu0 %v3779, 64
        %v4084 = vpop.permute.xlu0 %4083
        %4089 = vrot.lane.b32.xlu0 %v3644, 80
        %v4090 = vpop.permute.xlu0 %4089
        %4091 = vrot.lane.b32.xlu0 %v3780, 80
        %v4092 = vpop.permute.xlu0 %4091
        %4097 = vrot.lane.b32.xlu0 %v3645, 96
        %v4098 = vpop.permute.xlu0 %4097
        %4099 = vrot.lane.b32.xlu0 %v3781, 96
        %v4100 = vpop.permute.xlu0 %4099
        %4105 = vrot.lane.b32.xlu0 %v3646, 112
        %v4106 = vpop.permute.xlu0 %4105
        %4107 = vrot.lane.b32.xlu0 %v3782, 112
        %v4108 = vpop.permute.xlu0 %4107
        %4113 = vrot.lane.b32.xlu0 %v3912, 16
        %v4114 = vpop.permute.xlu0 %4113
        %4115 = vrot.lane.b32.xlu0 %v4048, 16
        %v4116 = vpop.permute.xlu0 %4115
        %4121 = vrot.lane.b32.xlu0 %v3913, 32
        %v4122 = vpop.permute.xlu0 %4121
        %4123 = vrot.lane.b32.xlu0 %v4049, 32
        %v4124 = vpop.permute.xlu0 %4123
        %4129 = vrot.lane.b32.xlu0 %v3914, 48
        %v4130 = vpop.permute.xlu0 %4129
        %4131 = vrot.lane.b32.xlu0 %v4050, 48
        %v4132 = vpop.permute.xlu0 %4131
        %4137 = vrot.lane.b32.xlu0 %v3915, 64
        %v4138 = vpop.permute.xlu0 %4137
        %4139 = vrot.lane.b32.xlu0 %v4051, 64
        %v4140 = vpop.permute.xlu0 %4139
        %4145 = vrot.lane.b32.xlu0 %v3916, 80
        %v4146 = vpop.permute.xlu0 %4145
        %4147 = vrot.lane.b32.xlu0 %v4052, 80
        %v4148 = vpop.permute.xlu0 %4147
        %4153 = vrot.lane.b32.xlu0 %v3917, 96
        %v4154 = vpop.permute.xlu0 %4153
        %4155 = vrot.lane.b32.xlu0 %v4053, 96
        %v4156 = vpop.permute.xlu0 %4155
        %4161 = vrot.lane.b32.xlu0 %v3918, 112
        %v4162 = vpop.permute.xlu0 %4161
        %4163 = vrot.lane.b32.xlu0 %v4054, 112
        %v4164 = vpop.permute.xlu0 %4163
        %v4167 = vsel %vm975, %v3639, %v4058
        %v4168 = vsel %vm975, %v3775, %v4060
        %v4169 = vsel %vm978, %v4167, %v4066
        %v4170 = vsel %vm978, %v4168, %v4068
        %v4171 = vsel %vm981, %v4169, %v4074
        %v4172 = vsel %vm981, %v4170, %v4076
        %v4173 = vsel %vm984, %v4171, %v4082
        %v4174 = vsel %vm984, %v4172, %v4084
        %v4175 = vsel %vm987, %v4173, %v4090
        %v4176 = vsel %vm987, %v4174, %v4092
        %v4177 = vsel %vm990, %v4175, %v4098
        %v4178 = vsel %vm990, %v4176, %v4100
        %v4179 = vsel %vm993, %v4177, %v4106
        %v4180 = vsel %vm993, %v4178, %v4108
        %v4181 = vsel %vm975, %v3911, %v4114
        %v4182 = vsel %vm975, %v4047, %v4116
        %v4183 = vsel %vm978, %v4181, %v4122
        %v4184 = vsel %vm978, %v4182, %v4124
        %v4185 = vsel %vm981, %v4183, %v4130
        %v4186 = vsel %vm981, %v4184, %v4132
        %v4187 = vsel %vm984, %v4185, %v4138
        %v4188 = vsel %vm984, %v4186, %v4140
        %v4189 = vsel %vm987, %v4187, %v4146
        %v4190 = vsel %vm987, %v4188, %v4148
        %v4191 = vsel %vm990, %v4189, %v4154
        %v4192 = vsel %vm990, %v4190, %v4156
        %v4193 = vsel %vm993, %v4191, %v4162
        %v4194 = vsel %vm993, %v4192, %v4164
        %4195 = vrot.lane.b32.xlu0 %v2621, 126
        %v4196 = vpop.permute.xlu0 %4195
        %4197 = vrot.lane.b32.xlu0 %v2623, 126
        %v4198 = vpop.permute.xlu0 %4197
        %4199 = vrot.lane.b32.xlu0 %v2626, 126
        %v4200 = vpop.permute.xlu0 %4199
        %4201 = vrot.lane.b32.xlu0 %v2628, 126
        %v4202 = vpop.permute.xlu0 %4201
        %4203 = vrot.lane.b32.xlu0 %v2631, 126
        %v4204 = vpop.permute.xlu0 %4203
        %4205 = vrot.lane.b32.xlu0 %v2633, 126
        %v4206 = vpop.permute.xlu0 %4205
        %4207 = vrot.lane.b32.xlu0 %v2636, 126
        %v4208 = vpop.permute.xlu0 %4207
        %4209 = vrot.lane.b32.xlu0 %v2638, 126
        %v4210 = vpop.permute.xlu0 %4209
        %4211 = vrot.lane.b32.xlu0 %v2641, 126
        %v4212 = vpop.permute.xlu0 %4211
        %4213 = vrot.lane.b32.xlu0 %v2643, 126
        %v4214 = vpop.permute.xlu0 %4213
        %4215 = vrot.lane.b32.xlu0 %v2646, 126
        %v4216 = vpop.permute.xlu0 %4215
        %4217 = vrot.lane.b32.xlu0 %v2648, 126
        %v4218 = vpop.permute.xlu0 %4217
        %4219 = vrot.lane.b32.xlu0 %v2651, 126
        %v4220 = vpop.permute.xlu0 %4219
        %4221 = vrot.lane.b32.xlu0 %v2653, 126
        %v4222 = vpop.permute.xlu0 %4221
        %4223 = vrot.lane.b32.xlu0 %v2656, 126
        %v4224 = vpop.permute.xlu0 %4223
        %4225 = vrot.lane.b32.xlu0 %v2658, 126
        %v4226 = vpop.permute.xlu0 %4225
        %4227 = vrot.lane.b32.xlu0 %v2661, 126
        %v4228 = vpop.permute.xlu0 %4227
        %4229 = vrot.lane.b32.xlu0 %v2663, 126
        %v4230 = vpop.permute.xlu0 %4229
        %4231 = vrot.lane.b32.xlu0 %v2666, 126
        %v4232 = vpop.permute.xlu0 %4231
        %4233 = vrot.lane.b32.xlu0 %v2668, 126
        %v4234 = vpop.permute.xlu0 %4233
        %4235 = vrot.lane.b32.xlu0 %v2671, 126
        %v4236 = vpop.permute.xlu0 %4235
        %4237 = vrot.lane.b32.xlu0 %v2673, 126
        %v4238 = vpop.permute.xlu0 %4237
        %4239 = vrot.lane.b32.xlu0 %v2676, 126
        %v4240 = vpop.permute.xlu0 %4239
        %4241 = vrot.lane.b32.xlu0 %v2678, 126
        %v4242 = vpop.permute.xlu0 %4241
        %4243 = vrot.lane.b32.xlu0 %v2681, 126
        %v4244 = vpop.permute.xlu0 %4243
        %4245 = vrot.lane.b32.xlu0 %v2683, 126
        %v4246 = vpop.permute.xlu0 %4245
        %4247 = vrot.lane.b32.xlu0 %v2686, 126
        %v4248 = vpop.permute.xlu0 %4247
        %4249 = vrot.lane.b32.xlu0 %v2688, 126
        %v4250 = vpop.permute.xlu0 %4249
        %4251 = vrot.lane.b32.xlu0 %v2691, 126
        %v4252 = vpop.permute.xlu0 %4251
        %4253 = vrot.lane.b32.xlu0 %v2693, 126
        %v4254 = vpop.permute.xlu0 %4253
        %4255 = vrot.lane.b32.xlu0 %v2696, 126
        %v4256 = vpop.permute.xlu0 %4255
        %4257 = vrot.lane.b32.xlu0 %v2698, 126
        %v4258 = vpop.permute.xlu0 %4257
        %v4291 = vcombine.low %v4196, %v4204
        %v4292 = vcombine.high %v4196, %v4204
        %v4294 = vunpack.c.l.s4 1983009808
        %v4295 = vunpack.c.0.s8 %v4294
        %v4296 = vlaneseq
        %v4297 = vshrl.u32 %v4296, 7
        %v4298 = vsub.s32 %v4295, %v4297
        %v4299 = vrot.slane %v4291, %v4298
        %v4301 = vunpack.c.l.s4 1983009808
        %v4302 = vunpack.c.0.s8 %v4301
        %v4303 = vlaneseq
        %v4304 = vshrl.u32 %v4303, 7
        %v4305 = vsub.s32 %v4302, %v4304
        %v4306 = vrot.slane %v4292, %v4305
        %v4307 = vcombine.low %v4200, %v4208
        %v4308 = vcombine.high %v4200, %v4208
        %v4310 = vunpack.c.l.s4 1983009808
        %v4311 = vunpack.c.0.s8 %v4310
        %v4312 = vlaneseq
        %v4313 = vshrl.u32 %v4312, 7
        %v4314 = vsub.s32 %v4311, %v4313
        %v4315 = vrot.slane %v4307, %v4314
        %v4317 = vunpack.c.l.s4 1983009808
        %v4318 = vunpack.c.0.s8 %v4317
        %v4319 = vlaneseq
        %v4320 = vshrl.u32 %v4319, 7
        %v4321 = vsub.s32 %v4318, %v4320
        %v4322 = vrot.slane %v4308, %v4321
        %v4323 = vcombine.low %v4212, %v4220
        %v4324 = vcombine.high %v4212, %v4220
        %v4326 = vunpack.c.l.s4 1983009808
        %v4327 = vunpack.c.0.s8 %v4326
        %v4328 = vlaneseq
        %v4329 = vshrl.u32 %v4328, 7
        %v4330 = vsub.s32 %v4327, %v4329
        %v4331 = vrot.slane %v4323, %v4330
        %v4333 = vunpack.c.l.s4 1983009808
        %v4334 = vunpack.c.0.s8 %v4333
        %v4335 = vlaneseq
        %v4336 = vshrl.u32 %v4335, 7
        %v4337 = vsub.s32 %v4334, %v4336
        %v4338 = vrot.slane %v4324, %v4337
        %v4339 = vcombine.low %v4216, %v4224
        %v4340 = vcombine.high %v4216, %v4224
        %v4342 = vunpack.c.l.s4 1983009808
        %v4343 = vunpack.c.0.s8 %v4342
        %v4344 = vlaneseq
        %v4345 = vshrl.u32 %v4344, 7
        %v4346 = vsub.s32 %v4343, %v4345
        %v4347 = vrot.slane %v4339, %v4346
        %v4349 = vunpack.c.l.s4 1983009808
        %v4350 = vunpack.c.0.s8 %v4349
        %v4351 = vlaneseq
        %v4352 = vshrl.u32 %v4351, 7
        %v4353 = vsub.s32 %v4350, %v4352
        %v4354 = vrot.slane %v4340, %v4353
        %v4355 = vcombine.low %v4299, %v4315
        %v4356 = vcombine.high %v4299, %v4315
        %v4358 = vunpack.c.l.s4 1934713408
        %v4359 = vunpack.c.0.s8 %v4358
        %v4360 = vlaneseq
        %v4361 = vshrl.u32 %v4360, 7
        %v4362 = vsub.s32 %v4359, %v4361
        %v4363 = vrot.slane %v4355, %v4362
        %v4365 = vunpack.c.l.s4 1934713408
        %v4366 = vunpack.c.0.s8 %v4365
        %v4367 = vlaneseq
        %v4368 = vshrl.u32 %v4367, 7
        %v4369 = vsub.s32 %v4366, %v4368
        %v4370 = vrot.slane %v4356, %v4369
        %v4371 = vcombine.low %v4306, %v4322
        %v4372 = vcombine.high %v4306, %v4322
        %v4374 = vunpack.c.l.s4 1934713408
        %v4375 = vunpack.c.0.s8 %v4374
        %v4376 = vlaneseq
        %v4377 = vshrl.u32 %v4376, 7
        %v4378 = vsub.s32 %v4375, %v4377
        %v4379 = vrot.slane %v4371, %v4378
        %v4381 = vunpack.c.l.s4 1934713408
        %v4382 = vunpack.c.0.s8 %v4381
        %v4383 = vlaneseq
        %v4384 = vshrl.u32 %v4383, 7
        %v4385 = vsub.s32 %v4382, %v4384
        %v4386 = vrot.slane %v4372, %v4385
        %v4387 = vcombine.low %v4331, %v4347
        %v4388 = vcombine.high %v4331, %v4347
        %v4390 = vunpack.c.l.s4 1934713408
        %v4391 = vunpack.c.0.s8 %v4390
        %v4392 = vlaneseq
        %v4393 = vshrl.u32 %v4392, 7
        %v4394 = vsub.s32 %v4391, %v4393
        %v4395 = vrot.slane %v4387, %v4394
        %v4397 = vunpack.c.l.s4 1934713408
        %v4398 = vunpack.c.0.s8 %v4397
        %v4399 = vlaneseq
        %v4400 = vshrl.u32 %v4399, 7
        %v4401 = vsub.s32 %v4398, %v4400
        %v4402 = vrot.slane %v4388, %v4401
        %v4403 = vcombine.low %v4338, %v4354
        %v4404 = vcombine.high %v4338, %v4354
        %v4406 = vunpack.c.l.s4 1934713408
        %v4407 = vunpack.c.0.s8 %v4406
        %v4408 = vlaneseq
        %v4409 = vshrl.u32 %v4408, 7
        %v4410 = vsub.s32 %v4407, %v4409
        %v4411 = vrot.slane %v4403, %v4410
        %v4413 = vunpack.c.l.s4 1934713408
        %v4414 = vunpack.c.0.s8 %v4413
        %v4415 = vlaneseq
        %v4416 = vshrl.u32 %v4415, 7
        %v4417 = vsub.s32 %v4414, %v4416
        %v4418 = vrot.slane %v4404, %v4417
        %v4419 = vcombine.low %v4363, %v4395
        %v4420 = vcombine.high %v4363, %v4395
        %v4421 = vcombine.low %v4370, %v4402
        %v4422 = vcombine.high %v4370, %v4402
        %v4423 = vcombine.low %v4379, %v4411
        %v4424 = vcombine.high %v4379, %v4411
        %v4425 = vcombine.low %v4386, %v4418
        %v4426 = vcombine.high %v4386, %v4418
        %v4427 = vcombine.low %v4228, %v4236
        %v4428 = vcombine.high %v4228, %v4236
        %v4430 = vunpack.c.l.s4 1983009808
        %v4431 = vunpack.c.0.s8 %v4430
        %v4432 = vlaneseq
        %v4433 = vshrl.u32 %v4432, 7
        %v4434 = vsub.s32 %v4431, %v4433
        %v4435 = vrot.slane %v4427, %v4434
        %v4437 = vunpack.c.l.s4 1983009808
        %v4438 = vunpack.c.0.s8 %v4437
        %v4439 = vlaneseq
        %v4440 = vshrl.u32 %v4439, 7
        %v4441 = vsub.s32 %v4438, %v4440
        %v4442 = vrot.slane %v4428, %v4441
        %v4443 = vcombine.low %v4232, %v4240
        %v4444 = vcombine.high %v4232, %v4240
        %v4446 = vunpack.c.l.s4 1983009808
        %v4447 = vunpack.c.0.s8 %v4446
        %v4448 = vlaneseq
        %v4449 = vshrl.u32 %v4448, 7
        %v4450 = vsub.s32 %v4447, %v4449
        %v4451 = vrot.slane %v4443, %v4450
        %v4453 = vunpack.c.l.s4 1983009808
        %v4454 = vunpack.c.0.s8 %v4453
        %v4455 = vlaneseq
        %v4456 = vshrl.u32 %v4455, 7
        %v4457 = vsub.s32 %v4454, %v4456
        %v4458 = vrot.slane %v4444, %v4457
        %v4459 = vcombine.low %v4244, %v4252
        %v4460 = vcombine.high %v4244, %v4252
        %v4462 = vunpack.c.l.s4 1983009808
        %v4463 = vunpack.c.0.s8 %v4462
        %v4464 = vlaneseq
        %v4465 = vshrl.u32 %v4464, 7
        %v4466 = vsub.s32 %v4463, %v4465
        %v4467 = vrot.slane %v4459, %v4466
        %v4469 = vunpack.c.l.s4 1983009808
        %v4470 = vunpack.c.0.s8 %v4469
        %v4471 = vlaneseq
        %v4472 = vshrl.u32 %v4471, 7
        %v4473 = vsub.s32 %v4470, %v4472
        %v4474 = vrot.slane %v4460, %v4473
        %v4475 = vcombine.low %v4248, %v4256
        %v4476 = vcombine.high %v4248, %v4256
        %v4478 = vunpack.c.l.s4 1983009808
        %v4479 = vunpack.c.0.s8 %v4478
        %v4480 = vlaneseq
        %v4481 = vshrl.u32 %v4480, 7
        %v4482 = vsub.s32 %v4479, %v4481
        %v4483 = vrot.slane %v4475, %v4482
        %v4485 = vunpack.c.l.s4 1983009808
        %v4486 = vunpack.c.0.s8 %v4485
        %v4487 = vlaneseq
        %v4488 = vshrl.u32 %v4487, 7
        %v4489 = vsub.s32 %v4486, %v4488
        %v4490 = vrot.slane %v4476, %v4489
        %v4491 = vcombine.low %v4435, %v4451
        %v4492 = vcombine.high %v4435, %v4451
        %v4494 = vunpack.c.l.s4 1934713408
        %v4495 = vunpack.c.0.s8 %v4494
        %v4496 = vlaneseq
        %v4497 = vshrl.u32 %v4496, 7
        %v4498 = vsub.s32 %v4495, %v4497
        %v4499 = vrot.slane %v4491, %v4498
        %v4501 = vunpack.c.l.s4 1934713408
        %v4502 = vunpack.c.0.s8 %v4501
        %v4503 = vlaneseq
        %v4504 = vshrl.u32 %v4503, 7
        %v4505 = vsub.s32 %v4502, %v4504
        %v4506 = vrot.slane %v4492, %v4505
        %v4507 = vcombine.low %v4442, %v4458
        %v4508 = vcombine.high %v4442, %v4458
        %v4510 = vunpack.c.l.s4 1934713408
        %v4511 = vunpack.c.0.s8 %v4510
        %v4512 = vlaneseq
        %v4513 = vshrl.u32 %v4512, 7
        %v4514 = vsub.s32 %v4511, %v4513
        %v4515 = vrot.slane %v4507, %v4514
        %v4517 = vunpack.c.l.s4 1934713408
        %v4518 = vunpack.c.0.s8 %v4517
        %v4519 = vlaneseq
        %v4520 = vshrl.u32 %v4519, 7
        %v4521 = vsub.s32 %v4518, %v4520
        %v4522 = vrot.slane %v4508, %v4521
        %v4523 = vcombine.low %v4467, %v4483
        %v4524 = vcombine.high %v4467, %v4483
        %v4526 = vunpack.c.l.s4 1934713408
        %v4527 = vunpack.c.0.s8 %v4526
        %v4528 = vlaneseq
        %v4529 = vshrl.u32 %v4528, 7
        %v4530 = vsub.s32 %v4527, %v4529
        %v4531 = vrot.slane %v4523, %v4530
        %v4533 = vunpack.c.l.s4 1934713408
        %v4534 = vunpack.c.0.s8 %v4533
        %v4535 = vlaneseq
        %v4536 = vshrl.u32 %v4535, 7
        %v4537 = vsub.s32 %v4534, %v4536
        %v4538 = vrot.slane %v4524, %v4537
        %v4539 = vcombine.low %v4474, %v4490
        %v4540 = vcombine.high %v4474, %v4490
        %v4542 = vunpack.c.l.s4 1934713408
        %v4543 = vunpack.c.0.s8 %v4542
        %v4544 = vlaneseq
        %v4545 = vshrl.u32 %v4544, 7
        %v4546 = vsub.s32 %v4543, %v4545
        %v4547 = vrot.slane %v4539, %v4546
        %v4549 = vunpack.c.l.s4 1934713408
        %v4550 = vunpack.c.0.s8 %v4549
        %v4551 = vlaneseq
        %v4552 = vshrl.u32 %v4551, 7
        %v4553 = vsub.s32 %v4550, %v4552
        %v4554 = vrot.slane %v4540, %v4553
        %v4555 = vcombine.low %v4499, %v4531
        %v4556 = vcombine.high %v4499, %v4531
        %v4557 = vcombine.low %v4506, %v4538
        %v4558 = vcombine.high %v4506, %v4538
        %v4559 = vcombine.low %v4515, %v4547
        %v4560 = vcombine.high %v4515, %v4547
        %v4561 = vcombine.low %v4522, %v4554
        %v4562 = vcombine.high %v4522, %v4554
        %v4563 = vcombine.low %v4198, %v4206
        %v4564 = vcombine.high %v4198, %v4206
        %v4566 = vunpack.c.l.s4 1983009808
        %v4567 = vunpack.c.0.s8 %v4566
        %v4568 = vlaneseq
        %v4569 = vshrl.u32 %v4568, 7
        %v4570 = vsub.s32 %v4567, %v4569
        %v4571 = vrot.slane %v4563, %v4570
        %v4573 = vunpack.c.l.s4 1983009808
        %v4574 = vunpack.c.0.s8 %v4573
        %v4575 = vlaneseq
        %v4576 = vshrl.u32 %v4575, 7
        %v4577 = vsub.s32 %v4574, %v4576
        %v4578 = vrot.slane %v4564, %v4577
        %v4579 = vcombine.low %v4202, %v4210
        %v4580 = vcombine.high %v4202, %v4210
        %v4582 = vunpack.c.l.s4 1983009808
        %v4583 = vunpack.c.0.s8 %v4582
        %v4584 = vlaneseq
        %v4585 = vshrl.u32 %v4584, 7
        %v4586 = vsub.s32 %v4583, %v4585
        %v4587 = vrot.slane %v4579, %v4586
        %v4589 = vunpack.c.l.s4 1983009808
        %v4590 = vunpack.c.0.s8 %v4589
        %v4591 = vlaneseq
        %v4592 = vshrl.u32 %v4591, 7
        %v4593 = vsub.s32 %v4590, %v4592
        %v4594 = vrot.slane %v4580, %v4593
        %v4595 = vcombine.low %v4214, %v4222
        %v4596 = vcombine.high %v4214, %v4222
        %v4598 = vunpack.c.l.s4 1983009808
        %v4599 = vunpack.c.0.s8 %v4598
        %v4600 = vlaneseq
        %v4601 = vshrl.u32 %v4600, 7
        %v4602 = vsub.s32 %v4599, %v4601
        %v4603 = vrot.slane %v4595, %v4602
        %v4605 = vunpack.c.l.s4 1983009808
        %v4606 = vunpack.c.0.s8 %v4605
        %v4607 = vlaneseq
        %v4608 = vshrl.u32 %v4607, 7
        %v4609 = vsub.s32 %v4606, %v4608
        %v4610 = vrot.slane %v4596, %v4609
        %v4611 = vcombine.low %v4218, %v4226
        %v4612 = vcombine.high %v4218, %v4226
        %v4614 = vunpack.c.l.s4 1983009808
        %v4615 = vunpack.c.0.s8 %v4614
        %v4616 = vlaneseq
        %v4617 = vshrl.u32 %v4616, 7
        %v4618 = vsub.s32 %v4615, %v4617
        %v4619 = vrot.slane %v4611, %v4618
        %v4621 = vunpack.c.l.s4 1983009808
        %v4622 = vunpack.c.0.s8 %v4621
        %v4623 = vlaneseq
        %v4624 = vshrl.u32 %v4623, 7
        %v4625 = vsub.s32 %v4622, %v4624
        %v4626 = vrot.slane %v4612, %v4625
        %v4627 = vcombine.low %v4571, %v4587
        %v4628 = vcombine.high %v4571, %v4587
        %v4630 = vunpack.c.l.s4 1934713408
        %v4631 = vunpack.c.0.s8 %v4630
        %v4632 = vlaneseq
        %v4633 = vshrl.u32 %v4632, 7
        %v4634 = vsub.s32 %v4631, %v4633
        %v4635 = vrot.slane %v4627, %v4634
        %v4637 = vunpack.c.l.s4 1934713408
        %v4638 = vunpack.c.0.s8 %v4637
        %v4639 = vlaneseq
        %v4640 = vshrl.u32 %v4639, 7
        %v4641 = vsub.s32 %v4638, %v4640
        %v4642 = vrot.slane %v4628, %v4641
        %v4643 = vcombine.low %v4578, %v4594
        %v4644 = vcombine.high %v4578, %v4594
        %v4646 = vunpack.c.l.s4 1934713408
        %v4647 = vunpack.c.0.s8 %v4646
        %v4648 = vlaneseq
        %v4649 = vshrl.u32 %v4648, 7
        %v4650 = vsub.s32 %v4647, %v4649
        %v4651 = vrot.slane %v4643, %v4650
        %v4653 = vunpack.c.l.s4 1934713408
        %v4654 = vunpack.c.0.s8 %v4653
        %v4655 = vlaneseq
        %v4656 = vshrl.u32 %v4655, 7
        %v4657 = vsub.s32 %v4654, %v4656
        %v4658 = vrot.slane %v4644, %v4657
        %v4659 = vcombine.low %v4603, %v4619
        %v4660 = vcombine.high %v4603, %v4619
        %v4662 = vunpack.c.l.s4 1934713408
        %v4663 = vunpack.c.0.s8 %v4662
        %v4664 = vlaneseq
        %v4665 = vshrl.u32 %v4664, 7
        %v4666 = vsub.s32 %v4663, %v4665
        %v4667 = vrot.slane %v4659, %v4666
        %v4669 = vunpack.c.l.s4 1934713408
        %v4670 = vunpack.c.0.s8 %v4669
        %v4671 = vlaneseq
        %v4672 = vshrl.u32 %v4671, 7
        %v4673 = vsub.s32 %v4670, %v4672
        %v4674 = vrot.slane %v4660, %v4673
        %v4675 = vcombine.low %v4610, %v4626
        %v4676 = vcombine.high %v4610, %v4626
        %v4678 = vunpack.c.l.s4 1934713408
        %v4679 = vunpack.c.0.s8 %v4678
        %v4680 = vlaneseq
        %v4681 = vshrl.u32 %v4680, 7
        %v4682 = vsub.s32 %v4679, %v4681
        %v4683 = vrot.slane %v4675, %v4682
        %v4685 = vunpack.c.l.s4 1934713408
        %v4686 = vunpack.c.0.s8 %v4685
        %v4687 = vlaneseq
        %v4688 = vshrl.u32 %v4687, 7
        %v4689 = vsub.s32 %v4686, %v4688
        %v4690 = vrot.slane %v4676, %v4689
        %v4691 = vcombine.low %v4635, %v4667
        %v4692 = vcombine.high %v4635, %v4667
        %v4693 = vcombine.low %v4642, %v4674
        %v4694 = vcombine.high %v4642, %v4674
        %v4695 = vcombine.low %v4651, %v4683
        %v4696 = vcombine.high %v4651, %v4683
        %v4697 = vcombine.low %v4658, %v4690
        %v4698 = vcombine.high %v4658, %v4690
        %v4699 = vcombine.low %v4230, %v4238
        %v4700 = vcombine.high %v4230, %v4238
        %v4702 = vunpack.c.l.s4 1983009808
        %v4703 = vunpack.c.0.s8 %v4702
        %v4704 = vlaneseq
        %v4705 = vshrl.u32 %v4704, 7
        %v4706 = vsub.s32 %v4703, %v4705
        %v4707 = vrot.slane %v4699, %v4706
        %v4709 = vunpack.c.l.s4 1983009808
        %v4710 = vunpack.c.0.s8 %v4709
        %v4711 = vlaneseq
        %v4712 = vshrl.u32 %v4711, 7
        %v4713 = vsub.s32 %v4710, %v4712
        %v4714 = vrot.slane %v4700, %v4713
        %v4715 = vcombine.low %v4234, %v4242
        %v4716 = vcombine.high %v4234, %v4242
        %v4718 = vunpack.c.l.s4 1983009808
        %v4719 = vunpack.c.0.s8 %v4718
        %v4720 = vlaneseq
        %v4721 = vshrl.u32 %v4720, 7
        %v4722 = vsub.s32 %v4719, %v4721
        %v4723 = vrot.slane %v4715, %v4722
        %v4725 = vunpack.c.l.s4 1983009808
        %v4726 = vunpack.c.0.s8 %v4725
        %v4727 = vlaneseq
        %v4728 = vshrl.u32 %v4727, 7
        %v4729 = vsub.s32 %v4726, %v4728
        %v4730 = vrot.slane %v4716, %v4729
        %v4731 = vcombine.low %v4246, %v4254
        %v4732 = vcombine.high %v4246, %v4254
        %v4734 = vunpack.c.l.s4 1983009808
        %v4735 = vunpack.c.0.s8 %v4734
        %v4736 = vlaneseq
        %v4737 = vshrl.u32 %v4736, 7
        %v4738 = vsub.s32 %v4735, %v4737
        %v4739 = vrot.slane %v4731, %v4738
        %v4741 = vunpack.c.l.s4 1983009808
        %v4742 = vunpack.c.0.s8 %v4741
        %v4743 = vlaneseq
        %v4744 = vshrl.u32 %v4743, 7
        %v4745 = vsub.s32 %v4742, %v4744
        %v4746 = vrot.slane %v4732, %v4745
        %v4747 = vcombine.low %v4250, %v4258
        %v4748 = vcombine.high %v4250, %v4258
        %v4750 = vunpack.c.l.s4 1983009808
        %v4751 = vunpack.c.0.s8 %v4750
        %v4752 = vlaneseq
        %v4753 = vshrl.u32 %v4752, 7
        %v4754 = vsub.s32 %v4751, %v4753
        %v4755 = vrot.slane %v4747, %v4754
        %v4757 = vunpack.c.l.s4 1983009808
        %v4758 = vunpack.c.0.s8 %v4757
        %v4759 = vlaneseq
        %v4760 = vshrl.u32 %v4759, 7
        %v4761 = vsub.s32 %v4758, %v4760
        %v4762 = vrot.slane %v4748, %v4761
        %v4763 = vcombine.low %v4707, %v4723
        %v4764 = vcombine.high %v4707, %v4723
        %v4766 = vunpack.c.l.s4 1934713408
        %v4767 = vunpack.c.0.s8 %v4766
        %v4768 = vlaneseq
        %v4769 = vshrl.u32 %v4768, 7
        %v4770 = vsub.s32 %v4767, %v4769
        %v4771 = vrot.slane %v4763, %v4770
        %v4773 = vunpack.c.l.s4 1934713408
        %v4774 = vunpack.c.0.s8 %v4773
        %v4775 = vlaneseq
        %v4776 = vshrl.u32 %v4775, 7
        %v4777 = vsub.s32 %v4774, %v4776
        %v4778 = vrot.slane %v4764, %v4777
        %v4779 = vcombine.low %v4714, %v4730
        %v4780 = vcombine.high %v4714, %v4730
        %v4782 = vunpack.c.l.s4 1934713408
        %v4783 = vunpack.c.0.s8 %v4782
        %v4784 = vlaneseq
        %v4785 = vshrl.u32 %v4784, 7
        %v4786 = vsub.s32 %v4783, %v4785
        %v4787 = vrot.slane %v4779, %v4786
        %v4789 = vunpack.c.l.s4 1934713408
        %v4790 = vunpack.c.0.s8 %v4789
        %v4791 = vlaneseq
        %v4792 = vshrl.u32 %v4791, 7
        %v4793 = vsub.s32 %v4790, %v4792
        %v4794 = vrot.slane %v4780, %v4793
        %v4795 = vcombine.low %v4739, %v4755
        %v4796 = vcombine.high %v4739, %v4755
        %v4798 = vunpack.c.l.s4 1934713408
        %v4799 = vunpack.c.0.s8 %v4798
        %v4800 = vlaneseq
        %v4801 = vshrl.u32 %v4800, 7
        %v4802 = vsub.s32 %v4799, %v4801
        %v4803 = vrot.slane %v4795, %v4802
        %v4805 = vunpack.c.l.s4 1934713408
        %v4806 = vunpack.c.0.s8 %v4805
        %v4807 = vlaneseq
        %v4808 = vshrl.u32 %v4807, 7
        %v4809 = vsub.s32 %v4806, %v4808
        %v4810 = vrot.slane %v4796, %v4809
        %v4811 = vcombine.low %v4746, %v4762
        %v4812 = vcombine.high %v4746, %v4762
        %v4814 = vunpack.c.l.s4 1934713408
        %v4815 = vunpack.c.0.s8 %v4814
        %v4816 = vlaneseq
        %v4817 = vshrl.u32 %v4816, 7
        %v4818 = vsub.s32 %v4815, %v4817
        %v4819 = vrot.slane %v4811, %v4818
        %v4821 = vunpack.c.l.s4 1934713408
        %v4822 = vunpack.c.0.s8 %v4821
        %v4823 = vlaneseq
        %v4824 = vshrl.u32 %v4823, 7
        %v4825 = vsub.s32 %v4822, %v4824
        %v4826 = vrot.slane %v4812, %v4825
        %v4827 = vcombine.low %v4771, %v4803
        %v4828 = vcombine.high %v4771, %v4803
        %v4829 = vcombine.low %v4778, %v4810
        %v4830 = vcombine.high %v4778, %v4810
        %v4831 = vcombine.low %v4787, %v4819
        %v4832 = vcombine.high %v4787, %v4819
        %v4833 = vcombine.low %v4794, %v4826
        %v4834 = vcombine.high %v4794, %v4826
        %4837 = vrot.lane.b32.xlu0 %v4420, 16
        %v4838 = vpop.permute.xlu0 %4837
        %4839 = vrot.lane.b32.xlu0 %v4556, 16
        %v4840 = vpop.permute.xlu0 %4839
        %4845 = vrot.lane.b32.xlu0 %v4421, 32
        %v4846 = vpop.permute.xlu0 %4845
        %4847 = vrot.lane.b32.xlu0 %v4557, 32
        %v4848 = vpop.permute.xlu0 %4847
        %4853 = vrot.lane.b32.xlu0 %v4422, 48
        %v4854 = vpop.permute.xlu0 %4853
        %4855 = vrot.lane.b32.xlu0 %v4558, 48
        %v4856 = vpop.permute.xlu0 %4855
        %4861 = vrot.lane.b32.xlu0 %v4423, 64
        %v4862 = vpop.permute.xlu0 %4861
        %4863 = vrot.lane.b32.xlu0 %v4559, 64
        %v4864 = vpop.permute.xlu0 %4863
        %4869 = vrot.lane.b32.xlu0 %v4424, 80
        %v4870 = vpop.permute.xlu0 %4869
        %4871 = vrot.lane.b32.xlu0 %v4560, 80
        %v4872 = vpop.permute.xlu0 %4871
        %4877 = vrot.lane.b32.xlu0 %v4425, 96
        %v4878 = vpop.permute.xlu0 %4877
        %4879 = vrot.lane.b32.xlu0 %v4561, 96
        %v4880 = vpop.permute.xlu0 %4879
        %4885 = vrot.lane.b32.xlu0 %v4426, 112
        %v4886 = vpop.permute.xlu0 %4885
        %4887 = vrot.lane.b32.xlu0 %v4562, 112
        %v4888 = vpop.permute.xlu0 %4887
        %4893 = vrot.lane.b32.xlu0 %v4692, 16
        %v4894 = vpop.permute.xlu0 %4893
        %4895 = vrot.lane.b32.xlu0 %v4828, 16
        %v4896 = vpop.permute.xlu0 %4895
        %4901 = vrot.lane.b32.xlu0 %v4693, 32
        %v4902 = vpop.permute.xlu0 %4901
        %4903 = vrot.lane.b32.xlu0 %v4829, 32
        %v4904 = vpop.permute.xlu0 %4903
        %4909 = vrot.lane.b32.xlu0 %v4694, 48
        %v4910 = vpop.permute.xlu0 %4909
        %4911 = vrot.lane.b32.xlu0 %v4830, 48
        %v4912 = vpop.permute.xlu0 %4911
        %4917 = vrot.lane.b32.xlu0 %v4695, 64
        %v4918 = vpop.permute.xlu0 %4917
        %4919 = vrot.lane.b32.xlu0 %v4831, 64
        %v4920 = vpop.permute.xlu0 %4919
        %4925 = vrot.lane.b32.xlu0 %v4696, 80
        %v4926 = vpop.permute.xlu0 %4925
        %4927 = vrot.lane.b32.xlu0 %v4832, 80
        %v4928 = vpop.permute.xlu0 %4927
        %4933 = vrot.lane.b32.xlu0 %v4697, 96
        %v4934 = vpop.permute.xlu0 %4933
        %4935 = vrot.lane.b32.xlu0 %v4833, 96
        %v4936 = vpop.permute.xlu0 %4935
        %4941 = vrot.lane.b32.xlu0 %v4698, 112
        %v4942 = vpop.permute.xlu0 %4941
        %4943 = vrot.lane.b32.xlu0 %v4834, 112
        %v4944 = vpop.permute.xlu0 %4943
        %v4947 = vsel %vm975, %v4419, %v4838
        %v4948 = vsel %vm975, %v4555, %v4840
        %v4949 = vsel %vm978, %v4947, %v4846
        %v4950 = vsel %vm978, %v4948, %v4848
        %v4951 = vsel %vm981, %v4949, %v4854
        %v4952 = vsel %vm981, %v4950, %v4856
        %v4953 = vsel %vm984, %v4951, %v4862
        %v4954 = vsel %vm984, %v4952, %v4864
        %v4955 = vsel %vm987, %v4953, %v4870
        %v4956 = vsel %vm987, %v4954, %v4872
        %v4957 = vsel %vm990, %v4955, %v4878
        %v4958 = vsel %vm990, %v4956, %v4880
        %v4959 = vsel %vm993, %v4957, %v4886
        %v4960 = vsel %vm993, %v4958, %v4888
        %v4961 = vsel %vm975, %v4691, %v4894
        %v4962 = vsel %vm975, %v4827, %v4896
        %v4963 = vsel %vm978, %v4961, %v4902
        %v4964 = vsel %vm978, %v4962, %v4904
        %v4965 = vsel %vm981, %v4963, %v4910
        %v4966 = vsel %vm981, %v4964, %v4912
        %v4967 = vsel %vm984, %v4965, %v4918
        %v4968 = vsel %vm984, %v4966, %v4920
        %v4969 = vsel %vm987, %v4967, %v4926
        %v4970 = vsel %vm987, %v4968, %v4928
        %v4971 = vsel %vm990, %v4969, %v4934
        %v4972 = vsel %vm990, %v4970, %v4936
        %v4973 = vsel %vm993, %v4971, %v4942
        %v4974 = vsel %vm993, %v4972, %v4944
        %vm4975 = vcmask 1045504
        %v4976 = vrot.slane %v271, 2
        %v4977 = vrot.slane %v272, 2
        %v4978 = vsel %vm4975, %v4976, %v4977
        %v4979 = vrot.slane %v273, 2
        %v4980 = vsel %vm4975, %v4977, %v4979
        %v4981 = vrot.slane %v274, 2
        %v4982 = vrot.slane %v275, 2
        %v4983 = vsel %vm4975, %v4981, %v4982
        %v4984 = vrot.slane %v276, 2
        %v4985 = vsel %vm4975, %v4982, %v4984
        %v4986 = vrot.slane %v277, 2
        %v4987 = vrot.slane %v278, 2
        %v4988 = vsel %vm4975, %v4986, %v4987
        %v4989 = vrot.slane %v279, 2
        %v4990 = vsel %vm4975, %v4987, %v4989
        %v4991 = vrot.slane %v280, 2
        %v4992 = vrot.slane %v281, 2
        %v4993 = vsel %vm4975, %v4991, %v4992
        %v4994 = vrot.slane %v282, 2
        %v4995 = vsel %vm4975, %v4992, %v4994
        %v4996 = vrot.slane %v283, 2
        %v4997 = vrot.slane %v284, 2
        %v4998 = vsel %vm4975, %v4996, %v4997
        %v4999 = vrot.slane %v285, 2
        %v5000 = vsel %vm4975, %v4997, %v4999
        %v5001 = vrot.slane %v286, 2
        %v5002 = vrot.slane %v287, 2
        %v5003 = vsel %vm4975, %v5001, %v5002
        %v5004 = vrot.slane %v288, 2
        %v5005 = vsel %vm4975, %v5002, %v5004
        %v5006 = vrot.slane %v289, 2
        %v5007 = vrot.slane %v290, 2
        %v5008 = vsel %vm4975, %v5006, %v5007
        %v5009 = vrot.slane %v291, 2
        %v5010 = vsel %vm4975, %v5007, %v5009
        %v5011 = vrot.slane %v292, 2
        %v5012 = vrot.slane %v293, 2
        %v5013 = vsel %vm4975, %v5011, %v5012
        %v5014 = vrot.slane %v294, 2
        %v5015 = vsel %vm4975, %v5012, %v5014
        %v5016 = vrot.slane %v295, 2
        %v5017 = vrot.slane %v296, 2
        %v5018 = vsel %vm4975, %v5016, %v5017
        %v5019 = vrot.slane %v297, 2
        %v5020 = vsel %vm4975, %v5017, %v5019
        %v5021 = vrot.slane %v298, 2
        %v5022 = vrot.slane %v299, 2
        %v5023 = vsel %vm4975, %v5021, %v5022
        %v5024 = vrot.slane %v300, 2
        %v5025 = vsel %vm4975, %v5022, %v5024
        %v5026 = vrot.slane %v301, 2
        %v5027 = vrot.slane %v302, 2
        %v5028 = vsel %vm4975, %v5026, %v5027
        %v5029 = vrot.slane %v303, 2
        %v5030 = vsel %vm4975, %v5027, %v5029
        %v5031 = vrot.slane %v304, 2
        %v5032 = vrot.slane %v305, 2
        %v5033 = vsel %vm4975, %v5031, %v5032
        %v5034 = vrot.slane %v306, 2
        %v5035 = vsel %vm4975, %v5032, %v5034
        %v5036 = vrot.slane %v307, 2
        %v5037 = vrot.slane %v308, 2
        %v5038 = vsel %vm4975, %v5036, %v5037
        %v5039 = vrot.slane %v309, 2
        %v5040 = vsel %vm4975, %v5037, %v5039
        %v5041 = vrot.slane %v310, 2
        %v5042 = vrot.slane %v311, 2
        %v5043 = vsel %vm4975, %v5041, %v5042
        %v5044 = vrot.slane %v312, 2
        %v5045 = vsel %vm4975, %v5042, %v5044
        %v5046 = vrot.slane %v313, 2
        %v5047 = vrot.slane %v314, 2
        %v5048 = vsel %vm4975, %v5046, %v5047
        %v5049 = vrot.slane %v315, 2
        %v5050 = vsel %vm4975, %v5047, %v5049
        %v5051 = vrot.slane %v316, 2
        %v5052 = vrot.slane %v317, 2
        %v5053 = vsel %vm4975, %v5051, %v5052
        %v5054 = vrot.slane %v318, 2
        %v5055 = vsel %vm4975, %v5052, %v5054
        %v5088 = vcombine.low %v4978, %v4988
        %v5089 = vcombine.high %v4978, %v4988
        %v5091 = vunpack.c.l.s4 1983009808
        %v5092 = vunpack.c.0.s8 %v5091
        %v5093 = vlaneseq
        %v5094 = vshrl.u32 %v5093, 7
        %v5095 = vsub.s32 %v5092, %v5094
        %v5096 = vrot.slane %v5088, %v5095
        %v5098 = vunpack.c.l.s4 1983009808
        %v5099 = vunpack.c.0.s8 %v5098
        %v5100 = vlaneseq
        %v5101 = vshrl.u32 %v5100, 7
        %v5102 = vsub.s32 %v5099, %v5101
        %v5103 = vrot.slane %v5089, %v5102
        %v5104 = vcombine.low %v4983, %v4993
        %v5105 = vcombine.high %v4983, %v4993
        %v5107 = vunpack.c.l.s4 1983009808
        %v5108 = vunpack.c.0.s8 %v5107
        %v5109 = vlaneseq
        %v5110 = vshrl.u32 %v5109, 7
        %v5111 = vsub.s32 %v5108, %v5110
        %v5112 = vrot.slane %v5104, %v5111
        %v5114 = vunpack.c.l.s4 1983009808
        %v5115 = vunpack.c.0.s8 %v5114
        %v5116 = vlaneseq
        %v5117 = vshrl.u32 %v5116, 7
        %v5118 = vsub.s32 %v5115, %v5117
        %v5119 = vrot.slane %v5105, %v5118
        %v5120 = vcombine.low %v4998, %v5008
        %v5121 = vcombine.high %v4998, %v5008
        %v5123 = vunpack.c.l.s4 1983009808
        %v5124 = vunpack.c.0.s8 %v5123
        %v5125 = vlaneseq
        %v5126 = vshrl.u32 %v5125, 7
        %v5127 = vsub.s32 %v5124, %v5126
        %v5128 = vrot.slane %v5120, %v5127
        %v5130 = vunpack.c.l.s4 1983009808
        %v5131 = vunpack.c.0.s8 %v5130
        %v5132 = vlaneseq
        %v5133 = vshrl.u32 %v5132, 7
        %v5134 = vsub.s32 %v5131, %v5133
        %v5135 = vrot.slane %v5121, %v5134
        %v5136 = vcombine.low %v5003, %v5013
        %v5137 = vcombine.high %v5003, %v5013
        %v5139 = vunpack.c.l.s4 1983009808
        %v5140 = vunpack.c.0.s8 %v5139
        %v5141 = vlaneseq
        %v5142 = vshrl.u32 %v5141, 7
        %v5143 = vsub.s32 %v5140, %v5142
        %v5144 = vrot.slane %v5136, %v5143
        %v5146 = vunpack.c.l.s4 1983009808
        %v5147 = vunpack.c.0.s8 %v5146
        %v5148 = vlaneseq
        %v5149 = vshrl.u32 %v5148, 7
        %v5150 = vsub.s32 %v5147, %v5149
        %v5151 = vrot.slane %v5137, %v5150
        %v5152 = vcombine.low %v5096, %v5112
        %v5153 = vcombine.high %v5096, %v5112
        %v5155 = vunpack.c.l.s4 1934713408
        %v5156 = vunpack.c.0.s8 %v5155
        %v5157 = vlaneseq
        %v5158 = vshrl.u32 %v5157, 7
        %v5159 = vsub.s32 %v5156, %v5158
        %v5160 = vrot.slane %v5152, %v5159
        %v5162 = vunpack.c.l.s4 1934713408
        %v5163 = vunpack.c.0.s8 %v5162
        %v5164 = vlaneseq
        %v5165 = vshrl.u32 %v5164, 7
        %v5166 = vsub.s32 %v5163, %v5165
        %v5167 = vrot.slane %v5153, %v5166
        %v5168 = vcombine.low %v5103, %v5119
        %v5169 = vcombine.high %v5103, %v5119
        %v5171 = vunpack.c.l.s4 1934713408
        %v5172 = vunpack.c.0.s8 %v5171
        %v5173 = vlaneseq
        %v5174 = vshrl.u32 %v5173, 7
        %v5175 = vsub.s32 %v5172, %v5174
        %v5176 = vrot.slane %v5168, %v5175
        %v5178 = vunpack.c.l.s4 1934713408
        %v5179 = vunpack.c.0.s8 %v5178
        %v5180 = vlaneseq
        %v5181 = vshrl.u32 %v5180, 7
        %v5182 = vsub.s32 %v5179, %v5181
        %v5183 = vrot.slane %v5169, %v5182
        %v5184 = vcombine.low %v5128, %v5144
        %v5185 = vcombine.high %v5128, %v5144
        %v5187 = vunpack.c.l.s4 1934713408
        %v5188 = vunpack.c.0.s8 %v5187
        %v5189 = vlaneseq
        %v5190 = vshrl.u32 %v5189, 7
        %v5191 = vsub.s32 %v5188, %v5190
        %v5192 = vrot.slane %v5184, %v5191
        %v5194 = vunpack.c.l.s4 1934713408
        %v5195 = vunpack.c.0.s8 %v5194
        %v5196 = vlaneseq
        %v5197 = vshrl.u32 %v5196, 7
        %v5198 = vsub.s32 %v5195, %v5197
        %v5199 = vrot.slane %v5185, %v5198
        %v5200 = vcombine.low %v5135, %v5151
        %v5201 = vcombine.high %v5135, %v5151
        %v5203 = vunpack.c.l.s4 1934713408
        %v5204 = vunpack.c.0.s8 %v5203
        %v5205 = vlaneseq
        %v5206 = vshrl.u32 %v5205, 7
        %v5207 = vsub.s32 %v5204, %v5206
        %v5208 = vrot.slane %v5200, %v5207
        %v5210 = vunpack.c.l.s4 1934713408
        %v5211 = vunpack.c.0.s8 %v5210
        %v5212 = vlaneseq
        %v5213 = vshrl.u32 %v5212, 7
        %v5214 = vsub.s32 %v5211, %v5213
        %v5215 = vrot.slane %v5201, %v5214
        %v5216 = vcombine.low %v5160, %v5192
        %v5217 = vcombine.high %v5160, %v5192
        %v5218 = vcombine.low %v5167, %v5199
        %v5219 = vcombine.high %v5167, %v5199
        %v5220 = vcombine.low %v5176, %v5208
        %v5221 = vcombine.high %v5176, %v5208
        %v5222 = vcombine.low %v5183, %v5215
        %v5223 = vcombine.high %v5183, %v5215
        %v5224 = vcombine.low %v5018, %v5028
        %v5225 = vcombine.high %v5018, %v5028
        %v5227 = vunpack.c.l.s4 1983009808
        %v5228 = vunpack.c.0.s8 %v5227
        %v5229 = vlaneseq
        %v5230 = vshrl.u32 %v5229, 7
        %v5231 = vsub.s32 %v5228, %v5230
        %v5232 = vrot.slane %v5224, %v5231
        %v5234 = vunpack.c.l.s4 1983009808
        %v5235 = vunpack.c.0.s8 %v5234
        %v5236 = vlaneseq
        %v5237 = vshrl.u32 %v5236, 7
        %v5238 = vsub.s32 %v5235, %v5237
        %v5239 = vrot.slane %v5225, %v5238
        %v5240 = vcombine.low %v5023, %v5033
        %v5241 = vcombine.high %v5023, %v5033
        %v5243 = vunpack.c.l.s4 1983009808
        %v5244 = vunpack.c.0.s8 %v5243
        %v5245 = vlaneseq
        %v5246 = vshrl.u32 %v5245, 7
        %v5247 = vsub.s32 %v5244, %v5246
        %v5248 = vrot.slane %v5240, %v5247
        %v5250 = vunpack.c.l.s4 1983009808
        %v5251 = vunpack.c.0.s8 %v5250
        %v5252 = vlaneseq
        %v5253 = vshrl.u32 %v5252, 7
        %v5254 = vsub.s32 %v5251, %v5253
        %v5255 = vrot.slane %v5241, %v5254
        %v5256 = vcombine.low %v5038, %v5048
        %v5257 = vcombine.high %v5038, %v5048
        %v5259 = vunpack.c.l.s4 1983009808
        %v5260 = vunpack.c.0.s8 %v5259
        %v5261 = vlaneseq
        %v5262 = vshrl.u32 %v5261, 7
        %v5263 = vsub.s32 %v5260, %v5262
        %v5264 = vrot.slane %v5256, %v5263
        %v5266 = vunpack.c.l.s4 1983009808
        %v5267 = vunpack.c.0.s8 %v5266
        %v5268 = vlaneseq
        %v5269 = vshrl.u32 %v5268, 7
        %v5270 = vsub.s32 %v5267, %v5269
        %v5271 = vrot.slane %v5257, %v5270
        %v5272 = vcombine.low %v5043, %v5053
        %v5273 = vcombine.high %v5043, %v5053
        %v5275 = vunpack.c.l.s4 1983009808
        %v5276 = vunpack.c.0.s8 %v5275
        %v5277 = vlaneseq
        %v5278 = vshrl.u32 %v5277, 7
        %v5279 = vsub.s32 %v5276, %v5278
        %v5280 = vrot.slane %v5272, %v5279
        %v5282 = vunpack.c.l.s4 1983009808
        %v5283 = vunpack.c.0.s8 %v5282
        %v5284 = vlaneseq
        %v5285 = vshrl.u32 %v5284, 7
        %v5286 = vsub.s32 %v5283, %v5285
        %v5287 = vrot.slane %v5273, %v5286
        %v5288 = vcombine.low %v5232, %v5248
        %v5289 = vcombine.high %v5232, %v5248
        %v5291 = vunpack.c.l.s4 1934713408
        %v5292 = vunpack.c.0.s8 %v5291
        %v5293 = vlaneseq
        %v5294 = vshrl.u32 %v5293, 7
        %v5295 = vsub.s32 %v5292, %v5294
        %v5296 = vrot.slane %v5288, %v5295
        %v5298 = vunpack.c.l.s4 1934713408
        %v5299 = vunpack.c.0.s8 %v5298
        %v5300 = vlaneseq
        %v5301 = vshrl.u32 %v5300, 7
        %v5302 = vsub.s32 %v5299, %v5301
        %v5303 = vrot.slane %v5289, %v5302
        %v5304 = vcombine.low %v5239, %v5255
        %v5305 = vcombine.high %v5239, %v5255
        %v5307 = vunpack.c.l.s4 1934713408
        %v5308 = vunpack.c.0.s8 %v5307
        %v5309 = vlaneseq
        %v5310 = vshrl.u32 %v5309, 7
        %v5311 = vsub.s32 %v5308, %v5310
        %v5312 = vrot.slane %v5304, %v5311
        %v5314 = vunpack.c.l.s4 1934713408
        %v5315 = vunpack.c.0.s8 %v5314
        %v5316 = vlaneseq
        %v5317 = vshrl.u32 %v5316, 7
        %v5318 = vsub.s32 %v5315, %v5317
        %v5319 = vrot.slane %v5305, %v5318
        %v5320 = vcombine.low %v5264, %v5280
        %v5321 = vcombine.high %v5264, %v5280
        %v5323 = vunpack.c.l.s4 1934713408
        %v5324 = vunpack.c.0.s8 %v5323
        %v5325 = vlaneseq
        %v5326 = vshrl.u32 %v5325, 7
        %v5327 = vsub.s32 %v5324, %v5326
        %v5328 = vrot.slane %v5320, %v5327
        %v5330 = vunpack.c.l.s4 1934713408
        %v5331 = vunpack.c.0.s8 %v5330
        %v5332 = vlaneseq
        %v5333 = vshrl.u32 %v5332, 7
        %v5334 = vsub.s32 %v5331, %v5333
        %v5335 = vrot.slane %v5321, %v5334
        %v5336 = vcombine.low %v5271, %v5287
        %v5337 = vcombine.high %v5271, %v5287
        %v5339 = vunpack.c.l.s4 1934713408
        %v5340 = vunpack.c.0.s8 %v5339
        %v5341 = vlaneseq
        %v5342 = vshrl.u32 %v5341, 7
        %v5343 = vsub.s32 %v5340, %v5342
        %v5344 = vrot.slane %v5336, %v5343
        %v5346 = vunpack.c.l.s4 1934713408
        %v5347 = vunpack.c.0.s8 %v5346
        %v5348 = vlaneseq
        %v5349 = vshrl.u32 %v5348, 7
        %v5350 = vsub.s32 %v5347, %v5349
        %v5351 = vrot.slane %v5337, %v5350
        %v5352 = vcombine.low %v5296, %v5328
        %v5353 = vcombine.high %v5296, %v5328
        %v5354 = vcombine.low %v5303, %v5335
        %v5355 = vcombine.high %v5303, %v5335
        %v5356 = vcombine.low %v5312, %v5344
        %v5357 = vcombine.high %v5312, %v5344
        %v5358 = vcombine.low %v5319, %v5351
        %v5359 = vcombine.high %v5319, %v5351
        %v5360 = vcombine.low %v4980, %v4990
        %v5361 = vcombine.high %v4980, %v4990
        %v5363 = vunpack.c.l.s4 1983009808
        %v5364 = vunpack.c.0.s8 %v5363
        %v5365 = vlaneseq
        %v5366 = vshrl.u32 %v5365, 7
        %v5367 = vsub.s32 %v5364, %v5366
        %v5368 = vrot.slane %v5360, %v5367
        %v5370 = vunpack.c.l.s4 1983009808
        %v5371 = vunpack.c.0.s8 %v5370
        %v5372 = vlaneseq
        %v5373 = vshrl.u32 %v5372, 7
        %v5374 = vsub.s32 %v5371, %v5373
        %v5375 = vrot.slane %v5361, %v5374
        %v5376 = vcombine.low %v4985, %v4995
        %v5377 = vcombine.high %v4985, %v4995
        %v5379 = vunpack.c.l.s4 1983009808
        %v5380 = vunpack.c.0.s8 %v5379
        %v5381 = vlaneseq
        %v5382 = vshrl.u32 %v5381, 7
        %v5383 = vsub.s32 %v5380, %v5382
        %v5384 = vrot.slane %v5376, %v5383
        %v5386 = vunpack.c.l.s4 1983009808
        %v5387 = vunpack.c.0.s8 %v5386
        %v5388 = vlaneseq
        %v5389 = vshrl.u32 %v5388, 7
        %v5390 = vsub.s32 %v5387, %v5389
        %v5391 = vrot.slane %v5377, %v5390
        %v5392 = vcombine.low %v5000, %v5010
        %v5393 = vcombine.high %v5000, %v5010
        %v5395 = vunpack.c.l.s4 1983009808
        %v5396 = vunpack.c.0.s8 %v5395
        %v5397 = vlaneseq
        %v5398 = vshrl.u32 %v5397, 7
        %v5399 = vsub.s32 %v5396, %v5398
        %v5400 = vrot.slane %v5392, %v5399
        %v5402 = vunpack.c.l.s4 1983009808
        %v5403 = vunpack.c.0.s8 %v5402
        %v5404 = vlaneseq
        %v5405 = vshrl.u32 %v5404, 7
        %v5406 = vsub.s32 %v5403, %v5405
        %v5407 = vrot.slane %v5393, %v5406
        %v5408 = vcombine.low %v5005, %v5015
        %v5409 = vcombine.high %v5005, %v5015
        %v5411 = vunpack.c.l.s4 1983009808
        %v5412 = vunpack.c.0.s8 %v5411
        %v5413 = vlaneseq
        %v5414 = vshrl.u32 %v5413, 7
        %v5415 = vsub.s32 %v5412, %v5414
        %v5416 = vrot.slane %v5408, %v5415
        %v5418 = vunpack.c.l.s4 1983009808
        %v5419 = vunpack.c.0.s8 %v5418
        %v5420 = vlaneseq
        %v5421 = vshrl.u32 %v5420, 7
        %v5422 = vsub.s32 %v5419, %v5421
        %v5423 = vrot.slane %v5409, %v5422
        %v5424 = vcombine.low %v5368, %v5384
        %v5425 = vcombine.high %v5368, %v5384
        %v5427 = vunpack.c.l.s4 1934713408
        %v5428 = vunpack.c.0.s8 %v5427
        %v5429 = vlaneseq
        %v5430 = vshrl.u32 %v5429, 7
        %v5431 = vsub.s32 %v5428, %v5430
        %v5432 = vrot.slane %v5424, %v5431
        %v5434 = vunpack.c.l.s4 1934713408
        %v5435 = vunpack.c.0.s8 %v5434
        %v5436 = vlaneseq
        %v5437 = vshrl.u32 %v5436, 7
        %v5438 = vsub.s32 %v5435, %v5437
        %v5439 = vrot.slane %v5425, %v5438
        %v5440 = vcombine.low %v5375, %v5391
        %v5441 = vcombine.high %v5375, %v5391
        %v5443 = vunpack.c.l.s4 1934713408
        %v5444 = vunpack.c.0.s8 %v5443
        %v5445 = vlaneseq
        %v5446 = vshrl.u32 %v5445, 7
        %v5447 = vsub.s32 %v5444, %v5446
        %v5448 = vrot.slane %v5440, %v5447
        %v5450 = vunpack.c.l.s4 1934713408
        %v5451 = vunpack.c.0.s8 %v5450
        %v5452 = vlaneseq
        %v5453 = vshrl.u32 %v5452, 7
        %v5454 = vsub.s32 %v5451, %v5453
        %v5455 = vrot.slane %v5441, %v5454
        %v5456 = vcombine.low %v5400, %v5416
        %v5457 = vcombine.high %v5400, %v5416
        %v5459 = vunpack.c.l.s4 1934713408
        %v5460 = vunpack.c.0.s8 %v5459
        %v5461 = vlaneseq
        %v5462 = vshrl.u32 %v5461, 7
        %v5463 = vsub.s32 %v5460, %v5462
        %v5464 = vrot.slane %v5456, %v5463
        %v5466 = vunpack.c.l.s4 1934713408
        %v5467 = vunpack.c.0.s8 %v5466
        %v5468 = vlaneseq
        %v5469 = vshrl.u32 %v5468, 7
        %v5470 = vsub.s32 %v5467, %v5469
        %v5471 = vrot.slane %v5457, %v5470
        %v5472 = vcombine.low %v5407, %v5423
        %v5473 = vcombine.high %v5407, %v5423
        %v5475 = vunpack.c.l.s4 1934713408
        %v5476 = vunpack.c.0.s8 %v5475
        %v5477 = vlaneseq
        %v5478 = vshrl.u32 %v5477, 7
        %v5479 = vsub.s32 %v5476, %v5478
        %v5480 = vrot.slane %v5472, %v5479
        %v5482 = vunpack.c.l.s4 1934713408
        %v5483 = vunpack.c.0.s8 %v5482
        %v5484 = vlaneseq
        %v5485 = vshrl.u32 %v5484, 7
        %v5486 = vsub.s32 %v5483, %v5485
        %v5487 = vrot.slane %v5473, %v5486
        %v5488 = vcombine.low %v5432, %v5464
        %v5489 = vcombine.high %v5432, %v5464
        %v5490 = vcombine.low %v5439, %v5471
        %v5491 = vcombine.high %v5439, %v5471
        %v5492 = vcombine.low %v5448, %v5480
        %v5493 = vcombine.high %v5448, %v5480
        %v5494 = vcombine.low %v5455, %v5487
        %v5495 = vcombine.high %v5455, %v5487
        %v5496 = vcombine.low %v5020, %v5030
        %v5497 = vcombine.high %v5020, %v5030
        %v5499 = vunpack.c.l.s4 1983009808
        %v5500 = vunpack.c.0.s8 %v5499
        %v5501 = vlaneseq
        %v5502 = vshrl.u32 %v5501, 7
        %v5503 = vsub.s32 %v5500, %v5502
        %v5504 = vrot.slane %v5496, %v5503
        %v5506 = vunpack.c.l.s4 1983009808
        %v5507 = vunpack.c.0.s8 %v5506
        %v5508 = vlaneseq
        %v5509 = vshrl.u32 %v5508, 7
        %v5510 = vsub.s32 %v5507, %v5509
        %v5511 = vrot.slane %v5497, %v5510
        %v5512 = vcombine.low %v5025, %v5035
        %v5513 = vcombine.high %v5025, %v5035
        %v5515 = vunpack.c.l.s4 1983009808
        %v5516 = vunpack.c.0.s8 %v5515
        %v5517 = vlaneseq
        %v5518 = vshrl.u32 %v5517, 7
        %v5519 = vsub.s32 %v5516, %v5518
        %v5520 = vrot.slane %v5512, %v5519
        %v5522 = vunpack.c.l.s4 1983009808
        %v5523 = vunpack.c.0.s8 %v5522
        %v5524 = vlaneseq
        %v5525 = vshrl.u32 %v5524, 7
        %v5526 = vsub.s32 %v5523, %v5525
        %v5527 = vrot.slane %v5513, %v5526
        %v5528 = vcombine.low %v5040, %v5050
        %v5529 = vcombine.high %v5040, %v5050
        %v5531 = vunpack.c.l.s4 1983009808
        %v5532 = vunpack.c.0.s8 %v5531
        %v5533 = vlaneseq
        %v5534 = vshrl.u32 %v5533, 7
        %v5535 = vsub.s32 %v5532, %v5534
        %v5536 = vrot.slane %v5528, %v5535
        %v5538 = vunpack.c.l.s4 1983009808
        %v5539 = vunpack.c.0.s8 %v5538
        %v5540 = vlaneseq
        %v5541 = vshrl.u32 %v5540, 7
        %v5542 = vsub.s32 %v5539, %v5541
        %v5543 = vrot.slane %v5529, %v5542
        %v5544 = vcombine.low %v5045, %v5055
        %v5545 = vcombine.high %v5045, %v5055
        %v5547 = vunpack.c.l.s4 1983009808
        %v5548 = vunpack.c.0.s8 %v5547
        %v5549 = vlaneseq
        %v5550 = vshrl.u32 %v5549, 7
        %v5551 = vsub.s32 %v5548, %v5550
        %v5552 = vrot.slane %v5544, %v5551
        %v5554 = vunpack.c.l.s4 1983009808
        %v5555 = vunpack.c.0.s8 %v5554
        %v5556 = vlaneseq
        %v5557 = vshrl.u32 %v5556, 7
        %v5558 = vsub.s32 %v5555, %v5557
        %v5559 = vrot.slane %v5545, %v5558
        %v5560 = vcombine.low %v5504, %v5520
        %v5561 = vcombine.high %v5504, %v5520
        %v5563 = vunpack.c.l.s4 1934713408
        %v5564 = vunpack.c.0.s8 %v5563
        %v5565 = vlaneseq
        %v5566 = vshrl.u32 %v5565, 7
        %v5567 = vsub.s32 %v5564, %v5566
        %v5568 = vrot.slane %v5560, %v5567
        %v5570 = vunpack.c.l.s4 1934713408
        %v5571 = vunpack.c.0.s8 %v5570
        %v5572 = vlaneseq
        %v5573 = vshrl.u32 %v5572, 7
        %v5574 = vsub.s32 %v5571, %v5573
        %v5575 = vrot.slane %v5561, %v5574
        %v5576 = vcombine.low %v5511, %v5527
        %v5577 = vcombine.high %v5511, %v5527
        %v5579 = vunpack.c.l.s4 1934713408
        %v5580 = vunpack.c.0.s8 %v5579
        %v5581 = vlaneseq
        %v5582 = vshrl.u32 %v5581, 7
        %v5583 = vsub.s32 %v5580, %v5582
        %v5584 = vrot.slane %v5576, %v5583
        %v5586 = vunpack.c.l.s4 1934713408
        %v5587 = vunpack.c.0.s8 %v5586
        %v5588 = vlaneseq
        %v5589 = vshrl.u32 %v5588, 7
        %v5590 = vsub.s32 %v5587, %v5589
        %v5591 = vrot.slane %v5577, %v5590
        %v5592 = vcombine.low %v5536, %v5552
        %v5593 = vcombine.high %v5536, %v5552
        %v5595 = vunpack.c.l.s4 1934713408
        %v5596 = vunpack.c.0.s8 %v5595
        %v5597 = vlaneseq
        %v5598 = vshrl.u32 %v5597, 7
        %v5599 = vsub.s32 %v5596, %v5598
        %v5600 = vrot.slane %v5592, %v5599
        %v5602 = vunpack.c.l.s4 1934713408
        %v5603 = vunpack.c.0.s8 %v5602
        %v5604 = vlaneseq
        %v5605 = vshrl.u32 %v5604, 7
        %v5606 = vsub.s32 %v5603, %v5605
        %v5607 = vrot.slane %v5593, %v5606
        %v5608 = vcombine.low %v5543, %v5559
        %v5609 = vcombine.high %v5543, %v5559
        %v5611 = vunpack.c.l.s4 1934713408
        %v5612 = vunpack.c.0.s8 %v5611
        %v5613 = vlaneseq
        %v5614 = vshrl.u32 %v5613, 7
        %v5615 = vsub.s32 %v5612, %v5614
        %v5616 = vrot.slane %v5608, %v5615
        %v5618 = vunpack.c.l.s4 1934713408
        %v5619 = vunpack.c.0.s8 %v5618
        %v5620 = vlaneseq
        %v5621 = vshrl.u32 %v5620, 7
        %v5622 = vsub.s32 %v5619, %v5621
        %v5623 = vrot.slane %v5609, %v5622
        %v5624 = vcombine.low %v5568, %v5600
        %v5625 = vcombine.high %v5568, %v5600
        %v5626 = vcombine.low %v5575, %v5607
        %v5627 = vcombine.high %v5575, %v5607
        %v5628 = vcombine.low %v5584, %v5616
        %v5629 = vcombine.high %v5584, %v5616
        %v5630 = vcombine.low %v5591, %v5623
        %v5631 = vcombine.high %v5591, %v5623
        %5634 = vrot.lane.b32.xlu0 %v5217, 16
        %v5635 = vpop.permute.xlu0 %5634
        %5636 = vrot.lane.b32.xlu0 %v5353, 16
        %v5637 = vpop.permute.xlu0 %5636
        %5642 = vrot.lane.b32.xlu0 %v5218, 32
        %v5643 = vpop.permute.xlu0 %5642
        %5644 = vrot.lane.b32.xlu0 %v5354, 32
        %v5645 = vpop.permute.xlu0 %5644
        %5650 = vrot.lane.b32.xlu0 %v5219, 48
        %v5651 = vpop.permute.xlu0 %5650
        %5652 = vrot.lane.b32.xlu0 %v5355, 48
        %v5653 = vpop.permute.xlu0 %5652
        %5658 = vrot.lane.b32.xlu0 %v5220, 64
        %v5659 = vpop.permute.xlu0 %5658
        %5660 = vrot.lane.b32.xlu0 %v5356, 64
        %v5661 = vpop.permute.xlu0 %5660
        %5666 = vrot.lane.b32.xlu0 %v5221, 80
        %v5667 = vpop.permute.xlu0 %5666
        %5668 = vrot.lane.b32.xlu0 %v5357, 80
        %v5669 = vpop.permute.xlu0 %5668
        %5674 = vrot.lane.b32.xlu0 %v5222, 96
        %v5675 = vpop.permute.xlu0 %5674
        %5676 = vrot.lane.b32.xlu0 %v5358, 96
        %v5677 = vpop.permute.xlu0 %5676
        %5682 = vrot.lane.b32.xlu0 %v5223, 112
        %v5683 = vpop.permute.xlu0 %5682
        %5684 = vrot.lane.b32.xlu0 %v5359, 112
        %v5685 = vpop.permute.xlu0 %5684
        %5690 = vrot.lane.b32.xlu0 %v5489, 16
        %v5691 = vpop.permute.xlu0 %5690
        %5692 = vrot.lane.b32.xlu0 %v5625, 16
        %v5693 = vpop.permute.xlu0 %5692
        %5698 = vrot.lane.b32.xlu0 %v5490, 32
        %v5699 = vpop.permute.xlu0 %5698
        %5700 = vrot.lane.b32.xlu0 %v5626, 32
        %v5701 = vpop.permute.xlu0 %5700
        %5706 = vrot.lane.b32.xlu0 %v5491, 48
        %v5707 = vpop.permute.xlu0 %5706
        %5708 = vrot.lane.b32.xlu0 %v5627, 48
        %v5709 = vpop.permute.xlu0 %5708
        %5714 = vrot.lane.b32.xlu0 %v5492, 64
        %v5715 = vpop.permute.xlu0 %5714
        %5716 = vrot.lane.b32.xlu0 %v5628, 64
        %v5717 = vpop.permute.xlu0 %5716
        %5722 = vrot.lane.b32.xlu0 %v5493, 80
        %v5723 = vpop.permute.xlu0 %5722
        %5724 = vrot.lane.b32.xlu0 %v5629, 80
        %v5725 = vpop.permute.xlu0 %5724
        %5730 = vrot.lane.b32.xlu0 %v5494, 96
        %v5731 = vpop.permute.xlu0 %5730
        %5732 = vrot.lane.b32.xlu0 %v5630, 96
        %v5733 = vpop.permute.xlu0 %5732
        %5738 = vrot.lane.b32.xlu0 %v5495, 112
        %v5739 = vpop.permute.xlu0 %5738
        %5740 = vrot.lane.b32.xlu0 %v5631, 112
        %v5741 = vpop.permute.xlu0 %5740
        %v5744 = vsel %vm975, %v5216, %v5635
        %v5745 = vsel %vm975, %v5352, %v5637
        %v5746 = vsel %vm978, %v5744, %v5643
        %v5747 = vsel %vm978, %v5745, %v5645
        %v5748 = vsel %vm981, %v5746, %v5651
        %v5749 = vsel %vm981, %v5747, %v5653
        %v5750 = vsel %vm984, %v5748, %v5659
        %v5751 = vsel %vm984, %v5749, %v5661
        %v5752 = vsel %vm987, %v5750, %v5667
        %v5753 = vsel %vm987, %v5751, %v5669
        %v5754 = vsel %vm990, %v5752, %v5675
        %v5755 = vsel %vm990, %v5753, %v5677
        %v5756 = vsel %vm993, %v5754, %v5683
        %v5757 = vsel %vm993, %v5755, %v5685
        %v5758 = vsel %vm975, %v5488, %v5691
        %v5759 = vsel %vm975, %v5624, %v5693
        %v5760 = vsel %vm978, %v5758, %v5699
        %v5761 = vsel %vm978, %v5759, %v5701
        %v5762 = vsel %vm981, %v5760, %v5707
        %v5763 = vsel %vm981, %v5761, %v5709
        %v5764 = vsel %vm984, %v5762, %v5715
        %v5765 = vsel %vm984, %v5763, %v5717
        %v5766 = vsel %vm987, %v5764, %v5723
        %v5767 = vsel %vm987, %v5765, %v5725
        %v5768 = vsel %vm990, %v5766, %v5731
        %v5769 = vsel %vm990, %v5767, %v5733
        %v5770 = vsel %vm993, %v5768, %v5739
        %v5771 = vsel %vm993, %v5769, %v5741
        %5772 = vrot.lane.b32.xlu0 %v4978, 127
        %v5773 = vpop.permute.xlu0 %5772
        %5774 = vrot.lane.b32.xlu0 %v4980, 127
        %v5775 = vpop.permute.xlu0 %5774
        %5776 = vrot.lane.b32.xlu0 %v4983, 127
        %v5777 = vpop.permute.xlu0 %5776
        %5778 = vrot.lane.b32.xlu0 %v4985, 127
        %v5779 = vpop.permute.xlu0 %5778
        %5780 = vrot.lane.b32.xlu0 %v4988, 127
        %v5781 = vpop.permute.xlu0 %5780
        %5782 = vrot.lane.b32.xlu0 %v4990, 127
        %v5783 = vpop.permute.xlu0 %5782
        %5784 = vrot.lane.b32.xlu0 %v4993, 127
        %v5785 = vpop.permute.xlu0 %5784
        %5786 = vrot.lane.b32.xlu0 %v4995, 127
        %v5787 = vpop.permute.xlu0 %5786
        %5788 = vrot.lane.b32.xlu0 %v4998, 127
        %v5789 = vpop.permute.xlu0 %5788
        %5790 = vrot.lane.b32.xlu0 %v5000, 127
        %v5791 = vpop.permute.xlu0 %5790
        %5792 = vrot.lane.b32.xlu0 %v5003, 127
        %v5793 = vpop.permute.xlu0 %5792
        %5794 = vrot.lane.b32.xlu0 %v5005, 127
        %v5795 = vpop.permute.xlu0 %5794
        %5796 = vrot.lane.b32.xlu0 %v5008, 127
        %v5797 = vpop.permute.xlu0 %5796
        %5798 = vrot.lane.b32.xlu0 %v5010, 127
        %v5799 = vpop.permute.xlu0 %5798
        %5800 = vrot.lane.b32.xlu0 %v5013, 127
        %v5801 = vpop.permute.xlu0 %5800
        %5802 = vrot.lane.b32.xlu0 %v5015, 127
        %v5803 = vpop.permute.xlu0 %5802
        %5804 = vrot.lane.b32.xlu0 %v5018, 127
        %v5805 = vpop.permute.xlu0 %5804
        %5806 = vrot.lane.b32.xlu0 %v5020, 127
        %v5807 = vpop.permute.xlu0 %5806
        %5808 = vrot.lane.b32.xlu0 %v5023, 127
        %v5809 = vpop.permute.xlu0 %5808
        %5810 = vrot.lane.b32.xlu0 %v5025, 127
        %v5811 = vpop.permute.xlu0 %5810
        %5812 = vrot.lane.b32.xlu0 %v5028, 127
        %v5813 = vpop.permute.xlu0 %5812
        %5814 = vrot.lane.b32.xlu0 %v5030, 127
        %v5815 = vpop.permute.xlu0 %5814
        %5816 = vrot.lane.b32.xlu0 %v5033, 127
        %v5817 = vpop.permute.xlu0 %5816
        %5818 = vrot.lane.b32.xlu0 %v5035, 127
        %v5819 = vpop.permute.xlu0 %5818
        %5820 = vrot.lane.b32.xlu0 %v5038, 127
        %v5821 = vpop.permute.xlu0 %5820
        %5822 = vrot.lane.b32.xlu0 %v5040, 127
        %v5823 = vpop.permute.xlu0 %5822
        %5824 = vrot.lane.b32.xlu0 %v5043, 127
        %v5825 = vpop.permute.xlu0 %5824
        %5826 = vrot.lane.b32.xlu0 %v5045, 127
        %v5827 = vpop.permute.xlu0 %5826
        %5828 = vrot.lane.b32.xlu0 %v5048, 127
        %v5829 = vpop.permute.xlu0 %5828
        %5830 = vrot.lane.b32.xlu0 %v5050, 127
        %v5831 = vpop.permute.xlu0 %5830
        %5832 = vrot.lane.b32.xlu0 %v5053, 127
        %v5833 = vpop.permute.xlu0 %5832
        %5834 = vrot.lane.b32.xlu0 %v5055, 127
        %v5835 = vpop.permute.xlu0 %5834
        %v5868 = vcombine.low %v5773, %v5781
        %v5869 = vcombine.high %v5773, %v5781
        %v5871 = vunpack.c.l.s4 1983009808
        %v5872 = vunpack.c.0.s8 %v5871
        %v5873 = vlaneseq
        %v5874 = vshrl.u32 %v5873, 7
        %v5875 = vsub.s32 %v5872, %v5874
        %v5876 = vrot.slane %v5868, %v5875
        %v5878 = vunpack.c.l.s4 1983009808
        %v5879 = vunpack.c.0.s8 %v5878
        %v5880 = vlaneseq
        %v5881 = vshrl.u32 %v5880, 7
        %v5882 = vsub.s32 %v5879, %v5881
        %v5883 = vrot.slane %v5869, %v5882
        %v5884 = vcombine.low %v5777, %v5785
        %v5885 = vcombine.high %v5777, %v5785
        %v5887 = vunpack.c.l.s4 1983009808
        %v5888 = vunpack.c.0.s8 %v5887
        %v5889 = vlaneseq
        %v5890 = vshrl.u32 %v5889, 7
        %v5891 = vsub.s32 %v5888, %v5890
        %v5892 = vrot.slane %v5884, %v5891
        %v5894 = vunpack.c.l.s4 1983009808
        %v5895 = vunpack.c.0.s8 %v5894
        %v5896 = vlaneseq
        %v5897 = vshrl.u32 %v5896, 7
        %v5898 = vsub.s32 %v5895, %v5897
        %v5899 = vrot.slane %v5885, %v5898
        %v5900 = vcombine.low %v5789, %v5797
        %v5901 = vcombine.high %v5789, %v5797
        %v5903 = vunpack.c.l.s4 1983009808
        %v5904 = vunpack.c.0.s8 %v5903
        %v5905 = vlaneseq
        %v5906 = vshrl.u32 %v5905, 7
        %v5907 = vsub.s32 %v5904, %v5906
        %v5908 = vrot.slane %v5900, %v5907
        %v5910 = vunpack.c.l.s4 1983009808
        %v5911 = vunpack.c.0.s8 %v5910
        %v5912 = vlaneseq
        %v5913 = vshrl.u32 %v5912, 7
        %v5914 = vsub.s32 %v5911, %v5913
        %v5915 = vrot.slane %v5901, %v5914
        %v5916 = vcombine.low %v5793, %v5801
        %v5917 = vcombine.high %v5793, %v5801
        %v5919 = vunpack.c.l.s4 1983009808
        %v5920 = vunpack.c.0.s8 %v5919
        %v5921 = vlaneseq
        %v5922 = vshrl.u32 %v5921, 7
        %v5923 = vsub.s32 %v5920, %v5922
        %v5924 = vrot.slane %v5916, %v5923
        %v5926 = vunpack.c.l.s4 1983009808
        %v5927 = vunpack.c.0.s8 %v5926
        %v5928 = vlaneseq
        %v5929 = vshrl.u32 %v5928, 7
        %v5930 = vsub.s32 %v5927, %v5929
        %v5931 = vrot.slane %v5917, %v5930
        %v5932 = vcombine.low %v5876, %v5892
        %v5933 = vcombine.high %v5876, %v5892
        %v5935 = vunpack.c.l.s4 1934713408
        %v5936 = vunpack.c.0.s8 %v5935
        %v5937 = vlaneseq
        %v5938 = vshrl.u32 %v5937, 7
        %v5939 = vsub.s32 %v5936, %v5938
        %v5940 = vrot.slane %v5932, %v5939
        %v5942 = vunpack.c.l.s4 1934713408
        %v5943 = vunpack.c.0.s8 %v5942
        %v5944 = vlaneseq
        %v5945 = vshrl.u32 %v5944, 7
        %v5946 = vsub.s32 %v5943, %v5945
        %v5947 = vrot.slane %v5933, %v5946
        %v5948 = vcombine.low %v5883, %v5899
        %v5949 = vcombine.high %v5883, %v5899
        %v5951 = vunpack.c.l.s4 1934713408
        %v5952 = vunpack.c.0.s8 %v5951
        %v5953 = vlaneseq
        %v5954 = vshrl.u32 %v5953, 7
        %v5955 = vsub.s32 %v5952, %v5954
        %v5956 = vrot.slane %v5948, %v5955
        %v5958 = vunpack.c.l.s4 1934713408
        %v5959 = vunpack.c.0.s8 %v5958
        %v5960 = vlaneseq
        %v5961 = vshrl.u32 %v5960, 7
        %v5962 = vsub.s32 %v5959, %v5961
        %v5963 = vrot.slane %v5949, %v5962
        %v5964 = vcombine.low %v5908, %v5924
        %v5965 = vcombine.high %v5908, %v5924
        %v5967 = vunpack.c.l.s4 1934713408
        %v5968 = vunpack.c.0.s8 %v5967
        %v5969 = vlaneseq
        %v5970 = vshrl.u32 %v5969, 7
        %v5971 = vsub.s32 %v5968, %v5970
        %v5972 = vrot.slane %v5964, %v5971
        %v5974 = vunpack.c.l.s4 1934713408
        %v5975 = vunpack.c.0.s8 %v5974
        %v5976 = vlaneseq
        %v5977 = vshrl.u32 %v5976, 7
        %v5978 = vsub.s32 %v5975, %v5977
        %v5979 = vrot.slane %v5965, %v5978
        %v5980 = vcombine.low %v5915, %v5931
        %v5981 = vcombine.high %v5915, %v5931
        %v5983 = vunpack.c.l.s4 1934713408
        %v5984 = vunpack.c.0.s8 %v5983
        %v5985 = vlaneseq
        %v5986 = vshrl.u32 %v5985, 7
        %v5987 = vsub.s32 %v5984, %v5986
        %v5988 = vrot.slane %v5980, %v5987
        %v5990 = vunpack.c.l.s4 1934713408
        %v5991 = vunpack.c.0.s8 %v5990
        %v5992 = vlaneseq
        %v5993 = vshrl.u32 %v5992, 7
        %v5994 = vsub.s32 %v5991, %v5993
        %v5995 = vrot.slane %v5981, %v5994
        %v5996 = vcombine.low %v5940, %v5972
        %v5997 = vcombine.high %v5940, %v5972
        %v5998 = vcombine.low %v5947, %v5979
        %v5999 = vcombine.high %v5947, %v5979
        %v6000 = vcombine.low %v5956, %v5988
        %v6001 = vcombine.high %v5956, %v5988
        %v6002 = vcombine.low %v5963, %v5995
        %v6003 = vcombine.high %v5963, %v5995
        %v6004 = vcombine.low %v5805, %v5813
        %v6005 = vcombine.high %v5805, %v5813
        %v6007 = vunpack.c.l.s4 1983009808
        %v6008 = vunpack.c.0.s8 %v6007
        %v6009 = vlaneseq
        %v6010 = vshrl.u32 %v6009, 7
        %v6011 = vsub.s32 %v6008, %v6010
        %v6012 = vrot.slane %v6004, %v6011
        %v6014 = vunpack.c.l.s4 1983009808
        %v6015 = vunpack.c.0.s8 %v6014
        %v6016 = vlaneseq
        %v6017 = vshrl.u32 %v6016, 7
        %v6018 = vsub.s32 %v6015, %v6017
        %v6019 = vrot.slane %v6005, %v6018
        %v6020 = vcombine.low %v5809, %v5817
        %v6021 = vcombine.high %v5809, %v5817
        %v6023 = vunpack.c.l.s4 1983009808
        %v6024 = vunpack.c.0.s8 %v6023
        %v6025 = vlaneseq
        %v6026 = vshrl.u32 %v6025, 7
        %v6027 = vsub.s32 %v6024, %v6026
        %v6028 = vrot.slane %v6020, %v6027
        %v6030 = vunpack.c.l.s4 1983009808
        %v6031 = vunpack.c.0.s8 %v6030
        %v6032 = vlaneseq
        %v6033 = vshrl.u32 %v6032, 7
        %v6034 = vsub.s32 %v6031, %v6033
        %v6035 = vrot.slane %v6021, %v6034
        %v6036 = vcombine.low %v5821, %v5829
        %v6037 = vcombine.high %v5821, %v5829
        %v6039 = vunpack.c.l.s4 1983009808
        %v6040 = vunpack.c.0.s8 %v6039
        %v6041 = vlaneseq
        %v6042 = vshrl.u32 %v6041, 7
        %v6043 = vsub.s32 %v6040, %v6042
        %v6044 = vrot.slane %v6036, %v6043
        %v6046 = vunpack.c.l.s4 1983009808
        %v6047 = vunpack.c.0.s8 %v6046
        %v6048 = vlaneseq
        %v6049 = vshrl.u32 %v6048, 7
        %v6050 = vsub.s32 %v6047, %v6049
        %v6051 = vrot.slane %v6037, %v6050
        %v6052 = vcombine.low %v5825, %v5833
        %v6053 = vcombine.high %v5825, %v5833
        %v6055 = vunpack.c.l.s4 1983009808
        %v6056 = vunpack.c.0.s8 %v6055
        %v6057 = vlaneseq
        %v6058 = vshrl.u32 %v6057, 7
        %v6059 = vsub.s32 %v6056, %v6058
        %v6060 = vrot.slane %v6052, %v6059
        %v6062 = vunpack.c.l.s4 1983009808
        %v6063 = vunpack.c.0.s8 %v6062
        %v6064 = vlaneseq
        %v6065 = vshrl.u32 %v6064, 7
        %v6066 = vsub.s32 %v6063, %v6065
        %v6067 = vrot.slane %v6053, %v6066
        %v6068 = vcombine.low %v6012, %v6028
        %v6069 = vcombine.high %v6012, %v6028
        %v6071 = vunpack.c.l.s4 1934713408
        %v6072 = vunpack.c.0.s8 %v6071
        %v6073 = vlaneseq
        %v6074 = vshrl.u32 %v6073, 7
        %v6075 = vsub.s32 %v6072, %v6074
        %v6076 = vrot.slane %v6068, %v6075
        %v6078 = vunpack.c.l.s4 1934713408
        %v6079 = vunpack.c.0.s8 %v6078
        %v6080 = vlaneseq
        %v6081 = vshrl.u32 %v6080, 7
        %v6082 = vsub.s32 %v6079, %v6081
        %v6083 = vrot.slane %v6069, %v6082
        %v6084 = vcombine.low %v6019, %v6035
        %v6085 = vcombine.high %v6019, %v6035
        %v6087 = vunpack.c.l.s4 1934713408
        %v6088 = vunpack.c.0.s8 %v6087
        %v6089 = vlaneseq
        %v6090 = vshrl.u32 %v6089, 7
        %v6091 = vsub.s32 %v6088, %v6090
        %v6092 = vrot.slane %v6084, %v6091
        %v6094 = vunpack.c.l.s4 1934713408
        %v6095 = vunpack.c.0.s8 %v6094
        %v6096 = vlaneseq
        %v6097 = vshrl.u32 %v6096, 7
        %v6098 = vsub.s32 %v6095, %v6097
        %v6099 = vrot.slane %v6085, %v6098
        %v6100 = vcombine.low %v6044, %v6060
        %v6101 = vcombine.high %v6044, %v6060
        %v6103 = vunpack.c.l.s4 1934713408
        %v6104 = vunpack.c.0.s8 %v6103
        %v6105 = vlaneseq
        %v6106 = vshrl.u32 %v6105, 7
        %v6107 = vsub.s32 %v6104, %v6106
        %v6108 = vrot.slane %v6100, %v6107
        %v6110 = vunpack.c.l.s4 1934713408
        %v6111 = vunpack.c.0.s8 %v6110
        %v6112 = vlaneseq
        %v6113 = vshrl.u32 %v6112, 7
        %v6114 = vsub.s32 %v6111, %v6113
        %v6115 = vrot.slane %v6101, %v6114
        %v6116 = vcombine.low %v6051, %v6067
        %v6117 = vcombine.high %v6051, %v6067
        %v6119 = vunpack.c.l.s4 1934713408
        %v6120 = vunpack.c.0.s8 %v6119
        %v6121 = vlaneseq
        %v6122 = vshrl.u32 %v6121, 7
        %v6123 = vsub.s32 %v6120, %v6122
        %v6124 = vrot.slane %v6116, %v6123
        %v6126 = vunpack.c.l.s4 1934713408
        %v6127 = vunpack.c.0.s8 %v6126
        %v6128 = vlaneseq
        %v6129 = vshrl.u32 %v6128, 7
        %v6130 = vsub.s32 %v6127, %v6129
        %v6131 = vrot.slane %v6117, %v6130
        %v6132 = vcombine.low %v6076, %v6108
        %v6133 = vcombine.high %v6076, %v6108
        %v6134 = vcombine.low %v6083, %v6115
        %v6135 = vcombine.high %v6083, %v6115
        %v6136 = vcombine.low %v6092, %v6124
        %v6137 = vcombine.high %v6092, %v6124
        %v6138 = vcombine.low %v6099, %v6131
        %v6139 = vcombine.high %v6099, %v6131
        %v6140 = vcombine.low %v5775, %v5783
        %v6141 = vcombine.high %v5775, %v5783
        %v6143 = vunpack.c.l.s4 1983009808
        %v6144 = vunpack.c.0.s8 %v6143
        %v6145 = vlaneseq
        %v6146 = vshrl.u32 %v6145, 7
        %v6147 = vsub.s32 %v6144, %v6146
        %v6148 = vrot.slane %v6140, %v6147
        %v6150 = vunpack.c.l.s4 1983009808
        %v6151 = vunpack.c.0.s8 %v6150
        %v6152 = vlaneseq
        %v6153 = vshrl.u32 %v6152, 7
        %v6154 = vsub.s32 %v6151, %v6153
        %v6155 = vrot.slane %v6141, %v6154
        %v6156 = vcombine.low %v5779, %v5787
        %v6157 = vcombine.high %v5779, %v5787
        %v6159 = vunpack.c.l.s4 1983009808
        %v6160 = vunpack.c.0.s8 %v6159
        %v6161 = vlaneseq
        %v6162 = vshrl.u32 %v6161, 7
        %v6163 = vsub.s32 %v6160, %v6162
        %v6164 = vrot.slane %v6156, %v6163
        %v6166 = vunpack.c.l.s4 1983009808
        %v6167 = vunpack.c.0.s8 %v6166
        %v6168 = vlaneseq
        %v6169 = vshrl.u32 %v6168, 7
        %v6170 = vsub.s32 %v6167, %v6169
        %v6171 = vrot.slane %v6157, %v6170
        %v6172 = vcombine.low %v5791, %v5799
        %v6173 = vcombine.high %v5791, %v5799
        %v6175 = vunpack.c.l.s4 1983009808
        %v6176 = vunpack.c.0.s8 %v6175
        %v6177 = vlaneseq
        %v6178 = vshrl.u32 %v6177, 7
        %v6179 = vsub.s32 %v6176, %v6178
        %v6180 = vrot.slane %v6172, %v6179
        %v6182 = vunpack.c.l.s4 1983009808
        %v6183 = vunpack.c.0.s8 %v6182
        %v6184 = vlaneseq
        %v6185 = vshrl.u32 %v6184, 7
        %v6186 = vsub.s32 %v6183, %v6185
        %v6187 = vrot.slane %v6173, %v6186
        %v6188 = vcombine.low %v5795, %v5803
        %v6189 = vcombine.high %v5795, %v5803
        %v6191 = vunpack.c.l.s4 1983009808
        %v6192 = vunpack.c.0.s8 %v6191
        %v6193 = vlaneseq
        %v6194 = vshrl.u32 %v6193, 7
        %v6195 = vsub.s32 %v6192, %v6194
        %v6196 = vrot.slane %v6188, %v6195
        %v6198 = vunpack.c.l.s4 1983009808
        %v6199 = vunpack.c.0.s8 %v6198
        %v6200 = vlaneseq
        %v6201 = vshrl.u32 %v6200, 7
        %v6202 = vsub.s32 %v6199, %v6201
        %v6203 = vrot.slane %v6189, %v6202
        %v6204 = vcombine.low %v6148, %v6164
        %v6205 = vcombine.high %v6148, %v6164
        %v6207 = vunpack.c.l.s4 1934713408
        %v6208 = vunpack.c.0.s8 %v6207
        %v6209 = vlaneseq
        %v6210 = vshrl.u32 %v6209, 7
        %v6211 = vsub.s32 %v6208, %v6210
        %v6212 = vrot.slane %v6204, %v6211
        %v6214 = vunpack.c.l.s4 1934713408
        %v6215 = vunpack.c.0.s8 %v6214
        %v6216 = vlaneseq
        %v6217 = vshrl.u32 %v6216, 7
        %v6218 = vsub.s32 %v6215, %v6217
        %v6219 = vrot.slane %v6205, %v6218
        %v6220 = vcombine.low %v6155, %v6171
        %v6221 = vcombine.high %v6155, %v6171
        %v6223 = vunpack.c.l.s4 1934713408
        %v6224 = vunpack.c.0.s8 %v6223
        %v6225 = vlaneseq
        %v6226 = vshrl.u32 %v6225, 7
        %v6227 = vsub.s32 %v6224, %v6226
        %v6228 = vrot.slane %v6220, %v6227
        %v6230 = vunpack.c.l.s4 1934713408
        %v6231 = vunpack.c.0.s8 %v6230
        %v6232 = vlaneseq
        %v6233 = vshrl.u32 %v6232, 7
        %v6234 = vsub.s32 %v6231, %v6233
        %v6235 = vrot.slane %v6221, %v6234
        %v6236 = vcombine.low %v6180, %v6196
        %v6237 = vcombine.high %v6180, %v6196
        %v6239 = vunpack.c.l.s4 1934713408
        %v6240 = vunpack.c.0.s8 %v6239
        %v6241 = vlaneseq
        %v6242 = vshrl.u32 %v6241, 7
        %v6243 = vsub.s32 %v6240, %v6242
        %v6244 = vrot.slane %v6236, %v6243
        %v6246 = vunpack.c.l.s4 1934713408
        %v6247 = vunpack.c.0.s8 %v6246
        %v6248 = vlaneseq
        %v6249 = vshrl.u32 %v6248, 7
        %v6250 = vsub.s32 %v6247, %v6249
        %v6251 = vrot.slane %v6237, %v6250
        %v6252 = vcombine.low %v6187, %v6203
        %v6253 = vcombine.high %v6187, %v6203
        %v6255 = vunpack.c.l.s4 1934713408
        %v6256 = vunpack.c.0.s8 %v6255
        %v6257 = vlaneseq
        %v6258 = vshrl.u32 %v6257, 7
        %v6259 = vsub.s32 %v6256, %v6258
        %v6260 = vrot.slane %v6252, %v6259
        %v6262 = vunpack.c.l.s4 1934713408
        %v6263 = vunpack.c.0.s8 %v6262
        %v6264 = vlaneseq
        %v6265 = vshrl.u32 %v6264, 7
        %v6266 = vsub.s32 %v6263, %v6265
        %v6267 = vrot.slane %v6253, %v6266
        %v6268 = vcombine.low %v6212, %v6244
        %v6269 = vcombine.high %v6212, %v6244
        %v6270 = vcombine.low %v6219, %v6251
        %v6271 = vcombine.high %v6219, %v6251
        %v6272 = vcombine.low %v6228, %v6260
        %v6273 = vcombine.high %v6228, %v6260
        %v6274 = vcombine.low %v6235, %v6267
        %v6275 = vcombine.high %v6235, %v6267
        %v6276 = vcombine.low %v5807, %v5815
        %v6277 = vcombine.high %v5807, %v5815
        %v6279 = vunpack.c.l.s4 1983009808
        %v6280 = vunpack.c.0.s8 %v6279
        %v6281 = vlaneseq
        %v6282 = vshrl.u32 %v6281, 7
        %v6283 = vsub.s32 %v6280, %v6282
        %v6284 = vrot.slane %v6276, %v6283
        %v6286 = vunpack.c.l.s4 1983009808
        %v6287 = vunpack.c.0.s8 %v6286
        %v6288 = vlaneseq
        %v6289 = vshrl.u32 %v6288, 7
        %v6290 = vsub.s32 %v6287, %v6289
        %v6291 = vrot.slane %v6277, %v6290
        %v6292 = vcombine.low %v5811, %v5819
        %v6293 = vcombine.high %v5811, %v5819
        %v6295 = vunpack.c.l.s4 1983009808
        %v6296 = vunpack.c.0.s8 %v6295
        %v6297 = vlaneseq
        %v6298 = vshrl.u32 %v6297, 7
        %v6299 = vsub.s32 %v6296, %v6298
        %v6300 = vrot.slane %v6292, %v6299
        %v6302 = vunpack.c.l.s4 1983009808
        %v6303 = vunpack.c.0.s8 %v6302
        %v6304 = vlaneseq
        %v6305 = vshrl.u32 %v6304, 7
        %v6306 = vsub.s32 %v6303, %v6305
        %v6307 = vrot.slane %v6293, %v6306
        %v6308 = vcombine.low %v5823, %v5831
        %v6309 = vcombine.high %v5823, %v5831
        %v6311 = vunpack.c.l.s4 1983009808
        %v6312 = vunpack.c.0.s8 %v6311
        %v6313 = vlaneseq
        %v6314 = vshrl.u32 %v6313, 7
        %v6315 = vsub.s32 %v6312, %v6314
        %v6316 = vrot.slane %v6308, %v6315
        %v6318 = vunpack.c.l.s4 1983009808
        %v6319 = vunpack.c.0.s8 %v6318
        %v6320 = vlaneseq
        %v6321 = vshrl.u32 %v6320, 7
        %v6322 = vsub.s32 %v6319, %v6321
        %v6323 = vrot.slane %v6309, %v6322
        %v6324 = vcombine.low %v5827, %v5835
        %v6325 = vcombine.high %v5827, %v5835
        %v6327 = vunpack.c.l.s4 1983009808
        %v6328 = vunpack.c.0.s8 %v6327
        %v6329 = vlaneseq
        %v6330 = vshrl.u32 %v6329, 7
        %v6331 = vsub.s32 %v6328, %v6330
        %v6332 = vrot.slane %v6324, %v6331
        %v6334 = vunpack.c.l.s4 1983009808
        %v6335 = vunpack.c.0.s8 %v6334
        %v6336 = vlaneseq
        %v6337 = vshrl.u32 %v6336, 7
        %v6338 = vsub.s32 %v6335, %v6337
        %v6339 = vrot.slane %v6325, %v6338
        %v6340 = vcombine.low %v6284, %v6300
        %v6341 = vcombine.high %v6284, %v6300
        %v6343 = vunpack.c.l.s4 1934713408
        %v6344 = vunpack.c.0.s8 %v6343
        %v6345 = vlaneseq
        %v6346 = vshrl.u32 %v6345, 7
        %v6347 = vsub.s32 %v6344, %v6346
        %v6348 = vrot.slane %v6340, %v6347
        %v6350 = vunpack.c.l.s4 1934713408
        %v6351 = vunpack.c.0.s8 %v6350
        %v6352 = vlaneseq
        %v6353 = vshrl.u32 %v6352, 7
        %v6354 = vsub.s32 %v6351, %v6353
        %v6355 = vrot.slane %v6341, %v6354
        %v6356 = vcombine.low %v6291, %v6307
        %v6357 = vcombine.high %v6291, %v6307
        %v6359 = vunpack.c.l.s4 1934713408
        %v6360 = vunpack.c.0.s8 %v6359
        %v6361 = vlaneseq
        %v6362 = vshrl.u32 %v6361, 7
        %v6363 = vsub.s32 %v6360, %v6362
        %v6364 = vrot.slane %v6356, %v6363
        %v6366 = vunpack.c.l.s4 1934713408
        %v6367 = vunpack.c.0.s8 %v6366
        %v6368 = vlaneseq
        %v6369 = vshrl.u32 %v6368, 7
        %v6370 = vsub.s32 %v6367, %v6369
        %v6371 = vrot.slane %v6357, %v6370
        %v6372 = vcombine.low %v6316, %v6332
        %v6373 = vcombine.high %v6316, %v6332
        %v6375 = vunpack.c.l.s4 1934713408
        %v6376 = vunpack.c.0.s8 %v6375
        %v6377 = vlaneseq
        %v6378 = vshrl.u32 %v6377, 7
        %v6379 = vsub.s32 %v6376, %v6378
        %v6380 = vrot.slane %v6372, %v6379
        %v6382 = vunpack.c.l.s4 1934713408
        %v6383 = vunpack.c.0.s8 %v6382
        %v6384 = vlaneseq
        %v6385 = vshrl.u32 %v6384, 7
        %v6386 = vsub.s32 %v6383, %v6385
        %v6387 = vrot.slane %v6373, %v6386
        %v6388 = vcombine.low %v6323, %v6339
        %v6389 = vcombine.high %v6323, %v6339
        %v6391 = vunpack.c.l.s4 1934713408
        %v6392 = vunpack.c.0.s8 %v6391
        %v6393 = vlaneseq
        %v6394 = vshrl.u32 %v6393, 7
        %v6395 = vsub.s32 %v6392, %v6394
        %v6396 = vrot.slane %v6388, %v6395
        %v6398 = vunpack.c.l.s4 1934713408
        %v6399 = vunpack.c.0.s8 %v6398
        %v6400 = vlaneseq
        %v6401 = vshrl.u32 %v6400, 7
        %v6402 = vsub.s32 %v6399, %v6401
        %v6403 = vrot.slane %v6389, %v6402
        %v6404 = vcombine.low %v6348, %v6380
        %v6405 = vcombine.high %v6348, %v6380
        %v6406 = vcombine.low %v6355, %v6387
        %v6407 = vcombine.high %v6355, %v6387
        %v6408 = vcombine.low %v6364, %v6396
        %v6409 = vcombine.high %v6364, %v6396
        %v6410 = vcombine.low %v6371, %v6403
        %v6411 = vcombine.high %v6371, %v6403
        %6414 = vrot.lane.b32.xlu0 %v5997, 16
        %v6415 = vpop.permute.xlu0 %6414
        %6416 = vrot.lane.b32.xlu0 %v6133, 16
        %v6417 = vpop.permute.xlu0 %6416
        %6422 = vrot.lane.b32.xlu0 %v5998, 32
        %v6423 = vpop.permute.xlu0 %6422
        %6424 = vrot.lane.b32.xlu0 %v6134, 32
        %v6425 = vpop.permute.xlu0 %6424
        %6430 = vrot.lane.b32.xlu0 %v5999, 48
        %v6431 = vpop.permute.xlu0 %6430
        %6432 = vrot.lane.b32.xlu0 %v6135, 48
        %v6433 = vpop.permute.xlu0 %6432
        %6438 = vrot.lane.b32.xlu0 %v6000, 64
        %v6439 = vpop.permute.xlu0 %6438
        %6440 = vrot.lane.b32.xlu0 %v6136, 64
        %v6441 = vpop.permute.xlu0 %6440
        %6446 = vrot.lane.b32.xlu0 %v6001, 80
        %v6447 = vpop.permute.xlu0 %6446
        %6448 = vrot.lane.b32.xlu0 %v6137, 80
        %v6449 = vpop.permute.xlu0 %6448
        %6454 = vrot.lane.b32.xlu0 %v6002, 96
        %v6455 = vpop.permute.xlu0 %6454
        %6456 = vrot.lane.b32.xlu0 %v6138, 96
        %v6457 = vpop.permute.xlu0 %6456
        %6462 = vrot.lane.b32.xlu0 %v6003, 112
        %v6463 = vpop.permute.xlu0 %6462
        %6464 = vrot.lane.b32.xlu0 %v6139, 112
        %v6465 = vpop.permute.xlu0 %6464
        %6470 = vrot.lane.b32.xlu0 %v6269, 16
        %v6471 = vpop.permute.xlu0 %6470
        %6472 = vrot.lane.b32.xlu0 %v6405, 16
        %v6473 = vpop.permute.xlu0 %6472
        %6478 = vrot.lane.b32.xlu0 %v6270, 32
        %v6479 = vpop.permute.xlu0 %6478
        %6480 = vrot.lane.b32.xlu0 %v6406, 32
        %v6481 = vpop.permute.xlu0 %6480
        %6486 = vrot.lane.b32.xlu0 %v6271, 48
        %v6487 = vpop.permute.xlu0 %6486
        %6488 = vrot.lane.b32.xlu0 %v6407, 48
        %v6489 = vpop.permute.xlu0 %6488
        %6494 = vrot.lane.b32.xlu0 %v6272, 64
        %v6495 = vpop.permute.xlu0 %6494
        %6496 = vrot.lane.b32.xlu0 %v6408, 64
        %v6497 = vpop.permute.xlu0 %6496
        %6502 = vrot.lane.b32.xlu0 %v6273, 80
        %v6503 = vpop.permute.xlu0 %6502
        %6504 = vrot.lane.b32.xlu0 %v6409, 80
        %v6505 = vpop.permute.xlu0 %6504
        %6510 = vrot.lane.b32.xlu0 %v6274, 96
        %v6511 = vpop.permute.xlu0 %6510
        %6512 = vrot.lane.b32.xlu0 %v6410, 96
        %v6513 = vpop.permute.xlu0 %6512
        %6518 = vrot.lane.b32.xlu0 %v6275, 112
        %v6519 = vpop.permute.xlu0 %6518
        %6520 = vrot.lane.b32.xlu0 %v6411, 112
        %v6521 = vpop.permute.xlu0 %6520
        %v6524 = vsel %vm975, %v5996, %v6415
        %v6525 = vsel %vm975, %v6132, %v6417
        %v6526 = vsel %vm978, %v6524, %v6423
        %v6527 = vsel %vm978, %v6525, %v6425
        %v6528 = vsel %vm981, %v6526, %v6431
        %v6529 = vsel %vm981, %v6527, %v6433
        %v6530 = vsel %vm984, %v6528, %v6439
        %v6531 = vsel %vm984, %v6529, %v6441
        %v6532 = vsel %vm987, %v6530, %v6447
        %v6533 = vsel %vm987, %v6531, %v6449
        %v6534 = vsel %vm990, %v6532, %v6455
        %v6535 = vsel %vm990, %v6533, %v6457
        %v6536 = vsel %vm993, %v6534, %v6463
        %v6537 = vsel %vm993, %v6535, %v6465
        %v6538 = vsel %vm975, %v6268, %v6471
        %v6539 = vsel %vm975, %v6404, %v6473
        %v6540 = vsel %vm978, %v6538, %v6479
        %v6541 = vsel %vm978, %v6539, %v6481
        %v6542 = vsel %vm981, %v6540, %v6487
        %v6543 = vsel %vm981, %v6541, %v6489
        %v6544 = vsel %vm984, %v6542, %v6495
        %v6545 = vsel %vm984, %v6543, %v6497
        %v6546 = vsel %vm987, %v6544, %v6503
        %v6547 = vsel %vm987, %v6545, %v6505
        %v6548 = vsel %vm990, %v6546, %v6511
        %v6549 = vsel %vm990, %v6547, %v6513
        %v6550 = vsel %vm993, %v6548, %v6519
        %v6551 = vsel %vm993, %v6549, %v6521
        %6552 = vrot.lane.b32.xlu0 %v4978, 126
        %v6553 = vpop.permute.xlu0 %6552
        %6554 = vrot.lane.b32.xlu0 %v4980, 126
        %v6555 = vpop.permute.xlu0 %6554
        %6556 = vrot.lane.b32.xlu0 %v4983, 126
        %v6557 = vpop.permute.xlu0 %6556
        %6558 = vrot.lane.b32.xlu0 %v4985, 126
        %v6559 = vpop.permute.xlu0 %6558
        %6560 = vrot.lane.b32.xlu0 %v4988, 126
        %v6561 = vpop.permute.xlu0 %6560
        %6562 = vrot.lane.b32.xlu0 %v4990, 126
        %v6563 = vpop.permute.xlu0 %6562
        %6564 = vrot.lane.b32.xlu0 %v4993, 126
        %v6565 = vpop.permute.xlu0 %6564
        %6566 = vrot.lane.b32.xlu0 %v4995, 126
        %v6567 = vpop.permute.xlu0 %6566
        %6568 = vrot.lane.b32.xlu0 %v4998, 126
        %v6569 = vpop.permute.xlu0 %6568
        %6570 = vrot.lane.b32.xlu0 %v5000, 126
        %v6571 = vpop.permute.xlu0 %6570
        %6572 = vrot.lane.b32.xlu0 %v5003, 126
        %v6573 = vpop.permute.xlu0 %6572
        %6574 = vrot.lane.b32.xlu0 %v5005, 126
        %v6575 = vpop.permute.xlu0 %6574
        %6576 = vrot.lane.b32.xlu0 %v5008, 126
        %v6577 = vpop.permute.xlu0 %6576
        %6578 = vrot.lane.b32.xlu0 %v5010, 126
        %v6579 = vpop.permute.xlu0 %6578
        %6580 = vrot.lane.b32.xlu0 %v5013, 126
        %v6581 = vpop.permute.xlu0 %6580
        %6582 = vrot.lane.b32.xlu0 %v5015, 126
        %v6583 = vpop.permute.xlu0 %6582
        %6584 = vrot.lane.b32.xlu0 %v5018, 126
        %v6585 = vpop.permute.xlu0 %6584
        %6586 = vrot.lane.b32.xlu0 %v5020, 126
        %v6587 = vpop.permute.xlu0 %6586
        %6588 = vrot.lane.b32.xlu0 %v5023, 126
        %v6589 = vpop.permute.xlu0 %6588
        %6590 = vrot.lane.b32.xlu0 %v5025, 126
        %v6591 = vpop.permute.xlu0 %6590
        %6592 = vrot.lane.b32.xlu0 %v5028, 126
        %v6593 = vpop.permute.xlu0 %6592
        %6594 = vrot.lane.b32.xlu0 %v5030, 126
        %v6595 = vpop.permute.xlu0 %6594
        %6596 = vrot.lane.b32.xlu0 %v5033, 126
        %v6597 = vpop.permute.xlu0 %6596
        %6598 = vrot.lane.b32.xlu0 %v5035, 126
        %v6599 = vpop.permute.xlu0 %6598
        %6600 = vrot.lane.b32.xlu0 %v5038, 126
        %v6601 = vpop.permute.xlu0 %6600
        %6602 = vrot.lane.b32.xlu0 %v5040, 126
        %v6603 = vpop.permute.xlu0 %6602
        %6604 = vrot.lane.b32.xlu0 %v5043, 126
        %v6605 = vpop.permute.xlu0 %6604
        %6606 = vrot.lane.b32.xlu0 %v5045, 126
        %v6607 = vpop.permute.xlu0 %6606
        %6608 = vrot.lane.b32.xlu0 %v5048, 126
        %v6609 = vpop.permute.xlu0 %6608
        %6610 = vrot.lane.b32.xlu0 %v5050, 126
        %v6611 = vpop.permute.xlu0 %6610
        %6612 = vrot.lane.b32.xlu0 %v5053, 126
        %v6613 = vpop.permute.xlu0 %6612
        %6614 = vrot.lane.b32.xlu0 %v5055, 126
        %v6615 = vpop.permute.xlu0 %6614
        %v6648 = vcombine.low %v6553, %v6561
        %v6649 = vcombine.high %v6553, %v6561
        %v6651 = vunpack.c.l.s4 1983009808
        %v6652 = vunpack.c.0.s8 %v6651
        %v6653 = vlaneseq
        %v6654 = vshrl.u32 %v6653, 7
        %v6655 = vsub.s32 %v6652, %v6654
        %v6656 = vrot.slane %v6648, %v6655
        %v6658 = vunpack.c.l.s4 1983009808
        %v6659 = vunpack.c.0.s8 %v6658
        %v6660 = vlaneseq
        %v6661 = vshrl.u32 %v6660, 7
        %v6662 = vsub.s32 %v6659, %v6661
        %v6663 = vrot.slane %v6649, %v6662
        %v6664 = vcombine.low %v6557, %v6565
        %v6665 = vcombine.high %v6557, %v6565
        %v6667 = vunpack.c.l.s4 1983009808
        %v6668 = vunpack.c.0.s8 %v6667
        %v6669 = vlaneseq
        %v6670 = vshrl.u32 %v6669, 7
        %v6671 = vsub.s32 %v6668, %v6670
        %v6672 = vrot.slane %v6664, %v6671
        %v6674 = vunpack.c.l.s4 1983009808
        %v6675 = vunpack.c.0.s8 %v6674
        %v6676 = vlaneseq
        %v6677 = vshrl.u32 %v6676, 7
        %v6678 = vsub.s32 %v6675, %v6677
        %v6679 = vrot.slane %v6665, %v6678
        %v6680 = vcombine.low %v6569, %v6577
        %v6681 = vcombine.high %v6569, %v6577
        %v6683 = vunpack.c.l.s4 1983009808
        %v6684 = vunpack.c.0.s8 %v6683
        %v6685 = vlaneseq
        %v6686 = vshrl.u32 %v6685, 7
        %v6687 = vsub.s32 %v6684, %v6686
        %v6688 = vrot.slane %v6680, %v6687
        %v6690 = vunpack.c.l.s4 1983009808
        %v6691 = vunpack.c.0.s8 %v6690
        %v6692 = vlaneseq
        %v6693 = vshrl.u32 %v6692, 7
        %v6694 = vsub.s32 %v6691, %v6693
        %v6695 = vrot.slane %v6681, %v6694
        %v6696 = vcombine.low %v6573, %v6581
        %v6697 = vcombine.high %v6573, %v6581
        %v6699 = vunpack.c.l.s4 1983009808
        %v6700 = vunpack.c.0.s8 %v6699
        %v6701 = vlaneseq
        %v6702 = vshrl.u32 %v6701, 7
        %v6703 = vsub.s32 %v6700, %v6702
        %v6704 = vrot.slane %v6696, %v6703
        %v6706 = vunpack.c.l.s4 1983009808
        %v6707 = vunpack.c.0.s8 %v6706
        %v6708 = vlaneseq
        %v6709 = vshrl.u32 %v6708, 7
        %v6710 = vsub.s32 %v6707, %v6709
        %v6711 = vrot.slane %v6697, %v6710
        %v6712 = vcombine.low %v6656, %v6672
        %v6713 = vcombine.high %v6656, %v6672
        %v6715 = vunpack.c.l.s4 1934713408
        %v6716 = vunpack.c.0.s8 %v6715
        %v6717 = vlaneseq
        %v6718 = vshrl.u32 %v6717, 7
        %v6719 = vsub.s32 %v6716, %v6718
        %v6720 = vrot.slane %v6712, %v6719
        %v6722 = vunpack.c.l.s4 1934713408
        %v6723 = vunpack.c.0.s8 %v6722
        %v6724 = vlaneseq
        %v6725 = vshrl.u32 %v6724, 7
        %v6726 = vsub.s32 %v6723, %v6725
        %v6727 = vrot.slane %v6713, %v6726
        %v6728 = vcombine.low %v6663, %v6679
        %v6729 = vcombine.high %v6663, %v6679
        %v6731 = vunpack.c.l.s4 1934713408
        %v6732 = vunpack.c.0.s8 %v6731
        %v6733 = vlaneseq
        %v6734 = vshrl.u32 %v6733, 7
        %v6735 = vsub.s32 %v6732, %v6734
        %v6736 = vrot.slane %v6728, %v6735
        %v6738 = vunpack.c.l.s4 1934713408
        %v6739 = vunpack.c.0.s8 %v6738
        %v6740 = vlaneseq
        %v6741 = vshrl.u32 %v6740, 7
        %v6742 = vsub.s32 %v6739, %v6741
        %v6743 = vrot.slane %v6729, %v6742
        %v6744 = vcombine.low %v6688, %v6704
        %v6745 = vcombine.high %v6688, %v6704
        %v6747 = vunpack.c.l.s4 1934713408
        %v6748 = vunpack.c.0.s8 %v6747
        %v6749 = vlaneseq
        %v6750 = vshrl.u32 %v6749, 7
        %v6751 = vsub.s32 %v6748, %v6750
        %v6752 = vrot.slane %v6744, %v6751
        %v6754 = vunpack.c.l.s4 1934713408
        %v6755 = vunpack.c.0.s8 %v6754
        %v6756 = vlaneseq
        %v6757 = vshrl.u32 %v6756, 7
        %v6758 = vsub.s32 %v6755, %v6757
        %v6759 = vrot.slane %v6745, %v6758
        %v6760 = vcombine.low %v6695, %v6711
        %v6761 = vcombine.high %v6695, %v6711
        %v6763 = vunpack.c.l.s4 1934713408
        %v6764 = vunpack.c.0.s8 %v6763
        %v6765 = vlaneseq
        %v6766 = vshrl.u32 %v6765, 7
        %v6767 = vsub.s32 %v6764, %v6766
        %v6768 = vrot.slane %v6760, %v6767
        %v6770 = vunpack.c.l.s4 1934713408
        %v6771 = vunpack.c.0.s8 %v6770
        %v6772 = vlaneseq
        %v6773 = vshrl.u32 %v6772, 7
        %v6774 = vsub.s32 %v6771, %v6773
        %v6775 = vrot.slane %v6761, %v6774
        %v6776 = vcombine.low %v6720, %v6752
        %v6777 = vcombine.high %v6720, %v6752
        %v6778 = vcombine.low %v6727, %v6759
        %v6779 = vcombine.high %v6727, %v6759
        %v6780 = vcombine.low %v6736, %v6768
        %v6781 = vcombine.high %v6736, %v6768
        %v6782 = vcombine.low %v6743, %v6775
        %v6783 = vcombine.high %v6743, %v6775
        %v6784 = vcombine.low %v6585, %v6593
        %v6785 = vcombine.high %v6585, %v6593
        %v6787 = vunpack.c.l.s4 1983009808
        %v6788 = vunpack.c.0.s8 %v6787
        %v6789 = vlaneseq
        %v6790 = vshrl.u32 %v6789, 7
        %v6791 = vsub.s32 %v6788, %v6790
        %v6792 = vrot.slane %v6784, %v6791
        %v6794 = vunpack.c.l.s4 1983009808
        %v6795 = vunpack.c.0.s8 %v6794
        %v6796 = vlaneseq
        %v6797 = vshrl.u32 %v6796, 7
        %v6798 = vsub.s32 %v6795, %v6797
        %v6799 = vrot.slane %v6785, %v6798
        %v6800 = vcombine.low %v6589, %v6597
        %v6801 = vcombine.high %v6589, %v6597
        %v6803 = vunpack.c.l.s4 1983009808
        %v6804 = vunpack.c.0.s8 %v6803
        %v6805 = vlaneseq
        %v6806 = vshrl.u32 %v6805, 7
        %v6807 = vsub.s32 %v6804, %v6806
        %v6808 = vrot.slane %v6800, %v6807
        %v6810 = vunpack.c.l.s4 1983009808
        %v6811 = vunpack.c.0.s8 %v6810
        %v6812 = vlaneseq
        %v6813 = vshrl.u32 %v6812, 7
        %v6814 = vsub.s32 %v6811, %v6813
        %v6815 = vrot.slane %v6801, %v6814
        %v6816 = vcombine.low %v6601, %v6609
        %v6817 = vcombine.high %v6601, %v6609
        %v6819 = vunpack.c.l.s4 1983009808
        %v6820 = vunpack.c.0.s8 %v6819
        %v6821 = vlaneseq
        %v6822 = vshrl.u32 %v6821, 7
        %v6823 = vsub.s32 %v6820, %v6822
        %v6824 = vrot.slane %v6816, %v6823
        %v6826 = vunpack.c.l.s4 1983009808
        %v6827 = vunpack.c.0.s8 %v6826
        %v6828 = vlaneseq
        %v6829 = vshrl.u32 %v6828, 7
        %v6830 = vsub.s32 %v6827, %v6829
        %v6831 = vrot.slane %v6817, %v6830
        %v6832 = vcombine.low %v6605, %v6613
        %v6833 = vcombine.high %v6605, %v6613
        %v6835 = vunpack.c.l.s4 1983009808
        %v6836 = vunpack.c.0.s8 %v6835
        %v6837 = vlaneseq
        %v6838 = vshrl.u32 %v6837, 7
        %v6839 = vsub.s32 %v6836, %v6838
        %v6840 = vrot.slane %v6832, %v6839
        %v6842 = vunpack.c.l.s4 1983009808
        %v6843 = vunpack.c.0.s8 %v6842
        %v6844 = vlaneseq
        %v6845 = vshrl.u32 %v6844, 7
        %v6846 = vsub.s32 %v6843, %v6845
        %v6847 = vrot.slane %v6833, %v6846
        %v6848 = vcombine.low %v6792, %v6808
        %v6849 = vcombine.high %v6792, %v6808
        %v6851 = vunpack.c.l.s4 1934713408
        %v6852 = vunpack.c.0.s8 %v6851
        %v6853 = vlaneseq
        %v6854 = vshrl.u32 %v6853, 7
        %v6855 = vsub.s32 %v6852, %v6854
        %v6856 = vrot.slane %v6848, %v6855
        %v6858 = vunpack.c.l.s4 1934713408
        %v6859 = vunpack.c.0.s8 %v6858
        %v6860 = vlaneseq
        %v6861 = vshrl.u32 %v6860, 7
        %v6862 = vsub.s32 %v6859, %v6861
        %v6863 = vrot.slane %v6849, %v6862
        %v6864 = vcombine.low %v6799, %v6815
        %v6865 = vcombine.high %v6799, %v6815
        %v6867 = vunpack.c.l.s4 1934713408
        %v6868 = vunpack.c.0.s8 %v6867
        %v6869 = vlaneseq
        %v6870 = vshrl.u32 %v6869, 7
        %v6871 = vsub.s32 %v6868, %v6870
        %v6872 = vrot.slane %v6864, %v6871
        %v6874 = vunpack.c.l.s4 1934713408
        %v6875 = vunpack.c.0.s8 %v6874
        %v6876 = vlaneseq
        %v6877 = vshrl.u32 %v6876, 7
        %v6878 = vsub.s32 %v6875, %v6877
        %v6879 = vrot.slane %v6865, %v6878
        %v6880 = vcombine.low %v6824, %v6840
        %v6881 = vcombine.high %v6824, %v6840
        %v6883 = vunpack.c.l.s4 1934713408
        %v6884 = vunpack.c.0.s8 %v6883
        %v6885 = vlaneseq
        %v6886 = vshrl.u32 %v6885, 7
        %v6887 = vsub.s32 %v6884, %v6886
        %v6888 = vrot.slane %v6880, %v6887
        %v6890 = vunpack.c.l.s4 1934713408
        %v6891 = vunpack.c.0.s8 %v6890
        %v6892 = vlaneseq
        %v6893 = vshrl.u32 %v6892, 7
        %v6894 = vsub.s32 %v6891, %v6893
        %v6895 = vrot.slane %v6881, %v6894
        %v6896 = vcombine.low %v6831, %v6847
        %v6897 = vcombine.high %v6831, %v6847
        %v6899 = vunpack.c.l.s4 1934713408
        %v6900 = vunpack.c.0.s8 %v6899
        %v6901 = vlaneseq
        %v6902 = vshrl.u32 %v6901, 7
        %v6903 = vsub.s32 %v6900, %v6902
        %v6904 = vrot.slane %v6896, %v6903
        %v6906 = vunpack.c.l.s4 1934713408
        %v6907 = vunpack.c.0.s8 %v6906
        %v6908 = vlaneseq
        %v6909 = vshrl.u32 %v6908, 7
        %v6910 = vsub.s32 %v6907, %v6909
        %v6911 = vrot.slane %v6897, %v6910
        %v6912 = vcombine.low %v6856, %v6888
        %v6913 = vcombine.high %v6856, %v6888
        %v6914 = vcombine.low %v6863, %v6895
        %v6915 = vcombine.high %v6863, %v6895
        %v6916 = vcombine.low %v6872, %v6904
        %v6917 = vcombine.high %v6872, %v6904
        %v6918 = vcombine.low %v6879, %v6911
        %v6919 = vcombine.high %v6879, %v6911
        %v6920 = vcombine.low %v6555, %v6563
        %v6921 = vcombine.high %v6555, %v6563
        %v6923 = vunpack.c.l.s4 1983009808
        %v6924 = vunpack.c.0.s8 %v6923
        %v6925 = vlaneseq
        %v6926 = vshrl.u32 %v6925, 7
        %v6927 = vsub.s32 %v6924, %v6926
        %v6928 = vrot.slane %v6920, %v6927
        %v6930 = vunpack.c.l.s4 1983009808
        %v6931 = vunpack.c.0.s8 %v6930
        %v6932 = vlaneseq
        %v6933 = vshrl.u32 %v6932, 7
        %v6934 = vsub.s32 %v6931, %v6933
        %v6935 = vrot.slane %v6921, %v6934
        %v6936 = vcombine.low %v6559, %v6567
        %v6937 = vcombine.high %v6559, %v6567
        %v6939 = vunpack.c.l.s4 1983009808
        %v6940 = vunpack.c.0.s8 %v6939
        %v6941 = vlaneseq
        %v6942 = vshrl.u32 %v6941, 7
        %v6943 = vsub.s32 %v6940, %v6942
        %v6944 = vrot.slane %v6936, %v6943
        %v6946 = vunpack.c.l.s4 1983009808
        %v6947 = vunpack.c.0.s8 %v6946
        %v6948 = vlaneseq
        %v6949 = vshrl.u32 %v6948, 7
        %v6950 = vsub.s32 %v6947, %v6949
        %v6951 = vrot.slane %v6937, %v6950
        %v6952 = vcombine.low %v6571, %v6579
        %v6953 = vcombine.high %v6571, %v6579
        %v6955 = vunpack.c.l.s4 1983009808
        %v6956 = vunpack.c.0.s8 %v6955
        %v6957 = vlaneseq
        %v6958 = vshrl.u32 %v6957, 7
        %v6959 = vsub.s32 %v6956, %v6958
        %v6960 = vrot.slane %v6952, %v6959
        %v6962 = vunpack.c.l.s4 1983009808
        %v6963 = vunpack.c.0.s8 %v6962
        %v6964 = vlaneseq
        %v6965 = vshrl.u32 %v6964, 7
        %v6966 = vsub.s32 %v6963, %v6965
        %v6967 = vrot.slane %v6953, %v6966
        %v6968 = vcombine.low %v6575, %v6583
        %v6969 = vcombine.high %v6575, %v6583
        %v6971 = vunpack.c.l.s4 1983009808
        %v6972 = vunpack.c.0.s8 %v6971
        %v6973 = vlaneseq
        %v6974 = vshrl.u32 %v6973, 7
        %v6975 = vsub.s32 %v6972, %v6974
        %v6976 = vrot.slane %v6968, %v6975
        %v6978 = vunpack.c.l.s4 1983009808
        %v6979 = vunpack.c.0.s8 %v6978
        %v6980 = vlaneseq
        %v6981 = vshrl.u32 %v6980, 7
        %v6982 = vsub.s32 %v6979, %v6981
        %v6983 = vrot.slane %v6969, %v6982
        %v6984 = vcombine.low %v6928, %v6944
        %v6985 = vcombine.high %v6928, %v6944
        %v6987 = vunpack.c.l.s4 1934713408
        %v6988 = vunpack.c.0.s8 %v6987
        %v6989 = vlaneseq
        %v6990 = vshrl.u32 %v6989, 7
        %v6991 = vsub.s32 %v6988, %v6990
        %v6992 = vrot.slane %v6984, %v6991
        %v6994 = vunpack.c.l.s4 1934713408
        %v6995 = vunpack.c.0.s8 %v6994
        %v6996 = vlaneseq
        %v6997 = vshrl.u32 %v6996, 7
        %v6998 = vsub.s32 %v6995, %v6997
        %v6999 = vrot.slane %v6985, %v6998
        %v7000 = vcombine.low %v6935, %v6951
        %v7001 = vcombine.high %v6935, %v6951
        %v7003 = vunpack.c.l.s4 1934713408
        %v7004 = vunpack.c.0.s8 %v7003
        %v7005 = vlaneseq
        %v7006 = vshrl.u32 %v7005, 7
        %v7007 = vsub.s32 %v7004, %v7006
        %v7008 = vrot.slane %v7000, %v7007
        %v7010 = vunpack.c.l.s4 1934713408
        %v7011 = vunpack.c.0.s8 %v7010
        %v7012 = vlaneseq
        %v7013 = vshrl.u32 %v7012, 7
        %v7014 = vsub.s32 %v7011, %v7013
        %v7015 = vrot.slane %v7001, %v7014
        %v7016 = vcombine.low %v6960, %v6976
        %v7017 = vcombine.high %v6960, %v6976
        %v7019 = vunpack.c.l.s4 1934713408
        %v7020 = vunpack.c.0.s8 %v7019
        %v7021 = vlaneseq
        %v7022 = vshrl.u32 %v7021, 7
        %v7023 = vsub.s32 %v7020, %v7022
        %v7024 = vrot.slane %v7016, %v7023
        %v7026 = vunpack.c.l.s4 1934713408
        %v7027 = vunpack.c.0.s8 %v7026
        %v7028 = vlaneseq
        %v7029 = vshrl.u32 %v7028, 7
        %v7030 = vsub.s32 %v7027, %v7029
        %v7031 = vrot.slane %v7017, %v7030
        %v7032 = vcombine.low %v6967, %v6983
        %v7033 = vcombine.high %v6967, %v6983
        %v7035 = vunpack.c.l.s4 1934713408
        %v7036 = vunpack.c.0.s8 %v7035
        %v7037 = vlaneseq
        %v7038 = vshrl.u32 %v7037, 7
        %v7039 = vsub.s32 %v7036, %v7038
        %v7040 = vrot.slane %v7032, %v7039
        %v7042 = vunpack.c.l.s4 1934713408
        %v7043 = vunpack.c.0.s8 %v7042
        %v7044 = vlaneseq
        %v7045 = vshrl.u32 %v7044, 7
        %v7046 = vsub.s32 %v7043, %v7045
        %v7047 = vrot.slane %v7033, %v7046
        %v7048 = vcombine.low %v6992, %v7024
        %v7049 = vcombine.high %v6992, %v7024
        %v7050 = vcombine.low %v6999, %v7031
        %v7051 = vcombine.high %v6999, %v7031
        %v7052 = vcombine.low %v7008, %v7040
        %v7053 = vcombine.high %v7008, %v7040
        %v7054 = vcombine.low %v7015, %v7047
        %v7055 = vcombine.high %v7015, %v7047
        %v7056 = vcombine.low %v6587, %v6595
        %v7057 = vcombine.high %v6587, %v6595
        %v7059 = vunpack.c.l.s4 1983009808
        %v7060 = vunpack.c.0.s8 %v7059
        %v7061 = vlaneseq
        %v7062 = vshrl.u32 %v7061, 7
        %v7063 = vsub.s32 %v7060, %v7062
        %v7064 = vrot.slane %v7056, %v7063
        %v7066 = vunpack.c.l.s4 1983009808
        %v7067 = vunpack.c.0.s8 %v7066
        %v7068 = vlaneseq
        %v7069 = vshrl.u32 %v7068, 7
        %v7070 = vsub.s32 %v7067, %v7069
        %v7071 = vrot.slane %v7057, %v7070
        %v7072 = vcombine.low %v6591, %v6599
        %v7073 = vcombine.high %v6591, %v6599
        %v7075 = vunpack.c.l.s4 1983009808
        %v7076 = vunpack.c.0.s8 %v7075
        %v7077 = vlaneseq
        %v7078 = vshrl.u32 %v7077, 7
        %v7079 = vsub.s32 %v7076, %v7078
        %v7080 = vrot.slane %v7072, %v7079
        %v7082 = vunpack.c.l.s4 1983009808
        %v7083 = vunpack.c.0.s8 %v7082
        %v7084 = vlaneseq
        %v7085 = vshrl.u32 %v7084, 7
        %v7086 = vsub.s32 %v7083, %v7085
        %v7087 = vrot.slane %v7073, %v7086
        %v7088 = vcombine.low %v6603, %v6611
        %v7089 = vcombine.high %v6603, %v6611
        %v7091 = vunpack.c.l.s4 1983009808
        %v7092 = vunpack.c.0.s8 %v7091
        %v7093 = vlaneseq
        %v7094 = vshrl.u32 %v7093, 7
        %v7095 = vsub.s32 %v7092, %v7094
        %v7096 = vrot.slane %v7088, %v7095
        %v7098 = vunpack.c.l.s4 1983009808
        %v7099 = vunpack.c.0.s8 %v7098
        %v7100 = vlaneseq
        %v7101 = vshrl.u32 %v7100, 7
        %v7102 = vsub.s32 %v7099, %v7101
        %v7103 = vrot.slane %v7089, %v7102
        %v7104 = vcombine.low %v6607, %v6615
        %v7105 = vcombine.high %v6607, %v6615
        %v7107 = vunpack.c.l.s4 1983009808
        %v7108 = vunpack.c.0.s8 %v7107
        %v7109 = vlaneseq
        %v7110 = vshrl.u32 %v7109, 7
        %v7111 = vsub.s32 %v7108, %v7110
        %v7112 = vrot.slane %v7104, %v7111
        %v7114 = vunpack.c.l.s4 1983009808
        %v7115 = vunpack.c.0.s8 %v7114
        %v7116 = vlaneseq
        %v7117 = vshrl.u32 %v7116, 7
        %v7118 = vsub.s32 %v7115, %v7117
        %v7119 = vrot.slane %v7105, %v7118
        %v7120 = vcombine.low %v7064, %v7080
        %v7121 = vcombine.high %v7064, %v7080
        %v7123 = vunpack.c.l.s4 1934713408
        %v7124 = vunpack.c.0.s8 %v7123
        %v7125 = vlaneseq
        %v7126 = vshrl.u32 %v7125, 7
        %v7127 = vsub.s32 %v7124, %v7126
        %v7128 = vrot.slane %v7120, %v7127
        %v7130 = vunpack.c.l.s4 1934713408
        %v7131 = vunpack.c.0.s8 %v7130
        %v7132 = vlaneseq
        %v7133 = vshrl.u32 %v7132, 7
        %v7134 = vsub.s32 %v7131, %v7133
        %v7135 = vrot.slane %v7121, %v7134
        %v7136 = vcombine.low %v7071, %v7087
        %v7137 = vcombine.high %v7071, %v7087
        %v7139 = vunpack.c.l.s4 1934713408
        %v7140 = vunpack.c.0.s8 %v7139
        %v7141 = vlaneseq
        %v7142 = vshrl.u32 %v7141, 7
        %v7143 = vsub.s32 %v7140, %v7142
        %v7144 = vrot.slane %v7136, %v7143
        %v7146 = vunpack.c.l.s4 1934713408
        %v7147 = vunpack.c.0.s8 %v7146
        %v7148 = vlaneseq
        %v7149 = vshrl.u32 %v7148, 7
        %v7150 = vsub.s32 %v7147, %v7149
        %v7151 = vrot.slane %v7137, %v7150
        %v7152 = vcombine.low %v7096, %v7112
        %v7153 = vcombine.high %v7096, %v7112
        %v7155 = vunpack.c.l.s4 1934713408
        %v7156 = vunpack.c.0.s8 %v7155
        %v7157 = vlaneseq
        %v7158 = vshrl.u32 %v7157, 7
        %v7159 = vsub.s32 %v7156, %v7158
        %v7160 = vrot.slane %v7152, %v7159
        %v7162 = vunpack.c.l.s4 1934713408
        %v7163 = vunpack.c.0.s8 %v7162
        %v7164 = vlaneseq
        %v7165 = vshrl.u32 %v7164, 7
        %v7166 = vsub.s32 %v7163, %v7165
        %v7167 = vrot.slane %v7153, %v7166
        %v7168 = vcombine.low %v7103, %v7119
        %v7169 = vcombine.high %v7103, %v7119
        %v7171 = vunpack.c.l.s4 1934713408
        %v7172 = vunpack.c.0.s8 %v7171
        %v7173 = vlaneseq
        %v7174 = vshrl.u32 %v7173, 7
        %v7175 = vsub.s32 %v7172, %v7174
        %v7176 = vrot.slane %v7168, %v7175
        %v7178 = vunpack.c.l.s4 1934713408
        %v7179 = vunpack.c.0.s8 %v7178
        %v7180 = vlaneseq
        %v7181 = vshrl.u32 %v7180, 7
        %v7182 = vsub.s32 %v7179, %v7181
        %v7183 = vrot.slane %v7169, %v7182
        %v7184 = vcombine.low %v7128, %v7160
        %v7185 = vcombine.high %v7128, %v7160
        %v7186 = vcombine.low %v7135, %v7167
        %v7187 = vcombine.high %v7135, %v7167
        %v7188 = vcombine.low %v7144, %v7176
        %v7189 = vcombine.high %v7144, %v7176
        %v7190 = vcombine.low %v7151, %v7183
        %v7191 = vcombine.high %v7151, %v7183
        %7194 = vrot.lane.b32.xlu0 %v6777, 16
        %v7195 = vpop.permute.xlu0 %7194
        %7196 = vrot.lane.b32.xlu0 %v6913, 16
        %v7197 = vpop.permute.xlu0 %7196
        %7202 = vrot.lane.b32.xlu0 %v6778, 32
        %v7203 = vpop.permute.xlu0 %7202
        %7204 = vrot.lane.b32.xlu0 %v6914, 32
        %v7205 = vpop.permute.xlu0 %7204
        %7210 = vrot.lane.b32.xlu0 %v6779, 48
        %v7211 = vpop.permute.xlu0 %7210
        %7212 = vrot.lane.b32.xlu0 %v6915, 48
        %v7213 = vpop.permute.xlu0 %7212
        %7218 = vrot.lane.b32.xlu0 %v6780, 64
        %v7219 = vpop.permute.xlu0 %7218
        %7220 = vrot.lane.b32.xlu0 %v6916, 64
        %v7221 = vpop.permute.xlu0 %7220
        %7226 = vrot.lane.b32.xlu0 %v6781, 80
        %v7227 = vpop.permute.xlu0 %7226
        %7228 = vrot.lane.b32.xlu0 %v6917, 80
        %v7229 = vpop.permute.xlu0 %7228
        %7234 = vrot.lane.b32.xlu0 %v6782, 96
        %v7235 = vpop.permute.xlu0 %7234
        %7236 = vrot.lane.b32.xlu0 %v6918, 96
        %v7237 = vpop.permute.xlu0 %7236
        %7242 = vrot.lane.b32.xlu0 %v6783, 112
        %v7243 = vpop.permute.xlu0 %7242
        %7244 = vrot.lane.b32.xlu0 %v6919, 112
        %v7245 = vpop.permute.xlu0 %7244
        %7250 = vrot.lane.b32.xlu0 %v7049, 16
        %v7251 = vpop.permute.xlu0 %7250
        %7252 = vrot.lane.b32.xlu0 %v7185, 16
        %v7253 = vpop.permute.xlu0 %7252
        %7258 = vrot.lane.b32.xlu0 %v7050, 32
        %v7259 = vpop.permute.xlu0 %7258
        %7260 = vrot.lane.b32.xlu0 %v7186, 32
        %v7261 = vpop.permute.xlu0 %7260
        %7266 = vrot.lane.b32.xlu0 %v7051, 48
        %v7267 = vpop.permute.xlu0 %7266
        %7268 = vrot.lane.b32.xlu0 %v7187, 48
        %v7269 = vpop.permute.xlu0 %7268
        %7274 = vrot.lane.b32.xlu0 %v7052, 64
        %v7275 = vpop.permute.xlu0 %7274
        %7276 = vrot.lane.b32.xlu0 %v7188, 64
        %v7277 = vpop.permute.xlu0 %7276
        %7282 = vrot.lane.b32.xlu0 %v7053, 80
        %v7283 = vpop.permute.xlu0 %7282
        %7284 = vrot.lane.b32.xlu0 %v7189, 80
        %v7285 = vpop.permute.xlu0 %7284
        %7290 = vrot.lane.b32.xlu0 %v7054, 96
        %v7291 = vpop.permute.xlu0 %7290
        %7292 = vrot.lane.b32.xlu0 %v7190, 96
        %v7293 = vpop.permute.xlu0 %7292
        %7298 = vrot.lane.b32.xlu0 %v7055, 112
        %v7299 = vpop.permute.xlu0 %7298
        %7300 = vrot.lane.b32.xlu0 %v7191, 112
        %v7301 = vpop.permute.xlu0 %7300
        %v7304 = vsel %vm975, %v6776, %v7195
        %v7305 = vsel %vm975, %v6912, %v7197
        %v7306 = vsel %vm978, %v7304, %v7203
        %v7307 = vsel %vm978, %v7305, %v7205
        %v7308 = vsel %vm981, %v7306, %v7211
        %v7309 = vsel %vm981, %v7307, %v7213
        %v7310 = vsel %vm984, %v7308, %v7219
        %v7311 = vsel %vm984, %v7309, %v7221
        %v7312 = vsel %vm987, %v7310, %v7227
        %v7313 = vsel %vm987, %v7311, %v7229
        %v7314 = vsel %vm990, %v7312, %v7235
        %v7315 = vsel %vm990, %v7313, %v7237
        %v7316 = vsel %vm993, %v7314, %v7243
        %v7317 = vsel %vm993, %v7315, %v7245
        %v7318 = vsel %vm975, %v7048, %v7251
        %v7319 = vsel %vm975, %v7184, %v7253
        %v7320 = vsel %vm978, %v7318, %v7259
        %v7321 = vsel %vm978, %v7319, %v7261
        %v7322 = vsel %vm981, %v7320, %v7267
        %v7323 = vsel %vm981, %v7321, %v7269
        %v7324 = vsel %vm984, %v7322, %v7275
        %v7325 = vsel %vm984, %v7323, %v7277
        %v7326 = vsel %vm987, %v7324, %v7283
        %v7327 = vsel %vm987, %v7325, %v7285
        %v7328 = vsel %vm990, %v7326, %v7291
        %v7329 = vsel %vm990, %v7327, %v7293
        %v7330 = vsel %vm993, %v7328, %v7299
        %v7331 = vsel %vm993, %v7329, %v7301
        %v7332 = vpack.c.bf16 %v995, %v994
        %v7333 = vpack.c.bf16 %v1009, %v1008
        %v7334 = vpack.c.bf16 %v1807, %v1806
        %v7335 = vpack.c.bf16 %v1821, %v1820
        %v7336 = vpack.c.bf16 %v2587, %v2586
        %v7337 = vpack.c.bf16 %v2601, %v2600
        %v7338 = vpack.c.bf16 %v3400, %v3399
        %v7339 = vpack.c.bf16 %v3414, %v3413
        %v7340 = vpack.c.bf16 %v4180, %v4179
        %v7341 = vpack.c.bf16 %v4194, %v4193
        %v7342 = vpack.c.bf16 %v4960, %v4959
        %v7343 = vpack.c.bf16 %v4974, %v4973
        %v7344 = vpack.c.bf16 %v5757, %v5756
        %v7345 = vpack.c.bf16 %v5771, %v5770
        %v7346 = vpack.c.bf16 %v6537, %v6536
        %v7347 = vpack.c.bf16 %v6551, %v6550
        %v7348 = vpack.c.bf16 %v7317, %v7316
        %v7349 = vpack.c.bf16 %v7331, %v7330
        %v7350 = vld [vmem:[%s1] sm:$0xff]
        %v7352 = vunpack.c.l.b16 %v7350
        %v7353 = vunpack.c.h.b16 %v7350
        %v7354 = vpack.c.b16 %v7352, %v7352
        %v7355 = vpack.c.b16 %v7353, %v7353
        %v7358 = vsel %vm975, %v7355, 0
        %7360 = vmatprep.subr.bf16.mxu0 %v7347
        %7361 = vmatpush1.bf16.msra.mxu0 %v7346
        %7362 = vmatprep.subr.bf16.mxu0 %v7345
        %7363 = vmatpush1.bf16.msra.mxu0 %v7344
        %7364 = vmatprep.subr.bf16.mxu0 %v7343
        %7365 = vmatpush1.bf16.msra.mxu0 %v7342
        %7366 = vmatprep.subr.bf16.mxu0 %v7341
        %7367 = vmatpush1.bf16.msra.mxu0 %v7340
        %7368 = vmatprep.subr.bf16.mxu0 %v7339
        %7369 = vmatpush1.bf16.msra.mxu0 %v7338
        %7370 = vmatprep.subr.bf16.mxu0 %v7337
        %7371 = vmatpush1.bf16.msra.mxu0 %v7336
        %7372 = vmatprep.subr.bf16.mxu0 %v7335
        %7373 = vmatpush1.bf16.msra.mxu0 %v7334
        %7374 = vmatprep.subr.bf16.mxu0 %v7333
        %7375 = vmatpush1.bf16.msra.mxu0 %v7332
        %7376 = vmatprep.subr.bf16.mxu0 0
        %7377 = vmatpush2.bf16.msra.mxu0 0
        %7378 = vmatprep.subr.bf16.mxu0 0
        %7379 = vmatpush2.bf16.msra.mxu0 0
        %7380 = vmatprep.subr.bf16.mxu0 0
        %7381 = vmatpush2.bf16.msra.mxu0 0
        %7382 = vmatprep.subr.bf16.mxu0 0
        %7383 = vmatpush2.bf16.msra.mxu0 0
        %7384 = vmatprep.subr.bf16.mxu0 0
        %7385 = vmatpush2.bf16.msra.mxu0 0
        %7386 = vmatprep.subr.bf16.mxu0 0
        %7387 = vmatpush2.bf16.msra.mxu0 0
        %7388 = vmatprep.subr.bf16.mxu0 0
        %7389 = vmatpush2.bf16.msra.mxu0 0
        %7390 = vmatprep.subr.bf16.mxu0 %v7349
        %7391 = vmatpush2.bf16.msra.mxu0 %v7348
        %7392 = vmatprep.mubr.bf16.mxu0 %v7358
        %7393 = vmatmul.mubr.bf16.gmra.mxu0 %v7354
        %v7394 = vpop.f32.mrf.mxu0
        %v7395 = vadd.f32 0.0, %v7394
        %v7396 = vpop.f32.mrf.mxu0
        %v7397 = vadd.f32 0.0, %v7396
        %v7398 = vpop.f32.mrf.mxu0
        %v7399 = vpop.f32.mrf.mxu0
        %7400 = vdwg.mxu0
        %v7401 = vmax.f32 %v7395, 0.0
        %v7402 = vmax.f32 %v7397, 0.0
        %7404 = vrot.lane.b32.xlu0 %v7401, 112
        %v7405 = vpop.permute.xlu0 %7404
        %7407 = vrot.lane.b32.xlu0 %v7401, 96
        %v7408 = vpop.permute.xlu0 %7407
        %7410 = vrot.lane.b32.xlu0 %v7401, 80
        %v7411 = vpop.permute.xlu0 %7410
        %7413 = vrot.lane.b32.xlu0 %v7401, 64
        %v7414 = vpop.permute.xlu0 %7413
        %7416 = vrot.lane.b32.xlu0 %v7401, 48
        %v7417 = vpop.permute.xlu0 %7416
        %7419 = vrot.lane.b32.xlu0 %v7401, 32
        %v7420 = vpop.permute.xlu0 %7419
        %7422 = vrot.lane.b32.xlu0 %v7401, 16
        %v7423 = vpop.permute.xlu0 %7422
        %7426 = vrot.lane.b32.xlu0 %v7402, 112
        %v7427 = vpop.permute.xlu0 %7426
        %7429 = vrot.lane.b32.xlu0 %v7402, 96
        %v7430 = vpop.permute.xlu0 %7429
        %7432 = vrot.lane.b32.xlu0 %v7402, 80
        %v7433 = vpop.permute.xlu0 %7432
        %7435 = vrot.lane.b32.xlu0 %v7402, 64
        %v7436 = vpop.permute.xlu0 %7435
        %7438 = vrot.lane.b32.xlu0 %v7402, 48
        %v7439 = vpop.permute.xlu0 %7438
        %7441 = vrot.lane.b32.xlu0 %v7402, 32
        %v7442 = vpop.permute.xlu0 %7441
        %7444 = vrot.lane.b32.xlu0 %v7402, 16
        %v7445 = vpop.permute.xlu0 %7444
        %v7447 = vcombine.low %v7401, %v7408
        %v7448 = vcombine.high %v7401, %v7408
        %v7450 = vunpack.c.l.s4 1983009808
        %v7451 = vunpack.c.0.s8 %v7450
        %v7452 = vlaneseq
        %v7453 = vshrl.u32 %v7452, 7
        %v7454 = vsub.s32 %v7451, %v7453
        %v7455 = vrot.slane %v7447, %v7454
        %v7457 = vunpack.c.l.s4 1983009808
        %v7458 = vunpack.c.0.s8 %v7457
        %v7459 = vlaneseq
        %v7460 = vshrl.u32 %v7459, 7
        %v7461 = vsub.s32 %v7458, %v7460
        %v7462 = vrot.slane %v7448, %v7461
        %v7463 = vcombine.low %v7405, %v7411
        %v7464 = vcombine.high %v7405, %v7411
        %v7466 = vunpack.c.l.s4 1983009808
        %v7467 = vunpack.c.0.s8 %v7466
        %v7468 = vlaneseq
        %v7469 = vshrl.u32 %v7468, 7
        %v7470 = vsub.s32 %v7467, %v7469
        %v7471 = vrot.slane %v7463, %v7470
        %v7473 = vunpack.c.l.s4 1983009808
        %v7474 = vunpack.c.0.s8 %v7473
        %v7475 = vlaneseq
        %v7476 = vshrl.u32 %v7475, 7
        %v7477 = vsub.s32 %v7474, %v7476
        %v7478 = vrot.slane %v7464, %v7477
        %v7479 = vcombine.low %v7414, %v7420
        %v7480 = vcombine.high %v7414, %v7420
        %v7482 = vunpack.c.l.s4 1983009808
        %v7483 = vunpack.c.0.s8 %v7482
        %v7484 = vlaneseq
        %v7485 = vshrl.u32 %v7484, 7
        %v7486 = vsub.s32 %v7483, %v7485
        %v7487 = vrot.slane %v7479, %v7486
        %v7489 = vunpack.c.l.s4 1983009808
        %v7490 = vunpack.c.0.s8 %v7489
        %v7491 = vlaneseq
        %v7492 = vshrl.u32 %v7491, 7
        %v7493 = vsub.s32 %v7490, %v7492
        %v7494 = vrot.slane %v7480, %v7493
        %v7495 = vcombine.low %v7417, %v7423
        %v7496 = vcombine.high %v7417, %v7423
        %v7498 = vunpack.c.l.s4 1983009808
        %v7499 = vunpack.c.0.s8 %v7498
        %v7500 = vlaneseq
        %v7501 = vshrl.u32 %v7500, 7
        %v7502 = vsub.s32 %v7499, %v7501
        %v7503 = vrot.slane %v7495, %v7502
        %v7505 = vunpack.c.l.s4 1983009808
        %v7506 = vunpack.c.0.s8 %v7505
        %v7507 = vlaneseq
        %v7508 = vshrl.u32 %v7507, 7
        %v7509 = vsub.s32 %v7506, %v7508
        %v7510 = vrot.slane %v7496, %v7509
        %v7511 = vcombine.low %v7455, %v7471
        %v7512 = vcombine.high %v7455, %v7471
        %v7514 = vunpack.c.l.s4 1934713408
        %v7515 = vunpack.c.0.s8 %v7514
        %v7516 = vlaneseq
        %v7517 = vshrl.u32 %v7516, 7
        %v7518 = vsub.s32 %v7515, %v7517
        %v7519 = vrot.slane %v7511, %v7518
        %v7521 = vunpack.c.l.s4 1934713408
        %v7522 = vunpack.c.0.s8 %v7521
        %v7523 = vlaneseq
        %v7524 = vshrl.u32 %v7523, 7
        %v7525 = vsub.s32 %v7522, %v7524
        %v7526 = vrot.slane %v7512, %v7525
        %v7527 = vcombine.low %v7462, %v7478
        %v7528 = vcombine.high %v7462, %v7478
        %v7530 = vunpack.c.l.s4 1934713408
        %v7531 = vunpack.c.0.s8 %v7530
        %v7532 = vlaneseq
        %v7533 = vshrl.u32 %v7532, 7
        %v7534 = vsub.s32 %v7531, %v7533
        %v7535 = vrot.slane %v7527, %v7534
        %v7537 = vunpack.c.l.s4 1934713408
        %v7538 = vunpack.c.0.s8 %v7537
        %v7539 = vlaneseq
        %v7540 = vshrl.u32 %v7539, 7
        %v7541 = vsub.s32 %v7538, %v7540
        %v7542 = vrot.slane %v7528, %v7541
        %v7543 = vcombine.low %v7487, %v7503
        %v7544 = vcombine.high %v7487, %v7503
        %v7546 = vunpack.c.l.s4 1934713408
        %v7547 = vunpack.c.0.s8 %v7546
        %v7548 = vlaneseq
        %v7549 = vshrl.u32 %v7548, 7
        %v7550 = vsub.s32 %v7547, %v7549
        %v7551 = vrot.slane %v7543, %v7550
        %v7553 = vunpack.c.l.s4 1934713408
        %v7554 = vunpack.c.0.s8 %v7553
        %v7555 = vlaneseq
        %v7556 = vshrl.u32 %v7555, 7
        %v7557 = vsub.s32 %v7554, %v7556
        %v7558 = vrot.slane %v7544, %v7557
        %v7559 = vcombine.low %v7494, %v7510
        %v7560 = vcombine.high %v7494, %v7510
        %v7562 = vunpack.c.l.s4 1934713408
        %v7563 = vunpack.c.0.s8 %v7562
        %v7564 = vlaneseq
        %v7565 = vshrl.u32 %v7564, 7
        %v7566 = vsub.s32 %v7563, %v7565
        %v7567 = vrot.slane %v7559, %v7566
        %v7569 = vunpack.c.l.s4 1934713408
        %v7570 = vunpack.c.0.s8 %v7569
        %v7571 = vlaneseq
        %v7572 = vshrl.u32 %v7571, 7
        %v7573 = vsub.s32 %v7570, %v7572
        %v7574 = vrot.slane %v7560, %v7573
        %v7575 = vcombine.low %v7519, %v7551
        %v7576 = vcombine.high %v7519, %v7551
        %v7577 = vcombine.low %v7526, %v7558
        %v7578 = vcombine.high %v7526, %v7558
        %v7579 = vcombine.low %v7535, %v7567
        %v7580 = vcombine.high %v7535, %v7567
        %v7581 = vcombine.low %v7542, %v7574
        %v7582 = vcombine.high %v7542, %v7574
        %v7583 = vcombine.low %v7402, %v7430
        %v7584 = vcombine.high %v7402, %v7430
        %v7586 = vunpack.c.l.s4 1983009808
        %v7587 = vunpack.c.0.s8 %v7586
        %v7588 = vlaneseq
        %v7589 = vshrl.u32 %v7588, 7
        %v7590 = vsub.s32 %v7587, %v7589
        %v7591 = vrot.slane %v7583, %v7590
        %v7593 = vunpack.c.l.s4 1983009808
        %v7594 = vunpack.c.0.s8 %v7593
        %v7595 = vlaneseq
        %v7596 = vshrl.u32 %v7595, 7
        %v7597 = vsub.s32 %v7594, %v7596
        %v7598 = vrot.slane %v7584, %v7597
        %v7599 = vcombine.low %v7427, %v7433
        %v7600 = vcombine.high %v7427, %v7433
        %v7602 = vunpack.c.l.s4 1983009808
        %v7603 = vunpack.c.0.s8 %v7602
        %v7604 = vlaneseq
        %v7605 = vshrl.u32 %v7604, 7
        %v7606 = vsub.s32 %v7603, %v7605
        %v7607 = vrot.slane %v7599, %v7606
        %v7609 = vunpack.c.l.s4 1983009808
        %v7610 = vunpack.c.0.s8 %v7609
        %v7611 = vlaneseq
        %v7612 = vshrl.u32 %v7611, 7
        %v7613 = vsub.s32 %v7610, %v7612
        %v7614 = vrot.slane %v7600, %v7613
        %v7615 = vcombine.low %v7436, %v7442
        %v7616 = vcombine.high %v7436, %v7442
        %v7618 = vunpack.c.l.s4 1983009808
        %v7619 = vunpack.c.0.s8 %v7618
        %v7620 = vlaneseq
        %v7621 = vshrl.u32 %v7620, 7
        %v7622 = vsub.s32 %v7619, %v7621
        %v7623 = vrot.slane %v7615, %v7622
        %v7625 = vunpack.c.l.s4 1983009808
        %v7626 = vunpack.c.0.s8 %v7625
        %v7627 = vlaneseq
        %v7628 = vshrl.u32 %v7627, 7
        %v7629 = vsub.s32 %v7626, %v7628
        %v7630 = vrot.slane %v7616, %v7629
        %v7631 = vcombine.low %v7439, %v7445
        %v7632 = vcombine.high %v7439, %v7445
        %v7634 = vunpack.c.l.s4 1983009808
        %v7635 = vunpack.c.0.s8 %v7634
        %v7636 = vlaneseq
        %v7637 = vshrl.u32 %v7636, 7
        %v7638 = vsub.s32 %v7635, %v7637
        %v7639 = vrot.slane %v7631, %v7638
        %v7641 = vunpack.c.l.s4 1983009808
        %v7642 = vunpack.c.0.s8 %v7641
        %v7643 = vlaneseq
        %v7644 = vshrl.u32 %v7643, 7
        %v7645 = vsub.s32 %v7642, %v7644
        %v7646 = vrot.slane %v7632, %v7645
        %v7647 = vcombine.low %v7591, %v7607
        %v7648 = vcombine.high %v7591, %v7607
        %v7650 = vunpack.c.l.s4 1934713408
        %v7651 = vunpack.c.0.s8 %v7650
        %v7652 = vlaneseq
        %v7653 = vshrl.u32 %v7652, 7
        %v7654 = vsub.s32 %v7651, %v7653
        %v7655 = vrot.slane %v7647, %v7654
        %v7657 = vunpack.c.l.s4 1934713408
        %v7658 = vunpack.c.0.s8 %v7657
        %v7659 = vlaneseq
        %v7660 = vshrl.u32 %v7659, 7
        %v7661 = vsub.s32 %v7658, %v7660
        %v7662 = vrot.slane %v7648, %v7661
        %v7663 = vcombine.low %v7598, %v7614
        %v7664 = vcombine.high %v7598, %v7614
        %v7666 = vunpack.c.l.s4 1934713408
        %v7667 = vunpack.c.0.s8 %v7666
        %v7668 = vlaneseq
        %v7669 = vshrl.u32 %v7668, 7
        %v7670 = vsub.s32 %v7667, %v7669
        %v7671 = vrot.slane %v7663, %v7670
        %v7673 = vunpack.c.l.s4 1934713408
        %v7674 = vunpack.c.0.s8 %v7673
        %v7675 = vlaneseq
        %v7676 = vshrl.u32 %v7675, 7
        %v7677 = vsub.s32 %v7674, %v7676
        %v7678 = vrot.slane %v7664, %v7677
        %v7679 = vcombine.low %v7623, %v7639
        %v7680 = vcombine.high %v7623, %v7639
        %v7682 = vunpack.c.l.s4 1934713408
        %v7683 = vunpack.c.0.s8 %v7682
        %v7684 = vlaneseq
        %v7685 = vshrl.u32 %v7684, 7
        %v7686 = vsub.s32 %v7683, %v7685
        %v7687 = vrot.slane %v7679, %v7686
        %v7689 = vunpack.c.l.s4 1934713408
        %v7690 = vunpack.c.0.s8 %v7689
        %v7691 = vlaneseq
        %v7692 = vshrl.u32 %v7691, 7
        %v7693 = vsub.s32 %v7690, %v7692
        %v7694 = vrot.slane %v7680, %v7693
        %v7695 = vcombine.low %v7630, %v7646
        %v7696 = vcombine.high %v7630, %v7646
        %v7698 = vunpack.c.l.s4 1934713408
        %v7699 = vunpack.c.0.s8 %v7698
        %v7700 = vlaneseq
        %v7701 = vshrl.u32 %v7700, 7
        %v7702 = vsub.s32 %v7699, %v7701
        %v7703 = vrot.slane %v7695, %v7702
        %v7705 = vunpack.c.l.s4 1934713408
        %v7706 = vunpack.c.0.s8 %v7705
        %v7707 = vlaneseq
        %v7708 = vshrl.u32 %v7707, 7
        %v7709 = vsub.s32 %v7706, %v7708
        %v7710 = vrot.slane %v7696, %v7709
        %v7711 = vcombine.low %v7655, %v7687
        %v7712 = vcombine.high %v7655, %v7687
        %v7713 = vcombine.low %v7662, %v7694
        %v7714 = vcombine.high %v7662, %v7694
        %v7715 = vcombine.low %v7671, %v7703
        %v7716 = vcombine.high %v7671, %v7703
        %v7717 = vcombine.low %v7678, %v7710
        %v7718 = vcombine.high %v7678, %v7710
        %7735 = vrot.lane.b32.xlu0 %v7575, 1
        %v7736 = vpop.permute.xlu0 %7735
        %7737 = vrot.lane.b32.xlu0 %v7711, 1
        %v7738 = vpop.permute.xlu0 %7737
        %7739 = vrot.lane.b32.xlu0 %v7576, 1
        %v7740 = vpop.permute.xlu0 %7739
        %7741 = vrot.lane.b32.xlu0 %v7712, 1
        %v7742 = vpop.permute.xlu0 %7741
        %7743 = vrot.lane.b32.xlu0 %v7577, 1
        %v7744 = vpop.permute.xlu0 %7743
        %7745 = vrot.lane.b32.xlu0 %v7713, 1
        %v7746 = vpop.permute.xlu0 %7745
        %7747 = vrot.lane.b32.xlu0 %v7578, 1
        %v7748 = vpop.permute.xlu0 %7747
        %7749 = vrot.lane.b32.xlu0 %v7714, 1
        %v7750 = vpop.permute.xlu0 %7749
        %7751 = vrot.lane.b32.xlu0 %v7579, 1
        %v7752 = vpop.permute.xlu0 %7751
        %7753 = vrot.lane.b32.xlu0 %v7715, 1
        %v7754 = vpop.permute.xlu0 %7753
        %7755 = vrot.lane.b32.xlu0 %v7580, 1
        %v7756 = vpop.permute.xlu0 %7755
        %7757 = vrot.lane.b32.xlu0 %v7716, 1
        %v7758 = vpop.permute.xlu0 %7757
        %7759 = vrot.lane.b32.xlu0 %v7581, 1
        %v7760 = vpop.permute.xlu0 %7759
        %7761 = vrot.lane.b32.xlu0 %v7717, 1
        %v7762 = vpop.permute.xlu0 %7761
        %7763 = vrot.lane.b32.xlu0 %v7582, 1
        %v7764 = vpop.permute.xlu0 %7763
        %7765 = vrot.lane.b32.xlu0 %v7718, 1
        %v7766 = vpop.permute.xlu0 %7765
        %vm7783 = vcmask 7168
        %v7784 = vsel %vm7783, 0.0, %v7736
        %v7785 = vsel %vm7783, 0.0, %v7738
        %v7786 = vsel %vm7783, 0.0, %v7740
        %v7787 = vsel %vm7783, 0.0, %v7742
        %v7788 = vsel %vm7783, 0.0, %v7744
        %v7789 = vsel %vm7783, 0.0, %v7746
        %v7790 = vsel %vm7783, 0.0, %v7748
        %v7791 = vsel %vm7783, 0.0, %v7750
        %v7792 = vsel %vm7783, 0.0, %v7752
        %v7793 = vsel %vm7783, 0.0, %v7754
        %v7794 = vsel %vm7783, 0.0, %v7756
        %v7795 = vsel %vm7783, 0.0, %v7758
        %v7796 = vsel %vm7783, 0.0, %v7760
        %v7797 = vsel %vm7783, 0.0, %v7762
        %v7798 = vsel %vm7783, 0.0, %v7764
        %v7799 = vsel %vm7783, 0.0, %v7766
        %vm7800 = vcmask 138240
        %v7801 = vsel %vm7800, %v7784, 0.0
        %v7802 = vsel %vm7800, %v7785, 0.0
        %v7803 = vsel %vm7800, %v7786, 0.0
        %v7804 = vsel %vm7800, %v7787, 0.0
        %v7805 = vsel %vm7800, %v7788, 0.0
        %v7806 = vsel %vm7800, %v7789, 0.0
        %v7807 = vsel %vm7800, %v7790, 0.0
        %v7808 = vsel %vm7800, %v7791, 0.0
        %v7809 = vsel %vm7800, %v7792, 0.0
        %v7810 = vsel %vm7800, %v7793, 0.0
        %v7811 = vsel %vm7800, %v7794, 0.0
        %v7812 = vsel %vm7800, %v7795, 0.0
        %v7813 = vsel %vm7800, %v7796, 0.0
        %v7814 = vsel %vm7800, %v7797, 0.0
        %v7815 = vsel %vm7800, %v7798, 0.0
        %v7816 = vsel %vm7800, %v7799, 0.0
        %vm7833 = vcmask 1040384
        %v7834 = vrot.slane %v7801, 7
        %v7835 = vrot.slane %v7802, 7
        %v7836 = vsel %vm7833, %v7834, %v7835
        %v7837 = vrot.slane %v7803, 7
        %v7838 = vrot.slane %v7804, 7
        %v7839 = vsel %vm7833, %v7837, %v7838
        %v7840 = vrot.slane %v7805, 7
        %v7841 = vrot.slane %v7806, 7
        %v7842 = vsel %vm7833, %v7840, %v7841
        %v7843 = vrot.slane %v7807, 7
        %v7844 = vrot.slane %v7808, 7
        %v7845 = vsel %vm7833, %v7843, %v7844
        %v7846 = vrot.slane %v7809, 7
        %v7847 = vrot.slane %v7810, 7
        %v7848 = vsel %vm7833, %v7846, %v7847
        %v7849 = vrot.slane %v7811, 7
        %v7850 = vrot.slane %v7812, 7
        %v7851 = vsel %vm7833, %v7849, %v7850
        %v7852 = vrot.slane %v7813, 7
        %v7853 = vrot.slane %v7814, 7
        %v7854 = vsel %vm7833, %v7852, %v7853
        %v7855 = vrot.slane %v7815, 7
        %v7856 = vrot.slane %v7816, 7
        %v7857 = vsel %vm7833, %v7855, %v7856
        %v7882 = vsel %vm7833, 0.0, %v7834
        %v7883 = vsel %vm7833, 0.0, %v7837
        %v7884 = vsel %vm7833, 0.0, %v7840
        %v7885 = vsel %vm7833, 0.0, %v7843
        %v7886 = vsel %vm7833, 0.0, %v7846
        %v7887 = vsel %vm7833, 0.0, %v7849
        %v7888 = vsel %vm7833, 0.0, %v7852
        %v7889 = vsel %vm7833, 0.0, %v7855
        %v7890 = vsel %vm7833, %v7835, 0.0
        %v7891 = vsel %vm7833, %v7838, 0.0
        %v7892 = vsel %vm7833, %v7841, 0.0
        %v7893 = vsel %vm7833, %v7844, 0.0
        %v7894 = vsel %vm7833, %v7847, 0.0
        %v7895 = vsel %vm7833, %v7850, 0.0
        %v7896 = vsel %vm7833, %v7853, 0.0
        %v7897 = vsel %vm7833, %v7856, 0.0
        %v7898 = vcombine.low %v7882, %v7884
        %v7899 = vcombine.high %v7882, %v7884
        %v7901 = vunpack.c.l.s4 1983009808
        %v7902 = vunpack.c.0.s8 %v7901
        %v7903 = vlaneseq
        %v7904 = vshrl.u32 %v7903, 7
        %v7905 = vsub.s32 %v7902, %v7904
        %v7906 = vrot.slane %v7898, %v7905
        %v7908 = vunpack.c.l.s4 1983009808
        %v7909 = vunpack.c.0.s8 %v7908
        %v7910 = vlaneseq
        %v7911 = vshrl.u32 %v7910, 7
        %v7912 = vsub.s32 %v7909, %v7911
        %v7913 = vrot.slane %v7899, %v7912
        %v7914 = vcombine.low %v7883, %v7885
        %v7915 = vcombine.high %v7883, %v7885
        %v7917 = vunpack.c.l.s4 1983009808
        %v7918 = vunpack.c.0.s8 %v7917
        %v7919 = vlaneseq
        %v7920 = vshrl.u32 %v7919, 7
        %v7921 = vsub.s32 %v7918, %v7920
        %v7922 = vrot.slane %v7914, %v7921
        %v7924 = vunpack.c.l.s4 1983009808
        %v7925 = vunpack.c.0.s8 %v7924
        %v7926 = vlaneseq
        %v7927 = vshrl.u32 %v7926, 7
        %v7928 = vsub.s32 %v7925, %v7927
        %v7929 = vrot.slane %v7915, %v7928
        %v7930 = vcombine.low %v7886, %v7888
        %v7931 = vcombine.high %v7886, %v7888
        %v7933 = vunpack.c.l.s4 1983009808
        %v7934 = vunpack.c.0.s8 %v7933
        %v7935 = vlaneseq
        %v7936 = vshrl.u32 %v7935, 7
        %v7937 = vsub.s32 %v7934, %v7936
        %v7938 = vrot.slane %v7930, %v7937
        %v7940 = vunpack.c.l.s4 1983009808
        %v7941 = vunpack.c.0.s8 %v7940
        %v7942 = vlaneseq
        %v7943 = vshrl.u32 %v7942, 7
        %v7944 = vsub.s32 %v7941, %v7943
        %v7945 = vrot.slane %v7931, %v7944
        %v7946 = vcombine.low %v7887, %v7889
        %v7947 = vcombine.high %v7887, %v7889
        %v7949 = vunpack.c.l.s4 1983009808
        %v7950 = vunpack.c.0.s8 %v7949
        %v7951 = vlaneseq
        %v7952 = vshrl.u32 %v7951, 7
        %v7953 = vsub.s32 %v7950, %v7952
        %v7954 = vrot.slane %v7946, %v7953
        %v7956 = vunpack.c.l.s4 1983009808
        %v7957 = vunpack.c.0.s8 %v7956
        %v7958 = vlaneseq
        %v7959 = vshrl.u32 %v7958, 7
        %v7960 = vsub.s32 %v7957, %v7959
        %v7961 = vrot.slane %v7947, %v7960
        %v7962 = vcombine.low %v7906, %v7922
        %v7963 = vcombine.high %v7906, %v7922
        %v7965 = vunpack.c.l.s4 1934713408
        %v7966 = vunpack.c.0.s8 %v7965
        %v7967 = vlaneseq
        %v7968 = vshrl.u32 %v7967, 7
        %v7969 = vsub.s32 %v7966, %v7968
        %v7970 = vrot.slane %v7962, %v7969
        %v7972 = vunpack.c.l.s4 1934713408
        %v7973 = vunpack.c.0.s8 %v7972
        %v7974 = vlaneseq
        %v7975 = vshrl.u32 %v7974, 7
        %v7976 = vsub.s32 %v7973, %v7975
        %v7977 = vrot.slane %v7963, %v7976
        %v7978 = vcombine.low %v7913, %v7929
        %v7979 = vcombine.high %v7913, %v7929
        %v7981 = vunpack.c.l.s4 1934713408
        %v7982 = vunpack.c.0.s8 %v7981
        %v7983 = vlaneseq
        %v7984 = vshrl.u32 %v7983, 7
        %v7985 = vsub.s32 %v7982, %v7984
        %v7986 = vrot.slane %v7978, %v7985
        %v7988 = vunpack.c.l.s4 1934713408
        %v7989 = vunpack.c.0.s8 %v7988
        %v7990 = vlaneseq
        %v7991 = vshrl.u32 %v7990, 7
        %v7992 = vsub.s32 %v7989, %v7991
        %v7993 = vrot.slane %v7979, %v7992
        %v7994 = vcombine.low %v7938, %v7954
        %v7995 = vcombine.high %v7938, %v7954
        %v7997 = vunpack.c.l.s4 1934713408
        %v7998 = vunpack.c.0.s8 %v7997
        %v7999 = vlaneseq
        %v8000 = vshrl.u32 %v7999, 7
        %v8001 = vsub.s32 %v7998, %v8000
        %v8002 = vrot.slane %v7994, %v8001
        %v8004 = vunpack.c.l.s4 1934713408
        %v8005 = vunpack.c.0.s8 %v8004
        %v8006 = vlaneseq
        %v8007 = vshrl.u32 %v8006, 7
        %v8008 = vsub.s32 %v8005, %v8007
        %v8009 = vrot.slane %v7995, %v8008
        %v8010 = vcombine.low %v7945, %v7961
        %v8011 = vcombine.high %v7945, %v7961
        %v8013 = vunpack.c.l.s4 1934713408
        %v8014 = vunpack.c.0.s8 %v8013
        %v8015 = vlaneseq
        %v8016 = vshrl.u32 %v8015, 7
        %v8017 = vsub.s32 %v8014, %v8016
        %v8018 = vrot.slane %v8010, %v8017
        %v8020 = vunpack.c.l.s4 1934713408
        %v8021 = vunpack.c.0.s8 %v8020
        %v8022 = vlaneseq
        %v8023 = vshrl.u32 %v8022, 7
        %v8024 = vsub.s32 %v8021, %v8023
        %v8025 = vrot.slane %v8011, %v8024
        %v8026 = vcombine.low %v7970, %v8002
        %v8027 = vcombine.high %v7970, %v8002
        %v8028 = vcombine.low %v7977, %v8009
        %v8029 = vcombine.high %v7977, %v8009
        %v8030 = vcombine.low %v7986, %v8018
        %v8031 = vcombine.high %v7986, %v8018
        %v8032 = vcombine.low %v7993, %v8025
        %v8033 = vcombine.high %v7993, %v8025
        %v8034 = vcombine.low %v7836, %v7842
        %v8035 = vcombine.high %v7836, %v7842
        %v8037 = vunpack.c.l.s4 1983009808
        %v8038 = vunpack.c.0.s8 %v8037
        %v8039 = vlaneseq
        %v8040 = vshrl.u32 %v8039, 7
        %v8041 = vsub.s32 %v8038, %v8040
        %v8042 = vrot.slane %v8034, %v8041
        %v8044 = vunpack.c.l.s4 1983009808
        %v8045 = vunpack.c.0.s8 %v8044
        %v8046 = vlaneseq
        %v8047 = vshrl.u32 %v8046, 7
        %v8048 = vsub.s32 %v8045, %v8047
        %v8049 = vrot.slane %v8035, %v8048
        %v8050 = vcombine.low %v7839, %v7845
        %v8051 = vcombine.high %v7839, %v7845
        %v8053 = vunpack.c.l.s4 1983009808
        %v8054 = vunpack.c.0.s8 %v8053
        %v8055 = vlaneseq
        %v8056 = vshrl.u32 %v8055, 7
        %v8057 = vsub.s32 %v8054, %v8056
        %v8058 = vrot.slane %v8050, %v8057
        %v8060 = vunpack.c.l.s4 1983009808
        %v8061 = vunpack.c.0.s8 %v8060
        %v8062 = vlaneseq
        %v8063 = vshrl.u32 %v8062, 7
        %v8064 = vsub.s32 %v8061, %v8063
        %v8065 = vrot.slane %v8051, %v8064
        %v8066 = vcombine.low %v7848, %v7854
        %v8067 = vcombine.high %v7848, %v7854
        %v8069 = vunpack.c.l.s4 1983009808
        %v8070 = vunpack.c.0.s8 %v8069
        %v8071 = vlaneseq
        %v8072 = vshrl.u32 %v8071, 7
        %v8073 = vsub.s32 %v8070, %v8072
        %v8074 = vrot.slane %v8066, %v8073
        %v8076 = vunpack.c.l.s4 1983009808
        %v8077 = vunpack.c.0.s8 %v8076
        %v8078 = vlaneseq
        %v8079 = vshrl.u32 %v8078, 7
        %v8080 = vsub.s32 %v8077, %v8079
        %v8081 = vrot.slane %v8067, %v8080
        %v8082 = vcombine.low %v7851, %v7857
        %v8083 = vcombine.high %v7851, %v7857
        %v8085 = vunpack.c.l.s4 1983009808
        %v8086 = vunpack.c.0.s8 %v8085
        %v8087 = vlaneseq
        %v8088 = vshrl.u32 %v8087, 7
        %v8089 = vsub.s32 %v8086, %v8088
        %v8090 = vrot.slane %v8082, %v8089
        %v8092 = vunpack.c.l.s4 1983009808
        %v8093 = vunpack.c.0.s8 %v8092
        %v8094 = vlaneseq
        %v8095 = vshrl.u32 %v8094, 7
        %v8096 = vsub.s32 %v8093, %v8095
        %v8097 = vrot.slane %v8083, %v8096
        %v8098 = vcombine.low %v8042, %v8058
        %v8099 = vcombine.high %v8042, %v8058
        %v8101 = vunpack.c.l.s4 1934713408
        %v8102 = vunpack.c.0.s8 %v8101
        %v8103 = vlaneseq
        %v8104 = vshrl.u32 %v8103, 7
        %v8105 = vsub.s32 %v8102, %v8104
        %v8106 = vrot.slane %v8098, %v8105
        %v8108 = vunpack.c.l.s4 1934713408
        %v8109 = vunpack.c.0.s8 %v8108
        %v8110 = vlaneseq
        %v8111 = vshrl.u32 %v8110, 7
        %v8112 = vsub.s32 %v8109, %v8111
        %v8113 = vrot.slane %v8099, %v8112
        %v8114 = vcombine.low %v8049, %v8065
        %v8115 = vcombine.high %v8049, %v8065
        %v8117 = vunpack.c.l.s4 1934713408
        %v8118 = vunpack.c.0.s8 %v8117
        %v8119 = vlaneseq
        %v8120 = vshrl.u32 %v8119, 7
        %v8121 = vsub.s32 %v8118, %v8120
        %v8122 = vrot.slane %v8114, %v8121
        %v8124 = vunpack.c.l.s4 1934713408
        %v8125 = vunpack.c.0.s8 %v8124
        %v8126 = vlaneseq
        %v8127 = vshrl.u32 %v8126, 7
        %v8128 = vsub.s32 %v8125, %v8127
        %v8129 = vrot.slane %v8115, %v8128
        %v8130 = vcombine.low %v8074, %v8090
        %v8131 = vcombine.high %v8074, %v8090
        %v8133 = vunpack.c.l.s4 1934713408
        %v8134 = vunpack.c.0.s8 %v8133
        %v8135 = vlaneseq
        %v8136 = vshrl.u32 %v8135, 7
        %v8137 = vsub.s32 %v8134, %v8136
        %v8138 = vrot.slane %v8130, %v8137
        %v8140 = vunpack.c.l.s4 1934713408
        %v8141 = vunpack.c.0.s8 %v8140
        %v8142 = vlaneseq
        %v8143 = vshrl.u32 %v8142, 7
        %v8144 = vsub.s32 %v8141, %v8143
        %v8145 = vrot.slane %v8131, %v8144
        %v8146 = vcombine.low %v8081, %v8097
        %v8147 = vcombine.high %v8081, %v8097
        %v8149 = vunpack.c.l.s4 1934713408
        %v8150 = vunpack.c.0.s8 %v8149
        %v8151 = vlaneseq
        %v8152 = vshrl.u32 %v8151, 7
        %v8153 = vsub.s32 %v8150, %v8152
        %v8154 = vrot.slane %v8146, %v8153
        %v8156 = vunpack.c.l.s4 1934713408
        %v8157 = vunpack.c.0.s8 %v8156
        %v8158 = vlaneseq
        %v8159 = vshrl.u32 %v8158, 7
        %v8160 = vsub.s32 %v8157, %v8159
        %v8161 = vrot.slane %v8147, %v8160
        %v8162 = vcombine.low %v8106, %v8138
        %v8163 = vcombine.high %v8106, %v8138
        %v8164 = vcombine.low %v8113, %v8145
        %v8165 = vcombine.high %v8113, %v8145
        %v8166 = vcombine.low %v8122, %v8154
        %v8167 = vcombine.high %v8122, %v8154
        %v8168 = vcombine.low %v8129, %v8161
        %v8169 = vcombine.high %v8129, %v8161
        %8171 = vrot.lane.b32.xlu0 %v8027, 16
        %v8172 = vpop.permute.xlu0 %8171
        %8175 = vrot.lane.b32.xlu0 %v8028, 32
        %v8176 = vpop.permute.xlu0 %8175
        %8179 = vrot.lane.b32.xlu0 %v8029, 48
        %v8180 = vpop.permute.xlu0 %8179
        %8183 = vrot.lane.b32.xlu0 %v8030, 64
        %v8184 = vpop.permute.xlu0 %8183
        %8187 = vrot.lane.b32.xlu0 %v8031, 80
        %v8188 = vpop.permute.xlu0 %8187
        %8191 = vrot.lane.b32.xlu0 %v8032, 96
        %v8192 = vpop.permute.xlu0 %8191
        %8195 = vrot.lane.b32.xlu0 %v8033, 112
        %v8196 = vpop.permute.xlu0 %8195
        %8199 = vrot.lane.b32.xlu0 %v8163, 16
        %v8200 = vpop.permute.xlu0 %8199
        %8203 = vrot.lane.b32.xlu0 %v8164, 32
        %v8204 = vpop.permute.xlu0 %8203
        %8207 = vrot.lane.b32.xlu0 %v8165, 48
        %v8208 = vpop.permute.xlu0 %8207
        %8211 = vrot.lane.b32.xlu0 %v8166, 64
        %v8212 = vpop.permute.xlu0 %8211
        %8215 = vrot.lane.b32.xlu0 %v8167, 80
        %v8216 = vpop.permute.xlu0 %8215
        %8219 = vrot.lane.b32.xlu0 %v8168, 96
        %v8220 = vpop.permute.xlu0 %8219
        %8223 = vrot.lane.b32.xlu0 %v8169, 112
        %v8224 = vpop.permute.xlu0 %8223
        %v8226 = vsel %vm975, %v8026, %v8172
        %v8227 = vsel %vm978, %v8226, %v8176
        %v8228 = vsel %vm981, %v8227, %v8180
        %v8229 = vsel %vm984, %v8228, %v8184
        %v8230 = vsel %vm987, %v8229, %v8188
        %v8231 = vsel %vm990, %v8230, %v8192
        %v8232 = vsel %vm993, %v8231, %v8196
        %v8233 = vsel %vm975, %v8162, %v8200
        %v8234 = vsel %vm978, %v8233, %v8204
        %v8235 = vsel %vm981, %v8234, %v8208
        %v8236 = vsel %vm984, %v8235, %v8212
        %v8237 = vsel %vm987, %v8236, %v8216
        %v8238 = vsel %vm990, %v8237, %v8220
        %v8239 = vsel %vm993, %v8238, %v8224
        %8248 = vrot.lane.b32.xlu0 %v7882, 127
        %v8249 = vpop.permute.xlu0 %8248
        %8250 = vrot.lane.b32.xlu0 %v7836, 127
        %v8251 = vpop.permute.xlu0 %8250
        %8252 = vrot.lane.b32.xlu0 %v7883, 127
        %v8253 = vpop.permute.xlu0 %8252
        %8254 = vrot.lane.b32.xlu0 %v7839, 127
        %v8255 = vpop.permute.xlu0 %8254
        %8256 = vrot.lane.b32.xlu0 %v7884, 127
        %v8257 = vpop.permute.xlu0 %8256
        %8258 = vrot.lane.b32.xlu0 %v7842, 127
        %v8259 = vpop.permute.xlu0 %8258
        %8260 = vrot.lane.b32.xlu0 %v7885, 127
        %v8261 = vpop.permute.xlu0 %8260
        %8262 = vrot.lane.b32.xlu0 %v7845, 127
        %v8263 = vpop.permute.xlu0 %8262
        %8264 = vrot.lane.b32.xlu0 %v7886, 127
        %v8265 = vpop.permute.xlu0 %8264
        %8266 = vrot.lane.b32.xlu0 %v7848, 127
        %v8267 = vpop.permute.xlu0 %8266
        %8268 = vrot.lane.b32.xlu0 %v7887, 127
        %v8269 = vpop.permute.xlu0 %8268
        %8270 = vrot.lane.b32.xlu0 %v7851, 127
        %v8271 = vpop.permute.xlu0 %8270
        %8272 = vrot.lane.b32.xlu0 %v7888, 127
        %v8273 = vpop.permute.xlu0 %8272
        %8274 = vrot.lane.b32.xlu0 %v7854, 127
        %v8275 = vpop.permute.xlu0 %8274
        %8276 = vrot.lane.b32.xlu0 %v7889, 127
        %v8277 = vpop.permute.xlu0 %8276
        %8278 = vrot.lane.b32.xlu0 %v7857, 127
        %v8279 = vpop.permute.xlu0 %8278
        %v8296 = vcombine.low %v8249, %v8257
        %v8297 = vcombine.high %v8249, %v8257
        %v8299 = vunpack.c.l.s4 1983009808
        %v8300 = vunpack.c.0.s8 %v8299
        %v8301 = vlaneseq
        %v8302 = vshrl.u32 %v8301, 7
        %v8303 = vsub.s32 %v8300, %v8302
        %v8304 = vrot.slane %v8296, %v8303
        %v8306 = vunpack.c.l.s4 1983009808
        %v8307 = vunpack.c.0.s8 %v8306
        %v8308 = vlaneseq
        %v8309 = vshrl.u32 %v8308, 7
        %v8310 = vsub.s32 %v8307, %v8309
        %v8311 = vrot.slane %v8297, %v8310
        %v8312 = vcombine.low %v8253, %v8261
        %v8313 = vcombine.high %v8253, %v8261
        %v8315 = vunpack.c.l.s4 1983009808
        %v8316 = vunpack.c.0.s8 %v8315
        %v8317 = vlaneseq
        %v8318 = vshrl.u32 %v8317, 7
        %v8319 = vsub.s32 %v8316, %v8318
        %v8320 = vrot.slane %v8312, %v8319
        %v8322 = vunpack.c.l.s4 1983009808
        %v8323 = vunpack.c.0.s8 %v8322
        %v8324 = vlaneseq
        %v8325 = vshrl.u32 %v8324, 7
        %v8326 = vsub.s32 %v8323, %v8325
        %v8327 = vrot.slane %v8313, %v8326
        %v8328 = vcombine.low %v8265, %v8273
        %v8329 = vcombine.high %v8265, %v8273
        %v8331 = vunpack.c.l.s4 1983009808
        %v8332 = vunpack.c.0.s8 %v8331
        %v8333 = vlaneseq
        %v8334 = vshrl.u32 %v8333, 7
        %v8335 = vsub.s32 %v8332, %v8334
        %v8336 = vrot.slane %v8328, %v8335
        %v8338 = vunpack.c.l.s4 1983009808
        %v8339 = vunpack.c.0.s8 %v8338
        %v8340 = vlaneseq
        %v8341 = vshrl.u32 %v8340, 7
        %v8342 = vsub.s32 %v8339, %v8341
        %v8343 = vrot.slane %v8329, %v8342
        %v8344 = vcombine.low %v8269, %v8277
        %v8345 = vcombine.high %v8269, %v8277
        %v8347 = vunpack.c.l.s4 1983009808
        %v8348 = vunpack.c.0.s8 %v8347
        %v8349 = vlaneseq
        %v8350 = vshrl.u32 %v8349, 7
        %v8351 = vsub.s32 %v8348, %v8350
        %v8352 = vrot.slane %v8344, %v8351
        %v8354 = vunpack.c.l.s4 1983009808
        %v8355 = vunpack.c.0.s8 %v8354
        %v8356 = vlaneseq
        %v8357 = vshrl.u32 %v8356, 7
        %v8358 = vsub.s32 %v8355, %v8357
        %v8359 = vrot.slane %v8345, %v8358
        %v8360 = vcombine.low %v8304, %v8320
        %v8361 = vcombine.high %v8304, %v8320
        %v8363 = vunpack.c.l.s4 1934713408
        %v8364 = vunpack.c.0.s8 %v8363
        %v8365 = vlaneseq
        %v8366 = vshrl.u32 %v8365, 7
        %v8367 = vsub.s32 %v8364, %v8366
        %v8368 = vrot.slane %v8360, %v8367
        %v8370 = vunpack.c.l.s4 1934713408
        %v8371 = vunpack.c.0.s8 %v8370
        %v8372 = vlaneseq
        %v8373 = vshrl.u32 %v8372, 7
        %v8374 = vsub.s32 %v8371, %v8373
        %v8375 = vrot.slane %v8361, %v8374
        %v8376 = vcombine.low %v8311, %v8327
        %v8377 = vcombine.high %v8311, %v8327
        %v8379 = vunpack.c.l.s4 1934713408
        %v8380 = vunpack.c.0.s8 %v8379
        %v8381 = vlaneseq
        %v8382 = vshrl.u32 %v8381, 7
        %v8383 = vsub.s32 %v8380, %v8382
        %v8384 = vrot.slane %v8376, %v8383
        %v8386 = vunpack.c.l.s4 1934713408
        %v8387 = vunpack.c.0.s8 %v8386
        %v8388 = vlaneseq
        %v8389 = vshrl.u32 %v8388, 7
        %v8390 = vsub.s32 %v8387, %v8389
        %v8391 = vrot.slane %v8377, %v8390
        %v8392 = vcombine.low %v8336, %v8352
        %v8393 = vcombine.high %v8336, %v8352
        %v8395 = vunpack.c.l.s4 1934713408
        %v8396 = vunpack.c.0.s8 %v8395
        %v8397 = vlaneseq
        %v8398 = vshrl.u32 %v8397, 7
        %v8399 = vsub.s32 %v8396, %v8398
        %v8400 = vrot.slane %v8392, %v8399
        %v8402 = vunpack.c.l.s4 1934713408
        %v8403 = vunpack.c.0.s8 %v8402
        %v8404 = vlaneseq
        %v8405 = vshrl.u32 %v8404, 7
        %v8406 = vsub.s32 %v8403, %v8405
        %v8407 = vrot.slane %v8393, %v8406
        %v8408 = vcombine.low %v8343, %v8359
        %v8409 = vcombine.high %v8343, %v8359
        %v8411 = vunpack.c.l.s4 1934713408
        %v8412 = vunpack.c.0.s8 %v8411
        %v8413 = vlaneseq
        %v8414 = vshrl.u32 %v8413, 7
        %v8415 = vsub.s32 %v8412, %v8414
        %v8416 = vrot.slane %v8408, %v8415
        %v8418 = vunpack.c.l.s4 1934713408
        %v8419 = vunpack.c.0.s8 %v8418
        %v8420 = vlaneseq
        %v8421 = vshrl.u32 %v8420, 7
        %v8422 = vsub.s32 %v8419, %v8421
        %v8423 = vrot.slane %v8409, %v8422
        %v8424 = vcombine.low %v8368, %v8400
        %v8425 = vcombine.high %v8368, %v8400
        %v8426 = vcombine.low %v8375, %v8407
        %v8427 = vcombine.high %v8375, %v8407
        %v8428 = vcombine.low %v8384, %v8416
        %v8429 = vcombine.high %v8384, %v8416
        %v8430 = vcombine.low %v8391, %v8423
        %v8431 = vcombine.high %v8391, %v8423
        %v8432 = vcombine.low %v8251, %v8259
        %v8433 = vcombine.high %v8251, %v8259
        %v8435 = vunpack.c.l.s4 1983009808
        %v8436 = vunpack.c.0.s8 %v8435
        %v8437 = vlaneseq
        %v8438 = vshrl.u32 %v8437, 7
        %v8439 = vsub.s32 %v8436, %v8438
        %v8440 = vrot.slane %v8432, %v8439
        %v8442 = vunpack.c.l.s4 1983009808
        %v8443 = vunpack.c.0.s8 %v8442
        %v8444 = vlaneseq
        %v8445 = vshrl.u32 %v8444, 7
        %v8446 = vsub.s32 %v8443, %v8445
        %v8447 = vrot.slane %v8433, %v8446
        %v8448 = vcombine.low %v8255, %v8263
        %v8449 = vcombine.high %v8255, %v8263
        %v8451 = vunpack.c.l.s4 1983009808
        %v8452 = vunpack.c.0.s8 %v8451
        %v8453 = vlaneseq
        %v8454 = vshrl.u32 %v8453, 7
        %v8455 = vsub.s32 %v8452, %v8454
        %v8456 = vrot.slane %v8448, %v8455
        %v8458 = vunpack.c.l.s4 1983009808
        %v8459 = vunpack.c.0.s8 %v8458
        %v8460 = vlaneseq
        %v8461 = vshrl.u32 %v8460, 7
        %v8462 = vsub.s32 %v8459, %v8461
        %v8463 = vrot.slane %v8449, %v8462
        %v8464 = vcombine.low %v8267, %v8275
        %v8465 = vcombine.high %v8267, %v8275
        %v8467 = vunpack.c.l.s4 1983009808
        %v8468 = vunpack.c.0.s8 %v8467
        %v8469 = vlaneseq
        %v8470 = vshrl.u32 %v8469, 7
        %v8471 = vsub.s32 %v8468, %v8470
        %v8472 = vrot.slane %v8464, %v8471
        %v8474 = vunpack.c.l.s4 1983009808
        %v8475 = vunpack.c.0.s8 %v8474
        %v8476 = vlaneseq
        %v8477 = vshrl.u32 %v8476, 7
        %v8478 = vsub.s32 %v8475, %v8477
        %v8479 = vrot.slane %v8465, %v8478
        %v8480 = vcombine.low %v8271, %v8279
        %v8481 = vcombine.high %v8271, %v8279
        %v8483 = vunpack.c.l.s4 1983009808
        %v8484 = vunpack.c.0.s8 %v8483
        %v8485 = vlaneseq
        %v8486 = vshrl.u32 %v8485, 7
        %v8487 = vsub.s32 %v8484, %v8486
        %v8488 = vrot.slane %v8480, %v8487
        %v8490 = vunpack.c.l.s4 1983009808
        %v8491 = vunpack.c.0.s8 %v8490
        %v8492 = vlaneseq
        %v8493 = vshrl.u32 %v8492, 7
        %v8494 = vsub.s32 %v8491, %v8493
        %v8495 = vrot.slane %v8481, %v8494
        %v8496 = vcombine.low %v8440, %v8456
        %v8497 = vcombine.high %v8440, %v8456
        %v8499 = vunpack.c.l.s4 1934713408
        %v8500 = vunpack.c.0.s8 %v8499
        %v8501 = vlaneseq
        %v8502 = vshrl.u32 %v8501, 7
        %v8503 = vsub.s32 %v8500, %v8502
        %v8504 = vrot.slane %v8496, %v8503
        %v8506 = vunpack.c.l.s4 1934713408
        %v8507 = vunpack.c.0.s8 %v8506
        %v8508 = vlaneseq
        %v8509 = vshrl.u32 %v8508, 7
        %v8510 = vsub.s32 %v8507, %v8509
        %v8511 = vrot.slane %v8497, %v8510
        %v8512 = vcombine.low %v8447, %v8463
        %v8513 = vcombine.high %v8447, %v8463
        %v8515 = vunpack.c.l.s4 1934713408
        %v8516 = vunpack.c.0.s8 %v8515
        %v8517 = vlaneseq
        %v8518 = vshrl.u32 %v8517, 7
        %v8519 = vsub.s32 %v8516, %v8518
        %v8520 = vrot.slane %v8512, %v8519
        %v8522 = vunpack.c.l.s4 1934713408
        %v8523 = vunpack.c.0.s8 %v8522
        %v8524 = vlaneseq
        %v8525 = vshrl.u32 %v8524, 7
        %v8526 = vsub.s32 %v8523, %v8525
        %v8527 = vrot.slane %v8513, %v8526
        %v8528 = vcombine.low %v8472, %v8488
        %v8529 = vcombine.high %v8472, %v8488
        %v8531 = vunpack.c.l.s4 1934713408
        %v8532 = vunpack.c.0.s8 %v8531
        %v8533 = vlaneseq
        %v8534 = vshrl.u32 %v8533, 7
        %v8535 = vsub.s32 %v8532, %v8534
        %v8536 = vrot.slane %v8528, %v8535
        %v8538 = vunpack.c.l.s4 1934713408
        %v8539 = vunpack.c.0.s8 %v8538
        %v8540 = vlaneseq
        %v8541 = vshrl.u32 %v8540, 7
        %v8542 = vsub.s32 %v8539, %v8541
        %v8543 = vrot.slane %v8529, %v8542
        %v8544 = vcombine.low %v8479, %v8495
        %v8545 = vcombine.high %v8479, %v8495
        %v8547 = vunpack.c.l.s4 1934713408
        %v8548 = vunpack.c.0.s8 %v8547
        %v8549 = vlaneseq
        %v8550 = vshrl.u32 %v8549, 7
        %v8551 = vsub.s32 %v8548, %v8550
        %v8552 = vrot.slane %v8544, %v8551
        %v8554 = vunpack.c.l.s4 1934713408
        %v8555 = vunpack.c.0.s8 %v8554
        %v8556 = vlaneseq
        %v8557 = vshrl.u32 %v8556, 7
        %v8558 = vsub.s32 %v8555, %v8557
        %v8559 = vrot.slane %v8545, %v8558
        %v8560 = vcombine.low %v8504, %v8536
        %v8561 = vcombine.high %v8504, %v8536
        %v8562 = vcombine.low %v8511, %v8543
        %v8563 = vcombine.high %v8511, %v8543
        %v8564 = vcombine.low %v8520, %v8552
        %v8565 = vcombine.high %v8520, %v8552
        %v8566 = vcombine.low %v8527, %v8559
        %v8567 = vcombine.high %v8527, %v8559
        %8569 = vrot.lane.b32.xlu0 %v8425, 16
        %v8570 = vpop.permute.xlu0 %8569
        %8573 = vrot.lane.b32.xlu0 %v8426, 32
        %v8574 = vpop.permute.xlu0 %8573
        %8577 = vrot.lane.b32.xlu0 %v8427, 48
        %v8578 = vpop.permute.xlu0 %8577
        %8581 = vrot.lane.b32.xlu0 %v8428, 64
        %v8582 = vpop.permute.xlu0 %8581
        %8585 = vrot.lane.b32.xlu0 %v8429, 80
        %v8586 = vpop.permute.xlu0 %8585
        %8589 = vrot.lane.b32.xlu0 %v8430, 96
        %v8590 = vpop.permute.xlu0 %8589
        %8593 = vrot.lane.b32.xlu0 %v8431, 112
        %v8594 = vpop.permute.xlu0 %8593
        %8597 = vrot.lane.b32.xlu0 %v8561, 16
        %v8598 = vpop.permute.xlu0 %8597
        %8601 = vrot.lane.b32.xlu0 %v8562, 32
        %v8602 = vpop.permute.xlu0 %8601
        %8605 = vrot.lane.b32.xlu0 %v8563, 48
        %v8606 = vpop.permute.xlu0 %8605
        %8609 = vrot.lane.b32.xlu0 %v8564, 64
        %v8610 = vpop.permute.xlu0 %8609
        %8613 = vrot.lane.b32.xlu0 %v8565, 80
        %v8614 = vpop.permute.xlu0 %8613
        %8617 = vrot.lane.b32.xlu0 %v8566, 96
        %v8618 = vpop.permute.xlu0 %8617
        %8621 = vrot.lane.b32.xlu0 %v8567, 112
        %v8622 = vpop.permute.xlu0 %8621
        %v8624 = vsel %vm975, %v8424, %v8570
        %v8625 = vsel %vm978, %v8624, %v8574
        %v8626 = vsel %vm981, %v8625, %v8578
        %v8627 = vsel %vm984, %v8626, %v8582
        %v8628 = vsel %vm987, %v8627, %v8586
        %v8629 = vsel %vm990, %v8628, %v8590
        %v8630 = vsel %vm993, %v8629, %v8594
        %v8631 = vsel %vm975, %v8560, %v8598
        %v8632 = vsel %vm978, %v8631, %v8602
        %v8633 = vsel %vm981, %v8632, %v8606
        %v8634 = vsel %vm984, %v8633, %v8610
        %v8635 = vsel %vm987, %v8634, %v8614
        %v8636 = vsel %vm990, %v8635, %v8618
        %v8637 = vsel %vm993, %v8636, %v8622
        %8638 = vrot.lane.b32.xlu0 %v7882, 126
        %v8639 = vpop.permute.xlu0 %8638
        %8640 = vrot.lane.b32.xlu0 %v7836, 126
        %v8641 = vpop.permute.xlu0 %8640
        %8642 = vrot.lane.b32.xlu0 %v7883, 126
        %v8643 = vpop.permute.xlu0 %8642
        %8644 = vrot.lane.b32.xlu0 %v7839, 126
        %v8645 = vpop.permute.xlu0 %8644
        %8646 = vrot.lane.b32.xlu0 %v7884, 126
        %v8647 = vpop.permute.xlu0 %8646
        %8648 = vrot.lane.b32.xlu0 %v7842, 126
        %v8649 = vpop.permute.xlu0 %8648
        %8650 = vrot.lane.b32.xlu0 %v7885, 126
        %v8651 = vpop.permute.xlu0 %8650
        %8652 = vrot.lane.b32.xlu0 %v7845, 126
        %v8653 = vpop.permute.xlu0 %8652
        %8654 = vrot.lane.b32.xlu0 %v7886, 126
        %v8655 = vpop.permute.xlu0 %8654
        %8656 = vrot.lane.b32.xlu0 %v7848, 126
        %v8657 = vpop.permute.xlu0 %8656
        %8658 = vrot.lane.b32.xlu0 %v7887, 126
        %v8659 = vpop.permute.xlu0 %8658
        %8660 = vrot.lane.b32.xlu0 %v7851, 126
        %v8661 = vpop.permute.xlu0 %8660
        %8662 = vrot.lane.b32.xlu0 %v7888, 126
        %v8663 = vpop.permute.xlu0 %8662
        %8664 = vrot.lane.b32.xlu0 %v7854, 126
        %v8665 = vpop.permute.xlu0 %8664
        %8666 = vrot.lane.b32.xlu0 %v7889, 126
        %v8667 = vpop.permute.xlu0 %8666
        %8668 = vrot.lane.b32.xlu0 %v7857, 126
        %v8669 = vpop.permute.xlu0 %8668
        %v8686 = vcombine.low %v8639, %v8647
        %v8687 = vcombine.high %v8639, %v8647
        %v8689 = vunpack.c.l.s4 1983009808
        %v8690 = vunpack.c.0.s8 %v8689
        %v8691 = vlaneseq
        %v8692 = vshrl.u32 %v8691, 7
        %v8693 = vsub.s32 %v8690, %v8692
        %v8694 = vrot.slane %v8686, %v8693
        %v8696 = vunpack.c.l.s4 1983009808
        %v8697 = vunpack.c.0.s8 %v8696
        %v8698 = vlaneseq
        %v8699 = vshrl.u32 %v8698, 7
        %v8700 = vsub.s32 %v8697, %v8699
        %v8701 = vrot.slane %v8687, %v8700
        %v8702 = vcombine.low %v8643, %v8651
        %v8703 = vcombine.high %v8643, %v8651
        %v8705 = vunpack.c.l.s4 1983009808
        %v8706 = vunpack.c.0.s8 %v8705
        %v8707 = vlaneseq
        %v8708 = vshrl.u32 %v8707, 7
        %v8709 = vsub.s32 %v8706, %v8708
        %v8710 = vrot.slane %v8702, %v8709
        %v8712 = vunpack.c.l.s4 1983009808
        %v8713 = vunpack.c.0.s8 %v8712
        %v8714 = vlaneseq
        %v8715 = vshrl.u32 %v8714, 7
        %v8716 = vsub.s32 %v8713, %v8715
        %v8717 = vrot.slane %v8703, %v8716
        %v8718 = vcombine.low %v8655, %v8663
        %v8719 = vcombine.high %v8655, %v8663
        %v8721 = vunpack.c.l.s4 1983009808
        %v8722 = vunpack.c.0.s8 %v8721
        %v8723 = vlaneseq
        %v8724 = vshrl.u32 %v8723, 7
        %v8725 = vsub.s32 %v8722, %v8724
        %v8726 = vrot.slane %v8718, %v8725
        %v8728 = vunpack.c.l.s4 1983009808
        %v8729 = vunpack.c.0.s8 %v8728
        %v8730 = vlaneseq
        %v8731 = vshrl.u32 %v8730, 7
        %v8732 = vsub.s32 %v8729, %v8731
        %v8733 = vrot.slane %v8719, %v8732
        %v8734 = vcombine.low %v8659, %v8667
        %v8735 = vcombine.high %v8659, %v8667
        %v8737 = vunpack.c.l.s4 1983009808
        %v8738 = vunpack.c.0.s8 %v8737
        %v8739 = vlaneseq
        %v8740 = vshrl.u32 %v8739, 7
        %v8741 = vsub.s32 %v8738, %v8740
        %v8742 = vrot.slane %v8734, %v8741
        %v8744 = vunpack.c.l.s4 1983009808
        %v8745 = vunpack.c.0.s8 %v8744
        %v8746 = vlaneseq
        %v8747 = vshrl.u32 %v8746, 7
        %v8748 = vsub.s32 %v8745, %v8747
        %v8749 = vrot.slane %v8735, %v8748
        %v8750 = vcombine.low %v8694, %v8710
        %v8751 = vcombine.high %v8694, %v8710
        %v8753 = vunpack.c.l.s4 1934713408
        %v8754 = vunpack.c.0.s8 %v8753
        %v8755 = vlaneseq
        %v8756 = vshrl.u32 %v8755, 7
        %v8757 = vsub.s32 %v8754, %v8756
        %v8758 = vrot.slane %v8750, %v8757
        %v8760 = vunpack.c.l.s4 1934713408
        %v8761 = vunpack.c.0.s8 %v8760
        %v8762 = vlaneseq
        %v8763 = vshrl.u32 %v8762, 7
        %v8764 = vsub.s32 %v8761, %v8763
        %v8765 = vrot.slane %v8751, %v8764
        %v8766 = vcombine.low %v8701, %v8717
        %v8767 = vcombine.high %v8701, %v8717
        %v8769 = vunpack.c.l.s4 1934713408
        %v8770 = vunpack.c.0.s8 %v8769
        %v8771 = vlaneseq
        %v8772 = vshrl.u32 %v8771, 7
        %v8773 = vsub.s32 %v8770, %v8772
        %v8774 = vrot.slane %v8766, %v8773
        %v8776 = vunpack.c.l.s4 1934713408
        %v8777 = vunpack.c.0.s8 %v8776
        %v8778 = vlaneseq
        %v8779 = vshrl.u32 %v8778, 7
        %v8780 = vsub.s32 %v8777, %v8779
        %v8781 = vrot.slane %v8767, %v8780
        %v8782 = vcombine.low %v8726, %v8742
        %v8783 = vcombine.high %v8726, %v8742
        %v8785 = vunpack.c.l.s4 1934713408
        %v8786 = vunpack.c.0.s8 %v8785
        %v8787 = vlaneseq
        %v8788 = vshrl.u32 %v8787, 7
        %v8789 = vsub.s32 %v8786, %v8788
        %v8790 = vrot.slane %v8782, %v8789
        %v8792 = vunpack.c.l.s4 1934713408
        %v8793 = vunpack.c.0.s8 %v8792
        %v8794 = vlaneseq
        %v8795 = vshrl.u32 %v8794, 7
        %v8796 = vsub.s32 %v8793, %v8795
        %v8797 = vrot.slane %v8783, %v8796
        %v8798 = vcombine.low %v8733, %v8749
        %v8799 = vcombine.high %v8733, %v8749
        %v8801 = vunpack.c.l.s4 1934713408
        %v8802 = vunpack.c.0.s8 %v8801
        %v8803 = vlaneseq
        %v8804 = vshrl.u32 %v8803, 7
        %v8805 = vsub.s32 %v8802, %v8804
        %v8806 = vrot.slane %v8798, %v8805
        %v8808 = vunpack.c.l.s4 1934713408
        %v8809 = vunpack.c.0.s8 %v8808
        %v8810 = vlaneseq
        %v8811 = vshrl.u32 %v8810, 7
        %v8812 = vsub.s32 %v8809, %v8811
        %v8813 = vrot.slane %v8799, %v8812
        %v8814 = vcombine.low %v8758, %v8790
        %v8815 = vcombine.high %v8758, %v8790
        %v8816 = vcombine.low %v8765, %v8797
        %v8817 = vcombine.high %v8765, %v8797
        %v8818 = vcombine.low %v8774, %v8806
        %v8819 = vcombine.high %v8774, %v8806
        %v8820 = vcombine.low %v8781, %v8813
        %v8821 = vcombine.high %v8781, %v8813
        %v8822 = vcombine.low %v8641, %v8649
        %v8823 = vcombine.high %v8641, %v8649
        %v8825 = vunpack.c.l.s4 1983009808
        %v8826 = vunpack.c.0.s8 %v8825
        %v8827 = vlaneseq
        %v8828 = vshrl.u32 %v8827, 7
        %v8829 = vsub.s32 %v8826, %v8828
        %v8830 = vrot.slane %v8822, %v8829
        %v8832 = vunpack.c.l.s4 1983009808
        %v8833 = vunpack.c.0.s8 %v8832
        %v8834 = vlaneseq
        %v8835 = vshrl.u32 %v8834, 7
        %v8836 = vsub.s32 %v8833, %v8835
        %v8837 = vrot.slane %v8823, %v8836
        %v8838 = vcombine.low %v8645, %v8653
        %v8839 = vcombine.high %v8645, %v8653
        %v8841 = vunpack.c.l.s4 1983009808
        %v8842 = vunpack.c.0.s8 %v8841
        %v8843 = vlaneseq
        %v8844 = vshrl.u32 %v8843, 7
        %v8845 = vsub.s32 %v8842, %v8844
        %v8846 = vrot.slane %v8838, %v8845
        %v8848 = vunpack.c.l.s4 1983009808
        %v8849 = vunpack.c.0.s8 %v8848
        %v8850 = vlaneseq
        %v8851 = vshrl.u32 %v8850, 7
        %v8852 = vsub.s32 %v8849, %v8851
        %v8853 = vrot.slane %v8839, %v8852
        %v8854 = vcombine.low %v8657, %v8665
        %v8855 = vcombine.high %v8657, %v8665
        %v8857 = vunpack.c.l.s4 1983009808
        %v8858 = vunpack.c.0.s8 %v8857
        %v8859 = vlaneseq
        %v8860 = vshrl.u32 %v8859, 7
        %v8861 = vsub.s32 %v8858, %v8860
        %v8862 = vrot.slane %v8854, %v8861
        %v8864 = vunpack.c.l.s4 1983009808
        %v8865 = vunpack.c.0.s8 %v8864
        %v8866 = vlaneseq
        %v8867 = vshrl.u32 %v8866, 7
        %v8868 = vsub.s32 %v8865, %v8867
        %v8869 = vrot.slane %v8855, %v8868
        %v8870 = vcombine.low %v8661, %v8669
        %v8871 = vcombine.high %v8661, %v8669
        %v8873 = vunpack.c.l.s4 1983009808
        %v8874 = vunpack.c.0.s8 %v8873
        %v8875 = vlaneseq
        %v8876 = vshrl.u32 %v8875, 7
        %v8877 = vsub.s32 %v8874, %v8876
        %v8878 = vrot.slane %v8870, %v8877
        %v8880 = vunpack.c.l.s4 1983009808
        %v8881 = vunpack.c.0.s8 %v8880
        %v8882 = vlaneseq
        %v8883 = vshrl.u32 %v8882, 7
        %v8884 = vsub.s32 %v8881, %v8883
        %v8885 = vrot.slane %v8871, %v8884
        %v8886 = vcombine.low %v8830, %v8846
        %v8887 = vcombine.high %v8830, %v8846
        %v8889 = vunpack.c.l.s4 1934713408
        %v8890 = vunpack.c.0.s8 %v8889
        %v8891 = vlaneseq
        %v8892 = vshrl.u32 %v8891, 7
        %v8893 = vsub.s32 %v8890, %v8892
        %v8894 = vrot.slane %v8886, %v8893
        %v8896 = vunpack.c.l.s4 1934713408
        %v8897 = vunpack.c.0.s8 %v8896
        %v8898 = vlaneseq
        %v8899 = vshrl.u32 %v8898, 7
        %v8900 = vsub.s32 %v8897, %v8899
        %v8901 = vrot.slane %v8887, %v8900
        %v8902 = vcombine.low %v8837, %v8853
        %v8903 = vcombine.high %v8837, %v8853
        %v8905 = vunpack.c.l.s4 1934713408
        %v8906 = vunpack.c.0.s8 %v8905
        %v8907 = vlaneseq
        %v8908 = vshrl.u32 %v8907, 7
        %v8909 = vsub.s32 %v8906, %v8908
        %v8910 = vrot.slane %v8902, %v8909
        %v8912 = vunpack.c.l.s4 1934713408
        %v8913 = vunpack.c.0.s8 %v8912
        %v8914 = vlaneseq
        %v8915 = vshrl.u32 %v8914, 7
        %v8916 = vsub.s32 %v8913, %v8915
        %v8917 = vrot.slane %v8903, %v8916
        %v8918 = vcombine.low %v8862, %v8878
        %v8919 = vcombine.high %v8862, %v8878
        %v8921 = vunpack.c.l.s4 1934713408
        %v8922 = vunpack.c.0.s8 %v8921
        %v8923 = vlaneseq
        %v8924 = vshrl.u32 %v8923, 7
        %v8925 = vsub.s32 %v8922, %v8924
        %v8926 = vrot.slane %v8918, %v8925
        %v8928 = vunpack.c.l.s4 1934713408
        %v8929 = vunpack.c.0.s8 %v8928
        %v8930 = vlaneseq
        %v8931 = vshrl.u32 %v8930, 7
        %v8932 = vsub.s32 %v8929, %v8931
        %v8933 = vrot.slane %v8919, %v8932
        %v8934 = vcombine.low %v8869, %v8885
        %v8935 = vcombine.high %v8869, %v8885
        %v8937 = vunpack.c.l.s4 1934713408
        %v8938 = vunpack.c.0.s8 %v8937
        %v8939 = vlaneseq
        %v8940 = vshrl.u32 %v8939, 7
        %v8941 = vsub.s32 %v8938, %v8940
        %v8942 = vrot.slane %v8934, %v8941
        %v8944 = vunpack.c.l.s4 1934713408
        %v8945 = vunpack.c.0.s8 %v8944
        %v8946 = vlaneseq
        %v8947 = vshrl.u32 %v8946, 7
        %v8948 = vsub.s32 %v8945, %v8947
        %v8949 = vrot.slane %v8935, %v8948
        %v8950 = vcombine.low %v8894, %v8926
        %v8951 = vcombine.high %v8894, %v8926
        %v8952 = vcombine.low %v8901, %v8933
        %v8953 = vcombine.high %v8901, %v8933
        %v8954 = vcombine.low %v8910, %v8942
        %v8955 = vcombine.high %v8910, %v8942
        %v8956 = vcombine.low %v8917, %v8949
        %v8957 = vcombine.high %v8917, %v8949
        %8959 = vrot.lane.b32.xlu0 %v8815, 16
        %v8960 = vpop.permute.xlu0 %8959
        %8963 = vrot.lane.b32.xlu0 %v8816, 32
        %v8964 = vpop.permute.xlu0 %8963
        %8967 = vrot.lane.b32.xlu0 %v8817, 48
        %v8968 = vpop.permute.xlu0 %8967
        %8971 = vrot.lane.b32.xlu0 %v8818, 64
        %v8972 = vpop.permute.xlu0 %8971
        %8975 = vrot.lane.b32.xlu0 %v8819, 80
        %v8976 = vpop.permute.xlu0 %8975
        %8979 = vrot.lane.b32.xlu0 %v8820, 96
        %v8980 = vpop.permute.xlu0 %8979
        %8983 = vrot.lane.b32.xlu0 %v8821, 112
        %v8984 = vpop.permute.xlu0 %8983
        %8987 = vrot.lane.b32.xlu0 %v8951, 16
        %v8988 = vpop.permute.xlu0 %8987
        %8991 = vrot.lane.b32.xlu0 %v8952, 32
        %v8992 = vpop.permute.xlu0 %8991
        %8995 = vrot.lane.b32.xlu0 %v8953, 48
        %v8996 = vpop.permute.xlu0 %8995
        %8999 = vrot.lane.b32.xlu0 %v8954, 64
        %v9000 = vpop.permute.xlu0 %8999
        %9003 = vrot.lane.b32.xlu0 %v8955, 80
        %v9004 = vpop.permute.xlu0 %9003
        %9007 = vrot.lane.b32.xlu0 %v8956, 96
        %v9008 = vpop.permute.xlu0 %9007
        %9011 = vrot.lane.b32.xlu0 %v8957, 112
        %v9012 = vpop.permute.xlu0 %9011
        %v9014 = vsel %vm975, %v8814, %v8960
        %v9015 = vsel %vm978, %v9014, %v8964
        %v9016 = vsel %vm981, %v9015, %v8968
        %v9017 = vsel %vm984, %v9016, %v8972
        %v9018 = vsel %vm987, %v9017, %v8976
        %v9019 = vsel %vm990, %v9018, %v8980
        %v9020 = vsel %vm993, %v9019, %v8984
        %v9021 = vsel %vm975, %v8950, %v8988
        %v9022 = vsel %vm978, %v9021, %v8992
        %v9023 = vsel %vm981, %v9022, %v8996
        %v9024 = vsel %vm984, %v9023, %v9000
        %v9025 = vsel %vm987, %v9024, %v9004
        %v9026 = vsel %vm990, %v9025, %v9008
        %v9027 = vsel %vm993, %v9026, %v9012
        %v9036 = vrot.slane %v7882, 1
        %v9037 = vrot.slane %v7836, 1
        %v9038 = vsel %vm2618, %v9036, %v9037
        %v9039 = vrot.slane %v7890, 1
        %v9040 = vsel %vm2618, %v9037, %v9039
        %v9041 = vrot.slane %v7883, 1
        %v9042 = vrot.slane %v7839, 1
        %v9043 = vsel %vm2618, %v9041, %v9042
        %v9044 = vrot.slane %v7891, 1
        %v9045 = vsel %vm2618, %v9042, %v9044
        %v9046 = vrot.slane %v7884, 1
        %v9047 = vrot.slane %v7842, 1
        %v9048 = vsel %vm2618, %v9046, %v9047
        %v9049 = vrot.slane %v7892, 1
        %v9050 = vsel %vm2618, %v9047, %v9049
        %v9051 = vrot.slane %v7885, 1
        %v9052 = vrot.slane %v7845, 1
        %v9053 = vsel %vm2618, %v9051, %v9052
        %v9054 = vrot.slane %v7893, 1
        %v9055 = vsel %vm2618, %v9052, %v9054
        %v9056 = vrot.slane %v7886, 1
        %v9057 = vrot.slane %v7848, 1
        %v9058 = vsel %vm2618, %v9056, %v9057
        %v9059 = vrot.slane %v7894, 1
        %v9060 = vsel %vm2618, %v9057, %v9059
        %v9061 = vrot.slane %v7887, 1
        %v9062 = vrot.slane %v7851, 1
        %v9063 = vsel %vm2618, %v9061, %v9062
        %v9064 = vrot.slane %v7895, 1
        %v9065 = vsel %vm2618, %v9062, %v9064
        %v9066 = vrot.slane %v7888, 1
        %v9067 = vrot.slane %v7854, 1
        %v9068 = vsel %vm2618, %v9066, %v9067
        %v9069 = vrot.slane %v7896, 1
        %v9070 = vsel %vm2618, %v9067, %v9069
        %v9071 = vrot.slane %v7889, 1
        %v9072 = vrot.slane %v7857, 1
        %v9073 = vsel %vm2618, %v9071, %v9072
        %v9074 = vrot.slane %v7897, 1
        %v9075 = vsel %vm2618, %v9072, %v9074
        %v9092 = vcombine.low %v9038, %v9048
        %v9093 = vcombine.high %v9038, %v9048
        %v9095 = vunpack.c.l.s4 1983009808
        %v9096 = vunpack.c.0.s8 %v9095
        %v9097 = vlaneseq
        %v9098 = vshrl.u32 %v9097, 7
        %v9099 = vsub.s32 %v9096, %v9098
        %v9100 = vrot.slane %v9092, %v9099
        %v9102 = vunpack.c.l.s4 1983009808
        %v9103 = vunpack.c.0.s8 %v9102
        %v9104 = vlaneseq
        %v9105 = vshrl.u32 %v9104, 7
        %v9106 = vsub.s32 %v9103, %v9105
        %v9107 = vrot.slane %v9093, %v9106
        %v9108 = vcombine.low %v9043, %v9053
        %v9109 = vcombine.high %v9043, %v9053
        %v9111 = vunpack.c.l.s4 1983009808
        %v9112 = vunpack.c.0.s8 %v9111
        %v9113 = vlaneseq
        %v9114 = vshrl.u32 %v9113, 7
        %v9115 = vsub.s32 %v9112, %v9114
        %v9116 = vrot.slane %v9108, %v9115
        %v9118 = vunpack.c.l.s4 1983009808
        %v9119 = vunpack.c.0.s8 %v9118
        %v9120 = vlaneseq
        %v9121 = vshrl.u32 %v9120, 7
        %v9122 = vsub.s32 %v9119, %v9121
        %v9123 = vrot.slane %v9109, %v9122
        %v9124 = vcombine.low %v9058, %v9068
        %v9125 = vcombine.high %v9058, %v9068
        %v9127 = vunpack.c.l.s4 1983009808
        %v9128 = vunpack.c.0.s8 %v9127
        %v9129 = vlaneseq
        %v9130 = vshrl.u32 %v9129, 7
        %v9131 = vsub.s32 %v9128, %v9130
        %v9132 = vrot.slane %v9124, %v9131
        %v9134 = vunpack.c.l.s4 1983009808
        %v9135 = vunpack.c.0.s8 %v9134
        %v9136 = vlaneseq
        %v9137 = vshrl.u32 %v9136, 7
        %v9138 = vsub.s32 %v9135, %v9137
        %v9139 = vrot.slane %v9125, %v9138
        %v9140 = vcombine.low %v9063, %v9073
        %v9141 = vcombine.high %v9063, %v9073
        %v9143 = vunpack.c.l.s4 1983009808
        %v9144 = vunpack.c.0.s8 %v9143
        %v9145 = vlaneseq
        %v9146 = vshrl.u32 %v9145, 7
        %v9147 = vsub.s32 %v9144, %v9146
        %v9148 = vrot.slane %v9140, %v9147
        %v9150 = vunpack.c.l.s4 1983009808
        %v9151 = vunpack.c.0.s8 %v9150
        %v9152 = vlaneseq
        %v9153 = vshrl.u32 %v9152, 7
        %v9154 = vsub.s32 %v9151, %v9153
        %v9155 = vrot.slane %v9141, %v9154
        %v9156 = vcombine.low %v9100, %v9116
        %v9157 = vcombine.high %v9100, %v9116
        %v9159 = vunpack.c.l.s4 1934713408
        %v9160 = vunpack.c.0.s8 %v9159
        %v9161 = vlaneseq
        %v9162 = vshrl.u32 %v9161, 7
        %v9163 = vsub.s32 %v9160, %v9162
        %v9164 = vrot.slane %v9156, %v9163
        %v9166 = vunpack.c.l.s4 1934713408
        %v9167 = vunpack.c.0.s8 %v9166
        %v9168 = vlaneseq
        %v9169 = vshrl.u32 %v9168, 7
        %v9170 = vsub.s32 %v9167, %v9169
        %v9171 = vrot.slane %v9157, %v9170
        %v9172 = vcombine.low %v9107, %v9123
        %v9173 = vcombine.high %v9107, %v9123
        %v9175 = vunpack.c.l.s4 1934713408
        %v9176 = vunpack.c.0.s8 %v9175
        %v9177 = vlaneseq
        %v9178 = vshrl.u32 %v9177, 7
        %v9179 = vsub.s32 %v9176, %v9178
        %v9180 = vrot.slane %v9172, %v9179
        %v9182 = vunpack.c.l.s4 1934713408
        %v9183 = vunpack.c.0.s8 %v9182
        %v9184 = vlaneseq
        %v9185 = vshrl.u32 %v9184, 7
        %v9186 = vsub.s32 %v9183, %v9185
        %v9187 = vrot.slane %v9173, %v9186
        %v9188 = vcombine.low %v9132, %v9148
        %v9189 = vcombine.high %v9132, %v9148
        %v9191 = vunpack.c.l.s4 1934713408
        %v9192 = vunpack.c.0.s8 %v9191
        %v9193 = vlaneseq
        %v9194 = vshrl.u32 %v9193, 7
        %v9195 = vsub.s32 %v9192, %v9194
        %v9196 = vrot.slane %v9188, %v9195
        %v9198 = vunpack.c.l.s4 1934713408
        %v9199 = vunpack.c.0.s8 %v9198
        %v9200 = vlaneseq
        %v9201 = vshrl.u32 %v9200, 7
        %v9202 = vsub.s32 %v9199, %v9201
        %v9203 = vrot.slane %v9189, %v9202
        %v9204 = vcombine.low %v9139, %v9155
        %v9205 = vcombine.high %v9139, %v9155
        %v9207 = vunpack.c.l.s4 1934713408
        %v9208 = vunpack.c.0.s8 %v9207
        %v9209 = vlaneseq
        %v9210 = vshrl.u32 %v9209, 7
        %v9211 = vsub.s32 %v9208, %v9210
        %v9212 = vrot.slane %v9204, %v9211
        %v9214 = vunpack.c.l.s4 1934713408
        %v9215 = vunpack.c.0.s8 %v9214
        %v9216 = vlaneseq
        %v9217 = vshrl.u32 %v9216, 7
        %v9218 = vsub.s32 %v9215, %v9217
        %v9219 = vrot.slane %v9205, %v9218
        %v9220 = vcombine.low %v9164, %v9196
        %v9221 = vcombine.high %v9164, %v9196
        %v9222 = vcombine.low %v9171, %v9203
        %v9223 = vcombine.high %v9171, %v9203
        %v9224 = vcombine.low %v9180, %v9212
        %v9225 = vcombine.high %v9180, %v9212
        %v9226 = vcombine.low %v9187, %v9219
        %v9227 = vcombine.high %v9187, %v9219
        %v9228 = vcombine.low %v9040, %v9050
        %v9229 = vcombine.high %v9040, %v9050
        %v9231 = vunpack.c.l.s4 1983009808
        %v9232 = vunpack.c.0.s8 %v9231
        %v9233 = vlaneseq
        %v9234 = vshrl.u32 %v9233, 7
        %v9235 = vsub.s32 %v9232, %v9234
        %v9236 = vrot.slane %v9228, %v9235
        %v9238 = vunpack.c.l.s4 1983009808
        %v9239 = vunpack.c.0.s8 %v9238
        %v9240 = vlaneseq
        %v9241 = vshrl.u32 %v9240, 7
        %v9242 = vsub.s32 %v9239, %v9241
        %v9243 = vrot.slane %v9229, %v9242
        %v9244 = vcombine.low %v9045, %v9055
        %v9245 = vcombine.high %v9045, %v9055
        %v9247 = vunpack.c.l.s4 1983009808
        %v9248 = vunpack.c.0.s8 %v9247
        %v9249 = vlaneseq
        %v9250 = vshrl.u32 %v9249, 7
        %v9251 = vsub.s32 %v9248, %v9250
        %v9252 = vrot.slane %v9244, %v9251
        %v9254 = vunpack.c.l.s4 1983009808
        %v9255 = vunpack.c.0.s8 %v9254
        %v9256 = vlaneseq
        %v9257 = vshrl.u32 %v9256, 7
        %v9258 = vsub.s32 %v9255, %v9257
        %v9259 = vrot.slane %v9245, %v9258
        %v9260 = vcombine.low %v9060, %v9070
        %v9261 = vcombine.high %v9060, %v9070
        %v9263 = vunpack.c.l.s4 1983009808
        %v9264 = vunpack.c.0.s8 %v9263
        %v9265 = vlaneseq
        %v9266 = vshrl.u32 %v9265, 7
        %v9267 = vsub.s32 %v9264, %v9266
        %v9268 = vrot.slane %v9260, %v9267
        %v9270 = vunpack.c.l.s4 1983009808
        %v9271 = vunpack.c.0.s8 %v9270
        %v9272 = vlaneseq
        %v9273 = vshrl.u32 %v9272, 7
        %v9274 = vsub.s32 %v9271, %v9273
        %v9275 = vrot.slane %v9261, %v9274
        %v9276 = vcombine.low %v9065, %v9075
        %v9277 = vcombine.high %v9065, %v9075
        %v9279 = vunpack.c.l.s4 1983009808
        %v9280 = vunpack.c.0.s8 %v9279
        %v9281 = vlaneseq
        %v9282 = vshrl.u32 %v9281, 7
        %v9283 = vsub.s32 %v9280, %v9282
        %v9284 = vrot.slane %v9276, %v9283
        %v9286 = vunpack.c.l.s4 1983009808
        %v9287 = vunpack.c.0.s8 %v9286
        %v9288 = vlaneseq
        %v9289 = vshrl.u32 %v9288, 7
        %v9290 = vsub.s32 %v9287, %v9289
        %v9291 = vrot.slane %v9277, %v9290
        %v9292 = vcombine.low %v9236, %v9252
        %v9293 = vcombine.high %v9236, %v9252
        %v9295 = vunpack.c.l.s4 1934713408
        %v9296 = vunpack.c.0.s8 %v9295
        %v9297 = vlaneseq
        %v9298 = vshrl.u32 %v9297, 7
        %v9299 = vsub.s32 %v9296, %v9298
        %v9300 = vrot.slane %v9292, %v9299
        %v9302 = vunpack.c.l.s4 1934713408
        %v9303 = vunpack.c.0.s8 %v9302
        %v9304 = vlaneseq
        %v9305 = vshrl.u32 %v9304, 7
        %v9306 = vsub.s32 %v9303, %v9305
        %v9307 = vrot.slane %v9293, %v9306
        %v9308 = vcombine.low %v9243, %v9259
        %v9309 = vcombine.high %v9243, %v9259
        %v9311 = vunpack.c.l.s4 1934713408
        %v9312 = vunpack.c.0.s8 %v9311
        %v9313 = vlaneseq
        %v9314 = vshrl.u32 %v9313, 7
        %v9315 = vsub.s32 %v9312, %v9314
        %v9316 = vrot.slane %v9308, %v9315
        %v9318 = vunpack.c.l.s4 1934713408
        %v9319 = vunpack.c.0.s8 %v9318
        %v9320 = vlaneseq
        %v9321 = vshrl.u32 %v9320, 7
        %v9322 = vsub.s32 %v9319, %v9321
        %v9323 = vrot.slane %v9309, %v9322
        %v9324 = vcombine.low %v9268, %v9284
        %v9325 = vcombine.high %v9268, %v9284
        %v9327 = vunpack.c.l.s4 1934713408
        %v9328 = vunpack.c.0.s8 %v9327
        %v9329 = vlaneseq
        %v9330 = vshrl.u32 %v9329, 7
        %v9331 = vsub.s32 %v9328, %v9330
        %v9332 = vrot.slane %v9324, %v9331
        %v9334 = vunpack.c.l.s4 1934713408
        %v9335 = vunpack.c.0.s8 %v9334
        %v9336 = vlaneseq
        %v9337 = vshrl.u32 %v9336, 7
        %v9338 = vsub.s32 %v9335, %v9337
        %v9339 = vrot.slane %v9325, %v9338
        %v9340 = vcombine.low %v9275, %v9291
        %v9341 = vcombine.high %v9275, %v9291
        %v9343 = vunpack.c.l.s4 1934713408
        %v9344 = vunpack.c.0.s8 %v9343
        %v9345 = vlaneseq
        %v9346 = vshrl.u32 %v9345, 7
        %v9347 = vsub.s32 %v9344, %v9346
        %v9348 = vrot.slane %v9340, %v9347
        %v9350 = vunpack.c.l.s4 1934713408
        %v9351 = vunpack.c.0.s8 %v9350
        %v9352 = vlaneseq
        %v9353 = vshrl.u32 %v9352, 7
        %v9354 = vsub.s32 %v9351, %v9353
        %v9355 = vrot.slane %v9341, %v9354
        %v9356 = vcombine.low %v9300, %v9332
        %v9357 = vcombine.high %v9300, %v9332
        %v9358 = vcombine.low %v9307, %v9339
        %v9359 = vcombine.high %v9307, %v9339
        %v9360 = vcombine.low %v9316, %v9348
        %v9361 = vcombine.high %v9316, %v9348
        %v9362 = vcombine.low %v9323, %v9355
        %v9363 = vcombine.high %v9323, %v9355
        %9365 = vrot.lane.b32.xlu0 %v9221, 16
        %v9366 = vpop.permute.xlu0 %9365
        %9369 = vrot.lane.b32.xlu0 %v9222, 32
        %v9370 = vpop.permute.xlu0 %9369
        %9373 = vrot.lane.b32.xlu0 %v9223, 48
        %v9374 = vpop.permute.xlu0 %9373
        %9377 = vrot.lane.b32.xlu0 %v9224, 64
        %v9378 = vpop.permute.xlu0 %9377
        %9381 = vrot.lane.b32.xlu0 %v9225, 80
        %v9382 = vpop.permute.xlu0 %9381
        %9385 = vrot.lane.b32.xlu0 %v9226, 96
        %v9386 = vpop.permute.xlu0 %9385
        %9389 = vrot.lane.b32.xlu0 %v9227, 112
        %v9390 = vpop.permute.xlu0 %9389
        %9393 = vrot.lane.b32.xlu0 %v9357, 16
        %v9394 = vpop.permute.xlu0 %9393
        %9397 = vrot.lane.b32.xlu0 %v9358, 32
        %v9398 = vpop.permute.xlu0 %9397
        %9401 = vrot.lane.b32.xlu0 %v9359, 48
        %v9402 = vpop.permute.xlu0 %9401
        %9405 = vrot.lane.b32.xlu0 %v9360, 64
        %v9406 = vpop.permute.xlu0 %9405
        %9409 = vrot.lane.b32.xlu0 %v9361, 80
        %v9410 = vpop.permute.xlu0 %9409
        %9413 = vrot.lane.b32.xlu0 %v9362, 96
        %v9414 = vpop.permute.xlu0 %9413
        %9417 = vrot.lane.b32.xlu0 %v9363, 112
        %v9418 = vpop.permute.xlu0 %9417
        %v9420 = vsel %vm975, %v9220, %v9366
        %v9421 = vsel %vm978, %v9420, %v9370
        %v9422 = vsel %vm981, %v9421, %v9374
        %v9423 = vsel %vm984, %v9422, %v9378
        %v9424 = vsel %vm987, %v9423, %v9382
        %v9425 = vsel %vm990, %v9424, %v9386
        %v9426 = vsel %vm993, %v9425, %v9390
        %v9427 = vsel %vm975, %v9356, %v9394
        %v9428 = vsel %vm978, %v9427, %v9398
        %v9429 = vsel %vm981, %v9428, %v9402
        %v9430 = vsel %vm984, %v9429, %v9406
        %v9431 = vsel %vm987, %v9430, %v9410
        %v9432 = vsel %vm990, %v9431, %v9414
        %v9433 = vsel %vm993, %v9432, %v9418
        %9434 = vrot.lane.b32.xlu0 %v9038, 127
        %v9435 = vpop.permute.xlu0 %9434
        %9436 = vrot.lane.b32.xlu0 %v9040, 127
        %v9437 = vpop.permute.xlu0 %9436
        %9438 = vrot.lane.b32.xlu0 %v9043, 127
        %v9439 = vpop.permute.xlu0 %9438
        %9440 = vrot.lane.b32.xlu0 %v9045, 127
        %v9441 = vpop.permute.xlu0 %9440
        %9442 = vrot.lane.b32.xlu0 %v9048, 127
        %v9443 = vpop.permute.xlu0 %9442
        %9444 = vrot.lane.b32.xlu0 %v9050, 127
        %v9445 = vpop.permute.xlu0 %9444
        %9446 = vrot.lane.b32.xlu0 %v9053, 127
        %v9447 = vpop.permute.xlu0 %9446
        %9448 = vrot.lane.b32.xlu0 %v9055, 127
        %v9449 = vpop.permute.xlu0 %9448
        %9450 = vrot.lane.b32.xlu0 %v9058, 127
        %v9451 = vpop.permute.xlu0 %9450
        %9452 = vrot.lane.b32.xlu0 %v9060, 127
        %v9453 = vpop.permute.xlu0 %9452
        %9454 = vrot.lane.b32.xlu0 %v9063, 127
        %v9455 = vpop.permute.xlu0 %9454
        %9456 = vrot.lane.b32.xlu0 %v9065, 127
        %v9457 = vpop.permute.xlu0 %9456
        %9458 = vrot.lane.b32.xlu0 %v9068, 127
        %v9459 = vpop.permute.xlu0 %9458
        %9460 = vrot.lane.b32.xlu0 %v9070, 127
        %v9461 = vpop.permute.xlu0 %9460
        %9462 = vrot.lane.b32.xlu0 %v9073, 127
        %v9463 = vpop.permute.xlu0 %9462
        %9464 = vrot.lane.b32.xlu0 %v9075, 127
        %v9465 = vpop.permute.xlu0 %9464
        %v9482 = vcombine.low %v9435, %v9443
        %v9483 = vcombine.high %v9435, %v9443
        %v9485 = vunpack.c.l.s4 1983009808
        %v9486 = vunpack.c.0.s8 %v9485
        %v9487 = vlaneseq
        %v9488 = vshrl.u32 %v9487, 7
        %v9489 = vsub.s32 %v9486, %v9488
        %v9490 = vrot.slane %v9482, %v9489
        %v9492 = vunpack.c.l.s4 1983009808
        %v9493 = vunpack.c.0.s8 %v9492
        %v9494 = vlaneseq
        %v9495 = vshrl.u32 %v9494, 7
        %v9496 = vsub.s32 %v9493, %v9495
        %v9497 = vrot.slane %v9483, %v9496
        %v9498 = vcombine.low %v9439, %v9447
        %v9499 = vcombine.high %v9439, %v9447
        %v9501 = vunpack.c.l.s4 1983009808
        %v9502 = vunpack.c.0.s8 %v9501
        %v9503 = vlaneseq
        %v9504 = vshrl.u32 %v9503, 7
        %v9505 = vsub.s32 %v9502, %v9504
        %v9506 = vrot.slane %v9498, %v9505
        %v9508 = vunpack.c.l.s4 1983009808
        %v9509 = vunpack.c.0.s8 %v9508
        %v9510 = vlaneseq
        %v9511 = vshrl.u32 %v9510, 7
        %v9512 = vsub.s32 %v9509, %v9511
        %v9513 = vrot.slane %v9499, %v9512
        %v9514 = vcombine.low %v9451, %v9459
        %v9515 = vcombine.high %v9451, %v9459
        %v9517 = vunpack.c.l.s4 1983009808
        %v9518 = vunpack.c.0.s8 %v9517
        %v9519 = vlaneseq
        %v9520 = vshrl.u32 %v9519, 7
        %v9521 = vsub.s32 %v9518, %v9520
        %v9522 = vrot.slane %v9514, %v9521
        %v9524 = vunpack.c.l.s4 1983009808
        %v9525 = vunpack.c.0.s8 %v9524
        %v9526 = vlaneseq
        %v9527 = vshrl.u32 %v9526, 7
        %v9528 = vsub.s32 %v9525, %v9527
        %v9529 = vrot.slane %v9515, %v9528
        %v9530 = vcombine.low %v9455, %v9463
        %v9531 = vcombine.high %v9455, %v9463
        %v9533 = vunpack.c.l.s4 1983009808
        %v9534 = vunpack.c.0.s8 %v9533
        %v9535 = vlaneseq
        %v9536 = vshrl.u32 %v9535, 7
        %v9537 = vsub.s32 %v9534, %v9536
        %v9538 = vrot.slane %v9530, %v9537
        %v9540 = vunpack.c.l.s4 1983009808
        %v9541 = vunpack.c.0.s8 %v9540
        %v9542 = vlaneseq
        %v9543 = vshrl.u32 %v9542, 7
        %v9544 = vsub.s32 %v9541, %v9543
        %v9545 = vrot.slane %v9531, %v9544
        %v9546 = vcombine.low %v9490, %v9506
        %v9547 = vcombine.high %v9490, %v9506
        %v9549 = vunpack.c.l.s4 1934713408
        %v9550 = vunpack.c.0.s8 %v9549
        %v9551 = vlaneseq
        %v9552 = vshrl.u32 %v9551, 7
        %v9553 = vsub.s32 %v9550, %v9552
        %v9554 = vrot.slane %v9546, %v9553
        %v9556 = vunpack.c.l.s4 1934713408
        %v9557 = vunpack.c.0.s8 %v9556
        %v9558 = vlaneseq
        %v9559 = vshrl.u32 %v9558, 7
        %v9560 = vsub.s32 %v9557, %v9559
        %v9561 = vrot.slane %v9547, %v9560
        %v9562 = vcombine.low %v9497, %v9513
        %v9563 = vcombine.high %v9497, %v9513
        %v9565 = vunpack.c.l.s4 1934713408
        %v9566 = vunpack.c.0.s8 %v9565
        %v9567 = vlaneseq
        %v9568 = vshrl.u32 %v9567, 7
        %v9569 = vsub.s32 %v9566, %v9568
        %v9570 = vrot.slane %v9562, %v9569
        %v9572 = vunpack.c.l.s4 1934713408
        %v9573 = vunpack.c.0.s8 %v9572
        %v9574 = vlaneseq
        %v9575 = vshrl.u32 %v9574, 7
        %v9576 = vsub.s32 %v9573, %v9575
        %v9577 = vrot.slane %v9563, %v9576
        %v9578 = vcombine.low %v9522, %v9538
        %v9579 = vcombine.high %v9522, %v9538
        %v9581 = vunpack.c.l.s4 1934713408
        %v9582 = vunpack.c.0.s8 %v9581
        %v9583 = vlaneseq
        %v9584 = vshrl.u32 %v9583, 7
        %v9585 = vsub.s32 %v9582, %v9584
        %v9586 = vrot.slane %v9578, %v9585
        %v9588 = vunpack.c.l.s4 1934713408
        %v9589 = vunpack.c.0.s8 %v9588
        %v9590 = vlaneseq
        %v9591 = vshrl.u32 %v9590, 7
        %v9592 = vsub.s32 %v9589, %v9591
        %v9593 = vrot.slane %v9579, %v9592
        %v9594 = vcombine.low %v9529, %v9545
        %v9595 = vcombine.high %v9529, %v9545
        %v9597 = vunpack.c.l.s4 1934713408
        %v9598 = vunpack.c.0.s8 %v9597
        %v9599 = vlaneseq
        %v9600 = vshrl.u32 %v9599, 7
        %v9601 = vsub.s32 %v9598, %v9600
        %v9602 = vrot.slane %v9594, %v9601
        %v9604 = vunpack.c.l.s4 1934713408
        %v9605 = vunpack.c.0.s8 %v9604
        %v9606 = vlaneseq
        %v9607 = vshrl.u32 %v9606, 7
        %v9608 = vsub.s32 %v9605, %v9607
        %v9609 = vrot.slane %v9595, %v9608
        %v9610 = vcombine.low %v9554, %v9586
        %v9611 = vcombine.high %v9554, %v9586
        %v9612 = vcombine.low %v9561, %v9593
        %v9613 = vcombine.high %v9561, %v9593
        %v9614 = vcombine.low %v9570, %v9602
        %v9615 = vcombine.high %v9570, %v9602
        %v9616 = vcombine.low %v9577, %v9609
        %v9617 = vcombine.high %v9577, %v9609
        %v9618 = vcombine.low %v9437, %v9445
        %v9619 = vcombine.high %v9437, %v9445
        %v9621 = vunpack.c.l.s4 1983009808
        %v9622 = vunpack.c.0.s8 %v9621
        %v9623 = vlaneseq
        %v9624 = vshrl.u32 %v9623, 7
        %v9625 = vsub.s32 %v9622, %v9624
        %v9626 = vrot.slane %v9618, %v9625
        %v9628 = vunpack.c.l.s4 1983009808
        %v9629 = vunpack.c.0.s8 %v9628
        %v9630 = vlaneseq
        %v9631 = vshrl.u32 %v9630, 7
        %v9632 = vsub.s32 %v9629, %v9631
        %v9633 = vrot.slane %v9619, %v9632
        %v9634 = vcombine.low %v9441, %v9449
        %v9635 = vcombine.high %v9441, %v9449
        %v9637 = vunpack.c.l.s4 1983009808
        %v9638 = vunpack.c.0.s8 %v9637
        %v9639 = vlaneseq
        %v9640 = vshrl.u32 %v9639, 7
        %v9641 = vsub.s32 %v9638, %v9640
        %v9642 = vrot.slane %v9634, %v9641
        %v9644 = vunpack.c.l.s4 1983009808
        %v9645 = vunpack.c.0.s8 %v9644
        %v9646 = vlaneseq
        %v9647 = vshrl.u32 %v9646, 7
        %v9648 = vsub.s32 %v9645, %v9647
        %v9649 = vrot.slane %v9635, %v9648
        %v9650 = vcombine.low %v9453, %v9461
        %v9651 = vcombine.high %v9453, %v9461
        %v9653 = vunpack.c.l.s4 1983009808
        %v9654 = vunpack.c.0.s8 %v9653
        %v9655 = vlaneseq
        %v9656 = vshrl.u32 %v9655, 7
        %v9657 = vsub.s32 %v9654, %v9656
        %v9658 = vrot.slane %v9650, %v9657
        %v9660 = vunpack.c.l.s4 1983009808
        %v9661 = vunpack.c.0.s8 %v9660
        %v9662 = vlaneseq
        %v9663 = vshrl.u32 %v9662, 7
        %v9664 = vsub.s32 %v9661, %v9663
        %v9665 = vrot.slane %v9651, %v9664
        %v9666 = vcombine.low %v9457, %v9465
        %v9667 = vcombine.high %v9457, %v9465
        %v9669 = vunpack.c.l.s4 1983009808
        %v9670 = vunpack.c.0.s8 %v9669
        %v9671 = vlaneseq
        %v9672 = vshrl.u32 %v9671, 7
        %v9673 = vsub.s32 %v9670, %v9672
        %v9674 = vrot.slane %v9666, %v9673
        %v9676 = vunpack.c.l.s4 1983009808
        %v9677 = vunpack.c.0.s8 %v9676
        %v9678 = vlaneseq
        %v9679 = vshrl.u32 %v9678, 7
        %v9680 = vsub.s32 %v9677, %v9679
        %v9681 = vrot.slane %v9667, %v9680
        %v9682 = vcombine.low %v9626, %v9642
        %v9683 = vcombine.high %v9626, %v9642
        %v9685 = vunpack.c.l.s4 1934713408
        %v9686 = vunpack.c.0.s8 %v9685
        %v9687 = vlaneseq
        %v9688 = vshrl.u32 %v9687, 7
        %v9689 = vsub.s32 %v9686, %v9688
        %v9690 = vrot.slane %v9682, %v9689
        %v9692 = vunpack.c.l.s4 1934713408
        %v9693 = vunpack.c.0.s8 %v9692
        %v9694 = vlaneseq
        %v9695 = vshrl.u32 %v9694, 7
        %v9696 = vsub.s32 %v9693, %v9695
        %v9697 = vrot.slane %v9683, %v9696
        %v9698 = vcombine.low %v9633, %v9649
        %v9699 = vcombine.high %v9633, %v9649
        %v9701 = vunpack.c.l.s4 1934713408
        %v9702 = vunpack.c.0.s8 %v9701
        %v9703 = vlaneseq
        %v9704 = vshrl.u32 %v9703, 7
        %v9705 = vsub.s32 %v9702, %v9704
        %v9706 = vrot.slane %v9698, %v9705
        %v9708 = vunpack.c.l.s4 1934713408
        %v9709 = vunpack.c.0.s8 %v9708
        %v9710 = vlaneseq
        %v9711 = vshrl.u32 %v9710, 7
        %v9712 = vsub.s32 %v9709, %v9711
        %v9713 = vrot.slane %v9699, %v9712
        %v9714 = vcombine.low %v9658, %v9674
        %v9715 = vcombine.high %v9658, %v9674
        %v9717 = vunpack.c.l.s4 1934713408
        %v9718 = vunpack.c.0.s8 %v9717
        %v9719 = vlaneseq
        %v9720 = vshrl.u32 %v9719, 7
        %v9721 = vsub.s32 %v9718, %v9720
        %v9722 = vrot.slane %v9714, %v9721
        %v9724 = vunpack.c.l.s4 1934713408
        %v9725 = vunpack.c.0.s8 %v9724
        %v9726 = vlaneseq
        %v9727 = vshrl.u32 %v9726, 7
        %v9728 = vsub.s32 %v9725, %v9727
        %v9729 = vrot.slane %v9715, %v9728
        %v9730 = vcombine.low %v9665, %v9681
        %v9731 = vcombine.high %v9665, %v9681
        %v9733 = vunpack.c.l.s4 1934713408
        %v9734 = vunpack.c.0.s8 %v9733
        %v9735 = vlaneseq
        %v9736 = vshrl.u32 %v9735, 7
        %v9737 = vsub.s32 %v9734, %v9736
        %v9738 = vrot.slane %v9730, %v9737
        %v9740 = vunpack.c.l.s4 1934713408
        %v9741 = vunpack.c.0.s8 %v9740
        %v9742 = vlaneseq
        %v9743 = vshrl.u32 %v9742, 7
        %v9744 = vsub.s32 %v9741, %v9743
        %v9745 = vrot.slane %v9731, %v9744
        %v9746 = vcombine.low %v9690, %v9722
        %v9747 = vcombine.high %v9690, %v9722
        %v9748 = vcombine.low %v9697, %v9729
        %v9749 = vcombine.high %v9697, %v9729
        %v9750 = vcombine.low %v9706, %v9738
        %v9751 = vcombine.high %v9706, %v9738
        %v9752 = vcombine.low %v9713, %v9745
        %v9753 = vcombine.high %v9713, %v9745
        %9755 = vrot.lane.b32.xlu0 %v9611, 16
        %v9756 = vpop.permute.xlu0 %9755
        %9759 = vrot.lane.b32.xlu0 %v9612, 32
        %v9760 = vpop.permute.xlu0 %9759
        %9763 = vrot.lane.b32.xlu0 %v9613, 48
        %v9764 = vpop.permute.xlu0 %9763
        %9767 = vrot.lane.b32.xlu0 %v9614, 64
        %v9768 = vpop.permute.xlu0 %9767
        %9771 = vrot.lane.b32.xlu0 %v9615, 80
        %v9772 = vpop.permute.xlu0 %9771
        %9775 = vrot.lane.b32.xlu0 %v9616, 96
        %v9776 = vpop.permute.xlu0 %9775
        %9779 = vrot.lane.b32.xlu0 %v9617, 112
        %v9780 = vpop.permute.xlu0 %9779
        %9783 = vrot.lane.b32.xlu0 %v9747, 16
        %v9784 = vpop.permute.xlu0 %9783
        %9787 = vrot.lane.b32.xlu0 %v9748, 32
        %v9788 = vpop.permute.xlu0 %9787
        %9791 = vrot.lane.b32.xlu0 %v9749, 48
        %v9792 = vpop.permute.xlu0 %9791
        %9795 = vrot.lane.b32.xlu0 %v9750, 64
        %v9796 = vpop.permute.xlu0 %9795
        %9799 = vrot.lane.b32.xlu0 %v9751, 80
        %v9800 = vpop.permute.xlu0 %9799
        %9803 = vrot.lane.b32.xlu0 %v9752, 96
        %v9804 = vpop.permute.xlu0 %9803
        %9807 = vrot.lane.b32.xlu0 %v9753, 112
        %v9808 = vpop.permute.xlu0 %9807
        %v9810 = vsel %vm975, %v9610, %v9756
        %v9811 = vsel %vm978, %v9810, %v9760
        %v9812 = vsel %vm981, %v9811, %v9764
        %v9813 = vsel %vm984, %v9812, %v9768
        %v9814 = vsel %vm987, %v9813, %v9772
        %v9815 = vsel %vm990, %v9814, %v9776
        %v9816 = vsel %vm993, %v9815, %v9780
        %v9817 = vsel %vm975, %v9746, %v9784
        %v9818 = vsel %vm978, %v9817, %v9788
        %v9819 = vsel %vm981, %v9818, %v9792
        %v9820 = vsel %vm984, %v9819, %v9796
        %v9821 = vsel %vm987, %v9820, %v9800
        %v9822 = vsel %vm990, %v9821, %v9804
        %v9823 = vsel %vm993, %v9822, %v9808
        %9824 = vrot.lane.b32.xlu0 %v9038, 126
        %v9825 = vpop.permute.xlu0 %9824
        %9826 = vrot.lane.b32.xlu0 %v9040, 126
        %v9827 = vpop.permute.xlu0 %9826
        %9828 = vrot.lane.b32.xlu0 %v9043, 126
        %v9829 = vpop.permute.xlu0 %9828
        %9830 = vrot.lane.b32.xlu0 %v9045, 126
        %v9831 = vpop.permute.xlu0 %9830
        %9832 = vrot.lane.b32.xlu0 %v9048, 126
        %v9833 = vpop.permute.xlu0 %9832
        %9834 = vrot.lane.b32.xlu0 %v9050, 126
        %v9835 = vpop.permute.xlu0 %9834
        %9836 = vrot.lane.b32.xlu0 %v9053, 126
        %v9837 = vpop.permute.xlu0 %9836
        %9838 = vrot.lane.b32.xlu0 %v9055, 126
        %v9839 = vpop.permute.xlu0 %9838
        %9840 = vrot.lane.b32.xlu0 %v9058, 126
        %v9841 = vpop.permute.xlu0 %9840
        %9842 = vrot.lane.b32.xlu0 %v9060, 126
        %v9843 = vpop.permute.xlu0 %9842
        %9844 = vrot.lane.b32.xlu0 %v9063, 126
        %v9845 = vpop.permute.xlu0 %9844
        %9846 = vrot.lane.b32.xlu0 %v9065, 126
        %v9847 = vpop.permute.xlu0 %9846
        %9848 = vrot.lane.b32.xlu0 %v9068, 126
        %v9849 = vpop.permute.xlu0 %9848
        %9850 = vrot.lane.b32.xlu0 %v9070, 126
        %v9851 = vpop.permute.xlu0 %9850
        %9852 = vrot.lane.b32.xlu0 %v9073, 126
        %v9853 = vpop.permute.xlu0 %9852
        %9854 = vrot.lane.b32.xlu0 %v9075, 126
        %v9855 = vpop.permute.xlu0 %9854
        %v9872 = vcombine.low %v9825, %v9833
        %v9873 = vcombine.high %v9825, %v9833
        %v9875 = vunpack.c.l.s4 1983009808
        %v9876 = vunpack.c.0.s8 %v9875
        %v9877 = vlaneseq
        %v9878 = vshrl.u32 %v9877, 7
        %v9879 = vsub.s32 %v9876, %v9878
        %v9880 = vrot.slane %v9872, %v9879
        %v9882 = vunpack.c.l.s4 1983009808
        %v9883 = vunpack.c.0.s8 %v9882
        %v9884 = vlaneseq
        %v9885 = vshrl.u32 %v9884, 7
        %v9886 = vsub.s32 %v9883, %v9885
        %v9887 = vrot.slane %v9873, %v9886
        %v9888 = vcombine.low %v9829, %v9837
        %v9889 = vcombine.high %v9829, %v9837
        %v9891 = vunpack.c.l.s4 1983009808
        %v9892 = vunpack.c.0.s8 %v9891
        %v9893 = vlaneseq
        %v9894 = vshrl.u32 %v9893, 7
        %v9895 = vsub.s32 %v9892, %v9894
        %v9896 = vrot.slane %v9888, %v9895
        %v9898 = vunpack.c.l.s4 1983009808
        %v9899 = vunpack.c.0.s8 %v9898
        %v9900 = vlaneseq
        %v9901 = vshrl.u32 %v9900, 7
        %v9902 = vsub.s32 %v9899, %v9901
        %v9903 = vrot.slane %v9889, %v9902
        %v9904 = vcombine.low %v9841, %v9849
        %v9905 = vcombine.high %v9841, %v9849
        %v9907 = vunpack.c.l.s4 1983009808
        %v9908 = vunpack.c.0.s8 %v9907
        %v9909 = vlaneseq
        %v9910 = vshrl.u32 %v9909, 7
        %v9911 = vsub.s32 %v9908, %v9910
        %v9912 = vrot.slane %v9904, %v9911
        %v9914 = vunpack.c.l.s4 1983009808
        %v9915 = vunpack.c.0.s8 %v9914
        %v9916 = vlaneseq
        %v9917 = vshrl.u32 %v9916, 7
        %v9918 = vsub.s32 %v9915, %v9917
        %v9919 = vrot.slane %v9905, %v9918
        %v9920 = vcombine.low %v9845, %v9853
        %v9921 = vcombine.high %v9845, %v9853
        %v9923 = vunpack.c.l.s4 1983009808
        %v9924 = vunpack.c.0.s8 %v9923
        %v9925 = vlaneseq
        %v9926 = vshrl.u32 %v9925, 7
        %v9927 = vsub.s32 %v9924, %v9926
        %v9928 = vrot.slane %v9920, %v9927
        %v9930 = vunpack.c.l.s4 1983009808
        %v9931 = vunpack.c.0.s8 %v9930
        %v9932 = vlaneseq
        %v9933 = vshrl.u32 %v9932, 7
        %v9934 = vsub.s32 %v9931, %v9933
        %v9935 = vrot.slane %v9921, %v9934
        %v9936 = vcombine.low %v9880, %v9896
        %v9937 = vcombine.high %v9880, %v9896
        %v9939 = vunpack.c.l.s4 1934713408
        %v9940 = vunpack.c.0.s8 %v9939
        %v9941 = vlaneseq
        %v9942 = vshrl.u32 %v9941, 7
        %v9943 = vsub.s32 %v9940, %v9942
        %v9944 = vrot.slane %v9936, %v9943
        %v9946 = vunpack.c.l.s4 1934713408
        %v9947 = vunpack.c.0.s8 %v9946
        %v9948 = vlaneseq
        %v9949 = vshrl.u32 %v9948, 7
        %v9950 = vsub.s32 %v9947, %v9949
        %v9951 = vrot.slane %v9937, %v9950
        %v9952 = vcombine.low %v9887, %v9903
        %v9953 = vcombine.high %v9887, %v9903
        %v9955 = vunpack.c.l.s4 1934713408
        %v9956 = vunpack.c.0.s8 %v9955
        %v9957 = vlaneseq
        %v9958 = vshrl.u32 %v9957, 7
        %v9959 = vsub.s32 %v9956, %v9958
        %v9960 = vrot.slane %v9952, %v9959
        %v9962 = vunpack.c.l.s4 1934713408
        %v9963 = vunpack.c.0.s8 %v9962
        %v9964 = vlaneseq
        %v9965 = vshrl.u32 %v9964, 7
        %v9966 = vsub.s32 %v9963, %v9965
        %v9967 = vrot.slane %v9953, %v9966
        %v9968 = vcombine.low %v9912, %v9928
        %v9969 = vcombine.high %v9912, %v9928
        %v9971 = vunpack.c.l.s4 1934713408
        %v9972 = vunpack.c.0.s8 %v9971
        %v9973 = vlaneseq
        %v9974 = vshrl.u32 %v9973, 7
        %v9975 = vsub.s32 %v9972, %v9974
        %v9976 = vrot.slane %v9968, %v9975
        %v9978 = vunpack.c.l.s4 1934713408
        %v9979 = vunpack.c.0.s8 %v9978
        %v9980 = vlaneseq
        %v9981 = vshrl.u32 %v9980, 7
        %v9982 = vsub.s32 %v9979, %v9981
        %v9983 = vrot.slane %v9969, %v9982
        %v9984 = vcombine.low %v9919, %v9935
        %v9985 = vcombine.high %v9919, %v9935
        %v9987 = vunpack.c.l.s4 1934713408
        %v9988 = vunpack.c.0.s8 %v9987
        %v9989 = vlaneseq
        %v9990 = vshrl.u32 %v9989, 7
        %v9991 = vsub.s32 %v9988, %v9990
        %v9992 = vrot.slane %v9984, %v9991
        %v9994 = vunpack.c.l.s4 1934713408
        %v9995 = vunpack.c.0.s8 %v9994
        %v9996 = vlaneseq
        %v9997 = vshrl.u32 %v9996, 7
        %v9998 = vsub.s32 %v9995, %v9997
        %v9999 = vrot.slane %v9985, %v9998
        %v10000 = vcombine.low %v9944, %v9976
        %v10001 = vcombine.high %v9944, %v9976
        %v10002 = vcombine.low %v9951, %v9983
        %v10003 = vcombine.high %v9951, %v9983
        %v10004 = vcombine.low %v9960, %v9992
        %v10005 = vcombine.high %v9960, %v9992
        %v10006 = vcombine.low %v9967, %v9999
        %v10007 = vcombine.high %v9967, %v9999
        %v10008 = vcombine.low %v9827, %v9835
        %v10009 = vcombine.high %v9827, %v9835
        %v10011 = vunpack.c.l.s4 1983009808
        %v10012 = vunpack.c.0.s8 %v10011
        %v10013 = vlaneseq
        %v10014 = vshrl.u32 %v10013, 7
        %v10015 = vsub.s32 %v10012, %v10014
        %v10016 = vrot.slane %v10008, %v10015
        %v10018 = vunpack.c.l.s4 1983009808
        %v10019 = vunpack.c.0.s8 %v10018
        %v10020 = vlaneseq
        %v10021 = vshrl.u32 %v10020, 7
        %v10022 = vsub.s32 %v10019, %v10021
        %v10023 = vrot.slane %v10009, %v10022
        %v10024 = vcombine.low %v9831, %v9839
        %v10025 = vcombine.high %v9831, %v9839
        %v10027 = vunpack.c.l.s4 1983009808
        %v10028 = vunpack.c.0.s8 %v10027
        %v10029 = vlaneseq
        %v10030 = vshrl.u32 %v10029, 7
        %v10031 = vsub.s32 %v10028, %v10030
        %v10032 = vrot.slane %v10024, %v10031
        %v10034 = vunpack.c.l.s4 1983009808
        %v10035 = vunpack.c.0.s8 %v10034
        %v10036 = vlaneseq
        %v10037 = vshrl.u32 %v10036, 7
        %v10038 = vsub.s32 %v10035, %v10037
        %v10039 = vrot.slane %v10025, %v10038
        %v10040 = vcombine.low %v9843, %v9851
        %v10041 = vcombine.high %v9843, %v9851
        %v10043 = vunpack.c.l.s4 1983009808
        %v10044 = vunpack.c.0.s8 %v10043
        %v10045 = vlaneseq
        %v10046 = vshrl.u32 %v10045, 7
        %v10047 = vsub.s32 %v10044, %v10046
        %v10048 = vrot.slane %v10040, %v10047
        %v10050 = vunpack.c.l.s4 1983009808
        %v10051 = vunpack.c.0.s8 %v10050
        %v10052 = vlaneseq
        %v10053 = vshrl.u32 %v10052, 7
        %v10054 = vsub.s32 %v10051, %v10053
        %v10055 = vrot.slane %v10041, %v10054
        %v10056 = vcombine.low %v9847, %v9855
        %v10057 = vcombine.high %v9847, %v9855
        %v10059 = vunpack.c.l.s4 1983009808
        %v10060 = vunpack.c.0.s8 %v10059
        %v10061 = vlaneseq
        %v10062 = vshrl.u32 %v10061, 7
        %v10063 = vsub.s32 %v10060, %v10062
        %v10064 = vrot.slane %v10056, %v10063
        %v10066 = vunpack.c.l.s4 1983009808
        %v10067 = vunpack.c.0.s8 %v10066
        %v10068 = vlaneseq
        %v10069 = vshrl.u32 %v10068, 7
        %v10070 = vsub.s32 %v10067, %v10069
        %v10071 = vrot.slane %v10057, %v10070
        %v10072 = vcombine.low %v10016, %v10032
        %v10073 = vcombine.high %v10016, %v10032
        %v10075 = vunpack.c.l.s4 1934713408
        %v10076 = vunpack.c.0.s8 %v10075
        %v10077 = vlaneseq
        %v10078 = vshrl.u32 %v10077, 7
        %v10079 = vsub.s32 %v10076, %v10078
        %v10080 = vrot.slane %v10072, %v10079
        %v10082 = vunpack.c.l.s4 1934713408
        %v10083 = vunpack.c.0.s8 %v10082
        %v10084 = vlaneseq
        %v10085 = vshrl.u32 %v10084, 7
        %v10086 = vsub.s32 %v10083, %v10085
        %v10087 = vrot.slane %v10073, %v10086
        %v10088 = vcombine.low %v10023, %v10039
        %v10089 = vcombine.high %v10023, %v10039
        %v10091 = vunpack.c.l.s4 1934713408
        %v10092 = vunpack.c.0.s8 %v10091
        %v10093 = vlaneseq
        %v10094 = vshrl.u32 %v10093, 7
        %v10095 = vsub.s32 %v10092, %v10094
        %v10096 = vrot.slane %v10088, %v10095
        %v10098 = vunpack.c.l.s4 1934713408
        %v10099 = vunpack.c.0.s8 %v10098
        %v10100 = vlaneseq
        %v10101 = vshrl.u32 %v10100, 7
        %v10102 = vsub.s32 %v10099, %v10101
        %v10103 = vrot.slane %v10089, %v10102
        %v10104 = vcombine.low %v10048, %v10064
        %v10105 = vcombine.high %v10048, %v10064
        %v10107 = vunpack.c.l.s4 1934713408
        %v10108 = vunpack.c.0.s8 %v10107
        %v10109 = vlaneseq
        %v10110 = vshrl.u32 %v10109, 7
        %v10111 = vsub.s32 %v10108, %v10110
        %v10112 = vrot.slane %v10104, %v10111
        %v10114 = vunpack.c.l.s4 1934713408
        %v10115 = vunpack.c.0.s8 %v10114
        %v10116 = vlaneseq
        %v10117 = vshrl.u32 %v10116, 7
        %v10118 = vsub.s32 %v10115, %v10117
        %v10119 = vrot.slane %v10105, %v10118
        %v10120 = vcombine.low %v10055, %v10071
        %v10121 = vcombine.high %v10055, %v10071
        %v10123 = vunpack.c.l.s4 1934713408
        %v10124 = vunpack.c.0.s8 %v10123
        %v10125 = vlaneseq
        %v10126 = vshrl.u32 %v10125, 7
        %v10127 = vsub.s32 %v10124, %v10126
        %v10128 = vrot.slane %v10120, %v10127
        %v10130 = vunpack.c.l.s4 1934713408
        %v10131 = vunpack.c.0.s8 %v10130
        %v10132 = vlaneseq
        %v10133 = vshrl.u32 %v10132, 7
        %v10134 = vsub.s32 %v10131, %v10133
        %v10135 = vrot.slane %v10121, %v10134
        %v10136 = vcombine.low %v10080, %v10112
        %v10137 = vcombine.high %v10080, %v10112
        %v10138 = vcombine.low %v10087, %v10119
        %v10139 = vcombine.high %v10087, %v10119
        %v10140 = vcombine.low %v10096, %v10128
        %v10141 = vcombine.high %v10096, %v10128
        %v10142 = vcombine.low %v10103, %v10135
        %v10143 = vcombine.high %v10103, %v10135
        %10145 = vrot.lane.b32.xlu0 %v10001, 16
        %v10146 = vpop.permute.xlu0 %10145
        %10149 = vrot.lane.b32.xlu0 %v10002, 32
        %v10150 = vpop.permute.xlu0 %10149
        %10153 = vrot.lane.b32.xlu0 %v10003, 48
        %v10154 = vpop.permute.xlu0 %10153
        %10157 = vrot.lane.b32.xlu0 %v10004, 64
        %v10158 = vpop.permute.xlu0 %10157
        %10161 = vrot.lane.b32.xlu0 %v10005, 80
        %v10162 = vpop.permute.xlu0 %10161
        %10165 = vrot.lane.b32.xlu0 %v10006, 96
        %v10166 = vpop.permute.xlu0 %10165
        %10169 = vrot.lane.b32.xlu0 %v10007, 112
        %v10170 = vpop.permute.xlu0 %10169
        %10173 = vrot.lane.b32.xlu0 %v10137, 16
        %v10174 = vpop.permute.xlu0 %10173
        %10177 = vrot.lane.b32.xlu0 %v10138, 32
        %v10178 = vpop.permute.xlu0 %10177
        %10181 = vrot.lane.b32.xlu0 %v10139, 48
        %v10182 = vpop.permute.xlu0 %10181
        %10185 = vrot.lane.b32.xlu0 %v10140, 64
        %v10186 = vpop.permute.xlu0 %10185
        %10189 = vrot.lane.b32.xlu0 %v10141, 80
        %v10190 = vpop.permute.xlu0 %10189
        %10193 = vrot.lane.b32.xlu0 %v10142, 96
        %v10194 = vpop.permute.xlu0 %10193
        %10197 = vrot.lane.b32.xlu0 %v10143, 112
        %v10198 = vpop.permute.xlu0 %10197
        %v10200 = vsel %vm975, %v10000, %v10146
        %v10201 = vsel %vm978, %v10200, %v10150
        %v10202 = vsel %vm981, %v10201, %v10154
        %v10203 = vsel %vm984, %v10202, %v10158
        %v10204 = vsel %vm987, %v10203, %v10162
        %v10205 = vsel %vm990, %v10204, %v10166
        %v10206 = vsel %vm993, %v10205, %v10170
        %v10207 = vsel %vm975, %v10136, %v10174
        %v10208 = vsel %vm978, %v10207, %v10178
        %v10209 = vsel %vm981, %v10208, %v10182
        %v10210 = vsel %vm984, %v10209, %v10186
        %v10211 = vsel %vm987, %v10210, %v10190
        %v10212 = vsel %vm990, %v10211, %v10194
        %v10213 = vsel %vm993, %v10212, %v10198
        %v10214 = vrot.slane %v7882, 2
        %v10215 = vrot.slane %v7836, 2
        %v10216 = vsel %vm4975, %v10214, %v10215
        %v10217 = vrot.slane %v7890, 2
        %v10218 = vsel %vm4975, %v10215, %v10217
        %v10219 = vrot.slane %v7883, 2
        %v10220 = vrot.slane %v7839, 2
        %v10221 = vsel %vm4975, %v10219, %v10220
        %v10222 = vrot.slane %v7891, 2
        %v10223 = vsel %vm4975, %v10220, %v10222
        %v10224 = vrot.slane %v7884, 2
        %v10225 = vrot.slane %v7842, 2
        %v10226 = vsel %vm4975, %v10224, %v10225
        %v10227 = vrot.slane %v7892, 2
        %v10228 = vsel %vm4975, %v10225, %v10227
        %v10229 = vrot.slane %v7885, 2
        %v10230 = vrot.slane %v7845, 2
        %v10231 = vsel %vm4975, %v10229, %v10230
        %v10232 = vrot.slane %v7893, 2
        %v10233 = vsel %vm4975, %v10230, %v10232
        %v10234 = vrot.slane %v7886, 2
        %v10235 = vrot.slane %v7848, 2
        %v10236 = vsel %vm4975, %v10234, %v10235
        %v10237 = vrot.slane %v7894, 2
        %v10238 = vsel %vm4975, %v10235, %v10237
        %v10239 = vrot.slane %v7887, 2
        %v10240 = vrot.slane %v7851, 2
        %v10241 = vsel %vm4975, %v10239, %v10240
        %v10242 = vrot.slane %v7895, 2
        %v10243 = vsel %vm4975, %v10240, %v10242
        %v10244 = vrot.slane %v7888, 2
        %v10245 = vrot.slane %v7854, 2
        %v10246 = vsel %vm4975, %v10244, %v10245
        %v10247 = vrot.slane %v7896, 2
        %v10248 = vsel %vm4975, %v10245, %v10247
        %v10249 = vrot.slane %v7889, 2
        %v10250 = vrot.slane %v7857, 2
        %v10251 = vsel %vm4975, %v10249, %v10250
        %v10252 = vrot.slane %v7897, 2
        %v10253 = vsel %vm4975, %v10250, %v10252
        %v10270 = vcombine.low %v10216, %v10226
        %v10271 = vcombine.high %v10216, %v10226
        %v10273 = vunpack.c.l.s4 1983009808
        %v10274 = vunpack.c.0.s8 %v10273
        %v10275 = vlaneseq
        %v10276 = vshrl.u32 %v10275, 7
        %v10277 = vsub.s32 %v10274, %v10276
        %v10278 = vrot.slane %v10270, %v10277
        %v10280 = vunpack.c.l.s4 1983009808
        %v10281 = vunpack.c.0.s8 %v10280
        %v10282 = vlaneseq
        %v10283 = vshrl.u32 %v10282, 7
        %v10284 = vsub.s32 %v10281, %v10283
        %v10285 = vrot.slane %v10271, %v10284
        %v10286 = vcombine.low %v10221, %v10231
        %v10287 = vcombine.high %v10221, %v10231
        %v10289 = vunpack.c.l.s4 1983009808
        %v10290 = vunpack.c.0.s8 %v10289
        %v10291 = vlaneseq
        %v10292 = vshrl.u32 %v10291, 7
        %v10293 = vsub.s32 %v10290, %v10292
        %v10294 = vrot.slane %v10286, %v10293
        %v10296 = vunpack.c.l.s4 1983009808
        %v10297 = vunpack.c.0.s8 %v10296
        %v10298 = vlaneseq
        %v10299 = vshrl.u32 %v10298, 7
        %v10300 = vsub.s32 %v10297, %v10299
        %v10301 = vrot.slane %v10287, %v10300
        %v10302 = vcombine.low %v10236, %v10246
        %v10303 = vcombine.high %v10236, %v10246
        %v10305 = vunpack.c.l.s4 1983009808
        %v10306 = vunpack.c.0.s8 %v10305
        %v10307 = vlaneseq
        %v10308 = vshrl.u32 %v10307, 7
        %v10309 = vsub.s32 %v10306, %v10308
        %v10310 = vrot.slane %v10302, %v10309
        %v10312 = vunpack.c.l.s4 1983009808
        %v10313 = vunpack.c.0.s8 %v10312
        %v10314 = vlaneseq
        %v10315 = vshrl.u32 %v10314, 7
        %v10316 = vsub.s32 %v10313, %v10315
        %v10317 = vrot.slane %v10303, %v10316
        %v10318 = vcombine.low %v10241, %v10251
        %v10319 = vcombine.high %v10241, %v10251
        %v10321 = vunpack.c.l.s4 1983009808
        %v10322 = vunpack.c.0.s8 %v10321
        %v10323 = vlaneseq
        %v10324 = vshrl.u32 %v10323, 7
        %v10325 = vsub.s32 %v10322, %v10324
        %v10326 = vrot.slane %v10318, %v10325
        %v10328 = vunpack.c.l.s4 1983009808
        %v10329 = vunpack.c.0.s8 %v10328
        %v10330 = vlaneseq
        %v10331 = vshrl.u32 %v10330, 7
        %v10332 = vsub.s32 %v10329, %v10331
        %v10333 = vrot.slane %v10319, %v10332
        %v10334 = vcombine.low %v10278, %v10294
        %v10335 = vcombine.high %v10278, %v10294
        %v10337 = vunpack.c.l.s4 1934713408
        %v10338 = vunpack.c.0.s8 %v10337
        %v10339 = vlaneseq
        %v10340 = vshrl.u32 %v10339, 7
        %v10341 = vsub.s32 %v10338, %v10340
        %v10342 = vrot.slane %v10334, %v10341
        %v10344 = vunpack.c.l.s4 1934713408
        %v10345 = vunpack.c.0.s8 %v10344
        %v10346 = vlaneseq
        %v10347 = vshrl.u32 %v10346, 7
        %v10348 = vsub.s32 %v10345, %v10347
        %v10349 = vrot.slane %v10335, %v10348
        %v10350 = vcombine.low %v10285, %v10301
        %v10351 = vcombine.high %v10285, %v10301
        %v10353 = vunpack.c.l.s4 1934713408
        %v10354 = vunpack.c.0.s8 %v10353
        %v10355 = vlaneseq
        %v10356 = vshrl.u32 %v10355, 7
        %v10357 = vsub.s32 %v10354, %v10356
        %v10358 = vrot.slane %v10350, %v10357
        %v10360 = vunpack.c.l.s4 1934713408
        %v10361 = vunpack.c.0.s8 %v10360
        %v10362 = vlaneseq
        %v10363 = vshrl.u32 %v10362, 7
        %v10364 = vsub.s32 %v10361, %v10363
        %v10365 = vrot.slane %v10351, %v10364
        %v10366 = vcombine.low %v10310, %v10326
        %v10367 = vcombine.high %v10310, %v10326
        %v10369 = vunpack.c.l.s4 1934713408
        %v10370 = vunpack.c.0.s8 %v10369
        %v10371 = vlaneseq
        %v10372 = vshrl.u32 %v10371, 7
        %v10373 = vsub.s32 %v10370, %v10372
        %v10374 = vrot.slane %v10366, %v10373
        %v10376 = vunpack.c.l.s4 1934713408
        %v10377 = vunpack.c.0.s8 %v10376
        %v10378 = vlaneseq
        %v10379 = vshrl.u32 %v10378, 7
        %v10380 = vsub.s32 %v10377, %v10379
        %v10381 = vrot.slane %v10367, %v10380
        %v10382 = vcombine.low %v10317, %v10333
        %v10383 = vcombine.high %v10317, %v10333
        %v10385 = vunpack.c.l.s4 1934713408
        %v10386 = vunpack.c.0.s8 %v10385
        %v10387 = vlaneseq
        %v10388 = vshrl.u32 %v10387, 7
        %v10389 = vsub.s32 %v10386, %v10388
        %v10390 = vrot.slane %v10382, %v10389
        %v10392 = vunpack.c.l.s4 1934713408
        %v10393 = vunpack.c.0.s8 %v10392
        %v10394 = vlaneseq
        %v10395 = vshrl.u32 %v10394, 7
        %v10396 = vsub.s32 %v10393, %v10395
        %v10397 = vrot.slane %v10383, %v10396
        %v10398 = vcombine.low %v10342, %v10374
        %v10399 = vcombine.high %v10342, %v10374
        %v10400 = vcombine.low %v10349, %v10381
        %v10401 = vcombine.high %v10349, %v10381
        %v10402 = vcombine.low %v10358, %v10390
        %v10403 = vcombine.high %v10358, %v10390
        %v10404 = vcombine.low %v10365, %v10397
        %v10405 = vcombine.high %v10365, %v10397
        %v10406 = vcombine.low %v10218, %v10228
        %v10407 = vcombine.high %v10218, %v10228
        %v10409 = vunpack.c.l.s4 1983009808
        %v10410 = vunpack.c.0.s8 %v10409
        %v10411 = vlaneseq
        %v10412 = vshrl.u32 %v10411, 7
        %v10413 = vsub.s32 %v10410, %v10412
        %v10414 = vrot.slane %v10406, %v10413
        %v10416 = vunpack.c.l.s4 1983009808
        %v10417 = vunpack.c.0.s8 %v10416
        %v10418 = vlaneseq
        %v10419 = vshrl.u32 %v10418, 7
        %v10420 = vsub.s32 %v10417, %v10419
        %v10421 = vrot.slane %v10407, %v10420
        %v10422 = vcombine.low %v10223, %v10233
        %v10423 = vcombine.high %v10223, %v10233
        %v10425 = vunpack.c.l.s4 1983009808
        %v10426 = vunpack.c.0.s8 %v10425
        %v10427 = vlaneseq
        %v10428 = vshrl.u32 %v10427, 7
        %v10429 = vsub.s32 %v10426, %v10428
        %v10430 = vrot.slane %v10422, %v10429
        %v10432 = vunpack.c.l.s4 1983009808
        %v10433 = vunpack.c.0.s8 %v10432
        %v10434 = vlaneseq
        %v10435 = vshrl.u32 %v10434, 7
        %v10436 = vsub.s32 %v10433, %v10435
        %v10437 = vrot.slane %v10423, %v10436
        %v10438 = vcombine.low %v10238, %v10248
        %v10439 = vcombine.high %v10238, %v10248
        %v10441 = vunpack.c.l.s4 1983009808
        %v10442 = vunpack.c.0.s8 %v10441
        %v10443 = vlaneseq
        %v10444 = vshrl.u32 %v10443, 7
        %v10445 = vsub.s32 %v10442, %v10444
        %v10446 = vrot.slane %v10438, %v10445
        %v10448 = vunpack.c.l.s4 1983009808
        %v10449 = vunpack.c.0.s8 %v10448
        %v10450 = vlaneseq
        %v10451 = vshrl.u32 %v10450, 7
        %v10452 = vsub.s32 %v10449, %v10451
        %v10453 = vrot.slane %v10439, %v10452
        %v10454 = vcombine.low %v10243, %v10253
        %v10455 = vcombine.high %v10243, %v10253
        %v10457 = vunpack.c.l.s4 1983009808
        %v10458 = vunpack.c.0.s8 %v10457
        %v10459 = vlaneseq
        %v10460 = vshrl.u32 %v10459, 7
        %v10461 = vsub.s32 %v10458, %v10460
        %v10462 = vrot.slane %v10454, %v10461
        %v10464 = vunpack.c.l.s4 1983009808
        %v10465 = vunpack.c.0.s8 %v10464
        %v10466 = vlaneseq
        %v10467 = vshrl.u32 %v10466, 7
        %v10468 = vsub.s32 %v10465, %v10467
        %v10469 = vrot.slane %v10455, %v10468
        %v10470 = vcombine.low %v10414, %v10430
        %v10471 = vcombine.high %v10414, %v10430
        %v10473 = vunpack.c.l.s4 1934713408
        %v10474 = vunpack.c.0.s8 %v10473
        %v10475 = vlaneseq
        %v10476 = vshrl.u32 %v10475, 7
        %v10477 = vsub.s32 %v10474, %v10476
        %v10478 = vrot.slane %v10470, %v10477
        %v10480 = vunpack.c.l.s4 1934713408
        %v10481 = vunpack.c.0.s8 %v10480
        %v10482 = vlaneseq
        %v10483 = vshrl.u32 %v10482, 7
        %v10484 = vsub.s32 %v10481, %v10483
        %v10485 = vrot.slane %v10471, %v10484
        %v10486 = vcombine.low %v10421, %v10437
        %v10487 = vcombine.high %v10421, %v10437
        %v10489 = vunpack.c.l.s4 1934713408
        %v10490 = vunpack.c.0.s8 %v10489
        %v10491 = vlaneseq
        %v10492 = vshrl.u32 %v10491, 7
        %v10493 = vsub.s32 %v10490, %v10492
        %v10494 = vrot.slane %v10486, %v10493
        %v10496 = vunpack.c.l.s4 1934713408
        %v10497 = vunpack.c.0.s8 %v10496
        %v10498 = vlaneseq
        %v10499 = vshrl.u32 %v10498, 7
        %v10500 = vsub.s32 %v10497, %v10499
        %v10501 = vrot.slane %v10487, %v10500
        %v10502 = vcombine.low %v10446, %v10462
        %v10503 = vcombine.high %v10446, %v10462
        %v10505 = vunpack.c.l.s4 1934713408
        %v10506 = vunpack.c.0.s8 %v10505
        %v10507 = vlaneseq
        %v10508 = vshrl.u32 %v10507, 7
        %v10509 = vsub.s32 %v10506, %v10508
        %v10510 = vrot.slane %v10502, %v10509
        %v10512 = vunpack.c.l.s4 1934713408
        %v10513 = vunpack.c.0.s8 %v10512
        %v10514 = vlaneseq
        %v10515 = vshrl.u32 %v10514, 7
        %v10516 = vsub.s32 %v10513, %v10515
        %v10517 = vrot.slane %v10503, %v10516
        %v10518 = vcombine.low %v10453, %v10469
        %v10519 = vcombine.high %v10453, %v10469
        %v10521 = vunpack.c.l.s4 1934713408
        %v10522 = vunpack.c.0.s8 %v10521
        %v10523 = vlaneseq
        %v10524 = vshrl.u32 %v10523, 7
        %v10525 = vsub.s32 %v10522, %v10524
        %v10526 = vrot.slane %v10518, %v10525
        %v10528 = vunpack.c.l.s4 1934713408
        %v10529 = vunpack.c.0.s8 %v10528
        %v10530 = vlaneseq
        %v10531 = vshrl.u32 %v10530, 7
        %v10532 = vsub.s32 %v10529, %v10531
        %v10533 = vrot.slane %v10519, %v10532
        %v10534 = vcombine.low %v10478, %v10510
        %v10535 = vcombine.high %v10478, %v10510
        %v10536 = vcombine.low %v10485, %v10517
        %v10537 = vcombine.high %v10485, %v10517
        %v10538 = vcombine.low %v10494, %v10526
        %v10539 = vcombine.high %v10494, %v10526
        %v10540 = vcombine.low %v10501, %v10533
        %v10541 = vcombine.high %v10501, %v10533
        %10543 = vrot.lane.b32.xlu0 %v10399, 16
        %v10544 = vpop.permute.xlu0 %10543
        %10547 = vrot.lane.b32.xlu0 %v10400, 32
        %v10548 = vpop.permute.xlu0 %10547
        %10551 = vrot.lane.b32.xlu0 %v10401, 48
        %v10552 = vpop.permute.xlu0 %10551
        %10555 = vrot.lane.b32.xlu0 %v10402, 64
        %v10556 = vpop.permute.xlu0 %10555
        %10559 = vrot.lane.b32.xlu0 %v10403, 80
        %v10560 = vpop.permute.xlu0 %10559
        %10563 = vrot.lane.b32.xlu0 %v10404, 96
        %v10564 = vpop.permute.xlu0 %10563
        %10567 = vrot.lane.b32.xlu0 %v10405, 112
        %v10568 = vpop.permute.xlu0 %10567
        %10571 = vrot.lane.b32.xlu0 %v10535, 16
        %v10572 = vpop.permute.xlu0 %10571
        %10575 = vrot.lane.b32.xlu0 %v10536, 32
        %v10576 = vpop.permute.xlu0 %10575
        %10579 = vrot.lane.b32.xlu0 %v10537, 48
        %v10580 = vpop.permute.xlu0 %10579
        %10583 = vrot.lane.b32.xlu0 %v10538, 64
        %v10584 = vpop.permute.xlu0 %10583
        %10587 = vrot.lane.b32.xlu0 %v10539, 80
        %v10588 = vpop.permute.xlu0 %10587
        %10591 = vrot.lane.b32.xlu0 %v10540, 96
        %v10592 = vpop.permute.xlu0 %10591
        %10595 = vrot.lane.b32.xlu0 %v10541, 112
        %v10596 = vpop.permute.xlu0 %10595
        %v10598 = vsel %vm975, %v10398, %v10544
        %v10599 = vsel %vm978, %v10598, %v10548
        %v10600 = vsel %vm981, %v10599, %v10552
        %v10601 = vsel %vm984, %v10600, %v10556
        %v10602 = vsel %vm987, %v10601, %v10560
        %v10603 = vsel %vm990, %v10602, %v10564
        %v10604 = vsel %vm993, %v10603, %v10568
        %v10605 = vsel %vm975, %v10534, %v10572
        %v10606 = vsel %vm978, %v10605, %v10576
        %v10607 = vsel %vm981, %v10606, %v10580
        %v10608 = vsel %vm984, %v10607, %v10584
        %v10609 = vsel %vm987, %v10608, %v10588
        %v10610 = vsel %vm990, %v10609, %v10592
        %v10611 = vsel %vm993, %v10610, %v10596
        %10612 = vrot.lane.b32.xlu0 %v10216, 127
        %v10613 = vpop.permute.xlu0 %10612
        %10614 = vrot.lane.b32.xlu0 %v10218, 127
        %v10615 = vpop.permute.xlu0 %10614
        %10616 = vrot.lane.b32.xlu0 %v10221, 127
        %v10617 = vpop.permute.xlu0 %10616
        %10618 = vrot.lane.b32.xlu0 %v10223, 127
        %v10619 = vpop.permute.xlu0 %10618
        %10620 = vrot.lane.b32.xlu0 %v10226, 127
        %v10621 = vpop.permute.xlu0 %10620
        %10622 = vrot.lane.b32.xlu0 %v10228, 127
        %v10623 = vpop.permute.xlu0 %10622
        %10624 = vrot.lane.b32.xlu0 %v10231, 127
        %v10625 = vpop.permute.xlu0 %10624
        %10626 = vrot.lane.b32.xlu0 %v10233, 127
        %v10627 = vpop.permute.xlu0 %10626
        %10628 = vrot.lane.b32.xlu0 %v10236, 127
        %v10629 = vpop.permute.xlu0 %10628
        %10630 = vrot.lane.b32.xlu0 %v10238, 127
        %v10631 = vpop.permute.xlu0 %10630
        %10632 = vrot.lane.b32.xlu0 %v10241, 127
        %v10633 = vpop.permute.xlu0 %10632
        %10634 = vrot.lane.b32.xlu0 %v10243, 127
        %v10635 = vpop.permute.xlu0 %10634
        %10636 = vrot.lane.b32.xlu0 %v10246, 127
        %v10637 = vpop.permute.xlu0 %10636
        %10638 = vrot.lane.b32.xlu0 %v10248, 127
        %v10639 = vpop.permute.xlu0 %10638
        %10640 = vrot.lane.b32.xlu0 %v10251, 127
        %v10641 = vpop.permute.xlu0 %10640
        %10642 = vrot.lane.b32.xlu0 %v10253, 127
        %v10643 = vpop.permute.xlu0 %10642
        %v10660 = vcombine.low %v10613, %v10621
        %v10661 = vcombine.high %v10613, %v10621
        %v10663 = vunpack.c.l.s4 1983009808
        %v10664 = vunpack.c.0.s8 %v10663
        %v10665 = vlaneseq
        %v10666 = vshrl.u32 %v10665, 7
        %v10667 = vsub.s32 %v10664, %v10666
        %v10668 = vrot.slane %v10660, %v10667
        %v10670 = vunpack.c.l.s4 1983009808
        %v10671 = vunpack.c.0.s8 %v10670
        %v10672 = vlaneseq
        %v10673 = vshrl.u32 %v10672, 7
        %v10674 = vsub.s32 %v10671, %v10673
        %v10675 = vrot.slane %v10661, %v10674
        %v10676 = vcombine.low %v10617, %v10625
        %v10677 = vcombine.high %v10617, %v10625
        %v10679 = vunpack.c.l.s4 1983009808
        %v10680 = vunpack.c.0.s8 %v10679
        %v10681 = vlaneseq
        %v10682 = vshrl.u32 %v10681, 7
        %v10683 = vsub.s32 %v10680, %v10682
        %v10684 = vrot.slane %v10676, %v10683
        %v10686 = vunpack.c.l.s4 1983009808
        %v10687 = vunpack.c.0.s8 %v10686
        %v10688 = vlaneseq
        %v10689 = vshrl.u32 %v10688, 7
        %v10690 = vsub.s32 %v10687, %v10689
        %v10691 = vrot.slane %v10677, %v10690
        %v10692 = vcombine.low %v10629, %v10637
        %v10693 = vcombine.high %v10629, %v10637
        %v10695 = vunpack.c.l.s4 1983009808
        %v10696 = vunpack.c.0.s8 %v10695
        %v10697 = vlaneseq
        %v10698 = vshrl.u32 %v10697, 7
        %v10699 = vsub.s32 %v10696, %v10698
        %v10700 = vrot.slane %v10692, %v10699
        %v10702 = vunpack.c.l.s4 1983009808
        %v10703 = vunpack.c.0.s8 %v10702
        %v10704 = vlaneseq
        %v10705 = vshrl.u32 %v10704, 7
        %v10706 = vsub.s32 %v10703, %v10705
        %v10707 = vrot.slane %v10693, %v10706
        %v10708 = vcombine.low %v10633, %v10641
        %v10709 = vcombine.high %v10633, %v10641
        %v10711 = vunpack.c.l.s4 1983009808
        %v10712 = vunpack.c.0.s8 %v10711
        %v10713 = vlaneseq
        %v10714 = vshrl.u32 %v10713, 7
        %v10715 = vsub.s32 %v10712, %v10714
        %v10716 = vrot.slane %v10708, %v10715
        %v10718 = vunpack.c.l.s4 1983009808
        %v10719 = vunpack.c.0.s8 %v10718
        %v10720 = vlaneseq
        %v10721 = vshrl.u32 %v10720, 7
        %v10722 = vsub.s32 %v10719, %v10721
        %v10723 = vrot.slane %v10709, %v10722
        %v10724 = vcombine.low %v10668, %v10684
        %v10725 = vcombine.high %v10668, %v10684
        %v10727 = vunpack.c.l.s4 1934713408
        %v10728 = vunpack.c.0.s8 %v10727
        %v10729 = vlaneseq
        %v10730 = vshrl.u32 %v10729, 7
        %v10731 = vsub.s32 %v10728, %v10730
        %v10732 = vrot.slane %v10724, %v10731
        %v10734 = vunpack.c.l.s4 1934713408
        %v10735 = vunpack.c.0.s8 %v10734
        %v10736 = vlaneseq
        %v10737 = vshrl.u32 %v10736, 7
        %v10738 = vsub.s32 %v10735, %v10737
        %v10739 = vrot.slane %v10725, %v10738
        %v10740 = vcombine.low %v10675, %v10691
        %v10741 = vcombine.high %v10675, %v10691
        %v10743 = vunpack.c.l.s4 1934713408
        %v10744 = vunpack.c.0.s8 %v10743
        %v10745 = vlaneseq
        %v10746 = vshrl.u32 %v10745, 7
        %v10747 = vsub.s32 %v10744, %v10746
        %v10748 = vrot.slane %v10740, %v10747
        %v10750 = vunpack.c.l.s4 1934713408
        %v10751 = vunpack.c.0.s8 %v10750
        %v10752 = vlaneseq
        %v10753 = vshrl.u32 %v10752, 7
        %v10754 = vsub.s32 %v10751, %v10753
        %v10755 = vrot.slane %v10741, %v10754
        %v10756 = vcombine.low %v10700, %v10716
        %v10757 = vcombine.high %v10700, %v10716
        %v10759 = vunpack.c.l.s4 1934713408
        %v10760 = vunpack.c.0.s8 %v10759
        %v10761 = vlaneseq
        %v10762 = vshrl.u32 %v10761, 7
        %v10763 = vsub.s32 %v10760, %v10762
        %v10764 = vrot.slane %v10756, %v10763
        %v10766 = vunpack.c.l.s4 1934713408
        %v10767 = vunpack.c.0.s8 %v10766
        %v10768 = vlaneseq
        %v10769 = vshrl.u32 %v10768, 7
        %v10770 = vsub.s32 %v10767, %v10769
        %v10771 = vrot.slane %v10757, %v10770
        %v10772 = vcombine.low %v10707, %v10723
        %v10773 = vcombine.high %v10707, %v10723
        %v10775 = vunpack.c.l.s4 1934713408
        %v10776 = vunpack.c.0.s8 %v10775
        %v10777 = vlaneseq
        %v10778 = vshrl.u32 %v10777, 7
        %v10779 = vsub.s32 %v10776, %v10778
        %v10780 = vrot.slane %v10772, %v10779
        %v10782 = vunpack.c.l.s4 1934713408
        %v10783 = vunpack.c.0.s8 %v10782
        %v10784 = vlaneseq
        %v10785 = vshrl.u32 %v10784, 7
        %v10786 = vsub.s32 %v10783, %v10785
        %v10787 = vrot.slane %v10773, %v10786
        %v10788 = vcombine.low %v10732, %v10764
        %v10789 = vcombine.high %v10732, %v10764
        %v10790 = vcombine.low %v10739, %v10771
        %v10791 = vcombine.high %v10739, %v10771
        %v10792 = vcombine.low %v10748, %v10780
        %v10793 = vcombine.high %v10748, %v10780
        %v10794 = vcombine.low %v10755, %v10787
        %v10795 = vcombine.high %v10755, %v10787
        %v10796 = vcombine.low %v10615, %v10623
        %v10797 = vcombine.high %v10615, %v10623
        %v10799 = vunpack.c.l.s4 1983009808
        %v10800 = vunpack.c.0.s8 %v10799
        %v10801 = vlaneseq
        %v10802 = vshrl.u32 %v10801, 7
        %v10803 = vsub.s32 %v10800, %v10802
        %v10804 = vrot.slane %v10796, %v10803
        %v10806 = vunpack.c.l.s4 1983009808
        %v10807 = vunpack.c.0.s8 %v10806
        %v10808 = vlaneseq
        %v10809 = vshrl.u32 %v10808, 7
        %v10810 = vsub.s32 %v10807, %v10809
        %v10811 = vrot.slane %v10797, %v10810
        %v10812 = vcombine.low %v10619, %v10627
        %v10813 = vcombine.high %v10619, %v10627
        %v10815 = vunpack.c.l.s4 1983009808
        %v10816 = vunpack.c.0.s8 %v10815
        %v10817 = vlaneseq
        %v10818 = vshrl.u32 %v10817, 7
        %v10819 = vsub.s32 %v10816, %v10818
        %v10820 = vrot.slane %v10812, %v10819
        %v10822 = vunpack.c.l.s4 1983009808
        %v10823 = vunpack.c.0.s8 %v10822
        %v10824 = vlaneseq
        %v10825 = vshrl.u32 %v10824, 7
        %v10826 = vsub.s32 %v10823, %v10825
        %v10827 = vrot.slane %v10813, %v10826
        %v10828 = vcombine.low %v10631, %v10639
        %v10829 = vcombine.high %v10631, %v10639
        %v10831 = vunpack.c.l.s4 1983009808
        %v10832 = vunpack.c.0.s8 %v10831
        %v10833 = vlaneseq
        %v10834 = vshrl.u32 %v10833, 7
        %v10835 = vsub.s32 %v10832, %v10834
        %v10836 = vrot.slane %v10828, %v10835
        %v10838 = vunpack.c.l.s4 1983009808
        %v10839 = vunpack.c.0.s8 %v10838
        %v10840 = vlaneseq
        %v10841 = vshrl.u32 %v10840, 7
        %v10842 = vsub.s32 %v10839, %v10841
        %v10843 = vrot.slane %v10829, %v10842
        %v10844 = vcombine.low %v10635, %v10643
        %v10845 = vcombine.high %v10635, %v10643
        %v10847 = vunpack.c.l.s4 1983009808
        %v10848 = vunpack.c.0.s8 %v10847
        %v10849 = vlaneseq
        %v10850 = vshrl.u32 %v10849, 7
        %v10851 = vsub.s32 %v10848, %v10850
        %v10852 = vrot.slane %v10844, %v10851
        %v10854 = vunpack.c.l.s4 1983009808
        %v10855 = vunpack.c.0.s8 %v10854
        %v10856 = vlaneseq
        %v10857 = vshrl.u32 %v10856, 7
        %v10858 = vsub.s32 %v10855, %v10857
        %v10859 = vrot.slane %v10845, %v10858
        %v10860 = vcombine.low %v10804, %v10820
        %v10861 = vcombine.high %v10804, %v10820
        %v10863 = vunpack.c.l.s4 1934713408
        %v10864 = vunpack.c.0.s8 %v10863
        %v10865 = vlaneseq
        %v10866 = vshrl.u32 %v10865, 7
        %v10867 = vsub.s32 %v10864, %v10866
        %v10868 = vrot.slane %v10860, %v10867
        %v10870 = vunpack.c.l.s4 1934713408
        %v10871 = vunpack.c.0.s8 %v10870
        %v10872 = vlaneseq
        %v10873 = vshrl.u32 %v10872, 7
        %v10874 = vsub.s32 %v10871, %v10873
        %v10875 = vrot.slane %v10861, %v10874
        %v10876 = vcombine.low %v10811, %v10827
        %v10877 = vcombine.high %v10811, %v10827
        %v10879 = vunpack.c.l.s4 1934713408
        %v10880 = vunpack.c.0.s8 %v10879
        %v10881 = vlaneseq
        %v10882 = vshrl.u32 %v10881, 7
        %v10883 = vsub.s32 %v10880, %v10882
        %v10884 = vrot.slane %v10876, %v10883
        %v10886 = vunpack.c.l.s4 1934713408
        %v10887 = vunpack.c.0.s8 %v10886
        %v10888 = vlaneseq
        %v10889 = vshrl.u32 %v10888, 7
        %v10890 = vsub.s32 %v10887, %v10889
        %v10891 = vrot.slane %v10877, %v10890
        %v10892 = vcombine.low %v10836, %v10852
        %v10893 = vcombine.high %v10836, %v10852
        %v10895 = vunpack.c.l.s4 1934713408
        %v10896 = vunpack.c.0.s8 %v10895
        %v10897 = vlaneseq
        %v10898 = vshrl.u32 %v10897, 7
        %v10899 = vsub.s32 %v10896, %v10898
        %v10900 = vrot.slane %v10892, %v10899
        %v10902 = vunpack.c.l.s4 1934713408
        %v10903 = vunpack.c.0.s8 %v10902
        %v10904 = vlaneseq
        %v10905 = vshrl.u32 %v10904, 7
        %v10906 = vsub.s32 %v10903, %v10905
        %v10907 = vrot.slane %v10893, %v10906
        %v10908 = vcombine.low %v10843, %v10859
        %v10909 = vcombine.high %v10843, %v10859
        %v10911 = vunpack.c.l.s4 1934713408
        %v10912 = vunpack.c.0.s8 %v10911
        %v10913 = vlaneseq
        %v10914 = vshrl.u32 %v10913, 7
        %v10915 = vsub.s32 %v10912, %v10914
        %v10916 = vrot.slane %v10908, %v10915
        %v10918 = vunpack.c.l.s4 1934713408
        %v10919 = vunpack.c.0.s8 %v10918
        %v10920 = vlaneseq
        %v10921 = vshrl.u32 %v10920, 7
        %v10922 = vsub.s32 %v10919, %v10921
        %v10923 = vrot.slane %v10909, %v10922
        %v10924 = vcombine.low %v10868, %v10900
        %v10925 = vcombine.high %v10868, %v10900
        %v10926 = vcombine.low %v10875, %v10907
        %v10927 = vcombine.high %v10875, %v10907
        %v10928 = vcombine.low %v10884, %v10916
        %v10929 = vcombine.high %v10884, %v10916
        %v10930 = vcombine.low %v10891, %v10923
        %v10931 = vcombine.high %v10891, %v10923
        %10933 = vrot.lane.b32.xlu0 %v10789, 16
        %v10934 = vpop.permute.xlu0 %10933
        %10937 = vrot.lane.b32.xlu0 %v10790, 32
        %v10938 = vpop.permute.xlu0 %10937
        %10941 = vrot.lane.b32.xlu0 %v10791, 48
        %v10942 = vpop.permute.xlu0 %10941
        %10945 = vrot.lane.b32.xlu0 %v10792, 64
        %v10946 = vpop.permute.xlu0 %10945
        %10949 = vrot.lane.b32.xlu0 %v10793, 80
        %v10950 = vpop.permute.xlu0 %10949
        %10953 = vrot.lane.b32.xlu0 %v10794, 96
        %v10954 = vpop.permute.xlu0 %10953
        %10957 = vrot.lane.b32.xlu0 %v10795, 112
        %v10958 = vpop.permute.xlu0 %10957
        %10961 = vrot.lane.b32.xlu0 %v10925, 16
        %v10962 = vpop.permute.xlu0 %10961
        %10965 = vrot.lane.b32.xlu0 %v10926, 32
        %v10966 = vpop.permute.xlu0 %10965
        %10969 = vrot.lane.b32.xlu0 %v10927, 48
        %v10970 = vpop.permute.xlu0 %10969
        %10973 = vrot.lane.b32.xlu0 %v10928, 64
        %v10974 = vpop.permute.xlu0 %10973
        %10977 = vrot.lane.b32.xlu0 %v10929, 80
        %v10978 = vpop.permute.xlu0 %10977
        %10981 = vrot.lane.b32.xlu0 %v10930, 96
        %v10982 = vpop.permute.xlu0 %10981
        %10985 = vrot.lane.b32.xlu0 %v10931, 112
        %v10986 = vpop.permute.xlu0 %10985
        %v10988 = vsel %vm975, %v10788, %v10934
        %v10989 = vsel %vm978, %v10988, %v10938
        %v10990 = vsel %vm981, %v10989, %v10942
        %v10991 = vsel %vm984, %v10990, %v10946
        %v10992 = vsel %vm987, %v10991, %v10950
        %v10993 = vsel %vm990, %v10992, %v10954
        %v10994 = vsel %vm993, %v10993, %v10958
        %v10995 = vsel %vm975, %v10924, %v10962
        %v10996 = vsel %vm978, %v10995, %v10966
        %v10997 = vsel %vm981, %v10996, %v10970
        %v10998 = vsel %vm984, %v10997, %v10974
        %v10999 = vsel %vm987, %v10998, %v10978
        %v11000 = vsel %vm990, %v10999, %v10982
        %v11001 = vsel %vm993, %v11000, %v10986
        %11002 = vrot.lane.b32.xlu0 %v10216, 126
        %v11003 = vpop.permute.xlu0 %11002
        %11004 = vrot.lane.b32.xlu0 %v10218, 126
        %v11005 = vpop.permute.xlu0 %11004
        %11006 = vrot.lane.b32.xlu0 %v10221, 126
        %v11007 = vpop.permute.xlu0 %11006
        %11008 = vrot.lane.b32.xlu0 %v10223, 126
        %v11009 = vpop.permute.xlu0 %11008
        %11010 = vrot.lane.b32.xlu0 %v10226, 126
        %v11011 = vpop.permute.xlu0 %11010
        %11012 = vrot.lane.b32.xlu0 %v10228, 126
        %v11013 = vpop.permute.xlu0 %11012
        %11014 = vrot.lane.b32.xlu0 %v10231, 126
        %v11015 = vpop.permute.xlu0 %11014
        %11016 = vrot.lane.b32.xlu0 %v10233, 126
        %v11017 = vpop.permute.xlu0 %11016
        %11018 = vrot.lane.b32.xlu0 %v10236, 126
        %v11019 = vpop.permute.xlu0 %11018
        %11020 = vrot.lane.b32.xlu0 %v10238, 126
        %v11021 = vpop.permute.xlu0 %11020
        %11022 = vrot.lane.b32.xlu0 %v10241, 126
        %v11023 = vpop.permute.xlu0 %11022
        %11024 = vrot.lane.b32.xlu0 %v10243, 126
        %v11025 = vpop.permute.xlu0 %11024
        %11026 = vrot.lane.b32.xlu0 %v10246, 126
        %v11027 = vpop.permute.xlu0 %11026
        %11028 = vrot.lane.b32.xlu0 %v10248, 126
        %v11029 = vpop.permute.xlu0 %11028
        %11030 = vrot.lane.b32.xlu0 %v10251, 126
        %v11031 = vpop.permute.xlu0 %11030
        %11032 = vrot.lane.b32.xlu0 %v10253, 126
        %v11033 = vpop.permute.xlu0 %11032
        %v11050 = vcombine.low %v11003, %v11011
        %v11051 = vcombine.high %v11003, %v11011
        %v11053 = vunpack.c.l.s4 1983009808
        %v11054 = vunpack.c.0.s8 %v11053
        %v11055 = vlaneseq
        %v11056 = vshrl.u32 %v11055, 7
        %v11057 = vsub.s32 %v11054, %v11056
        %v11058 = vrot.slane %v11050, %v11057
        %v11060 = vunpack.c.l.s4 1983009808
        %v11061 = vunpack.c.0.s8 %v11060
        %v11062 = vlaneseq
        %v11063 = vshrl.u32 %v11062, 7
        %v11064 = vsub.s32 %v11061, %v11063
        %v11065 = vrot.slane %v11051, %v11064
        %v11066 = vcombine.low %v11007, %v11015
        %v11067 = vcombine.high %v11007, %v11015
        %v11069 = vunpack.c.l.s4 1983009808
        %v11070 = vunpack.c.0.s8 %v11069
        %v11071 = vlaneseq
        %v11072 = vshrl.u32 %v11071, 7
        %v11073 = vsub.s32 %v11070, %v11072
        %v11074 = vrot.slane %v11066, %v11073
        %v11076 = vunpack.c.l.s4 1983009808
        %v11077 = vunpack.c.0.s8 %v11076
        %v11078 = vlaneseq
        %v11079 = vshrl.u32 %v11078, 7
        %v11080 = vsub.s32 %v11077, %v11079
        %v11081 = vrot.slane %v11067, %v11080
        %v11082 = vcombine.low %v11019, %v11027
        %v11083 = vcombine.high %v11019, %v11027
        %v11085 = vunpack.c.l.s4 1983009808
        %v11086 = vunpack.c.0.s8 %v11085
        %v11087 = vlaneseq
        %v11088 = vshrl.u32 %v11087, 7
        %v11089 = vsub.s32 %v11086, %v11088
        %v11090 = vrot.slane %v11082, %v11089
        %v11092 = vunpack.c.l.s4 1983009808
        %v11093 = vunpack.c.0.s8 %v11092
        %v11094 = vlaneseq
        %v11095 = vshrl.u32 %v11094, 7
        %v11096 = vsub.s32 %v11093, %v11095
        %v11097 = vrot.slane %v11083, %v11096
        %v11098 = vcombine.low %v11023, %v11031
        %v11099 = vcombine.high %v11023, %v11031
        %v11101 = vunpack.c.l.s4 1983009808
        %v11102 = vunpack.c.0.s8 %v11101
        %v11103 = vlaneseq
        %v11104 = vshrl.u32 %v11103, 7
        %v11105 = vsub.s32 %v11102, %v11104
        %v11106 = vrot.slane %v11098, %v11105
        %v11108 = vunpack.c.l.s4 1983009808
        %v11109 = vunpack.c.0.s8 %v11108
        %v11110 = vlaneseq
        %v11111 = vshrl.u32 %v11110, 7
        %v11112 = vsub.s32 %v11109, %v11111
        %v11113 = vrot.slane %v11099, %v11112
        %v11114 = vcombine.low %v11058, %v11074
        %v11115 = vcombine.high %v11058, %v11074
        %v11117 = vunpack.c.l.s4 1934713408
        %v11118 = vunpack.c.0.s8 %v11117
        %v11119 = vlaneseq
        %v11120 = vshrl.u32 %v11119, 7
        %v11121 = vsub.s32 %v11118, %v11120
        %v11122 = vrot.slane %v11114, %v11121
        %v11124 = vunpack.c.l.s4 1934713408
        %v11125 = vunpack.c.0.s8 %v11124
        %v11126 = vlaneseq
        %v11127 = vshrl.u32 %v11126, 7
        %v11128 = vsub.s32 %v11125, %v11127
        %v11129 = vrot.slane %v11115, %v11128
        %v11130 = vcombine.low %v11065, %v11081
        %v11131 = vcombine.high %v11065, %v11081
        %v11133 = vunpack.c.l.s4 1934713408
        %v11134 = vunpack.c.0.s8 %v11133
        %v11135 = vlaneseq
        %v11136 = vshrl.u32 %v11135, 7
        %v11137 = vsub.s32 %v11134, %v11136
        %v11138 = vrot.slane %v11130, %v11137
        %v11140 = vunpack.c.l.s4 1934713408
        %v11141 = vunpack.c.0.s8 %v11140
        %v11142 = vlaneseq
        %v11143 = vshrl.u32 %v11142, 7
        %v11144 = vsub.s32 %v11141, %v11143
        %v11145 = vrot.slane %v11131, %v11144
        %v11146 = vcombine.low %v11090, %v11106
        %v11147 = vcombine.high %v11090, %v11106
        %v11149 = vunpack.c.l.s4 1934713408
        %v11150 = vunpack.c.0.s8 %v11149
        %v11151 = vlaneseq
        %v11152 = vshrl.u32 %v11151, 7
        %v11153 = vsub.s32 %v11150, %v11152
        %v11154 = vrot.slane %v11146, %v11153
        %v11156 = vunpack.c.l.s4 1934713408
        %v11157 = vunpack.c.0.s8 %v11156
        %v11158 = vlaneseq
        %v11159 = vshrl.u32 %v11158, 7
        %v11160 = vsub.s32 %v11157, %v11159
        %v11161 = vrot.slane %v11147, %v11160
        %v11162 = vcombine.low %v11097, %v11113
        %v11163 = vcombine.high %v11097, %v11113
        %v11165 = vunpack.c.l.s4 1934713408
        %v11166 = vunpack.c.0.s8 %v11165
        %v11167 = vlaneseq
        %v11168 = vshrl.u32 %v11167, 7
        %v11169 = vsub.s32 %v11166, %v11168
        %v11170 = vrot.slane %v11162, %v11169
        %v11172 = vunpack.c.l.s4 1934713408
        %v11173 = vunpack.c.0.s8 %v11172
        %v11174 = vlaneseq
        %v11175 = vshrl.u32 %v11174, 7
        %v11176 = vsub.s32 %v11173, %v11175
        %v11177 = vrot.slane %v11163, %v11176
        %v11178 = vcombine.low %v11122, %v11154
        %v11179 = vcombine.high %v11122, %v11154
        %v11180 = vcombine.low %v11129, %v11161
        %v11181 = vcombine.high %v11129, %v11161
        %v11182 = vcombine.low %v11138, %v11170
        %v11183 = vcombine.high %v11138, %v11170
        %v11184 = vcombine.low %v11145, %v11177
        %v11185 = vcombine.high %v11145, %v11177
        %v11186 = vcombine.low %v11005, %v11013
        %v11187 = vcombine.high %v11005, %v11013
        %v11189 = vunpack.c.l.s4 1983009808
        %v11190 = vunpack.c.0.s8 %v11189
        %v11191 = vlaneseq
        %v11192 = vshrl.u32 %v11191, 7
        %v11193 = vsub.s32 %v11190, %v11192
        %v11194 = vrot.slane %v11186, %v11193
        %v11196 = vunpack.c.l.s4 1983009808
        %v11197 = vunpack.c.0.s8 %v11196
        %v11198 = vlaneseq
        %v11199 = vshrl.u32 %v11198, 7
        %v11200 = vsub.s32 %v11197, %v11199
        %v11201 = vrot.slane %v11187, %v11200
        %v11202 = vcombine.low %v11009, %v11017
        %v11203 = vcombine.high %v11009, %v11017
        %v11205 = vunpack.c.l.s4 1983009808
        %v11206 = vunpack.c.0.s8 %v11205
        %v11207 = vlaneseq
        %v11208 = vshrl.u32 %v11207, 7
        %v11209 = vsub.s32 %v11206, %v11208
        %v11210 = vrot.slane %v11202, %v11209
        %v11212 = vunpack.c.l.s4 1983009808
        %v11213 = vunpack.c.0.s8 %v11212
        %v11214 = vlaneseq
        %v11215 = vshrl.u32 %v11214, 7
        %v11216 = vsub.s32 %v11213, %v11215
        %v11217 = vrot.slane %v11203, %v11216
        %v11218 = vcombine.low %v11021, %v11029
        %v11219 = vcombine.high %v11021, %v11029
        %v11221 = vunpack.c.l.s4 1983009808
        %v11222 = vunpack.c.0.s8 %v11221
        %v11223 = vlaneseq
        %v11224 = vshrl.u32 %v11223, 7
        %v11225 = vsub.s32 %v11222, %v11224
        %v11226 = vrot.slane %v11218, %v11225
        %v11228 = vunpack.c.l.s4 1983009808
        %v11229 = vunpack.c.0.s8 %v11228
        %v11230 = vlaneseq
        %v11231 = vshrl.u32 %v11230, 7
        %v11232 = vsub.s32 %v11229, %v11231
        %v11233 = vrot.slane %v11219, %v11232
        %v11234 = vcombine.low %v11025, %v11033
        %v11235 = vcombine.high %v11025, %v11033
        %v11237 = vunpack.c.l.s4 1983009808
        %v11238 = vunpack.c.0.s8 %v11237
        %v11239 = vlaneseq
        %v11240 = vshrl.u32 %v11239, 7
        %v11241 = vsub.s32 %v11238, %v11240
        %v11242 = vrot.slane %v11234, %v11241
        %v11244 = vunpack.c.l.s4 1983009808
        %v11245 = vunpack.c.0.s8 %v11244
        %v11246 = vlaneseq
        %v11247 = vshrl.u32 %v11246, 7
        %v11248 = vsub.s32 %v11245, %v11247
        %v11249 = vrot.slane %v11235, %v11248
        %v11250 = vcombine.low %v11194, %v11210
        %v11251 = vcombine.high %v11194, %v11210
        %v11253 = vunpack.c.l.s4 1934713408
        %v11254 = vunpack.c.0.s8 %v11253
        %v11255 = vlaneseq
        %v11256 = vshrl.u32 %v11255, 7
        %v11257 = vsub.s32 %v11254, %v11256
        %v11258 = vrot.slane %v11250, %v11257
        %v11260 = vunpack.c.l.s4 1934713408
        %v11261 = vunpack.c.0.s8 %v11260
        %v11262 = vlaneseq
        %v11263 = vshrl.u32 %v11262, 7
        %v11264 = vsub.s32 %v11261, %v11263
        %v11265 = vrot.slane %v11251, %v11264
        %v11266 = vcombine.low %v11201, %v11217
        %v11267 = vcombine.high %v11201, %v11217
        %v11269 = vunpack.c.l.s4 1934713408
        %v11270 = vunpack.c.0.s8 %v11269
        %v11271 = vlaneseq
        %v11272 = vshrl.u32 %v11271, 7
        %v11273 = vsub.s32 %v11270, %v11272
        %v11274 = vrot.slane %v11266, %v11273
        %v11276 = vunpack.c.l.s4 1934713408
        %v11277 = vunpack.c.0.s8 %v11276
        %v11278 = vlaneseq
        %v11279 = vshrl.u32 %v11278, 7
        %v11280 = vsub.s32 %v11277, %v11279
        %v11281 = vrot.slane %v11267, %v11280
        %v11282 = vcombine.low %v11226, %v11242
        %v11283 = vcombine.high %v11226, %v11242
        %v11285 = vunpack.c.l.s4 1934713408
        %v11286 = vunpack.c.0.s8 %v11285
        %v11287 = vlaneseq
        %v11288 = vshrl.u32 %v11287, 7
        %v11289 = vsub.s32 %v11286, %v11288
        %v11290 = vrot.slane %v11282, %v11289
        %v11292 = vunpack.c.l.s4 1934713408
        %v11293 = vunpack.c.0.s8 %v11292
        %v11294 = vlaneseq
        %v11295 = vshrl.u32 %v11294, 7
        %v11296 = vsub.s32 %v11293, %v11295
        %v11297 = vrot.slane %v11283, %v11296
        %v11298 = vcombine.low %v11233, %v11249
        %v11299 = vcombine.high %v11233, %v11249
        %v11301 = vunpack.c.l.s4 1934713408
        %v11302 = vunpack.c.0.s8 %v11301
        %v11303 = vlaneseq
        %v11304 = vshrl.u32 %v11303, 7
        %v11305 = vsub.s32 %v11302, %v11304
        %v11306 = vrot.slane %v11298, %v11305
        %v11308 = vunpack.c.l.s4 1934713408
        %v11309 = vunpack.c.0.s8 %v11308
        %v11310 = vlaneseq
        %v11311 = vshrl.u32 %v11310, 7
        %v11312 = vsub.s32 %v11309, %v11311
        %v11313 = vrot.slane %v11299, %v11312
        %v11314 = vcombine.low %v11258, %v11290
        %v11315 = vcombine.high %v11258, %v11290
        %v11316 = vcombine.low %v11265, %v11297
        %v11317 = vcombine.high %v11265, %v11297
        %v11318 = vcombine.low %v11274, %v11306
        %v11319 = vcombine.high %v11274, %v11306
        %v11320 = vcombine.low %v11281, %v11313
        %v11321 = vcombine.high %v11281, %v11313
        %11323 = vrot.lane.b32.xlu0 %v11179, 16
        %v11324 = vpop.permute.xlu0 %11323
        %11327 = vrot.lane.b32.xlu0 %v11180, 32
        %v11328 = vpop.permute.xlu0 %11327
        %11331 = vrot.lane.b32.xlu0 %v11181, 48
        %v11332 = vpop.permute.xlu0 %11331
        %11335 = vrot.lane.b32.xlu0 %v11182, 64
        %v11336 = vpop.permute.xlu0 %11335
        %11339 = vrot.lane.b32.xlu0 %v11183, 80
        %v11340 = vpop.permute.xlu0 %11339
        %11343 = vrot.lane.b32.xlu0 %v11184, 96
        %v11344 = vpop.permute.xlu0 %11343
        %11347 = vrot.lane.b32.xlu0 %v11185, 112
        %v11348 = vpop.permute.xlu0 %11347
        %11351 = vrot.lane.b32.xlu0 %v11315, 16
        %v11352 = vpop.permute.xlu0 %11351
        %11355 = vrot.lane.b32.xlu0 %v11316, 32
        %v11356 = vpop.permute.xlu0 %11355
        %11359 = vrot.lane.b32.xlu0 %v11317, 48
        %v11360 = vpop.permute.xlu0 %11359
        %11363 = vrot.lane.b32.xlu0 %v11318, 64
        %v11364 = vpop.permute.xlu0 %11363
        %11367 = vrot.lane.b32.xlu0 %v11319, 80
        %v11368 = vpop.permute.xlu0 %11367
        %11371 = vrot.lane.b32.xlu0 %v11320, 96
        %v11372 = vpop.permute.xlu0 %11371
        %11375 = vrot.lane.b32.xlu0 %v11321, 112
        %v11376 = vpop.permute.xlu0 %11375
        %v11378 = vsel %vm975, %v11178, %v11324
        %v11379 = vsel %vm978, %v11378, %v11328
        %v11380 = vsel %vm981, %v11379, %v11332
        %v11381 = vsel %vm984, %v11380, %v11336
        %v11382 = vsel %vm987, %v11381, %v11340
        %v11383 = vsel %vm990, %v11382, %v11344
        %v11384 = vsel %vm993, %v11383, %v11348
        %v11385 = vsel %vm975, %v11314, %v11352
        %v11386 = vsel %vm978, %v11385, %v11356
        %v11387 = vsel %vm981, %v11386, %v11360
        %v11388 = vsel %vm984, %v11387, %v11364
        %v11389 = vsel %vm987, %v11388, %v11368
        %v11390 = vsel %vm990, %v11389, %v11372
        %v11391 = vsel %vm993, %v11390, %v11376
        %v11392 = vpack.c.bf16 %v8630, %v8232
        %v11393 = vpack.c.bf16 %v8637, %v8239
        %v11394 = vpack.c.bf16 %v9426, %v9020
        %v11395 = vpack.c.bf16 %v9433, %v9027
        %v11396 = vpack.c.bf16 %v10206, %v9816
        %v11397 = vpack.c.bf16 %v10213, %v9823
        %v11398 = vpack.c.bf16 %v10994, %v10604
        %v11399 = vpack.c.bf16 %v11001, %v10611
        %v11400 = vpack.c.bf16 %v11384, %v11384
        %v11401 = vpack.c.bf16 %v11391, %v11391
        %v11402 = vld [vmem:[%s2] sm:$0x3]
        %vm11403 = vcmask 588800
        %v11405 = vsel %vm11403, %v11402, 0
        %vm11407 = vcmask 1043456
        %v11409 = vsel %vm11407, %v11400, 0
        %v11412 = vsel %vm11407, %v11401, 0
        %11414 = vmatprep.subr.bf16.mxu0 0
        %11415 = vmatpush1.bf16.msra.mxu0 0
        %11416 = vmatprep.subr.bf16.mxu0 0
        %11417 = vmatpush1.bf16.msra.mxu0 0
        %11418 = vmatprep.subr.bf16.mxu0 0
        %11419 = vmatpush1.bf16.msra.mxu0 0
        %11420 = vmatprep.subr.bf16.mxu0 %v11412
        %11421 = vmatpush1.bf16.msra.mxu0 %v11409
        %11422 = vmatprep.subr.bf16.mxu0 %v11399
        %11423 = vmatpush1.bf16.msra.mxu0 %v11398
        %11424 = vmatprep.subr.bf16.mxu0 %v11397
        %11425 = vmatpush1.bf16.msra.mxu0 %v11396
        %11426 = vmatprep.subr.bf16.mxu0 %v11395
        %11427 = vmatpush1.bf16.msra.mxu0 %v11394
        %11428 = vmatprep.subr.bf16.mxu0 %v11393
        %11429 = vmatpush1.bf16.msra.mxu0 %v11392
        %11430 = vmatprep.subr.bf16.mxu0 0
        %11431 = vmatpush2.bf16.msra.mxu0 0
        %11432 = vmatprep.subr.bf16.mxu0 0
        %11433 = vmatpush2.bf16.msra.mxu0 0
        %11434 = vmatprep.subr.bf16.mxu0 0
        %11435 = vmatpush2.bf16.msra.mxu0 0
        %11436 = vmatprep.subr.bf16.mxu0 0
        %11437 = vmatpush2.bf16.msra.mxu0 0
        %11438 = vmatprep.subr.bf16.mxu0 0
        %11439 = vmatpush2.bf16.msra.mxu0 0
        %11440 = vmatprep.subr.bf16.mxu0 0
        %11441 = vmatpush2.bf16.msra.mxu0 0
        %11442 = vmatprep.subr.bf16.mxu0 0
        %11443 = vmatpush2.bf16.msra.mxu0 0
        %11444 = vmatprep.subr.bf16.mxu0 0
        %11445 = vmatpush2.bf16.msra.mxu0 0
        %11446 = vmatprep.mubr.bf16.mxu0 0
        %11447 = vmatmul.mubr.bf16.gmra.mxu0 %v11405
        %v11448 = vpop.f32.mrf.mxu0
        %v11449 = vadd.f32 0.0, %v11448
        %v11450 = vpop.f32.mrf.mxu0
        %v11451 = vadd.f32 0.0, %v11450
        %v11452 = vpop.f32.mrf.mxu0
        %v11453 = vpop.f32.mrf.mxu0
        %11454 = vdwg.mxu0
        %v11455 = vmax.f32 %v11449, 0.0
        %v11456 = vmax.f32 %v11451, 0.0
        %v11457 = vld [vmem:[%s3] sm:$0xf]
        %11459 = vset.pattern.permute.xlu0 0
        %11460 = vperm.xlu0 %11459, %v11457
        %v11461 = vpop.permute.xlu0 %11460
        %v11463 = vmul.f32 %v11455, %v11461
        %v11464 = vmul.f32 %v11456, %v11461
        %v11465 = vsel %vm11407, %v11463, 0.0
        %v11466 = vrot.slane %v11465, 4
        %v11467 = vadd.f32 %v11465, %v11466
        %v11468 = vrot.slane %v11467, 2
        %v11469 = vadd.f32 %v11467, %v11468
        %v11470 = vrot.slane %v11469, 1
        %v11471 = vadd.f32 %v11469, %v11470
        %v11472 = vsel %vm11407, %v11464, 0.0
        %v11473 = vrot.slane %v11472, 4
        %v11474 = vadd.f32 %v11472, %v11473
        %v11475 = vrot.slane %v11474, 2
        %v11476 = vadd.f32 %v11474, %v11475
        %v11477 = vrot.slane %v11476, 1
        %v11478 = vadd.f32 %v11476, %v11477
        %v11481 = vcombine.low %v11471, %v11478
        %v11483 = vunpack.c.l.s4 1966171168
        %v11484 = vunpack.c.0.s8 %v11483
        %v11485 = vlaneseq
        %v11486 = vshrl.u32 %v11485, 7
        %v11487 = vsub.s32 %v11484, %v11486
        %v11488 = vrot.slane %v11481, %v11487
        %v11490 = vunpack.c.l.s4 1966171168
        %v11491 = vunpack.c.0.s8 %v11490
        %v11492 = vlaneseq
        %v11493 = vshrl.u32 %v11492, 7
        %v11494 = vsub.s32 %v11491, %v11493
        %v11495 = vrot.slane %v11488, %v11494
        %v11497 = vlaneseq
        %vm11498 = vcmp.ge.s32.totalorder %v11497, 0
        %vm11499 = vcmp.lt.s32.totalorder %v11497, 256
        %vm11500 = vmand %vm11498, %vm11499
        %11501 = vst.msk [vmem:[%s214] sm:$0x3] %vm11500, %v11495
        %v11502 = vmax.f32 %v11471, 0.0
        %v11503 = vmax.f32 %v11478, 0.0
        %v11504 = vmul.f32 %v11471, 0.0
        %v11505 = vmul.f32 %v11478, 0.0
        %v11506 = vsub.f32 %v11502, %v11504
        %v11507 = vsub.f32 %v11503, %v11505
        %v11508 = vand.u32 2147483647, %v11471
        %v11509 = vand.u32 2147483647, %v11478
        %v11510 = vsub.f32 0.0, %v11508
        %v11511 = vsub.f32 0.0, %v11509
        %v11512 = vmul.f32 %v11510, 1.442695
        %v11513 = vpow.pop %v11512
        %v11514 = vmul.f32 %v11511, 1.442695
        %v11515 = vpow.pop %v11514
        %v11516 = vadd.f32 %v11513, 1.0
        %v11517 = vadd.f32 %v11515, 1.0
        %v11518 = vlog2.pop %v11516
        %v11519 = vmul.f32 %v11518, 0.6931472
        %v11520 = vlog2.pop %v11517
        %v11521 = vmul.f32 %v11520, 0.6931472
        %v11522 = vadd.f32 %v11506, %v11519
        %v11523 = vadd.f32 %v11507, %v11521
        %v11524 = vadd.f32 %v11522, %v11523
        %11525 = vadd.xlane.f32.xlu0 %v11524
        %v11526 = vpop.xlane.xlu0 %11525
        %p11527 = scmp.eq.s32.totalorder %s21, 0
        // Predicated region
        $region37: #{tpu_custom_call.1} parent=35 // pred_check
          %p11528 = pneg %p11527
        $region38: #{tpu_custom_call.1} parent=35 // pred_check_branch
          %11530 = sbr.rel (%p11528) target = $region40
        $region39: #{tpu_custom_call.1} parent=35 // pred_region
          %vm11531 = vcmask 0
          %11532 = vst.msk [vmem:[#allocation2] sm:$0x1] %vm11531, 0.0
        $region40: #{tpu_custom_call.1} parent=35 // pred_fallthru
          _
        %v11533 = vld [vmem:[#allocation2] sm:$0x1]
        %v11534 = vadd.f32 %v11533, %v11526
        %vm11535 = vcmask 0
        %11536 = vst.msk [vmem:[#allocation2] sm:$0x1] %vm11535, %v11534
        %p11537 = scmp.eq.s32.totalorder %s21, 1
        // Predicated region
        $region41: #{tpu_custom_call.1} parent=35 // pred_check
          %p11538 = pneg %p11537
        $region42: #{tpu_custom_call.1} parent=35 // pred_check_branch
          %11540 = sbr.rel (%p11538) target = $region44
        $region43: #{tpu_custom_call.1} parent=35 // pred_region
          %v11541 = vld [vmem:[#allocation2] sm:$0x1]
          %v11542 = vmul.f32 %v11541, 0.001953125
          %11543 = vst.msk [vmem:[#allocation5] sm:$0x1] %vm11535, %v11542
        $region44: #{tpu_custom_call.1} parent=35 // pred_fallthru
          _
        %s11544 = sand.u32 %s118, 1
        %s11545 = scalar_lea.sflag [#allocation4], %s11544
        %s11546 = sand.u32 %s118, 1
        %s11547 = smul.addr %s11546, 2
        %s11548 = scalar_lea.vmem [#allocation3], %s11547
        // Predicated region
        $region45: #{tpu_custom_call.1} parent=35 // pred_check
          %p11549 = pneg %p128
        $region46: #{tpu_custom_call.1} parent=35 // pred_check_branch
          %11551 = sbr.rel (%p11549) target = $region48
        $region47: #{tpu_custom_call.1} parent=35 // pred_region
          %s11553 = ssub.s32 32, 32
          %11554 = vsyncadd %s11545, %s11553
          %s11555 = smul.addr %s21, 2
          %s11556 = smul.addr %s11555, 16
          %s11557 = scalar_lea.hbm %s4, %s11556
          %s11559 = sshll.u32 %s11548, 4
          %s11560 = int_to_ptr.vmem [resolvable:$true] %s11559
          %11562 = dma.vmem_to_hbm [thread:$0]  %s11560, 32, %s11557, %s11545
        $region48: #{tpu_custom_call.1} parent=35 // pred_fallthru
          _
        // Predicated region
        $region49: #{tpu_custom_call.1} parent=35 // pred_check
          %p11563 = pneg %p149
        $region50: #{tpu_custom_call.1} parent=35 // pred_check_branch
          %11565 = sbr.rel (%p11563) target = $region52
        $region51: #{tpu_custom_call.1} parent=35 // pred_region
          %s11567 = ssub.s32 16, 16
          %11568 = vsyncadd [#allocation6], %s11567
          %s11570 = sshll.u32 [#allocation5], 4
          %s11571 = int_to_ptr.vmem [resolvable:$true] %s11570
          %11573 = dma.vmem_to_hbm [thread:$0]  %s11571, 16, %s5, [#allocation6]
        $region52: #{tpu_custom_call.1} parent=35 // pred_fallthru
          _
        // Predicated region
        $region53: #{tpu_custom_call.1} parent=35 // pred_check
          %p11574 = pneg %p149
        $region54: #{tpu_custom_call.1} parent=35 // pred_check_branch
          %11576 = sbr.rel (%p11574) target = $region56
        $region55: #{tpu_custom_call.1} parent=35 // pred_region
          %11577 = dma.done [#allocation6], 16
        $region56: #{tpu_custom_call.1} parent=35 // pred_fallthru
          _
      $region36: #{tpu_custom_call.1} parent=5 // pred_fallthru
        _
      %p11578 = scmp.le.s32.totalorder 2, %s16
      // Predicated region
      $region57: #{tpu_custom_call.1} parent=5 // pred_check
        %p11579 = pneg %p11578
      $region58: #{tpu_custom_call.1} parent=5 // pred_check_branch
        %11581 = sbr.rel (%p11579) target = $region60
      $region59: #{tpu_custom_call.1} parent=5 // pred_region
        %s11582 = ssub.s32 %s16, 2
        // Predicated region
        $region61: #{tpu_custom_call.1} parent=59 // pred_check
          %p11583 = pneg %p134
        $region62: #{tpu_custom_call.1} parent=59 // pred_check_branch
          %11585 = sbr.rel (%p11583) target = $region64
        $region63: #{tpu_custom_call.1} parent=59 // pred_region
          %s11586 = sand.u32 %s119, 1
          %s11587 = scalar_lea.sflag [#allocation4], %s11586
          %s11588 = sand.u32 %s119, 1
          %s11589 = smul.addr %s11588, 2
          %s11590 = scalar_lea.vmem [#allocation3], %s11589
          %11591 = dma.done %s11587, 32
        $region64: #{tpu_custom_call.1} parent=59 // pred_fallthru
          _
      $region60: #{tpu_custom_call.1} parent=5 // pred_fallthru
        _
    $region6: #{tpu_custom_call.1} parent=1 // loop_footer
      %s20 = sadd.s32 1, %s16
    $region7: #{tpu_custom_call.1} parent=1 // loop_footer_branch
      %15 = sbr.rel target = $region3
    $region8: #{tpu_custom_call.1} parent=1 // loop_exit
      _
    %11592 = vsyncpa [#allocation4], 1
    %s11593 = scalar_lea.sflag [#allocation4], 1
    %11594 = vsyncpa %s11593, 1
    %11595 = vsyncpa [#allocation6], 1

</llo_original>
